<compile_context>
chip_gen: v5e
topology: v5e:2x2
jax: 0.10.0
libtpu: 0.0.40
codegen_flags: <defaults>
</compile_context>

<pallas_src>
import jax
import jax.numpy as jnp
from jax import lax
from jax.experimental import pallas as pl
from jax.experimental.pallas import tpu as pltpu


# ------------------------------ configuration ------------------------------

VOCAB = 50
PAD_ID = 1          # attention_mask = inputs.ne(1), as in the PyTorch Model
HIDDEN = 32
NUM_HEADS = 4
HEAD_DIM = HIDDEN // NUM_HEADS
FFN = 64
NUM_LAYERS = 2
MAX_SEQ = 64
LN_EPS = 1e-5
NEG_INF = -1e9


# ------------------------------ fused kernel --------------------------------

def _ln(x, g, b):
    mu = jnp.mean(x, axis=-1, keepdims=True)
    var = jnp.mean((x - mu) ** 2, axis=-1, keepdims=True)
    return (x - mu) * lax.rsqrt(var + LN_EPS) * g + b


def _encoder_kernel(ids_ref,                           # (Bt, S) int32 block
                    word_emb, pos_emb, emb_ln,         # embeddings (+ LN params)
                    w_proj, vec_h, w1, b1, w2,         # stacked layer weights
                    out_ref):                          # (Bt, H) CLS output block
    Bt, S = ids_ref.shape
    H, NH, HD = HIDDEN, NUM_HEADS, HEAD_DIM

    ids = ids_ref[...]                                               # (Bt, S)

    # Additive key-mask bias: 0 where token != PAD, -1e9 at pads.
    bias = jnp.where(ids != PAD_ID, 0.0, NEG_INF).astype(jnp.float32)  # (Bt, S)

    # Embedding gather as a single one-hot MXU matmul (no per-token vld/concat).
    vocab_iota = lax.broadcasted_iota(jnp.int32, (Bt, S, VOCAB), 2)
    onehot = (vocab_iota == ids[:, :, None]).astype(jnp.float32)
    onehot = onehot.reshape(Bt * S, VOCAB)
    x = jnp.dot(onehot, word_emb[...], preferred_element_type=jnp.float32)
    x = x + jnp.tile(pos_emb[...], (Bt, 1))                          # (Bt*S, H)
    x = _ln(x, emb_ln[0:1, :], emb_ln[1:2, :])

    scale = 1.0 / (HD ** 0.5)

    def to_heads(t):
        # (Bt*S, H) -> (Bt*NH, S, HD): heads stacked along the batch axis.
        t3 = t.reshape(Bt, S, H)
        hs = [t3[:, :, h * HD:(h + 1) * HD] for h in range(NH)]
        return jnp.stack(hs, axis=1).reshape(Bt * NH, S, HD)

    for l in range(NUM_LAYERS):                 # static unroll, static indexing
        vec = vec_h[l]                          # (9, H) f32
        bq, bk, bv, bo = vec[0:1], vec[1:2], vec[2:3], vec[3:4]
        ln1_g, ln1_b = vec[4:5], vec[5:6]
        b2 = vec[6:7]
        ln2_g, ln2_b = vec[7:8], vec[8:9]

        xb = x.astype(jnp.bfloat16)
        q = jnp.dot(xb, w_proj[4 * l + 0], preferred_element_type=jnp.float32) + bq
        k = jnp.dot(xb, w_proj[4 * l + 1], preferred_element_type=jnp.float32) + bk
        v = jnp.dot(xb, w_proj[4 * l + 2], preferred_element_type=jnp.float32) + bv

        qh = to_heads(q).astype(jnp.bfloat16)
        kh = to_heads(k).astype(jnp.bfloat16)
        vh = to_heads(v).astype(jnp.bfloat16)

        # All heads' scores via one head-batched dot; single softmax pass.
        s = jnp.einsum("bqd,bkd->bqk", qh, kh,
                       preferred_element_type=jnp.float32)           # (Bt*NH, S, S)
        s = s.reshape(Bt, NH, S, S) * scale + bias[:, None, None, :]
        s = s - jnp.max(s, axis=-1, keepdims=True)
        p = jnp.exp(s)
        p = p * pl.reciprocal(jnp.sum(p, axis=-1, keepdims=True), approx=True)
        p = p.reshape(Bt * NH, S, S).astype(jnp.bfloat16)

        ctx_h = jnp.einsum("bqk,bkd->bqd", p, vh,
                           preferred_element_type=jnp.float32)       # (Bt*NH, S, HD)
        ctx4 = ctx_h.reshape(Bt, NH, S, HD)
        ctx = jnp.concatenate([ctx4[:, h, :, :] for h in range(NH)], axis=-1)
        ctx = ctx.reshape(Bt * S, H).astype(jnp.bfloat16)

        attn = jnp.dot(ctx, w_proj[4 * l + 3],
                       preferred_element_type=jnp.float32) + bo
        h1 = _ln(x + attn, ln1_g, ln1_b)

        ff = jax.nn.gelu(
            jnp.dot(h1.astype(jnp.bfloat16), w1[l],
                    preferred_element_type=jnp.float32) + b1[l],
            approximate=True)
        ff = jnp.dot(ff.astype(jnp.bfloat16), w2[l],
                     preferred_element_type=jnp.float32) + b2
        x = _ln(h1 + ff, ln2_g, ln2_b)

    # CLS-token hidden state per sequence (lane-dense (Bt, H) slab).
    out_ref[...] = x.reshape(Bt, S, H)[:, 0, :]


# --------------------------------- wrapper -----------------------------------

def _pack_weights(params, seq_len):
    """Fold per-layer weights into a few stacked arrays; bf16 for MXU operands."""
    L = NUM_LAYERS
    w_proj = jnp.stack([params["wq"], params["wk"], params["wv"], params["wo"]],
                       axis=1).reshape(L * 4, HIDDEN, HIDDEN).astype(jnp.bfloat16)
    vec_h = jnp.concatenate(
        [params["bq"], params["bk"], params["bv"], params["bo"],
         params["ln1_g"], params["ln1_b"], params["b2"],
         params["ln2_g"], params["ln2_b"]], axis=1)                  # (L, 9, H)
    emb_ln = jnp.concatenate([params["emb_ln_g"], params["emb_ln_b"]], axis=0)
    return dict(
        word_emb=params["word_emb"],                                 # (V, H) f32
        pos_emb=params["pos_emb"][:seq_len],                         # (S, H) f32
        emb_ln=emb_ln,                                               # (2, H) f32
        w_proj=w_proj,                                               # (4L, H, H) bf16
        vec_h=vec_h,                                                 # (L, 9, H) f32
        w1=params["w1"].astype(jnp.bfloat16),                        # (L, H, F)
        b1=params["b1"],                                             # (L, 1, F) f32
        w2=params["w2"].astype(jnp.bfloat16),                        # (L, F, H)
    )


def _encoder_cls_forward(params, token_ids):
    """token_ids: (B, S) int32 -> CLS hidden state (B, H) f32. One pallas_call."""
    B, S = token_ids.shape
    Bt = 8 if B >= 8 else B                 # sequences per grid step
    G = -(-B // Bt)                         # grid blocks
    Bp = G * Bt
    if Bp != B:
        token_ids = jnp.pad(token_ids, ((0, Bp - B), (0, 0)),
                            constant_values=PAD_ID)

    p = _pack_weights(params, S)
    L, H, F, V = NUM_LAYERS, HIDDEN, FFN, VOCAB

    full2 = lambda shape: pl.BlockSpec(shape, lambda g: (0, 0))
    full3 = lambda shape: pl.BlockSpec(shape, lambda g: (0, 0, 0))

    grid_spec = pltpu.PrefetchScalarGridSpec(
        num_scalar_prefetch=0,
        grid=(G,),
        in_specs=[
            pl.BlockSpec((Bt, S), lambda g: (g, 0)),     # token ids
            full2((V, H)),                               # word embedding table
            full2((S, H)),                               # positional embedding
            full2((2, H)),                               # emb LN gamma/beta
            full3((4 * L, H, H)),                        # wq/wk/wv/wo stacked
            full3((L, 9, H)),                            # biases + LN params
            full3((L, H, F)),                            # ffn w1
            full3((L, 1, F)),                            # ffn b1
            full3((L, F, H)),                            # ffn w2
        ],
        out_specs=pl.BlockSpec((Bt, H), lambda g: (g, 0)),
    )

    out = pl.pallas_call(
        _encoder_kernel,
        out_shape=jax.ShapeDtypeStruct((Bp, H), jnp.float32),
        grid_spec=grid_spec,
        compiler_params=pltpu.CompilerParams(
            dimension_semantics=("parallel",)),  # v7x: 2 TCs split the batch blocks
    )(token_ids, p["word_emb"], p["pos_emb"], p["emb_ln"], p["w_proj"],
      p["vec_h"], p["w1"], p["b1"], p["w2"])
    return out[:B]


_forward_jit = jax.jit(_encoder_cls_forward)


# --------------------------- synthetic parameters ---------------------------

def init_params(key):
    keys = iter(jax.random.split(key, 16))
    nrm = lambda shape, s=0.02: (s * jax.random.normal(next(keys), shape)
                                 ).astype(jnp.float32)
    L = NUM_LAYERS
    return {
        "word_emb": nrm((VOCAB, HIDDEN)),
        "pos_emb": nrm((MAX_SEQ, HIDDEN)),
        "emb_ln_g": jnp.ones((1, HIDDEN), jnp.float32),
        "emb_ln_b": jnp.zeros((1, HIDDEN), jnp.float32),
        "wq": nrm((L, HIDDEN, HIDDEN)), "bq": jnp.zeros((L, 1, HIDDEN), jnp.float32),
        "wk": nrm((L, HIDDEN, HIDDEN)), "bk": jnp.zeros((L, 1, HIDDEN), jnp.float32),
        "wv": nrm((L, HIDDEN, HIDDEN)), "bv": jnp.zeros((L, 1, HIDDEN), jnp.float32),
        "wo": nrm((L, HIDDEN, HIDDEN)), "bo": jnp.zeros((L, 1, HIDDEN), jnp.float32),
        "ln1_g": jnp.ones((L, 1, HIDDEN), jnp.float32),
        "ln1_b": jnp.zeros((L, 1, HIDDEN), jnp.float32),
        "w1": nrm((L, HIDDEN, FFN)), "b1": jnp.zeros((L, 1, FFN), jnp.float32),
        "w2": nrm((L, FFN, HIDDEN)), "b2": jnp.zeros((L, 1, HIDDEN), jnp.float32),
        "ln2_g": jnp.ones((L, 1, HIDDEN), jnp.float32),
        "ln2_b": jnp.zeros((L, 1, HIDDEN), jnp.float32),
    }


# ------------------------- pure-JAX reference (check) ------------------------

def _reference_cls_forward(params, token_ids):
    B, S = token_ids.shape

    def ln(x, g, b):
        mu = x.mean(-1, keepdims=True)
        var = ((x - mu) ** 2).mean(-1, keepdims=True)
        return (x - mu) * lax.rsqrt(var + LN_EPS) * g + b

    mask_bias = jnp.where(token_ids != PAD_ID, 0.0, NEG_INF)[:, None, None, :]
    h = params["word_emb"][token_ids] + params["pos_emb"][:S][None]
    h = ln(h, params["emb_ln_g"], params["emb_ln_b"])
    scale = 1.0 / (HEAD_DIM ** 0.5)
    for l in range(NUM_LAYERS):
        q = h @ params["wq"][l] + params["bq"][l]
        k = h @ params["wk"][l] + params["bk"][l]
        v = h @ params["wv"][l] + params["bv"][l]
        q = q.reshape(B, S, NUM_HEADS, HEAD_DIM).transpose(0, 2, 1, 3)
        k = k.reshape(B, S, NUM_HEADS, HEAD_DIM).transpose(0, 2, 1, 3)
        v = v.reshape(B, S, NUM_HEADS, HEAD_DIM).transpose(0, 2, 1, 3)
        s = jnp.einsum("bhqd,bhkd->bhqk", q, k) * scale + mask_bias
        p = jax.nn.softmax(s, axis=-1)
        ctx = jnp.einsum("bhqk,bhkd->bhqd", p, v).transpose(0, 2, 1, 3)
        ctx = ctx.reshape(B, S, HIDDEN)
        attn = ctx @ params["wo"][l] + params["bo"][l]
        h1 = ln(h + attn, params["ln1_g"][l], params["ln1_b"][l])
        ff = jax.nn.gelu(h1 @ params["w1"][l] + params["b1"][l], approximate=True)
        ff = ff @ params["w2"][l] + params["b2"][l]
        h = ln(h1 + ff, params["ln2_g"][l], params["ln2_b"][l])
    return h[:, 0, :]


# --------------------------------- Model -------------------------------------

class Model:
    """Mirror of the PyTorch Model wrapper."""

    def __init__(self, params):
        self.params = params

    def __call__(self, code_inputs=None, nl_inputs=None):
        if code_inputs is not None:
            return self.get_code_vec(code_inputs)
        if nl_inputs is not None:
            return self.get_nl_vec(nl_inputs)

    def get_code_vec(self, code_inputs):
        return _forward_jit(self.params, code_inputs)   # CLS-token hidden state

    def get_nl_vec(self, nl_inputs):
        return _forward_jit(self.params, nl_inputs)


# ----------------------------------- main ------------------------------------

if __name__ == "__main__":
    key = jax.random.PRNGKey(0)
    pkey, tkey = jax.random.split(key)

    params = init_params(pkey)
    model = Model(params)

    B, S = 16, 16   # 2 grid blocks of 8 sequences each
    token_ids = jax.random.randint(tkey, (B, S), 2, VOCAB, dtype=jnp.int32)
    # CLS-like token at position 0; pad the tails of a couple of sequences
    # with PAD_ID=1 to exercise the attention mask.
    token_ids = token_ids.at[:, 0].set(0)
    token_ids = token_ids.at[1, 10:].set(PAD_ID)
    token_ids = token_ids.at[7, 5:].set(PAD_ID)
    token_ids = token_ids.at[12, 12:].set(PAD_ID)

    code_vec = model(code_inputs=token_ids)
    nl_vec = model(nl_inputs=token_ids)
    jax.block_until_ready((code_vec, nl_vec))

    assert code_vec.shape == (B, HIDDEN)
    assert nl_vec.shape == (B, HIDDEN)
    assert bool(jnp.all(jnp.isfinite(code_vec)))

    ref = _reference_cls_forward(params, token_ids)
    max_err = float(jnp.max(jnp.abs(code_vec - ref)))
    assert max_err < 5e-2, f"mismatch vs pure-JAX reference: {max_err}"

    print("KERNEL_OK")
</pallas_src>

<mosaic_0001>
module attributes {stable_mosaic.version = 11 : i64} {
  func.func @_encoder_kernel(%arg0: i32, %arg1: memref<8x16xi32, #tpu.memory_space<vmem>>, %arg2: memref<50x32xf32, #tpu.memory_space<vmem>>, %arg3: memref<16x32xf32, #tpu.memory_space<vmem>>, %arg4: memref<2x32xf32, #tpu.memory_space<vmem>>, %arg5: memref<8x32x32xbf16, #tpu.memory_space<vmem>>, %arg6: memref<2x9x32xf32, #tpu.memory_space<vmem>>, %arg7: memref<2x32x64xbf16, #tpu.memory_space<vmem>>, %arg8: memref<2x1x64xf32, #tpu.memory_space<vmem>>, %arg9: memref<2x64x32xbf16, #tpu.memory_space<vmem>>, %arg10: memref<8x32xf32, #tpu.memory_space<vmem>>) attributes {dimension_semantics = [#tpu.dimension_semantics<parallel>], iteration_bounds = array<i64: 2>, scalar_prefetch = 0 : i64, scratch_operands = 0 : i64, tpu.core_type = #tpu.core_type<tc>, window_params = [{transform_indices = @transform_0, window_bounds = array<i64: 8, 16>}, {pipeline_mode = #tpu.pipeline_mode<synchronous>, transform_indices = @transform_1, window_bounds = array<i64: 50, 32>}, {pipeline_mode = #tpu.pipeline_mode<synchronous>, transform_indices = @transform_2, window_bounds = array<i64: 16, 32>}, {pipeline_mode = #tpu.pipeline_mode<synchronous>, transform_indices = @transform_3, window_bounds = array<i64: 2, 32>}, {pipeline_mode = #tpu.pipeline_mode<synchronous>, transform_indices = @transform_4, window_bounds = array<i64: 8, 32, 32>}, {pipeline_mode = #tpu.pipeline_mode<synchronous>, transform_indices = @transform_5, window_bounds = array<i64: 2, 9, 32>}, {pipeline_mode = #tpu.pipeline_mode<synchronous>, transform_indices = @transform_6, window_bounds = array<i64: 2, 32, 64>}, {pipeline_mode = #tpu.pipeline_mode<synchronous>, transform_indices = @transform_7, window_bounds = array<i64: 2, 1, 64>}, {pipeline_mode = #tpu.pipeline_mode<synchronous>, transform_indices = @transform_8, window_bounds = array<i64: 2, 64, 32>}, {transform_indices = @transform_9, window_bounds = array<i64: 8, 32>}]} {
    %c0 = arith.constant 0 : index
    %c0_0 = arith.constant 0 : index
    %0 = vector.load %arg1[%c0, %c0_0] : memref<8x16xi32, #tpu.memory_space<vmem>>, vector<8x16xi32>
    %c1_i32 = arith.constant 1 : i32
    %1 = vector.broadcast %c1_i32 : i32 to vector<8x16xi32>
    %2 = arith.cmpi ne, %0, %1 : vector<8x16xi32>
    %cst = arith.constant 0.000000e+00 : f32
    %cst_1 = arith.constant -1.000000e+09 : f32
    %3 = vector.broadcast %cst : f32 to vector<8x16xf32>
    %4 = vector.broadcast %cst_1 : f32 to vector<8x16xf32>
    %5 = arith.select %2, %3, %4 : vector<8x16xi1>, vector<8x16xf32>
    %6 = tpu.iota {dimensions = array<i32: 2>} : vector<8x16x50xi32>
    %7 = vector.shape_cast %0 : vector<8x16xi32> to vector<8x16x1xi32>
    %8 = vector.broadcast %7 : vector<8x16x1xi32> to vector<8x16x50xi32>
    %9 = arith.cmpi eq, %6, %8 : vector<8x16x50xi32>
    %10 = arith.extui %9 : vector<8x16x50xi1> to vector<8x16x50xi32>
    %11 = arith.sitofp %10 : vector<8x16x50xi32> to vector<8x16x50xf32>
    %12 = vector.shape_cast %11 : vector<8x16x50xf32> to vector<128x50xf32>
    %c0_2 = arith.constant 0 : index
    %c0_3 = arith.constant 0 : index
    %13 = vector.load %arg2[%c0_2, %c0_3] : memref<50x32xf32, #tpu.memory_space<vmem>>, vector<50x32xf32>
    %cst_4 = arith.constant dense<0.000000e+00> : vector<128x32xf32>
    %14 = tpu.matmul %12, %13, %cst_4 {dimension_numbers = #tpu.dot_dimension_numbers<[1], [0], [0], [1], [0, 0, 1, 1], [], []>} : vector<128x50xf32>, vector<50x32xf32>, vector<128x32xf32> -> vector<128x32xf32>
    %c0_5 = arith.constant 0 : index
    %c0_6 = arith.constant 0 : index
    %15 = vector.load %arg3[%c0_5, %c0_6] : memref<16x32xf32, #tpu.memory_space<vmem>>, vector<16x32xf32>
    %16 = tpu.concatenate %15, %15, %15, %15, %15, %15, %15, %15 in 0 : vector<16x32xf32>, vector<16x32xf32>, vector<16x32xf32>, vector<16x32xf32>, vector<16x32xf32>, vector<16x32xf32>, vector<16x32xf32>, vector<16x32xf32> -> vector<128x32xf32>
    %17 = arith.addf %14, %16 : vector<128x32xf32>
    %c0_7 = arith.constant 0 : index
    %c0_8 = arith.constant 0 : index
    %18 = vector.load %arg4[%c0_7, %c0_8] : memref<2x32xf32, #tpu.memory_space<vmem>>, vector<1x32xf32>
    %c1 = arith.constant 1 : index
    %c0_9 = arith.constant 0 : index
    %19 = vector.load %arg4[%c1, %c0_9] : memref<2x32xf32, #tpu.memory_space<vmem>>, vector<1x32xf32>
    %cst_10 = arith.constant dense<0.000000e+00> : vector<128xf32>
    %20 = vector.multi_reduction <add>, %17, %cst_10 [1] : vector<128x32xf32> to vector<128xf32>
    %21 = vector.shape_cast %20 : vector<128xf32> to vector<128x1xf32>
    %cst_11 = arith.constant 3.200000e+01 : f32
    %22 = vector.broadcast %cst_11 : f32 to vector<128x1xf32>
    %23 = arith.divf %21, %22 : vector<128x1xf32>
    %24 = vector.broadcast %23 : vector<128x1xf32> to vector<128x32xf32>
    %25 = arith.subf %17, %24 : vector<128x32xf32>
    %26 = arith.mulf %25, %25 : vector<128x32xf32>
    %cst_12 = arith.constant dense<0.000000e+00> : vector<128xf32>
    %27 = vector.multi_reduction <add>, %26, %cst_12 [1] : vector<128x32xf32> to vector<128xf32>
    %28 = vector.shape_cast %27 : vector<128xf32> to vector<128x1xf32>
    %cst_13 = arith.constant 3.200000e+01 : f32
    %29 = vector.broadcast %cst_13 : f32 to vector<128x1xf32>
    %30 = arith.divf %28, %29 : vector<128x1xf32>
    %31 = vector.broadcast %23 : vector<128x1xf32> to vector<128x32xf32>
    %32 = arith.subf %17, %31 : vector<128x32xf32>
    %cst_14 = arith.constant 9.99999974E-6 : f32
    %33 = vector.broadcast %cst_14 : f32 to vector<128x1xf32>
    %34 = arith.addf %30, %33 : vector<128x1xf32>
    %35 = math.rsqrt %34 : vector<128x1xf32>
    %36 = vector.broadcast %35 : vector<128x1xf32> to vector<128x32xf32>
    %37 = arith.mulf %32, %36 : vector<128x32xf32>
    %38 = vector.broadcast %18 : vector<1x32xf32> to vector<128x32xf32>
    %39 = arith.mulf %37, %38 : vector<128x32xf32>
    %40 = vector.broadcast %19 : vector<1x32xf32> to vector<128x32xf32>
    %41 = arith.addf %39, %40 : vector<128x32xf32>
    %c0_15 = arith.constant 0 : index
    %c0_16 = arith.constant 0 : index
    %c0_17 = arith.constant 0 : index
    %42 = vector.load %arg6[%c0_15, %c0_16, %c0_17] : memref<2x9x32xf32, #tpu.memory_space<vmem>>, vector<1x9x32xf32>
    %43 = vector.shape_cast %42 : vector<1x9x32xf32> to vector<9x32xf32>
    %44 = vector.extract_strided_slice %43 {offsets = [0, 0], sizes = [1, 32], strides = [1, 1]} : vector<9x32xf32> to vector<1x32xf32>
    %45 = vector.extract_strided_slice %43 {offsets = [1, 0], sizes = [1, 32], strides = [1, 1]} : vector<9x32xf32> to vector<1x32xf32>
    %46 = vector.extract_strided_slice %43 {offsets = [2, 0], sizes = [1, 32], strides = [1, 1]} : vector<9x32xf32> to vector<1x32xf32>
    %47 = vector.extract_strided_slice %43 {offsets = [3, 0], sizes = [1, 32], strides = [1, 1]} : vector<9x32xf32> to vector<1x32xf32>
    %48 = vector.extract_strided_slice %43 {offsets = [4, 0], sizes = [1, 32], strides = [1, 1]} : vector<9x32xf32> to vector<1x32xf32>
    %49 = vector.extract_strided_slice %43 {offsets = [5, 0], sizes = [1, 32], strides = [1, 1]} : vector<9x32xf32> to vector<1x32xf32>
    %50 = vector.extract_strided_slice %43 {offsets = [6, 0], sizes = [1, 32], strides = [1, 1]} : vector<9x32xf32> to vector<1x32xf32>
    %51 = vector.extract_strided_slice %43 {offsets = [7, 0], sizes = [1, 32], strides = [1, 1]} : vector<9x32xf32> to vector<1x32xf32>
    %52 = vector.extract_strided_slice %43 {offsets = [8, 0], sizes = [1, 32], strides = [1, 1]} : vector<9x32xf32> to vector<1x32xf32>
    %53 = arith.truncf %41 : vector<128x32xf32> to vector<128x32xbf16>
    %c0_18 = arith.constant 0 : index
    %c0_19 = arith.constant 0 : index
    %c0_20 = arith.constant 0 : index
    %54 = vector.load %arg5[%c0_18, %c0_19, %c0_20] : memref<8x32x32xbf16, #tpu.memory_space<vmem>>, vector<1x32x32xbf16>
    %55 = vector.shape_cast %54 : vector<1x32x32xbf16> to vector<32x32xbf16>
    %cst_21 = arith.constant dense<0.000000e+00> : vector<128x32xf32>
    %56 = tpu.matmul %53, %55, %cst_21 {dimension_numbers = #tpu.dot_dimension_numbers<[1], [0], [0], [1], [0, 0, 1, 1], [], []>} : vector<128x32xbf16>, vector<32x32xbf16>, vector<128x32xf32> -> vector<128x32xf32>
    %57 = vector.broadcast %44 : vector<1x32xf32> to vector<128x32xf32>
    %58 = arith.addf %56, %57 : vector<128x32xf32>
    %c1_22 = arith.constant 1 : index
    %c0_23 = arith.constant 0 : index
    %c0_24 = arith.constant 0 : index
    %59 = vector.load %arg5[%c1_22, %c0_23, %c0_24] : memref<8x32x32xbf16, #tpu.memory_space<vmem>>, vector<1x32x32xbf16>
    %60 = vector.shape_cast %59 : vector<1x32x32xbf16> to vector<32x32xbf16>
    %cst_25 = arith.constant dense<0.000000e+00> : vector<128x32xf32>
    %61 = tpu.matmul %53, %60, %cst_25 {dimension_numbers = #tpu.dot_dimension_numbers<[1], [0], [0], [1], [0, 0, 1, 1], [], []>} : vector<128x32xbf16>, vector<32x32xbf16>, vector<128x32xf32> -> vector<128x32xf32>
    %62 = vector.broadcast %45 : vector<1x32xf32> to vector<128x32xf32>
    %63 = arith.addf %61, %62 : vector<128x32xf32>
    %c2 = arith.constant 2 : index
    %c0_26 = arith.constant 0 : index
    %c0_27 = arith.constant 0 : index
    %64 = vector.load %arg5[%c2, %c0_26, %c0_27] : memref<8x32x32xbf16, #tpu.memory_space<vmem>>, vector<1x32x32xbf16>
    %65 = vector.shape_cast %64 : vector<1x32x32xbf16> to vector<32x32xbf16>
    %cst_28 = arith.constant dense<0.000000e+00> : vector<128x32xf32>
    %66 = tpu.matmul %53, %65, %cst_28 {dimension_numbers = #tpu.dot_dimension_numbers<[1], [0], [0], [1], [0, 0, 1, 1], [], []>} : vector<128x32xbf16>, vector<32x32xbf16>, vector<128x32xf32> -> vector<128x32xf32>
    %67 = vector.broadcast %46 : vector<1x32xf32> to vector<128x32xf32>
    %68 = arith.addf %66, %67 : vector<128x32xf32>
    %69 = vector.shape_cast %58 : vector<128x32xf32> to vector<8x16x32xf32>
    %70 = vector.extract_strided_slice %69 {offsets = [0, 0, 0], sizes = [8, 16, 8], strides = [1, 1, 1]} : vector<8x16x32xf32> to vector<8x16x8xf32>
    %71 = vector.extract_strided_slice %69 {offsets = [0, 0, 8], sizes = [8, 16, 8], strides = [1, 1, 1]} : vector<8x16x32xf32> to vector<8x16x8xf32>
    %72 = vector.extract_strided_slice %69 {offsets = [0, 0, 16], sizes = [8, 16, 8], strides = [1, 1, 1]} : vector<8x16x32xf32> to vector<8x16x8xf32>
    %73 = vector.extract_strided_slice %69 {offsets = [0, 0, 24], sizes = [8, 16, 8], strides = [1, 1, 1]} : vector<8x16x32xf32> to vector<8x16x8xf32>
    %74 = vector.shape_cast %70 : vector<8x16x8xf32> to vector<8x1x16x8xf32>
    %75 = vector.shape_cast %71 : vector<8x16x8xf32> to vector<8x1x16x8xf32>
    %76 = vector.shape_cast %72 : vector<8x16x8xf32> to vector<8x1x16x8xf32>
    %77 = vector.shape_cast %73 : vector<8x16x8xf32> to vector<8x1x16x8xf32>
    %78 = tpu.concatenate %74, %75, %76, %77 in 1 : vector<8x1x16x8xf32>, vector<8x1x16x8xf32>, vector<8x1x16x8xf32>, vector<8x1x16x8xf32> -> vector<8x4x16x8xf32>
    %79 = vector.shape_cast %78 : vector<8x4x16x8xf32> to vector<32x16x8xf32>
    %80 = arith.truncf %79 : vector<32x16x8xf32> to vector<32x16x8xbf16>
    %81 = vector.shape_cast %63 : vector<128x32xf32> to vector<8x16x32xf32>
    %82 = vector.extract_strided_slice %81 {offsets = [0, 0, 0], sizes = [8, 16, 8], strides = [1, 1, 1]} : vector<8x16x32xf32> to vector<8x16x8xf32>
    %83 = vector.extract_strided_slice %81 {offsets = [0, 0, 8], sizes = [8, 16, 8], strides = [1, 1, 1]} : vector<8x16x32xf32> to vector<8x16x8xf32>
    %84 = vector.extract_strided_slice %81 {offsets = [0, 0, 16], sizes = [8, 16, 8], strides = [1, 1, 1]} : vector<8x16x32xf32> to vector<8x16x8xf32>
    %85 = vector.extract_strided_slice %81 {offsets = [0, 0, 24], sizes = [8, 16, 8], strides = [1, 1, 1]} : vector<8x16x32xf32> to vector<8x16x8xf32>
    %86 = vector.shape_cast %82 : vector<8x16x8xf32> to vector<8x1x16x8xf32>
    %87 = vector.shape_cast %83 : vector<8x16x8xf32> to vector<8x1x16x8xf32>
    %88 = vector.shape_cast %84 : vector<8x16x8xf32> to vector<8x1x16x8xf32>
    %89 = vector.shape_cast %85 : vector<8x16x8xf32> to vector<8x1x16x8xf32>
    %90 = tpu.concatenate %86, %87, %88, %89 in 1 : vector<8x1x16x8xf32>, vector<8x1x16x8xf32>, vector<8x1x16x8xf32>, vector<8x1x16x8xf32> -> vector<8x4x16x8xf32>
    %91 = vector.shape_cast %90 : vector<8x4x16x8xf32> to vector<32x16x8xf32>
    %92 = arith.truncf %91 : vector<32x16x8xf32> to vector<32x16x8xbf16>
    %93 = vector.shape_cast %68 : vector<128x32xf32> to vector<8x16x32xf32>
    %94 = vector.extract_strided_slice %93 {offsets = [0, 0, 0], sizes = [8, 16, 8], strides = [1, 1, 1]} : vector<8x16x32xf32> to vector<8x16x8xf32>
    %95 = vector.extract_strided_slice %93 {offsets = [0, 0, 8], sizes = [8, 16, 8], strides = [1, 1, 1]} : vector<8x16x32xf32> to vector<8x16x8xf32>
    %96 = vector.extract_strided_slice %93 {offsets = [0, 0, 16], sizes = [8, 16, 8], strides = [1, 1, 1]} : vector<8x16x32xf32> to vector<8x16x8xf32>
    %97 = vector.extract_strided_slice %93 {offsets = [0, 0, 24], sizes = [8, 16, 8], strides = [1, 1, 1]} : vector<8x16x32xf32> to vector<8x16x8xf32>
    %98 = vector.shape_cast %94 : vector<8x16x8xf32> to vector<8x1x16x8xf32>
    %99 = vector.shape_cast %95 : vector<8x16x8xf32> to vector<8x1x16x8xf32>
    %100 = vector.shape_cast %96 : vector<8x16x8xf32> to vector<8x1x16x8xf32>
    %101 = vector.shape_cast %97 : vector<8x16x8xf32> to vector<8x1x16x8xf32>
    %102 = tpu.concatenate %98, %99, %100, %101 in 1 : vector<8x1x16x8xf32>, vector<8x1x16x8xf32>, vector<8x1x16x8xf32>, vector<8x1x16x8xf32> -> vector<8x4x16x8xf32>
    %103 = vector.shape_cast %102 : vector<8x4x16x8xf32> to vector<32x16x8xf32>
    %104 = arith.truncf %103 : vector<32x16x8xf32> to vector<32x16x8xbf16>
    "tpu.trace_start"() <{level = 10 : i32, message = "bqd,bkd->bqk"}> : () -> ()
    %cst_29 = arith.constant dense<0.000000e+00> : vector<32x16x16xf32>
    %105 = tpu.matmul %80, %92, %cst_29 {dimension_numbers = #tpu.dot_dimension_numbers<[2], [2], [1], [1], [0, 0, 0, 1, 1, 1], [0], [0]>} : vector<32x16x8xbf16>, vector<32x16x8xbf16>, vector<32x16x16xf32> -> vector<32x16x16xf32>
    "tpu.trace_stop"() : () -> ()
    %106 = vector.shape_cast %105 : vector<32x16x16xf32> to vector<8x4x16x16xf32>
    %cst_30 = arith.constant 0.353553385 : f32
    %107 = vector.broadcast %cst_30 : f32 to vector<8x4x16x16xf32>
    %108 = arith.mulf %106, %107 : vector<8x4x16x16xf32>
    %109 = vector.shape_cast %5 : vector<8x16xf32> to vector<8x1x1x16xf32>
    %110 = vector.broadcast %109 : vector<8x1x1x16xf32> to vector<8x4x16x16xf32>
    %111 = arith.addf %108, %110 : vector<8x4x16x16xf32>
    %cst_31 = arith.constant dense<0xFF800000> : vector<8x4x16xf32>
    %112 = vector.multi_reduction <maximumf>, %111, %cst_31 [3] : vector<8x4x16x16xf32> to vector<8x4x16xf32>
    %113 = vector.shape_cast %112 : vector<8x4x16xf32> to vector<8x4x16x1xf32>
    %114 = vector.broadcast %113 : vector<8x4x16x1xf32> to vector<8x4x16x16xf32>
    %115 = arith.subf %111, %114 : vector<8x4x16x16xf32>
    %116 = math.exp %115 : vector<8x4x16x16xf32>
    %cst_32 = arith.constant dense<0.000000e+00> : vector<8x4x16xf32>
    %117 = vector.multi_reduction <add>, %116, %cst_32 [3] : vector<8x4x16x16xf32> to vector<8x4x16xf32>
    %118 = vector.shape_cast %117 : vector<8x4x16xf32> to vector<8x4x16x1xf32>
    %119 = tpu.reciprocal %118 {approx = true} : vector<8x4x16x1xf32> -> vector<8x4x16x1xf32>
    %120 = vector.broadcast %119 : vector<8x4x16x1xf32> to vector<8x4x16x16xf32>
    %121 = arith.mulf %116, %120 : vector<8x4x16x16xf32>
    %122 = vector.shape_cast %121 : vector<8x4x16x16xf32> to vector<32x16x16xf32>
    %123 = arith.truncf %122 : vector<32x16x16xf32> to vector<32x16x16xbf16>
    "tpu.trace_start"() <{level = 10 : i32, message = "bqk,bkd->bqd"}> : () -> ()
    %cst_33 = arith.constant dense<0.000000e+00> : vector<32x16x8xf32>
    %124 = tpu.matmul %123, %104, %cst_33 {dimension_numbers = #tpu.dot_dimension_numbers<[2], [1], [1], [2], [0, 0, 0, 1, 1, 2], [0], [0]>} : vector<32x16x16xbf16>, vector<32x16x8xbf16>, vector<32x16x8xf32> -> vector<32x16x8xf32>
    "tpu.trace_stop"() : () -> ()
    %125 = vector.shape_cast %124 : vector<32x16x8xf32> to vector<8x4x16x8xf32>
    %126 = vector.extract_strided_slice %125 {offsets = [0, 0, 0, 0], sizes = [8, 1, 16, 8], strides = [1, 1, 1, 1]} : vector<8x4x16x8xf32> to vector<8x1x16x8xf32>
    %127 = vector.shape_cast %126 : vector<8x1x16x8xf32> to vector<8x16x8xf32>
    %128 = vector.extract_strided_slice %125 {offsets = [0, 1, 0, 0], sizes = [8, 1, 16, 8], strides = [1, 1, 1, 1]} : vector<8x4x16x8xf32> to vector<8x1x16x8xf32>
    %129 = vector.shape_cast %128 : vector<8x1x16x8xf32> to vector<8x16x8xf32>
    %130 = vector.extract_strided_slice %125 {offsets = [0, 2, 0, 0], sizes = [8, 1, 16, 8], strides = [1, 1, 1, 1]} : vector<8x4x16x8xf32> to vector<8x1x16x8xf32>
    %131 = vector.shape_cast %130 : vector<8x1x16x8xf32> to vector<8x16x8xf32>
    %132 = vector.extract_strided_slice %125 {offsets = [0, 3, 0, 0], sizes = [8, 1, 16, 8], strides = [1, 1, 1, 1]} : vector<8x4x16x8xf32> to vector<8x1x16x8xf32>
    %133 = vector.shape_cast %132 : vector<8x1x16x8xf32> to vector<8x16x8xf32>
    %134 = tpu.concatenate %127, %129, %131, %133 in 2 : vector<8x16x8xf32>, vector<8x16x8xf32>, vector<8x16x8xf32>, vector<8x16x8xf32> -> vector<8x16x32xf32>
    %135 = vector.shape_cast %134 : vector<8x16x32xf32> to vector<128x32xf32>
    %136 = arith.truncf %135 : vector<128x32xf32> to vector<128x32xbf16>
    %c3 = arith.constant 3 : index
    %c0_34 = arith.constant 0 : index
    %c0_35 = arith.constant 0 : index
    %137 = vector.load %arg5[%c3, %c0_34, %c0_35] : memref<8x32x32xbf16, #tpu.memory_space<vmem>>, vector<1x32x32xbf16>
    %138 = vector.shape_cast %137 : vector<1x32x32xbf16> to vector<32x32xbf16>
    %cst_36 = arith.constant dense<0.000000e+00> : vector<128x32xf32>
    %139 = tpu.matmul %136, %138, %cst_36 {dimension_numbers = #tpu.dot_dimension_numbers<[1], [0], [0], [1], [0, 0, 1, 1], [], []>} : vector<128x32xbf16>, vector<32x32xbf16>, vector<128x32xf32> -> vector<128x32xf32>
    %140 = vector.broadcast %47 : vector<1x32xf32> to vector<128x32xf32>
    %141 = arith.addf %139, %140 : vector<128x32xf32>
    %142 = arith.addf %41, %141 : vector<128x32xf32>
    %cst_37 = arith.constant dense<0.000000e+00> : vector<128xf32>
    %143 = vector.multi_reduction <add>, %142, %cst_37 [1] : vector<128x32xf32> to vector<128xf32>
    %144 = vector.shape_cast %143 : vector<128xf32> to vector<128x1xf32>
    %cst_38 = arith.constant 3.200000e+01 : f32
    %145 = vector.broadcast %cst_38 : f32 to vector<128x1xf32>
    %146 = arith.divf %144, %145 : vector<128x1xf32>
    %147 = vector.broadcast %146 : vector<128x1xf32> to vector<128x32xf32>
    %148 = arith.subf %142, %147 : vector<128x32xf32>
    %149 = arith.mulf %148, %148 : vector<128x32xf32>
    %cst_39 = arith.constant dense<0.000000e+00> : vector<128xf32>
    %150 = vector.multi_reduction <add>, %149, %cst_39 [1] : vector<128x32xf32> to vector<128xf32>
    %151 = vector.shape_cast %150 : vector<128xf32> to vector<128x1xf32>
    %cst_40 = arith.constant 3.200000e+01 : f32
    %152 = vector.broadcast %cst_40 : f32 to vector<128x1xf32>
    %153 = arith.divf %151, %152 : vector<128x1xf32>
    %154 = vector.broadcast %146 : vector<128x1xf32> to vector<128x32xf32>
    %155 = arith.subf %142, %154 : vector<128x32xf32>
    %cst_41 = arith.constant 9.99999974E-6 : f32
    %156 = vector.broadcast %cst_41 : f32 to vector<128x1xf32>
    %157 = arith.addf %153, %156 : vector<128x1xf32>
    %158 = math.rsqrt %157 : vector<128x1xf32>
    %159 = vector.broadcast %158 : vector<128x1xf32> to vector<128x32xf32>
    %160 = arith.mulf %155, %159 : vector<128x32xf32>
    %161 = vector.broadcast %48 : vector<1x32xf32> to vector<128x32xf32>
    %162 = arith.mulf %160, %161 : vector<128x32xf32>
    %163 = vector.broadcast %49 : vector<1x32xf32> to vector<128x32xf32>
    %164 = arith.addf %162, %163 : vector<128x32xf32>
    %165 = arith.truncf %164 : vector<128x32xf32> to vector<128x32xbf16>
    %c0_42 = arith.constant 0 : index
    %c0_43 = arith.constant 0 : index
    %c0_44 = arith.constant 0 : index
    %166 = vector.load %arg7[%c0_42, %c0_43, %c0_44] : memref<2x32x64xbf16, #tpu.memory_space<vmem>>, vector<1x32x64xbf16>
    %167 = vector.shape_cast %166 : vector<1x32x64xbf16> to vector<32x64xbf16>
    %cst_45 = arith.constant dense<0.000000e+00> : vector<128x64xf32>
    %168 = tpu.matmul %165, %167, %cst_45 {dimension_numbers = #tpu.dot_dimension_numbers<[1], [0], [0], [1], [0, 0, 1, 1], [], []>} : vector<128x32xbf16>, vector<32x64xbf16>, vector<128x64xf32> -> vector<128x64xf32>
    %c0_46 = arith.constant 0 : index
    %c0_47 = arith.constant 0 : index
    %c0_48 = arith.constant 0 : index
    %169 = vector.load %arg8[%c0_46, %c0_47, %c0_48] : memref<2x1x64xf32, #tpu.memory_space<vmem>>, vector<1x1x64xf32>
    %170 = vector.shape_cast %169 : vector<1x1x64xf32> to vector<1x64xf32>
    %171 = vector.broadcast %170 : vector<1x64xf32> to vector<128x64xf32>
    %172 = arith.addf %168, %171 : vector<128x64xf32>
    %173 = arith.mulf %172, %172 : vector<128x64xf32>
    %174 = arith.mulf %172, %173 : vector<128x64xf32>
    %cst_49 = arith.constant 4.471500e-02 : f32
    %175 = vector.broadcast %cst_49 : f32 to vector<128x64xf32>
    %176 = arith.mulf %175, %174 : vector<128x64xf32>
    %177 = arith.addf %172, %176 : vector<128x64xf32>
    %cst_50 = arith.constant 0.797884583 : f32
    %178 = vector.broadcast %cst_50 : f32 to vector<128x64xf32>
    %179 = arith.mulf %178, %177 : vector<128x64xf32>
    %180 = math.tanh %179 : vector<128x64xf32>
    %cst_51 = arith.constant 1.000000e+00 : f32
    %181 = vector.broadcast %cst_51 : f32 to vector<128x64xf32>
    %182 = arith.addf %181, %180 : vector<128x64xf32>
    %cst_52 = arith.constant 5.000000e-01 : f32
    %183 = vector.broadcast %cst_52 : f32 to vector<128x64xf32>
    %184 = arith.mulf %183, %182 : vector<128x64xf32>
    %185 = arith.mulf %172, %184 : vector<128x64xf32>
    %186 = arith.truncf %185 : vector<128x64xf32> to vector<128x64xbf16>
    %c0_53 = arith.constant 0 : index
    %c0_54 = arith.constant 0 : index
    %c0_55 = arith.constant 0 : index
    %187 = vector.load %arg9[%c0_53, %c0_54, %c0_55] : memref<2x64x32xbf16, #tpu.memory_space<vmem>>, vector<1x64x32xbf16>
    %188 = vector.shape_cast %187 : vector<1x64x32xbf16> to vector<64x32xbf16>
    %cst_56 = arith.constant dense<0.000000e+00> : vector<128x32xf32>
    %189 = tpu.matmul %186, %188, %cst_56 {dimension_numbers = #tpu.dot_dimension_numbers<[1], [0], [0], [1], [0, 0, 1, 1], [], []>} : vector<128x64xbf16>, vector<64x32xbf16>, vector<128x32xf32> -> vector<128x32xf32>
    %190 = vector.broadcast %50 : vector<1x32xf32> to vector<128x32xf32>
    %191 = arith.addf %189, %190 : vector<128x32xf32>
    %192 = arith.addf %164, %191 : vector<128x32xf32>
    %cst_57 = arith.constant dense<0.000000e+00> : vector<128xf32>
    %193 = vector.multi_reduction <add>, %192, %cst_57 [1] : vector<128x32xf32> to vector<128xf32>
    %194 = vector.shape_cast %193 : vector<128xf32> to vector<128x1xf32>
    %cst_58 = arith.constant 3.200000e+01 : f32
    %195 = vector.broadcast %cst_58 : f32 to vector<128x1xf32>
    %196 = arith.divf %194, %195 : vector<128x1xf32>
    %197 = vector.broadcast %196 : vector<128x1xf32> to vector<128x32xf32>
    %198 = arith.subf %192, %197 : vector<128x32xf32>
    %199 = arith.mulf %198, %198 : vector<128x32xf32>
    %cst_59 = arith.constant dense<0.000000e+00> : vector<128xf32>
    %200 = vector.multi_reduction <add>, %199, %cst_59 [1] : vector<128x32xf32> to vector<128xf32>
    %201 = vector.shape_cast %200 : vector<128xf32> to vector<128x1xf32>
    %cst_60 = arith.constant 3.200000e+01 : f32
    %202 = vector.broadcast %cst_60 : f32 to vector<128x1xf32>
    %203 = arith.divf %201, %202 : vector<128x1xf32>
    %204 = vector.broadcast %196 : vector<128x1xf32> to vector<128x32xf32>
    %205 = arith.subf %192, %204 : vector<128x32xf32>
    %cst_61 = arith.constant 9.99999974E-6 : f32
    %206 = vector.broadcast %cst_61 : f32 to vector<128x1xf32>
    %207 = arith.addf %203, %206 : vector<128x1xf32>
    %208 = math.rsqrt %207 : vector<128x1xf32>
    %209 = vector.broadcast %208 : vector<128x1xf32> to vector<128x32xf32>
    %210 = arith.mulf %205, %209 : vector<128x32xf32>
    %211 = vector.broadcast %51 : vector<1x32xf32> to vector<128x32xf32>
    %212 = arith.mulf %210, %211 : vector<128x32xf32>
    %213 = vector.broadcast %52 : vector<1x32xf32> to vector<128x32xf32>
    %214 = arith.addf %212, %213 : vector<128x32xf32>
    %c1_62 = arith.constant 1 : index
    %c0_63 = arith.constant 0 : index
    %c0_64 = arith.constant 0 : index
    %215 = vector.load %arg6[%c1_62, %c0_63, %c0_64] : memref<2x9x32xf32, #tpu.memory_space<vmem>>, vector<1x9x32xf32>
    %216 = vector.shape_cast %215 : vector<1x9x32xf32> to vector<9x32xf32>
    %217 = vector.extract_strided_slice %216 {offsets = [0, 0], sizes = [1, 32], strides = [1, 1]} : vector<9x32xf32> to vector<1x32xf32>
    %218 = vector.extract_strided_slice %216 {offsets = [1, 0], sizes = [1, 32], strides = [1, 1]} : vector<9x32xf32> to vector<1x32xf32>
    %219 = vector.extract_strided_slice %216 {offsets = [2, 0], sizes = [1, 32], strides = [1, 1]} : vector<9x32xf32> to vector<1x32xf32>
    %220 = vector.extract_strided_slice %216 {offsets = [3, 0], sizes = [1, 32], strides = [1, 1]} : vector<9x32xf32> to vector<1x32xf32>
    %221 = vector.extract_strided_slice %216 {offsets = [4, 0], sizes = [1, 32], strides = [1, 1]} : vector<9x32xf32> to vector<1x32xf32>
    %222 = vector.extract_strided_slice %216 {offsets = [5, 0], sizes = [1, 32], strides = [1, 1]} : vector<9x32xf32> to vector<1x32xf32>
    %223 = vector.extract_strided_slice %216 {offsets = [6, 0], sizes = [1, 32], strides = [1, 1]} : vector<9x32xf32> to vector<1x32xf32>
    %224 = vector.extract_strided_slice %216 {offsets = [7, 0], sizes = [1, 32], strides = [1, 1]} : vector<9x32xf32> to vector<1x32xf32>
    %225 = vector.extract_strided_slice %216 {offsets = [8, 0], sizes = [1, 32], strides = [1, 1]} : vector<9x32xf32> to vector<1x32xf32>
    %226 = arith.truncf %214 : vector<128x32xf32> to vector<128x32xbf16>
    %c4 = arith.constant 4 : index
    %c0_65 = arith.constant 0 : index
    %c0_66 = arith.constant 0 : index
    %227 = vector.load %arg5[%c4, %c0_65, %c0_66] : memref<8x32x32xbf16, #tpu.memory_space<vmem>>, vector<1x32x32xbf16>
    %228 = vector.shape_cast %227 : vector<1x32x32xbf16> to vector<32x32xbf16>
    %cst_67 = arith.constant dense<0.000000e+00> : vector<128x32xf32>
    %229 = tpu.matmul %226, %228, %cst_67 {dimension_numbers = #tpu.dot_dimension_numbers<[1], [0], [0], [1], [0, 0, 1, 1], [], []>} : vector<128x32xbf16>, vector<32x32xbf16>, vector<128x32xf32> -> vector<128x32xf32>
    %230 = vector.broadcast %217 : vector<1x32xf32> to vector<128x32xf32>
    %231 = arith.addf %229, %230 : vector<128x32xf32>
    %c5 = arith.constant 5 : index
    %c0_68 = arith.constant 0 : index
    %c0_69 = arith.constant 0 : index
    %232 = vector.load %arg5[%c5, %c0_68, %c0_69] : memref<8x32x32xbf16, #tpu.memory_space<vmem>>, vector<1x32x32xbf16>
    %233 = vector.shape_cast %232 : vector<1x32x32xbf16> to vector<32x32xbf16>
    %cst_70 = arith.constant dense<0.000000e+00> : vector<128x32xf32>
    %234 = tpu.matmul %226, %233, %cst_70 {dimension_numbers = #tpu.dot_dimension_numbers<[1], [0], [0], [1], [0, 0, 1, 1], [], []>} : vector<128x32xbf16>, vector<32x32xbf16>, vector<128x32xf32> -> vector<128x32xf32>
    %235 = vector.broadcast %218 : vector<1x32xf32> to vector<128x32xf32>
    %236 = arith.addf %234, %235 : vector<128x32xf32>
    %c6 = arith.constant 6 : index
    %c0_71 = arith.constant 0 : index
    %c0_72 = arith.constant 0 : index
    %237 = vector.load %arg5[%c6, %c0_71, %c0_72] : memref<8x32x32xbf16, #tpu.memory_space<vmem>>, vector<1x32x32xbf16>
    %238 = vector.shape_cast %237 : vector<1x32x32xbf16> to vector<32x32xbf16>
    %cst_73 = arith.constant dense<0.000000e+00> : vector<128x32xf32>
    %239 = tpu.matmul %226, %238, %cst_73 {dimension_numbers = #tpu.dot_dimension_numbers<[1], [0], [0], [1], [0, 0, 1, 1], [], []>} : vector<128x32xbf16>, vector<32x32xbf16>, vector<128x32xf32> -> vector<128x32xf32>
    %240 = vector.broadcast %219 : vector<1x32xf32> to vector<128x32xf32>
    %241 = arith.addf %239, %240 : vector<128x32xf32>
    %242 = vector.shape_cast %231 : vector<128x32xf32> to vector<8x16x32xf32>
    %243 = vector.extract_strided_slice %242 {offsets = [0, 0, 0], sizes = [8, 16, 8], strides = [1, 1, 1]} : vector<8x16x32xf32> to vector<8x16x8xf32>
    %244 = vector.extract_strided_slice %242 {offsets = [0, 0, 8], sizes = [8, 16, 8], strides = [1, 1, 1]} : vector<8x16x32xf32> to vector<8x16x8xf32>
    %245 = vector.extract_strided_slice %242 {offsets = [0, 0, 16], sizes = [8, 16, 8], strides = [1, 1, 1]} : vector<8x16x32xf32> to vector<8x16x8xf32>
    %246 = vector.extract_strided_slice %242 {offsets = [0, 0, 24], sizes = [8, 16, 8], strides = [1, 1, 1]} : vector<8x16x32xf32> to vector<8x16x8xf32>
    %247 = vector.shape_cast %243 : vector<8x16x8xf32> to vector<8x1x16x8xf32>
    %248 = vector.shape_cast %244 : vector<8x16x8xf32> to vector<8x1x16x8xf32>
    %249 = vector.shape_cast %245 : vector<8x16x8xf32> to vector<8x1x16x8xf32>
    %250 = vector.shape_cast %246 : vector<8x16x8xf32> to vector<8x1x16x8xf32>
    %251 = tpu.concatenate %247, %248, %249, %250 in 1 : vector<8x1x16x8xf32>, vector<8x1x16x8xf32>, vector<8x1x16x8xf32>, vector<8x1x16x8xf32> -> vector<8x4x16x8xf32>
    %252 = vector.shape_cast %251 : vector<8x4x16x8xf32> to vector<32x16x8xf32>
    %253 = arith.truncf %252 : vector<32x16x8xf32> to vector<32x16x8xbf16>
    %254 = vector.shape_cast %236 : vector<128x32xf32> to vector<8x16x32xf32>
    %255 = vector.extract_strided_slice %254 {offsets = [0, 0, 0], sizes = [8, 16, 8], strides = [1, 1, 1]} : vector<8x16x32xf32> to vector<8x16x8xf32>
    %256 = vector.extract_strided_slice %254 {offsets = [0, 0, 8], sizes = [8, 16, 8], strides = [1, 1, 1]} : vector<8x16x32xf32> to vector<8x16x8xf32>
    %257 = vector.extract_strided_slice %254 {offsets = [0, 0, 16], sizes = [8, 16, 8], strides = [1, 1, 1]} : vector<8x16x32xf32> to vector<8x16x8xf32>
    %258 = vector.extract_strided_slice %254 {offsets = [0, 0, 24], sizes = [8, 16, 8], strides = [1, 1, 1]} : vector<8x16x32xf32> to vector<8x16x8xf32>
    %259 = vector.shape_cast %255 : vector<8x16x8xf32> to vector<8x1x16x8xf32>
    %260 = vector.shape_cast %256 : vector<8x16x8xf32> to vector<8x1x16x8xf32>
    %261 = vector.shape_cast %257 : vector<8x16x8xf32> to vector<8x1x16x8xf32>
    %262 = vector.shape_cast %258 : vector<8x16x8xf32> to vector<8x1x16x8xf32>
    %263 = tpu.concatenate %259, %260, %261, %262 in 1 : vector<8x1x16x8xf32>, vector<8x1x16x8xf32>, vector<8x1x16x8xf32>, vector<8x1x16x8xf32> -> vector<8x4x16x8xf32>
    %264 = vector.shape_cast %263 : vector<8x4x16x8xf32> to vector<32x16x8xf32>
    %265 = arith.truncf %264 : vector<32x16x8xf32> to vector<32x16x8xbf16>
    %266 = vector.shape_cast %241 : vector<128x32xf32> to vector<8x16x32xf32>
    %267 = vector.extract_strided_slice %266 {offsets = [0, 0, 0], sizes = [8, 16, 8], strides = [1, 1, 1]} : vector<8x16x32xf32> to vector<8x16x8xf32>
    %268 = vector.extract_strided_slice %266 {offsets = [0, 0, 8], sizes = [8, 16, 8], strides = [1, 1, 1]} : vector<8x16x32xf32> to vector<8x16x8xf32>
    %269 = vector.extract_strided_slice %266 {offsets = [0, 0, 16], sizes = [8, 16, 8], strides = [1, 1, 1]} : vector<8x16x32xf32> to vector<8x16x8xf32>
    %270 = vector.extract_strided_slice %266 {offsets = [0, 0, 24], sizes = [8, 16, 8], strides = [1, 1, 1]} : vector<8x16x32xf32> to vector<8x16x8xf32>
    %271 = vector.shape_cast %267 : vector<8x16x8xf32> to vector<8x1x16x8xf32>
    %272 = vector.shape_cast %268 : vector<8x16x8xf32> to vector<8x1x16x8xf32>
    %273 = vector.shape_cast %269 : vector<8x16x8xf32> to vector<8x1x16x8xf32>
    %274 = vector.shape_cast %270 : vector<8x16x8xf32> to vector<8x1x16x8xf32>
    %275 = tpu.concatenate %271, %272, %273, %274 in 1 : vector<8x1x16x8xf32>, vector<8x1x16x8xf32>, vector<8x1x16x8xf32>, vector<8x1x16x8xf32> -> vector<8x4x16x8xf32>
    %276 = vector.shape_cast %275 : vector<8x4x16x8xf32> to vector<32x16x8xf32>
    %277 = arith.truncf %276 : vector<32x16x8xf32> to vector<32x16x8xbf16>
    "tpu.trace_start"() <{level = 10 : i32, message = "bqd,bkd->bqk"}> : () -> ()
    %cst_74 = arith.constant dense<0.000000e+00> : vector<32x16x16xf32>
    %278 = tpu.matmul %253, %265, %cst_74 {dimension_numbers = #tpu.dot_dimension_numbers<[2], [2], [1], [1], [0, 0, 0, 1, 1, 1], [0], [0]>} : vector<32x16x8xbf16>, vector<32x16x8xbf16>, vector<32x16x16xf32> -> vector<32x16x16xf32>
    "tpu.trace_stop"() : () -> ()
    %279 = vector.shape_cast %278 : vector<32x16x16xf32> to vector<8x4x16x16xf32>
    %cst_75 = arith.constant 0.353553385 : f32
    %280 = vector.broadcast %cst_75 : f32 to vector<8x4x16x16xf32>
    %281 = arith.mulf %279, %280 : vector<8x4x16x16xf32>
    %282 = vector.shape_cast %5 : vector<8x16xf32> to vector<8x1x1x16xf32>
    %283 = vector.broadcast %282 : vector<8x1x1x16xf32> to vector<8x4x16x16xf32>
    %284 = arith.addf %281, %283 : vector<8x4x16x16xf32>
    %cst_76 = arith.constant dense<0xFF800000> : vector<8x4x16xf32>
    %285 = vector.multi_reduction <maximumf>, %284, %cst_76 [3] : vector<8x4x16x16xf32> to vector<8x4x16xf32>
    %286 = vector.shape_cast %285 : vector<8x4x16xf32> to vector<8x4x16x1xf32>
    %287 = vector.broadcast %286 : vector<8x4x16x1xf32> to vector<8x4x16x16xf32>
    %288 = arith.subf %284, %287 : vector<8x4x16x16xf32>
    %289 = math.exp %288 : vector<8x4x16x16xf32>
    %cst_77 = arith.constant dense<0.000000e+00> : vector<8x4x16xf32>
    %290 = vector.multi_reduction <add>, %289, %cst_77 [3] : vector<8x4x16x16xf32> to vector<8x4x16xf32>
    %291 = vector.shape_cast %290 : vector<8x4x16xf32> to vector<8x4x16x1xf32>
    %292 = tpu.reciprocal %291 {approx = true} : vector<8x4x16x1xf32> -> vector<8x4x16x1xf32>
    %293 = vector.broadcast %292 : vector<8x4x16x1xf32> to vector<8x4x16x16xf32>
    %294 = arith.mulf %289, %293 : vector<8x4x16x16xf32>
    %295 = vector.shape_cast %294 : vector<8x4x16x16xf32> to vector<32x16x16xf32>
    %296 = arith.truncf %295 : vector<32x16x16xf32> to vector<32x16x16xbf16>
    "tpu.trace_start"() <{level = 10 : i32, message = "bqk,bkd->bqd"}> : () -> ()
    %cst_78 = arith.constant dense<0.000000e+00> : vector<32x16x8xf32>
    %297 = tpu.matmul %296, %277, %cst_78 {dimension_numbers = #tpu.dot_dimension_numbers<[2], [1], [1], [2], [0, 0, 0, 1, 1, 2], [0], [0]>} : vector<32x16x16xbf16>, vector<32x16x8xbf16>, vector<32x16x8xf32> -> vector<32x16x8xf32>
    "tpu.trace_stop"() : () -> ()
    %298 = vector.shape_cast %297 : vector<32x16x8xf32> to vector<8x4x16x8xf32>
    %299 = vector.extract_strided_slice %298 {offsets = [0, 0, 0, 0], sizes = [8, 1, 16, 8], strides = [1, 1, 1, 1]} : vector<8x4x16x8xf32> to vector<8x1x16x8xf32>
    %300 = vector.shape_cast %299 : vector<8x1x16x8xf32> to vector<8x16x8xf32>
    %301 = vector.extract_strided_slice %298 {offsets = [0, 1, 0, 0], sizes = [8, 1, 16, 8], strides = [1, 1, 1, 1]} : vector<8x4x16x8xf32> to vector<8x1x16x8xf32>
    %302 = vector.shape_cast %301 : vector<8x1x16x8xf32> to vector<8x16x8xf32>
    %303 = vector.extract_strided_slice %298 {offsets = [0, 2, 0, 0], sizes = [8, 1, 16, 8], strides = [1, 1, 1, 1]} : vector<8x4x16x8xf32> to vector<8x1x16x8xf32>
    %304 = vector.shape_cast %303 : vector<8x1x16x8xf32> to vector<8x16x8xf32>
    %305 = vector.extract_strided_slice %298 {offsets = [0, 3, 0, 0], sizes = [8, 1, 16, 8], strides = [1, 1, 1, 1]} : vector<8x4x16x8xf32> to vector<8x1x16x8xf32>
    %306 = vector.shape_cast %305 : vector<8x1x16x8xf32> to vector<8x16x8xf32>
    %307 = tpu.concatenate %300, %302, %304, %306 in 2 : vector<8x16x8xf32>, vector<8x16x8xf32>, vector<8x16x8xf32>, vector<8x16x8xf32> -> vector<8x16x32xf32>
    %308 = vector.shape_cast %307 : vector<8x16x32xf32> to vector<128x32xf32>
    %309 = arith.truncf %308 : vector<128x32xf32> to vector<128x32xbf16>
    %c7 = arith.constant 7 : index
    %c0_79 = arith.constant 0 : index
    %c0_80 = arith.constant 0 : index
    %310 = vector.load %arg5[%c7, %c0_79, %c0_80] : memref<8x32x32xbf16, #tpu.memory_space<vmem>>, vector<1x32x32xbf16>
    %311 = vector.shape_cast %310 : vector<1x32x32xbf16> to vector<32x32xbf16>
    %cst_81 = arith.constant dense<0.000000e+00> : vector<128x32xf32>
    %312 = tpu.matmul %309, %311, %cst_81 {dimension_numbers = #tpu.dot_dimension_numbers<[1], [0], [0], [1], [0, 0, 1, 1], [], []>} : vector<128x32xbf16>, vector<32x32xbf16>, vector<128x32xf32> -> vector<128x32xf32>
    %313 = vector.broadcast %220 : vector<1x32xf32> to vector<128x32xf32>
    %314 = arith.addf %312, %313 : vector<128x32xf32>
    %315 = arith.addf %214, %314 : vector<128x32xf32>
    %cst_82 = arith.constant dense<0.000000e+00> : vector<128xf32>
    %316 = vector.multi_reduction <add>, %315, %cst_82 [1] : vector<128x32xf32> to vector<128xf32>
    %317 = vector.shape_cast %316 : vector<128xf32> to vector<128x1xf32>
    %cst_83 = arith.constant 3.200000e+01 : f32
    %318 = vector.broadcast %cst_83 : f32 to vector<128x1xf32>
    %319 = arith.divf %317, %318 : vector<128x1xf32>
    %320 = vector.broadcast %319 : vector<128x1xf32> to vector<128x32xf32>
    %321 = arith.subf %315, %320 : vector<128x32xf32>
    %322 = arith.mulf %321, %321 : vector<128x32xf32>
    %cst_84 = arith.constant dense<0.000000e+00> : vector<128xf32>
    %323 = vector.multi_reduction <add>, %322, %cst_84 [1] : vector<128x32xf32> to vector<128xf32>
    %324 = vector.shape_cast %323 : vector<128xf32> to vector<128x1xf32>
    %cst_85 = arith.constant 3.200000e+01 : f32
    %325 = vector.broadcast %cst_85 : f32 to vector<128x1xf32>
    %326 = arith.divf %324, %325 : vector<128x1xf32>
    %327 = vector.broadcast %319 : vector<128x1xf32> to vector<128x32xf32>
    %328 = arith.subf %315, %327 : vector<128x32xf32>
    %cst_86 = arith.constant 9.99999974E-6 : f32
    %329 = vector.broadcast %cst_86 : f32 to vector<128x1xf32>
    %330 = arith.addf %326, %329 : vector<128x1xf32>
    %331 = math.rsqrt %330 : vector<128x1xf32>
    %332 = vector.broadcast %331 : vector<128x1xf32> to vector<128x32xf32>
    %333 = arith.mulf %328, %332 : vector<128x32xf32>
    %334 = vector.broadcast %221 : vector<1x32xf32> to vector<128x32xf32>
    %335 = arith.mulf %333, %334 : vector<128x32xf32>
    %336 = vector.broadcast %222 : vector<1x32xf32> to vector<128x32xf32>
    %337 = arith.addf %335, %336 : vector<128x32xf32>
    %338 = arith.truncf %337 : vector<128x32xf32> to vector<128x32xbf16>
    %c1_87 = arith.constant 1 : index
    %c0_88 = arith.constant 0 : index
    %c0_89 = arith.constant 0 : index
    %339 = vector.load %arg7[%c1_87, %c0_88, %c0_89] : memref<2x32x64xbf16, #tpu.memory_space<vmem>>, vector<1x32x64xbf16>
    %340 = vector.shape_cast %339 : vector<1x32x64xbf16> to vector<32x64xbf16>
    %cst_90 = arith.constant dense<0.000000e+00> : vector<128x64xf32>
    %341 = tpu.matmul %338, %340, %cst_90 {dimension_numbers = #tpu.dot_dimension_numbers<[1], [0], [0], [1], [0, 0, 1, 1], [], []>} : vector<128x32xbf16>, vector<32x64xbf16>, vector<128x64xf32> -> vector<128x64xf32>
    %c1_91 = arith.constant 1 : index
    %c0_92 = arith.constant 0 : index
    %c0_93 = arith.constant 0 : index
    %342 = vector.load %arg8[%c1_91, %c0_92, %c0_93] : memref<2x1x64xf32, #tpu.memory_space<vmem>>, vector<1x1x64xf32>
    %343 = vector.shape_cast %342 : vector<1x1x64xf32> to vector<1x64xf32>
    %344 = vector.broadcast %343 : vector<1x64xf32> to vector<128x64xf32>
    %345 = arith.addf %341, %344 : vector<128x64xf32>
    %346 = arith.mulf %345, %345 : vector<128x64xf32>
    %347 = arith.mulf %345, %346 : vector<128x64xf32>
    %cst_94 = arith.constant 4.471500e-02 : f32
    %348 = vector.broadcast %cst_94 : f32 to vector<128x64xf32>
    %349 = arith.mulf %348, %347 : vector<128x64xf32>
    %350 = arith.addf %345, %349 : vector<128x64xf32>
    %cst_95 = arith.constant 0.797884583 : f32
    %351 = vector.broadcast %cst_95 : f32 to vector<128x64xf32>
    %352 = arith.mulf %351, %350 : vector<128x64xf32>
    %353 = math.tanh %352 : vector<128x64xf32>
    %cst_96 = arith.constant 1.000000e+00 : f32
    %354 = vector.broadcast %cst_96 : f32 to vector<128x64xf32>
    %355 = arith.addf %354, %353 : vector<128x64xf32>
    %cst_97 = arith.constant 5.000000e-01 : f32
    %356 = vector.broadcast %cst_97 : f32 to vector<128x64xf32>
    %357 = arith.mulf %356, %355 : vector<128x64xf32>
    %358 = arith.mulf %345, %357 : vector<128x64xf32>
    %359 = arith.truncf %358 : vector<128x64xf32> to vector<128x64xbf16>
    %c1_98 = arith.constant 1 : index
    %c0_99 = arith.constant 0 : index
    %c0_100 = arith.constant 0 : index
    %360 = vector.load %arg9[%c1_98, %c0_99, %c0_100] : memref<2x64x32xbf16, #tpu.memory_space<vmem>>, vector<1x64x32xbf16>
    %361 = vector.shape_cast %360 : vector<1x64x32xbf16> to vector<64x32xbf16>
    %cst_101 = arith.constant dense<0.000000e+00> : vector<128x32xf32>
    %362 = tpu.matmul %359, %361, %cst_101 {dimension_numbers = #tpu.dot_dimension_numbers<[1], [0], [0], [1], [0, 0, 1, 1], [], []>} : vector<128x64xbf16>, vector<64x32xbf16>, vector<128x32xf32> -> vector<128x32xf32>
    %363 = vector.broadcast %223 : vector<1x32xf32> to vector<128x32xf32>
    %364 = arith.addf %362, %363 : vector<128x32xf32>
    %365 = arith.addf %337, %364 : vector<128x32xf32>
    %cst_102 = arith.constant dense<0.000000e+00> : vector<128xf32>
    %366 = vector.multi_reduction <add>, %365, %cst_102 [1] : vector<128x32xf32> to vector<128xf32>
    %367 = vector.shape_cast %366 : vector<128xf32> to vector<128x1xf32>
    %cst_103 = arith.constant 3.200000e+01 : f32
    %368 = vector.broadcast %cst_103 : f32 to vector<128x1xf32>
    %369 = arith.divf %367, %368 : vector<128x1xf32>
    %370 = vector.broadcast %369 : vector<128x1xf32> to vector<128x32xf32>
    %371 = arith.subf %365, %370 : vector<128x32xf32>
    %372 = arith.mulf %371, %371 : vector<128x32xf32>
    %cst_104 = arith.constant dense<0.000000e+00> : vector<128xf32>
    %373 = vector.multi_reduction <add>, %372, %cst_104 [1] : vector<128x32xf32> to vector<128xf32>
    %374 = vector.shape_cast %373 : vector<128xf32> to vector<128x1xf32>
    %cst_105 = arith.constant 3.200000e+01 : f32
    %375 = vector.broadcast %cst_105 : f32 to vector<128x1xf32>
    %376 = arith.divf %374, %375 : vector<128x1xf32>
    %377 = vector.broadcast %369 : vector<128x1xf32> to vector<128x32xf32>
    %378 = arith.subf %365, %377 : vector<128x32xf32>
    %cst_106 = arith.constant 9.99999974E-6 : f32
    %379 = vector.broadcast %cst_106 : f32 to vector<128x1xf32>
    %380 = arith.addf %376, %379 : vector<128x1xf32>
    %381 = math.rsqrt %380 : vector<128x1xf32>
    %382 = vector.broadcast %381 : vector<128x1xf32> to vector<128x32xf32>
    %383 = arith.mulf %378, %382 : vector<128x32xf32>
    %384 = vector.broadcast %224 : vector<1x32xf32> to vector<128x32xf32>
    %385 = arith.mulf %383, %384 : vector<128x32xf32>
    %386 = vector.broadcast %225 : vector<1x32xf32> to vector<128x32xf32>
    %387 = arith.addf %385, %386 : vector<128x32xf32>
    %388 = vector.shape_cast %387 : vector<128x32xf32> to vector<8x16x32xf32>
    %389 = vector.extract_strided_slice %388 {offsets = [0, 0, 0], sizes = [8, 1, 32], strides = [1, 1, 1]} : vector<8x16x32xf32> to vector<8x1x32xf32>
    %390 = vector.shape_cast %389 : vector<8x1x32xf32> to vector<8x32xf32>
    %c0_107 = arith.constant 0 : index
    %c0_108 = arith.constant 0 : index
    %391 = vector.load %arg10[%c0_107, %c0_108] : memref<8x32xf32, #tpu.memory_space<vmem>>, vector<8x32xf32>
    tpu.vector_store %arg10[%c0_107, %c0_108], %390 {strides = array<i32>} : memref<8x32xf32, #tpu.memory_space<vmem>>, vector<8x32xf32>,
    return
  }
  func.func @transform_0(%arg0: i32) -> (i32, i32) {
    %c0_i32 = arith.constant 0 : i32
    %c0_i32_0 = arith.constant 0 : i32
    return %arg0, %c0_i32 : i32, i32
  }
  func.func @transform_1(%arg0: i32) -> (i32, i32) {
    %c0_i32 = arith.constant 0 : i32
    %c0_i32_0 = arith.constant 0 : i32
    %c0_i32_1 = arith.constant 0 : i32
    return %c0_i32, %c0_i32_0 : i32, i32
  }
  func.func @transform_2(%arg0: i32) -> (i32, i32) {
    %c0_i32 = arith.constant 0 : i32
    %c0_i32_0 = arith.constant 0 : i32
    %c0_i32_1 = arith.constant 0 : i32
    return %c0_i32, %c0_i32_0 : i32, i32
  }
  func.func @transform_3(%arg0: i32) -> (i32, i32) {
    %c0_i32 = arith.constant 0 : i32
    %c0_i32_0 = arith.constant 0 : i32
    %c0_i32_1 = arith.constant 0 : i32
    return %c0_i32, %c0_i32_0 : i32, i32
  }
  func.func @transform_4(%arg0: i32) -> (i32, i32, i32) {
    %c0_i32 = arith.constant 0 : i32
    %c0_i32_0 = arith.constant 0 : i32
    %c0_i32_1 = arith.constant 0 : i32
    %c0_i32_2 = arith.constant 0 : i32
    return %c0_i32, %c0_i32_0, %c0_i32_1 : i32, i32, i32
  }
  func.func @transform_5(%arg0: i32) -> (i32, i32, i32) {
    %c0_i32 = arith.constant 0 : i32
    %c0_i32_0 = arith.constant 0 : i32
    %c0_i32_1 = arith.constant 0 : i32
    %c0_i32_2 = arith.constant 0 : i32
    return %c0_i32, %c0_i32_0, %c0_i32_1 : i32, i32, i32
  }
  func.func @transform_6(%arg0: i32) -> (i32, i32, i32) {
    %c0_i32 = arith.constant 0 : i32
    %c0_i32_0 = arith.constant 0 : i32
    %c0_i32_1 = arith.constant 0 : i32
    %c0_i32_2 = arith.constant 0 : i32
    return %c0_i32, %c0_i32_0, %c0_i32_1 : i32, i32, i32
  }
  func.func @transform_7(%arg0: i32) -> (i32, i32, i32) {
    %c0_i32 = arith.constant 0 : i32
    %c0_i32_0 = arith.constant 0 : i32
    %c0_i32_1 = arith.constant 0 : i32
    %c0_i32_2 = arith.constant 0 : i32
    return %c0_i32, %c0_i32_0, %c0_i32_1 : i32, i32, i32
  }
  func.func @transform_8(%arg0: i32) -> (i32, i32, i32) {
    %c0_i32 = arith.constant 0 : i32
    %c0_i32_0 = arith.constant 0 : i32
    %c0_i32_1 = arith.constant 0 : i32
    %c0_i32_2 = arith.constant 0 : i32
    return %c0_i32, %c0_i32_0, %c0_i32_1 : i32, i32, i32
  }
  func.func @transform_9(%arg0: i32) -> (i32, i32) {
    %c0_i32 = arith.constant 0 : i32
    %c0_i32_0 = arith.constant 0 : i32
    return %arg0, %c0_i32 : i32, i32
  }
}

</mosaic_0001>

<llo_original>
// kernel: _encoder_cls_forward.1
$region0: #{_encoder_cls_forward.1}
  #allocation0 [shape = 'u32[]', space=smem, size = 0x4, offset = 0x4, fixed_abs, tag = 'smem constant byte address 0x4 - core index']
  #allocation1 [shape = 'u32[72,128]{1,0:T(1,128)}', space=vmem, size = 0x9000, scoped, tag = 'internal scratch']
  %s0 = inlined_call_operand.vmem [shape: s32[16,16], index: 0, kind: input, shape index: {}]
  %s1 = inlined_call_operand.vmem [shape: f32[50,32], index: 1, kind: input, shape index: {}]
  %s2 = inlined_call_operand.vmem [shape: f32[16,32], index: 2, kind: input, shape index: {}]
  %s3 = inlined_call_operand.vmem [shape: f32[2,32], index: 3, kind: input, shape index: {}]
  %s4 = inlined_call_operand.vmem [shape: bf16[8,32,32], index: 4, kind: input, shape index: {}]
  %s5 = inlined_call_operand.vmem [shape: f32[2,9,32], index: 5, kind: input, shape index: {}]
  %s6 = inlined_call_operand.vmem [shape: bf16[2,32,64], index: 6, kind: input, shape index: {}]
  %s7 = inlined_call_operand.vmem [shape: f32[2,1,64], index: 7, kind: input, shape index: {}]
  %s8 = inlined_call_operand.vmem [shape: bf16[2,64,32], index: 8, kind: input, shape index: {}]
  %s9 = inlined_call_operand.hbm [shape: f32[16,32], index: 9, kind: output, shape index: {}]
  %s10 = sld [smem:[#allocation0]]
  $region69: #{_encoder_cls_forward.1} parent=0
    _
  %s12 = ssub.s32 1, %s10
  %s13 = scalar_select 0, %s12, %s10
  $region1: #{_encoder_cls_forward.1} parent=0
    #allocation2 [shape = 'u8[8192]{0}', space=vmem, size = 0x2000, scoped, tag = 'output window, operand 0']
    #allocation3 [shape = 's32[2]{0}', space=sflag, size = 0x8, scoped, tag = 'scoped memory for _encoder_cls_forward.1']
    %14 = vsyncpa [#allocation3], 0
    %s15 = scalar_lea.sflag [#allocation3], 1
    %16 = vsyncpa %s15, 0
    loop: start=0, step=1, limit=4
    $region2: #{_encoder_cls_forward.1} parent=1 // loop_pre_header
      _
    $region3: #{_encoder_cls_forward.1} parent=1 // loop_header
      %s18 = sphi 0, %s22
      %p19 = scmp.ge.s32.totalorder %s18, 4
      %s28 = sphi 0, %s30
      %s31 = sphi 0, %s28
      %s32 = sphi 0, %s31
      %s48 = sphi 0, %s32
      %s52 = sphi 0, %s52
      %s54 = sphi 0, %s52
      %s55 = sphi 0, %s54
      %s69 = sphi 0, %s55
      %s73 = sphi 0, %s73
      %s75 = sphi 0, %s73
      %s76 = sphi 0, %s75
      %s90 = sphi 0, %s76
      %s94 = sphi 0, %s94
      %s96 = sphi 0, %s94
      %s97 = sphi 0, %s96
      %s111 = sphi 0, %s97
      %s115 = sphi 0, %s115
      %s117 = sphi 0, %s115
      %s118 = sphi 0, %s117
      %s132 = sphi 0, %s118
      %s136 = sphi 0, %s136
      %s138 = sphi 0, %s136
      %s139 = sphi 0, %s138
      %s153 = sphi 0, %s139
      %s157 = sphi 0, %s157
      %s159 = sphi 0, %s157
      %s160 = sphi 0, %s159
      %s174 = sphi 0, %s160
      %s178 = sphi 0, %s178
      %s180 = sphi 0, %s178
      %s181 = sphi 0, %s180
      %s195 = sphi 0, %s181
      %s199 = sphi 0, %s199
      %s201 = sphi 0, %s199
      %s202 = sphi 0, %s201
      %s216 = sphi 0, %s202
      %s222 = sphi 0, %s224
      %s225 = sphi 0, %s222
      %s226 = sphi 0, %s225
      %s242 = sphi 0, %s226
    $region4: #{_encoder_cls_forward.1} parent=1 // loop_header_branch
      %21 = sbr.rel (%p19) target = $region8
    $region5: #{_encoder_cls_forward.1} parent=1 // loop_body
      %s23 = ssub.s32 %s18, 1
      %s24 = ssub.s32 %s18, 2
      %s25 = sadd.s32 %s18, 1
      %s26 = ssub.s32 %s18, %s25
      %p27 = scmp.eq.s32.totalorder %s26, 0
      %s29 = sadd.s32 %s28, 1
      %s30 = scalar_select %p27, %s28, %s29
      %p33 = pneg %p27
      %p34 = scmp.eq.s32.totalorder %s18, 1
      %p35 = por %p33, %p34
      %p36 = scmp.ne.s32.totalorder %s28, %s31
      %p37 = scmp.eq.s32.totalorder %s18, 0
      %p38 = por %p36, %p37
      %p39 = scmp.ne.s32.totalorder %s28, %s31
      %p40 = scmp.eq.s32.totalorder %s23, 1
      %p41 = por %p39, %p40
      %p42 = scmp.ne.s32.totalorder %s31, %s32
      %p43 = scmp.eq.s32.totalorder %s23, 0
      %p44 = por %p42, %p43
      %p45 = scmp.ne.s32.totalorder %s31, %s32
      %p46 = scmp.eq.s32.totalorder %s24, 1
      %p47 = por %p45, %p46
      %p49 = scmp.ne.s32.totalorder %s32, %s48
      %p50 = scmp.eq.s32.totalorder %s24, 0
      %p51 = por %p49, %p50
      %s53 = sadd.s32 %s52, 1
      %p56 = scmp.eq.s32.totalorder %s18, 1
      %p57 = scmp.ne.s32.totalorder %s52, %s54
      %p58 = scmp.eq.s32.totalorder %s18, 0
      %p59 = por %p57, %p58
      %p60 = scmp.ne.s32.totalorder %s52, %s54
      %p61 = scmp.eq.s32.totalorder %s23, 1
      %p62 = por %p60, %p61
      %p63 = scmp.ne.s32.totalorder %s54, %s55
      %p64 = scmp.eq.s32.totalorder %s23, 0
      %p65 = por %p63, %p64
      %p66 = scmp.ne.s32.totalorder %s54, %s55
      %p67 = scmp.eq.s32.totalorder %s24, 1
      %p68 = por %p66, %p67
      %p70 = scmp.ne.s32.totalorder %s55, %s69
      %p71 = scmp.eq.s32.totalorder %s24, 0
      %p72 = por %p70, %p71
      %s74 = sadd.s32 %s73, 1
      %p77 = scmp.eq.s32.totalorder %s18, 1
      %p78 = scmp.ne.s32.totalorder %s73, %s75
      %p79 = scmp.eq.s32.totalorder %s18, 0
      %p80 = por %p78, %p79
      %p81 = scmp.ne.s32.totalorder %s73, %s75
      %p82 = scmp.eq.s32.totalorder %s23, 1
      %p83 = por %p81, %p82
      %p84 = scmp.ne.s32.totalorder %s75, %s76
      %p85 = scmp.eq.s32.totalorder %s23, 0
      %p86 = por %p84, %p85
      %p87 = scmp.ne.s32.totalorder %s75, %s76
      %p88 = scmp.eq.s32.totalorder %s24, 1
      %p89 = por %p87, %p88
      %p91 = scmp.ne.s32.totalorder %s76, %s90
      %p92 = scmp.eq.s32.totalorder %s24, 0
      %p93 = por %p91, %p92
      %s95 = sadd.s32 %s94, 1
      %p98 = scmp.eq.s32.totalorder %s18, 1
      %p99 = scmp.ne.s32.totalorder %s94, %s96
      %p100 = scmp.eq.s32.totalorder %s18, 0
      %p101 = por %p99, %p100
      %p102 = scmp.ne.s32.totalorder %s94, %s96
      %p103 = scmp.eq.s32.totalorder %s23, 1
      %p104 = por %p102, %p103
      %p105 = scmp.ne.s32.totalorder %s96, %s97
      %p106 = scmp.eq.s32.totalorder %s23, 0
      %p107 = por %p105, %p106
      %p108 = scmp.ne.s32.totalorder %s96, %s97
      %p109 = scmp.eq.s32.totalorder %s24, 1
      %p110 = por %p108, %p109
      %p112 = scmp.ne.s32.totalorder %s97, %s111
      %p113 = scmp.eq.s32.totalorder %s24, 0
      %p114 = por %p112, %p113
      %s116 = sadd.s32 %s115, 1
      %p119 = scmp.eq.s32.totalorder %s18, 1
      %p120 = scmp.ne.s32.totalorder %s115, %s117
      %p121 = scmp.eq.s32.totalorder %s18, 0
      %p122 = por %p120, %p121
      %p123 = scmp.ne.s32.totalorder %s115, %s117
      %p124 = scmp.eq.s32.totalorder %s23, 1
      %p125 = por %p123, %p124
      %p126 = scmp.ne.s32.totalorder %s117, %s118
      %p127 = scmp.eq.s32.totalorder %s23, 0
      %p128 = por %p126, %p127
      %p129 = scmp.ne.s32.totalorder %s117, %s118
      %p130 = scmp.eq.s32.totalorder %s24, 1
      %p131 = por %p129, %p130
      %p133 = scmp.ne.s32.totalorder %s118, %s132
      %p134 = scmp.eq.s32.totalorder %s24, 0
      %p135 = por %p133, %p134
      %s137 = sadd.s32 %s136, 1
      %p140 = scmp.eq.s32.totalorder %s18, 1
      %p141 = scmp.ne.s32.totalorder %s136, %s138
      %p142 = scmp.eq.s32.totalorder %s18, 0
      %p143 = por %p141, %p142
      %p144 = scmp.ne.s32.totalorder %s136, %s138
      %p145 = scmp.eq.s32.totalorder %s23, 1
      %p146 = por %p144, %p145
      %p147 = scmp.ne.s32.totalorder %s138, %s139
      %p148 = scmp.eq.s32.totalorder %s23, 0
      %p149 = por %p147, %p148
      %p150 = scmp.ne.s32.totalorder %s138, %s139
      %p151 = scmp.eq.s32.totalorder %s24, 1
      %p152 = por %p150, %p151
      %p154 = scmp.ne.s32.totalorder %s139, %s153
      %p155 = scmp.eq.s32.totalorder %s24, 0
      %p156 = por %p154, %p155
      %s158 = sadd.s32 %s157, 1
      %p161 = scmp.eq.s32.totalorder %s18, 1
      %p162 = scmp.ne.s32.totalorder %s157, %s159
      %p163 = scmp.eq.s32.totalorder %s18, 0
      %p164 = por %p162, %p163
      %p165 = scmp.ne.s32.totalorder %s157, %s159
      %p166 = scmp.eq.s32.totalorder %s23, 1
      %p167 = por %p165, %p166
      %p168 = scmp.ne.s32.totalorder %s159, %s160
      %p169 = scmp.eq.s32.totalorder %s23, 0
      %p170 = por %p168, %p169
      %p171 = scmp.ne.s32.totalorder %s159, %s160
      %p172 = scmp.eq.s32.totalorder %s24, 1
      %p173 = por %p171, %p172
      %p175 = scmp.ne.s32.totalorder %s160, %s174
      %p176 = scmp.eq.s32.totalorder %s24, 0
      %p177 = por %p175, %p176
      %s179 = sadd.s32 %s178, 1
      %p182 = scmp.eq.s32.totalorder %s18, 1
      %p183 = scmp.ne.s32.totalorder %s178, %s180
      %p184 = scmp.eq.s32.totalorder %s18, 0
      %p185 = por %p183, %p184
      %p186 = scmp.ne.s32.totalorder %s178, %s180
      %p187 = scmp.eq.s32.totalorder %s23, 1
      %p188 = por %p186, %p187
      %p189 = scmp.ne.s32.totalorder %s180, %s181
      %p190 = scmp.eq.s32.totalorder %s23, 0
      %p191 = por %p189, %p190
      %p192 = scmp.ne.s32.totalorder %s180, %s181
      %p193 = scmp.eq.s32.totalorder %s24, 1
      %p194 = por %p192, %p193
      %p196 = scmp.ne.s32.totalorder %s181, %s195
      %p197 = scmp.eq.s32.totalorder %s24, 0
      %p198 = por %p196, %p197
      %s200 = sadd.s32 %s199, 1
      %p203 = scmp.eq.s32.totalorder %s18, 1
      %p204 = scmp.ne.s32.totalorder %s199, %s201
      %p205 = scmp.eq.s32.totalorder %s18, 0
      %p206 = por %p204, %p205
      %p207 = scmp.ne.s32.totalorder %s199, %s201
      %p208 = scmp.eq.s32.totalorder %s23, 1
      %p209 = por %p207, %p208
      %p210 = scmp.ne.s32.totalorder %s201, %s202
      %p211 = scmp.eq.s32.totalorder %s23, 0
      %p212 = por %p210, %p211
      %p213 = scmp.ne.s32.totalorder %s201, %s202
      %p214 = scmp.eq.s32.totalorder %s24, 1
      %p215 = por %p213, %p214
      %p217 = scmp.ne.s32.totalorder %s202, %s216
      %p218 = scmp.eq.s32.totalorder %s24, 0
      %p219 = por %p217, %p218
      %s220 = ssub.s32 %s18, %s25
      %p221 = scmp.eq.s32.totalorder %s220, 0
      %s223 = sadd.s32 %s222, 1
      %s224 = scalar_select %p221, %s222, %s223
      %p227 = pneg %p221
      %p228 = scmp.eq.s32.totalorder %s18, 1
      %p229 = por %p227, %p228
      %p230 = scmp.ne.s32.totalorder %s222, %s225
      %p231 = scmp.eq.s32.totalorder %s18, 0
      %p232 = por %p230, %p231
      %p233 = scmp.ne.s32.totalorder %s222, %s225
      %p234 = scmp.eq.s32.totalorder %s23, 1
      %p235 = por %p233, %p234
      %p236 = scmp.ne.s32.totalorder %s225, %s226
      %p237 = scmp.eq.s32.totalorder %s23, 0
      %p238 = por %p236, %p237
      %p239 = scmp.ne.s32.totalorder %s225, %s226
      %p240 = scmp.eq.s32.totalorder %s24, 1
      %p241 = por %p239, %p240
      %p243 = scmp.ne.s32.totalorder %s226, %s242
      %p244 = scmp.eq.s32.totalorder %s24, 0
      %p245 = por %p243, %p244
      %p246 = scmp.le.s32.totalorder 1, %s18
      %p247 = scmp.lt.s32.totalorder %s18, 3
      %p248 = pnand %p246, %p247
      %p249 = pneg %p248
      // Predicated region
      $region9: #{_encoder_cls_forward.1} parent=5 // pred_check
        _
      $region10: #{_encoder_cls_forward.1} parent=5 // pred_check_branch
        %251 = sbr.rel (%p248) target = $region12
      $region11: #{_encoder_cls_forward.1} parent=5 // pred_region
        %s252 = ssub.s32 %s18, 1
        // Predicated region
        $region13: #{_encoder_cls_forward.1} parent=11 // pred_check
          %p253 = pneg %p65
        $region14: #{_encoder_cls_forward.1} parent=11 // pred_check_branch
          %255 = sbr.rel (%p253) target = $region16
        $region15: #{_encoder_cls_forward.1} parent=11 // pred_region
          _
        $region16: #{_encoder_cls_forward.1} parent=11 // pred_fallthru
          _
        // Predicated region
        $region17: #{_encoder_cls_forward.1} parent=11 // pred_check
          %p256 = pneg %p86
        $region18: #{_encoder_cls_forward.1} parent=11 // pred_check_branch
          %258 = sbr.rel (%p256) target = $region20
        $region19: #{_encoder_cls_forward.1} parent=11 // pred_region
          _
        $region20: #{_encoder_cls_forward.1} parent=11 // pred_fallthru
          _
        // Predicated region
        $region21: #{_encoder_cls_forward.1} parent=11 // pred_check
          %p259 = pneg %p107
        $region22: #{_encoder_cls_forward.1} parent=11 // pred_check_branch
          %261 = sbr.rel (%p259) target = $region24
        $region23: #{_encoder_cls_forward.1} parent=11 // pred_region
          _
        $region24: #{_encoder_cls_forward.1} parent=11 // pred_fallthru
          _
        // Predicated region
        $region25: #{_encoder_cls_forward.1} parent=11 // pred_check
          %p262 = pneg %p128
        $region26: #{_encoder_cls_forward.1} parent=11 // pred_check_branch
          %264 = sbr.rel (%p262) target = $region28
        $region27: #{_encoder_cls_forward.1} parent=11 // pred_region
          _
        $region28: #{_encoder_cls_forward.1} parent=11 // pred_fallthru
          _
        // Predicated region
        $region29: #{_encoder_cls_forward.1} parent=11 // pred_check
          %p265 = pneg %p149
        $region30: #{_encoder_cls_forward.1} parent=11 // pred_check_branch
          %267 = sbr.rel (%p265) target = $region32
        $region31: #{_encoder_cls_forward.1} parent=11 // pred_region
          _
        $region32: #{_encoder_cls_forward.1} parent=11 // pred_fallthru
          _
        // Predicated region
        $region33: #{_encoder_cls_forward.1} parent=11 // pred_check
          %p268 = pneg %p170
        $region34: #{_encoder_cls_forward.1} parent=11 // pred_check_branch
          %270 = sbr.rel (%p268) target = $region36
        $region35: #{_encoder_cls_forward.1} parent=11 // pred_region
          _
        $region36: #{_encoder_cls_forward.1} parent=11 // pred_fallthru
          _
        // Predicated region
        $region37: #{_encoder_cls_forward.1} parent=11 // pred_check
          %p271 = pneg %p191
        $region38: #{_encoder_cls_forward.1} parent=11 // pred_check_branch
          %273 = sbr.rel (%p271) target = $region40
        $region39: #{_encoder_cls_forward.1} parent=11 // pred_region
          _
        $region40: #{_encoder_cls_forward.1} parent=11 // pred_fallthru
          _
        // Predicated region
        $region41: #{_encoder_cls_forward.1} parent=11 // pred_check
          %p274 = pneg %p212
        $region42: #{_encoder_cls_forward.1} parent=11 // pred_check_branch
          %276 = sbr.rel (%p274) target = $region44
        $region43: #{_encoder_cls_forward.1} parent=11 // pred_region
          _
        $region44: #{_encoder_cls_forward.1} parent=11 // pred_fallthru
          _
      $region12: #{_encoder_cls_forward.1} parent=5 // pred_fallthru
        _
      %p277 = scmp.lt.s32.totalorder %s18, 2
      // Predicated region
      $region45: #{_encoder_cls_forward.1} parent=5 // pred_check
        %p278 = pneg %p277
      $region46: #{_encoder_cls_forward.1} parent=5 // pred_check_branch
        %280 = sbr.rel (%p278) target = $region48
      $region47: #{_encoder_cls_forward.1} parent=5 // pred_region
        // Predicated region
        $region49: #{_encoder_cls_forward.1} parent=47 // pred_check
          %p281 = pneg %p38
        $region50: #{_encoder_cls_forward.1} parent=47 // pred_check_branch
          %283 = sbr.rel (%p281) target = $region52
        $region51: #{_encoder_cls_forward.1} parent=47 // pred_region
          %p284 = scmp.lt.s32.totalorder %s18, 1
          %s285 = scalar_select %p284, %s18, 1
          %s286 = smul.addr %s285, 8
          %s287 = scalar_lea.vmem %s0, %s286
        $region52: #{_encoder_cls_forward.1} parent=47 // pred_fallthru
          _
      $region48: #{_encoder_cls_forward.1} parent=5 // pred_fallthru
        _
      %p288 = scmp.le.s32.totalorder 1, %s18
      %p289 = scmp.lt.s32.totalorder %s18, 3
      %p290 = pnand %p288, %p289
      %p291 = pneg %p290
      // Predicated region
      $region53: #{_encoder_cls_forward.1} parent=5 // pred_check
        _
      $region54: #{_encoder_cls_forward.1} parent=5 // pred_check_branch
        %293 = sbr.rel (%p290) target = $region56
      $region55: #{_encoder_cls_forward.1} parent=5 // pred_region
        %s294 = ssub.s32 %s18, 1
        %p295 = scmp.lt.s32.totalorder %s23, 1
        %s296 = scalar_select %p295, %s23, 1
        %s297 = smul.addr %s296, 8
        %s298 = scalar_lea.vmem %s0, %s297
        %p299 = pneg %p44
        %p300 = pneg %p41
        %p301 = pneg %p65
        %p302 = pneg %p62
        %p303 = pneg %p86
        %p304 = pneg %p83
        %p305 = pneg %p107
        %p306 = pneg %p104
        %p307 = pneg %p128
        %p308 = pneg %p125
        %p309 = pneg %p149
        %p310 = pneg %p146
        %p311 = pneg %p170
        %p312 = pneg %p167
        %p313 = pneg %p191
        %p314 = pneg %p188
        %p315 = pneg %p212
        %p316 = pneg %p209
        %p317 = pneg %p238
        %p318 = pneg %p235
        %s319 = sand.u32 %s225, 1
        %s320 = scalar_lea.sflag [#allocation3], %s319
        %s321 = sand.u32 %s225, 1
        %s322 = smul.addr %s321, 8
        %s323 = scalar_lea.vmem [#allocation2], %s322
        %p324 = scmp.lt.s32.totalorder %s23, 1
        %s325 = scalar_select %p324, %s23, 1
        %s326 = smul.addr %s325, 8
        %s327 = scalar_lea.vmem %s0, %s326
        %v329 = vld [vmem:[%s327] sm:$0xff]
        %vm330 = vcmp.ne.s32.totalorder %v329, 1
        %v331 = vsel %vm330, 0.0, -1e+09
        %v332 = vlaneseq
        %v333 = vand.u32 %v332, 127
        %v334 = vperm.slane %v329, 0
        %v335 = vlaneseq
        %v336 = vshrl.u32 %v335, 7
        %338 = vset.pattern.permute.xlu0 %v336
        %339 = vperm.xlu0 %338, %v334
        %v340 = vpop.permute.xlu0 %339
        %v341 = vlaneseq
        %v342 = vshrl.u32 %v341, 7
        %v343 = vadd.s32 %v342, 8
        %344 = vset.pattern.permute.xlu0 %v343
        %345 = vperm.xlu0 %344, %v334
        %v346 = vpop.permute.xlu0 %345
        %v347 = vperm.slane %v329, 1
        %v348 = vlaneseq
        %v349 = vshrl.u32 %v348, 7
        %351 = vset.pattern.permute.xlu0 %v349
        %352 = vperm.xlu0 %351, %v347
        %v353 = vpop.permute.xlu0 %352
        %v354 = vlaneseq
        %v355 = vshrl.u32 %v354, 7
        %v356 = vadd.s32 %v355, 8
        %357 = vset.pattern.permute.xlu0 %v356
        %358 = vperm.xlu0 %357, %v347
        %v359 = vpop.permute.xlu0 %358
        %v360 = vperm.slane %v329, 2
        %v361 = vlaneseq
        %v362 = vshrl.u32 %v361, 7
        %364 = vset.pattern.permute.xlu0 %v362
        %365 = vperm.xlu0 %364, %v360
        %v366 = vpop.permute.xlu0 %365
        %v367 = vlaneseq
        %v368 = vshrl.u32 %v367, 7
        %v369 = vadd.s32 %v368, 8
        %370 = vset.pattern.permute.xlu0 %v369
        %371 = vperm.xlu0 %370, %v360
        %v372 = vpop.permute.xlu0 %371
        %v373 = vperm.slane %v329, 3
        %v374 = vlaneseq
        %v375 = vshrl.u32 %v374, 7
        %377 = vset.pattern.permute.xlu0 %v375
        %378 = vperm.xlu0 %377, %v373
        %v379 = vpop.permute.xlu0 %378
        %v380 = vlaneseq
        %v381 = vshrl.u32 %v380, 7
        %v382 = vadd.s32 %v381, 8
        %383 = vset.pattern.permute.xlu0 %v382
        %384 = vperm.xlu0 %383, %v373
        %v385 = vpop.permute.xlu0 %384
        %v386 = vperm.slane %v329, 4
        %v387 = vlaneseq
        %v388 = vshrl.u32 %v387, 7
        %390 = vset.pattern.permute.xlu0 %v388
        %391 = vperm.xlu0 %390, %v386
        %v392 = vpop.permute.xlu0 %391
        %v393 = vlaneseq
        %v394 = vshrl.u32 %v393, 7
        %v395 = vadd.s32 %v394, 8
        %396 = vset.pattern.permute.xlu0 %v395
        %397 = vperm.xlu0 %396, %v386
        %v398 = vpop.permute.xlu0 %397
        %v399 = vperm.slane %v329, 5
        %v400 = vlaneseq
        %v401 = vshrl.u32 %v400, 7
        %403 = vset.pattern.permute.xlu0 %v401
        %404 = vperm.xlu0 %403, %v399
        %v405 = vpop.permute.xlu0 %404
        %v406 = vlaneseq
        %v407 = vshrl.u32 %v406, 7
        %v408 = vadd.s32 %v407, 8
        %409 = vset.pattern.permute.xlu0 %v408
        %410 = vperm.xlu0 %409, %v399
        %v411 = vpop.permute.xlu0 %410
        %v412 = vperm.slane %v329, 6
        %v413 = vlaneseq
        %v414 = vshrl.u32 %v413, 7
        %416 = vset.pattern.permute.xlu0 %v414
        %417 = vperm.xlu0 %416, %v412
        %v418 = vpop.permute.xlu0 %417
        %v419 = vlaneseq
        %v420 = vshrl.u32 %v419, 7
        %v421 = vadd.s32 %v420, 8
        %422 = vset.pattern.permute.xlu0 %v421
        %423 = vperm.xlu0 %422, %v412
        %v424 = vpop.permute.xlu0 %423
        %v425 = vperm.slane %v329, 7
        %v426 = vlaneseq
        %v427 = vshrl.u32 %v426, 7
        %429 = vset.pattern.permute.xlu0 %v427
        %430 = vperm.xlu0 %429, %v425
        %v431 = vpop.permute.xlu0 %430
        %v432 = vlaneseq
        %v433 = vshrl.u32 %v432, 7
        %v434 = vadd.s32 %v433, 8
        %435 = vset.pattern.permute.xlu0 %v434
        %436 = vperm.xlu0 %435, %v425
        %v437 = vpop.permute.xlu0 %436
        %vm438 = vcmp.eq.s32.totalorder %v333, %v340
        %vm439 = vcmp.eq.s32.totalorder %v333, %v346
        %vm440 = vcmp.eq.s32.totalorder %v333, %v353
        %vm441 = vcmp.eq.s32.totalorder %v333, %v359
        %vm442 = vcmp.eq.s32.totalorder %v333, %v366
        %vm443 = vcmp.eq.s32.totalorder %v333, %v372
        %vm444 = vcmp.eq.s32.totalorder %v333, %v379
        %vm445 = vcmp.eq.s32.totalorder %v333, %v385
        %vm446 = vcmp.eq.s32.totalorder %v333, %v392
        %vm447 = vcmp.eq.s32.totalorder %v333, %v398
        %vm448 = vcmp.eq.s32.totalorder %v333, %v405
        %vm449 = vcmp.eq.s32.totalorder %v333, %v411
        %vm450 = vcmp.eq.s32.totalorder %v333, %v418
        %vm451 = vcmp.eq.s32.totalorder %v333, %v424
        %vm452 = vcmp.eq.s32.totalorder %v333, %v431
        %vm453 = vcmp.eq.s32.totalorder %v333, %v437
        %v454 = vsel %vm438, 1, 0
        %v455 = vsel %vm439, 1, 0
        %v456 = vsel %vm440, 1, 0
        %v457 = vsel %vm441, 1, 0
        %v458 = vsel %vm442, 1, 0
        %v459 = vsel %vm443, 1, 0
        %v460 = vsel %vm444, 1, 0
        %v461 = vsel %vm445, 1, 0
        %v462 = vsel %vm446, 1, 0
        %v463 = vsel %vm447, 1, 0
        %v464 = vsel %vm448, 1, 0
        %v465 = vsel %vm449, 1, 0
        %v466 = vsel %vm450, 1, 0
        %v467 = vsel %vm451, 1, 0
        %v468 = vsel %vm452, 1, 0
        %v469 = vsel %vm453, 1, 0
        %v470 = vcvt.s32.f32 %v454
        %v471 = vcvt.s32.f32 %v455
        %v472 = vcvt.s32.f32 %v456
        %v473 = vcvt.s32.f32 %v457
        %v474 = vcvt.s32.f32 %v458
        %v475 = vcvt.s32.f32 %v459
        %v476 = vcvt.s32.f32 %v460
        %v477 = vcvt.s32.f32 %v461
        %v478 = vcvt.s32.f32 %v462
        %v479 = vcvt.s32.f32 %v463
        %v480 = vcvt.s32.f32 %v464
        %v481 = vcvt.s32.f32 %v465
        %v482 = vcvt.s32.f32 %v466
        %v483 = vcvt.s32.f32 %v467
        %v484 = vcvt.s32.f32 %v468
        %v485 = vcvt.s32.f32 %v469
        %v486 = vld [vmem:[%s1] sm:$0xff]
        %v487 = vld [vmem:[%s1 + $0x8] sm:$0xff]
        %v488 = vld [vmem:[%s1 + $0x10] sm:$0xff]
        %v489 = vld [vmem:[%s1 + $0x18] sm:$0xff]
        %v490 = vld [vmem:[%s1 + $0x20] sm:$0xff]
        %v491 = vld [vmem:[%s1 + $0x28] sm:$0xff]
        %v492 = vld [vmem:[%s1 + $0x30] sm:$0x3]
        %v493 = vld [vmem:[%s2] sm:$0xff]
        %v494 = vld [vmem:[%s2 + $0x8] sm:$0xff]
        %vm495 = vcmask 408576
        %v497 = vsel %vm495, %v470, 0
        %v500 = vsel %vm495, %v471, 0
        %v503 = vsel %vm495, %v472, 0
        %v506 = vsel %vm495, %v473, 0
        %v509 = vsel %vm495, %v474, 0
        %v512 = vsel %vm495, %v475, 0
        %v515 = vsel %vm495, %v476, 0
        %v518 = vsel %vm495, %v477, 0
        %v521 = vsel %vm495, %v478, 0
        %v524 = vsel %vm495, %v479, 0
        %v527 = vsel %vm495, %v480, 0
        %v530 = vsel %vm495, %v481, 0
        %v533 = vsel %vm495, %v482, 0
        %v536 = vsel %vm495, %v483, 0
        %v539 = vsel %vm495, %v484, 0
        %v542 = vsel %vm495, %v485, 0
        %vm544 = vcmask 1041408
        %v546 = vsel %vm544, %v492, 0
        %548 = vmatpush.msra.mxu0 0.0
        %549 = vmatpush.msra.mxu0 0.0
        %550 = vmatpush.msra.mxu0 0.0
        %551 = vmatpush.msra.mxu0 0.0
        %552 = vmatpush.msra.mxu0 0.0
        %553 = vmatpush.msra.mxu0 0.0
        %554 = vmatpush.msra.mxu0 0.0
        %555 = vmatpush.msra.mxu0 0.0
        %556 = vmatpush.msra.mxu0 0.0
        %557 = vmatpush.msra.mxu0 %v546
        %558 = vmatpush.msra.mxu0 %v491
        %559 = vmatpush.msra.mxu0 %v490
        %560 = vmatpush.msra.mxu0 %v489
        %561 = vmatpush.msra.mxu0 %v488
        %562 = vmatpush.msra.mxu0 %v487
        %563 = vmatpush.msra.mxu0 %v486
        %564 = vmatmul.f32.gmra.mxu0 %v497
        %v565 = vpop.f32.mrf.mxu0
        %v566 = vadd.f32 %v493, %v565
        %567 = vmatmul.f32.gmra.mxu0 %v500
        %v568 = vpop.f32.mrf.mxu0
        %v569 = vadd.f32 %v494, %v568
        %570 = vmatmul.f32.gmra.mxu0 %v503
        %v571 = vpop.f32.mrf.mxu0
        %v572 = vadd.f32 %v493, %v571
        %573 = vmatmul.f32.gmra.mxu0 %v506
        %v574 = vpop.f32.mrf.mxu0
        %v575 = vadd.f32 %v494, %v574
        %576 = vmatmul.f32.gmra.mxu0 %v509
        %v577 = vpop.f32.mrf.mxu0
        %v578 = vadd.f32 %v493, %v577
        %579 = vmatmul.f32.gmra.mxu0 %v512
        %v580 = vpop.f32.mrf.mxu0
        %v581 = vadd.f32 %v494, %v580
        %582 = vmatmul.f32.gmra.mxu0 %v515
        %v583 = vpop.f32.mrf.mxu0
        %v584 = vadd.f32 %v493, %v583
        %585 = vmatmul.f32.gmra.mxu0 %v518
        %v586 = vpop.f32.mrf.mxu0
        %v587 = vadd.f32 %v494, %v586
        %588 = vmatmul.f32.gmra.mxu0 %v521
        %v589 = vpop.f32.mrf.mxu0
        %v590 = vadd.f32 %v493, %v589
        %591 = vmatmul.f32.gmra.mxu0 %v524
        %v592 = vpop.f32.mrf.mxu0
        %v593 = vadd.f32 %v494, %v592
        %594 = vmatmul.f32.gmra.mxu0 %v527
        %v595 = vpop.f32.mrf.mxu0
        %v596 = vadd.f32 %v493, %v595
        %597 = vmatmul.f32.gmra.mxu0 %v530
        %v598 = vpop.f32.mrf.mxu0
        %v599 = vadd.f32 %v494, %v598
        %600 = vmatmul.f32.gmra.mxu0 %v533
        %v601 = vpop.f32.mrf.mxu0
        %v602 = vadd.f32 %v493, %v601
        %603 = vmatmul.f32.gmra.mxu0 %v536
        %v604 = vpop.f32.mrf.mxu0
        %v605 = vadd.f32 %v494, %v604
        %606 = vmatmul.f32.gmra.mxu0 %v539
        %v607 = vpop.f32.mrf.mxu0
        %v608 = vadd.f32 %v493, %v607
        %609 = vmatmul.f32.gmra.mxu0 %v542
        %v610 = vpop.f32.mrf.mxu0
        %v611 = vadd.f32 %v494, %v610
        %612 = vdwg.mxu0
        %v613 = vld [vmem:[%s3] sm:$0x1]
        %v614 = vld [vmem:[%s3 + $0x1] sm:$0x1]
        %vm615 = vcmask 261120
        %v616 = vsel %vm615, %v566, 0.0
        %617 = vadd.xlane.f32.xlu0 %v616
        %v618 = vpop.xlane.xlu0 %617
        %v619 = vsel %vm615, %v569, 0.0
        %620 = vadd.xlane.f32.xlu0 %v619
        %v621 = vpop.xlane.xlu0 %620
        %v622 = vsel %vm615, %v572, 0.0
        %623 = vadd.xlane.f32.xlu0 %v622
        %v624 = vpop.xlane.xlu0 %623
        %v625 = vsel %vm615, %v575, 0.0
        %626 = vadd.xlane.f32.xlu0 %v625
        %v627 = vpop.xlane.xlu0 %626
        %v628 = vsel %vm615, %v578, 0.0
        %629 = vadd.xlane.f32.xlu0 %v628
        %v630 = vpop.xlane.xlu0 %629
        %v631 = vsel %vm615, %v581, 0.0
        %632 = vadd.xlane.f32.xlu0 %v631
        %v633 = vpop.xlane.xlu0 %632
        %v634 = vsel %vm615, %v584, 0.0
        %635 = vadd.xlane.f32.xlu0 %v634
        %v636 = vpop.xlane.xlu0 %635
        %v637 = vsel %vm615, %v587, 0.0
        %638 = vadd.xlane.f32.xlu0 %v637
        %v639 = vpop.xlane.xlu0 %638
        %v640 = vsel %vm615, %v590, 0.0
        %641 = vadd.xlane.f32.xlu0 %v640
        %v642 = vpop.xlane.xlu0 %641
        %v643 = vsel %vm615, %v593, 0.0
        %644 = vadd.xlane.f32.xlu0 %v643
        %v645 = vpop.xlane.xlu0 %644
        %v646 = vsel %vm615, %v596, 0.0
        %647 = vadd.xlane.f32.xlu0 %v646
        %v648 = vpop.xlane.xlu0 %647
        %v649 = vsel %vm615, %v599, 0.0
        %650 = vadd.xlane.f32.xlu0 %v649
        %v651 = vpop.xlane.xlu0 %650
        %v652 = vsel %vm615, %v602, 0.0
        %653 = vadd.xlane.f32.xlu0 %v652
        %v654 = vpop.xlane.xlu0 %653
        %v655 = vsel %vm615, %v605, 0.0
        %656 = vadd.xlane.f32.xlu0 %v655
        %v657 = vpop.xlane.xlu0 %656
        %v658 = vsel %vm615, %v608, 0.0
        %659 = vadd.xlane.f32.xlu0 %v658
        %v660 = vpop.xlane.xlu0 %659
        %v661 = vsel %vm615, %v611, 0.0
        %662 = vadd.xlane.f32.xlu0 %v661
        %v663 = vpop.xlane.xlu0 %662
        %v664 = vrcp.pop 32.0
        %v665 = vmul.f32 32.0, %v664
        %v666 = vsub.f32 1.0, %v665
        %v667 = vmul.f32 %v664, %v666
        %v668 = vadd.f32 %v664, %v667
        %vm669 = vweird.f32 %v664
        %v670 = vsel %vm669, %v664, %v668
        %v671 = vmul.f32 %v618, %v670
        %v672 = vmul.f32 %v621, %v670
        %v673 = vmul.f32 %v624, %v670
        %v674 = vmul.f32 %v627, %v670
        %v675 = vmul.f32 %v630, %v670
        %v676 = vmul.f32 %v633, %v670
        %v677 = vmul.f32 %v636, %v670
        %v678 = vmul.f32 %v639, %v670
        %v679 = vmul.f32 %v642, %v670
        %v680 = vmul.f32 %v645, %v670
        %v681 = vmul.f32 %v648, %v670
        %v682 = vmul.f32 %v651, %v670
        %v683 = vmul.f32 %v654, %v670
        %v684 = vmul.f32 %v657, %v670
        %v685 = vmul.f32 %v660, %v670
        %v686 = vmul.f32 %v663, %v670
        %v687 = vsub.f32 %v566, %v671
        %v688 = vsub.f32 %v569, %v672
        %v689 = vsub.f32 %v572, %v673
        %v690 = vsub.f32 %v575, %v674
        %v691 = vsub.f32 %v578, %v675
        %v692 = vsub.f32 %v581, %v676
        %v693 = vsub.f32 %v584, %v677
        %v694 = vsub.f32 %v587, %v678
        %v695 = vsub.f32 %v590, %v679
        %v696 = vsub.f32 %v593, %v680
        %v697 = vsub.f32 %v596, %v681
        %v698 = vsub.f32 %v599, %v682
        %v699 = vsub.f32 %v602, %v683
        %v700 = vsub.f32 %v605, %v684
        %v701 = vsub.f32 %v608, %v685
        %v702 = vsub.f32 %v611, %v686
        %v703 = vmul.f32 %v687, %v687
        %v704 = vmul.f32 %v688, %v688
        %v705 = vmul.f32 %v689, %v689
        %v706 = vmul.f32 %v690, %v690
        %v707 = vmul.f32 %v691, %v691
        %v708 = vmul.f32 %v692, %v692
        %v709 = vmul.f32 %v693, %v693
        %v710 = vmul.f32 %v694, %v694
        %v711 = vmul.f32 %v695, %v695
        %v712 = vmul.f32 %v696, %v696
        %v713 = vmul.f32 %v697, %v697
        %v714 = vmul.f32 %v698, %v698
        %v715 = vmul.f32 %v699, %v699
        %v716 = vmul.f32 %v700, %v700
        %v717 = vmul.f32 %v701, %v701
        %v718 = vmul.f32 %v702, %v702
        %v719 = vsel %vm615, %v703, 0.0
        %720 = vadd.xlane.f32.xlu0 %v719
        %v721 = vpop.xlane.xlu0 %720
        %v722 = vsel %vm615, %v704, 0.0
        %723 = vadd.xlane.f32.xlu0 %v722
        %v724 = vpop.xlane.xlu0 %723
        %v725 = vsel %vm615, %v705, 0.0
        %726 = vadd.xlane.f32.xlu0 %v725
        %v727 = vpop.xlane.xlu0 %726
        %v728 = vsel %vm615, %v706, 0.0
        %729 = vadd.xlane.f32.xlu0 %v728
        %v730 = vpop.xlane.xlu0 %729
        %v731 = vsel %vm615, %v707, 0.0
        %732 = vadd.xlane.f32.xlu0 %v731
        %v733 = vpop.xlane.xlu0 %732
        %v734 = vsel %vm615, %v708, 0.0
        %735 = vadd.xlane.f32.xlu0 %v734
        %v736 = vpop.xlane.xlu0 %735
        %v737 = vsel %vm615, %v709, 0.0
        %738 = vadd.xlane.f32.xlu0 %v737
        %v739 = vpop.xlane.xlu0 %738
        %v740 = vsel %vm615, %v710, 0.0
        %741 = vadd.xlane.f32.xlu0 %v740
        %v742 = vpop.xlane.xlu0 %741
        %v743 = vsel %vm615, %v711, 0.0
        %744 = vadd.xlane.f32.xlu0 %v743
        %v745 = vpop.xlane.xlu0 %744
        %v746 = vsel %vm615, %v712, 0.0
        %747 = vadd.xlane.f32.xlu0 %v746
        %v748 = vpop.xlane.xlu0 %747
        %v749 = vsel %vm615, %v713, 0.0
        %750 = vadd.xlane.f32.xlu0 %v749
        %v751 = vpop.xlane.xlu0 %750
        %v752 = vsel %vm615, %v714, 0.0
        %753 = vadd.xlane.f32.xlu0 %v752
        %v754 = vpop.xlane.xlu0 %753
        %v755 = vsel %vm615, %v715, 0.0
        %756 = vadd.xlane.f32.xlu0 %v755
        %v757 = vpop.xlane.xlu0 %756
        %v758 = vsel %vm615, %v716, 0.0
        %759 = vadd.xlane.f32.xlu0 %v758
        %v760 = vpop.xlane.xlu0 %759
        %v761 = vsel %vm615, %v717, 0.0
        %762 = vadd.xlane.f32.xlu0 %v761
        %v763 = vpop.xlane.xlu0 %762
        %v764 = vsel %vm615, %v718, 0.0
        %765 = vadd.xlane.f32.xlu0 %v764
        %v766 = vpop.xlane.xlu0 %765
        %v767 = vmul.f32 %v721, %v670
        %v768 = vmul.f32 %v724, %v670
        %v769 = vmul.f32 %v727, %v670
        %v770 = vmul.f32 %v730, %v670
        %v771 = vmul.f32 %v733, %v670
        %v772 = vmul.f32 %v736, %v670
        %v773 = vmul.f32 %v739, %v670
        %v774 = vmul.f32 %v742, %v670
        %v775 = vmul.f32 %v745, %v670
        %v776 = vmul.f32 %v748, %v670
        %v777 = vmul.f32 %v751, %v670
        %v778 = vmul.f32 %v754, %v670
        %v779 = vmul.f32 %v757, %v670
        %v780 = vmul.f32 %v760, %v670
        %v781 = vmul.f32 %v763, %v670
        %v782 = vmul.f32 %v766, %v670
        %v783 = vadd.f32 %v767, 1e-05
        %v784 = vadd.f32 %v768, 1e-05
        %v785 = vadd.f32 %v769, 1e-05
        %v786 = vadd.f32 %v770, 1e-05
        %v787 = vadd.f32 %v771, 1e-05
        %v788 = vadd.f32 %v772, 1e-05
        %v789 = vadd.f32 %v773, 1e-05
        %v790 = vadd.f32 %v774, 1e-05
        %v791 = vadd.f32 %v775, 1e-05
        %v792 = vadd.f32 %v776, 1e-05
        %v793 = vadd.f32 %v777, 1e-05
        %v794 = vadd.f32 %v778, 1e-05
        %v795 = vadd.f32 %v779, 1e-05
        %v796 = vadd.f32 %v780, 1e-05
        %v797 = vadd.f32 %v781, 1e-05
        %v798 = vadd.f32 %v782, 1e-05
        %v799 = vrsqrt.pop %v783
        %v800 = vmul.f32 %v799, %v783
        %v801 = vmul.f32 %v800, %v799
        %v802 = vmul.f32 0.5, %v801
        %v803 = vsub.f32 1.5, %v802
        %v804 = vmul.f32 %v799, %v803
        %vm805 = vweird.f32 %v783
        %vm806 = vweird.f32 %v799
        %vm807 = vmor %vm805, %vm806
        %v808 = vsel %vm807, %v799, %v804
        %v809 = vrsqrt.pop %v784
        %v810 = vmul.f32 %v809, %v784
        %v811 = vmul.f32 %v810, %v809
        %v812 = vmul.f32 0.5, %v811
        %v813 = vsub.f32 1.5, %v812
        %v814 = vmul.f32 %v809, %v813
        %vm815 = vweird.f32 %v784
        %vm816 = vweird.f32 %v809
        %vm817 = vmor %vm815, %vm816
        %v818 = vsel %vm817, %v809, %v814
        %v819 = vrsqrt.pop %v785
        %v820 = vmul.f32 %v819, %v785
        %v821 = vmul.f32 %v820, %v819
        %v822 = vmul.f32 0.5, %v821
        %v823 = vsub.f32 1.5, %v822
        %v824 = vmul.f32 %v819, %v823
        %vm825 = vweird.f32 %v785
        %vm826 = vweird.f32 %v819
        %vm827 = vmor %vm825, %vm826
        %v828 = vsel %vm827, %v819, %v824
        %v829 = vrsqrt.pop %v786
        %v830 = vmul.f32 %v829, %v786
        %v831 = vmul.f32 %v830, %v829
        %v832 = vmul.f32 0.5, %v831
        %v833 = vsub.f32 1.5, %v832
        %v834 = vmul.f32 %v829, %v833
        %vm835 = vweird.f32 %v786
        %vm836 = vweird.f32 %v829
        %vm837 = vmor %vm835, %vm836
        %v838 = vsel %vm837, %v829, %v834
        %v839 = vrsqrt.pop %v787
        %v840 = vmul.f32 %v839, %v787
        %v841 = vmul.f32 %v840, %v839
        %v842 = vmul.f32 0.5, %v841
        %v843 = vsub.f32 1.5, %v842
        %v844 = vmul.f32 %v839, %v843
        %vm845 = vweird.f32 %v787
        %vm846 = vweird.f32 %v839
        %vm847 = vmor %vm845, %vm846
        %v848 = vsel %vm847, %v839, %v844
        %v849 = vrsqrt.pop %v788
        %v850 = vmul.f32 %v849, %v788
        %v851 = vmul.f32 %v850, %v849
        %v852 = vmul.f32 0.5, %v851
        %v853 = vsub.f32 1.5, %v852
        %v854 = vmul.f32 %v849, %v853
        %vm855 = vweird.f32 %v788
        %vm856 = vweird.f32 %v849
        %vm857 = vmor %vm855, %vm856
        %v858 = vsel %vm857, %v849, %v854
        %v859 = vrsqrt.pop %v789
        %v860 = vmul.f32 %v859, %v789
        %v861 = vmul.f32 %v860, %v859
        %v862 = vmul.f32 0.5, %v861
        %v863 = vsub.f32 1.5, %v862
        %v864 = vmul.f32 %v859, %v863
        %vm865 = vweird.f32 %v789
        %vm866 = vweird.f32 %v859
        %vm867 = vmor %vm865, %vm866
        %v868 = vsel %vm867, %v859, %v864
        %v869 = vrsqrt.pop %v790
        %v870 = vmul.f32 %v869, %v790
        %v871 = vmul.f32 %v870, %v869
        %v872 = vmul.f32 0.5, %v871
        %v873 = vsub.f32 1.5, %v872
        %v874 = vmul.f32 %v869, %v873
        %vm875 = vweird.f32 %v790
        %vm876 = vweird.f32 %v869
        %vm877 = vmor %vm875, %vm876
        %v878 = vsel %vm877, %v869, %v874
        %v879 = vrsqrt.pop %v791
        %v880 = vmul.f32 %v879, %v791
        %v881 = vmul.f32 %v880, %v879
        %v882 = vmul.f32 0.5, %v881
        %v883 = vsub.f32 1.5, %v882
        %v884 = vmul.f32 %v879, %v883
        %vm885 = vweird.f32 %v791
        %vm886 = vweird.f32 %v879
        %vm887 = vmor %vm885, %vm886
        %v888 = vsel %vm887, %v879, %v884
        %v889 = vrsqrt.pop %v792
        %v890 = vmul.f32 %v889, %v792
        %v891 = vmul.f32 %v890, %v889
        %v892 = vmul.f32 0.5, %v891
        %v893 = vsub.f32 1.5, %v892
        %v894 = vmul.f32 %v889, %v893
        %vm895 = vweird.f32 %v792
        %vm896 = vweird.f32 %v889
        %vm897 = vmor %vm895, %vm896
        %v898 = vsel %vm897, %v889, %v894
        %v899 = vrsqrt.pop %v793
        %v900 = vmul.f32 %v899, %v793
        %v901 = vmul.f32 %v900, %v899
        %v902 = vmul.f32 0.5, %v901
        %v903 = vsub.f32 1.5, %v902
        %v904 = vmul.f32 %v899, %v903
        %vm905 = vweird.f32 %v793
        %vm906 = vweird.f32 %v899
        %vm907 = vmor %vm905, %vm906
        %v908 = vsel %vm907, %v899, %v904
        %v909 = vrsqrt.pop %v794
        %v910 = vmul.f32 %v909, %v794
        %v911 = vmul.f32 %v910, %v909
        %v912 = vmul.f32 0.5, %v911
        %v913 = vsub.f32 1.5, %v912
        %v914 = vmul.f32 %v909, %v913
        %vm915 = vweird.f32 %v794
        %vm916 = vweird.f32 %v909
        %vm917 = vmor %vm915, %vm916
        %v918 = vsel %vm917, %v909, %v914
        %v919 = vrsqrt.pop %v795
        %v920 = vmul.f32 %v919, %v795
        %v921 = vmul.f32 %v920, %v919
        %v922 = vmul.f32 0.5, %v921
        %v923 = vsub.f32 1.5, %v922
        %v924 = vmul.f32 %v919, %v923
        %vm925 = vweird.f32 %v795
        %vm926 = vweird.f32 %v919
        %vm927 = vmor %vm925, %vm926
        %v928 = vsel %vm927, %v919, %v924
        %v929 = vrsqrt.pop %v796
        %v930 = vmul.f32 %v929, %v796
        %v931 = vmul.f32 %v930, %v929
        %v932 = vmul.f32 0.5, %v931
        %v933 = vsub.f32 1.5, %v932
        %v934 = vmul.f32 %v929, %v933
        %vm935 = vweird.f32 %v796
        %vm936 = vweird.f32 %v929
        %vm937 = vmor %vm935, %vm936
        %v938 = vsel %vm937, %v929, %v934
        %v939 = vrsqrt.pop %v797
        %v940 = vmul.f32 %v939, %v797
        %v941 = vmul.f32 %v940, %v939
        %v942 = vmul.f32 0.5, %v941
        %v943 = vsub.f32 1.5, %v942
        %v944 = vmul.f32 %v939, %v943
        %vm945 = vweird.f32 %v797
        %vm946 = vweird.f32 %v939
        %vm947 = vmor %vm945, %vm946
        %v948 = vsel %vm947, %v939, %v944
        %v949 = vrsqrt.pop %v798
        %v950 = vmul.f32 %v949, %v798
        %v951 = vmul.f32 %v950, %v949
        %v952 = vmul.f32 0.5, %v951
        %v953 = vsub.f32 1.5, %v952
        %v954 = vmul.f32 %v949, %v953
        %vm955 = vweird.f32 %v798
        %vm956 = vweird.f32 %v949
        %vm957 = vmor %vm955, %vm956
        %v958 = vsel %vm957, %v949, %v954
        %v959 = vmul.f32 %v687, %v808
        %v960 = vmul.f32 %v688, %v818
        %v961 = vmul.f32 %v689, %v828
        %v962 = vmul.f32 %v690, %v838
        %v963 = vmul.f32 %v691, %v848
        %v964 = vmul.f32 %v692, %v858
        %v965 = vmul.f32 %v693, %v868
        %v966 = vmul.f32 %v694, %v878
        %v967 = vmul.f32 %v695, %v888
        %v968 = vmul.f32 %v696, %v898
        %v969 = vmul.f32 %v697, %v908
        %v970 = vmul.f32 %v698, %v918
        %v971 = vmul.f32 %v699, %v928
        %v972 = vmul.f32 %v700, %v938
        %v973 = vmul.f32 %v701, %v948
        %v974 = vmul.f32 %v702, %v958
        %v975 = vperm.slane %v613, 0
        %v976 = vmul.f32 %v959, %v975
        %v977 = vmul.f32 %v960, %v975
        %v978 = vmul.f32 %v961, %v975
        %v979 = vmul.f32 %v962, %v975
        %v980 = vmul.f32 %v963, %v975
        %v981 = vmul.f32 %v964, %v975
        %v982 = vmul.f32 %v965, %v975
        %v983 = vmul.f32 %v966, %v975
        %v984 = vmul.f32 %v967, %v975
        %v985 = vmul.f32 %v968, %v975
        %v986 = vmul.f32 %v969, %v975
        %v987 = vmul.f32 %v970, %v975
        %v988 = vmul.f32 %v971, %v975
        %v989 = vmul.f32 %v972, %v975
        %v990 = vmul.f32 %v973, %v975
        %v991 = vmul.f32 %v974, %v975
        %v992 = vperm.slane %v614, 0
        %v993 = vadd.f32 %v976, %v992
        %v994 = vadd.f32 %v977, %v992
        %v995 = vadd.f32 %v978, %v992
        %v996 = vadd.f32 %v979, %v992
        %v997 = vadd.f32 %v980, %v992
        %v998 = vadd.f32 %v981, %v992
        %v999 = vadd.f32 %v982, %v992
        %v1000 = vadd.f32 %v983, %v992
        %v1001 = vadd.f32 %v984, %v992
        %v1002 = vadd.f32 %v985, %v992
        %v1003 = vadd.f32 %v986, %v992
        %v1004 = vadd.f32 %v987, %v992
        %v1005 = vadd.f32 %v988, %v992
        %v1006 = vadd.f32 %v989, %v992
        %v1007 = vadd.f32 %v990, %v992
        %v1008 = vadd.f32 %v991, %v992
        %v1009 = vld [vmem:[%s5] sm:$0xff]
        %v1010 = vld [vmem:[%s5 + $0x8] sm:$0x1]
        %v1011 = vpack.c.bf16 %v994, %v993
        %v1012 = vpack.c.bf16 %v996, %v995
        %v1013 = vpack.c.bf16 %v998, %v997
        %v1014 = vpack.c.bf16 %v1000, %v999
        %v1015 = vpack.c.bf16 %v1002, %v1001
        %v1016 = vpack.c.bf16 %v1004, %v1003
        %v1017 = vpack.c.bf16 %v1006, %v1005
        %v1018 = vpack.c.bf16 %v1008, %v1007
        %v1019 = vld [vmem:[%s4] sm:$0xf]
        %v1020 = vld [vmem:[%s4 + $0x4] sm:$0xf]
        %v1021 = vld [vmem:[%s4 + $0x8] sm:$0xf]
        %v1022 = vld [vmem:[%s4 + $0xc] sm:$0xf]
        %v1023 = vperm.slane %v1009, 0
        %v1028 = vunpack.c.l.b16 %v1019
        %v1029 = vunpack.c.l.b16 %v1020
        %v1030 = vunpack.c.l.b16 %v1021
        %v1031 = vunpack.c.l.b16 %v1022
        %v1032 = vpack.c.b16 %v1029, %v1028
        %v1033 = vpack.c.b16 %v1031, %v1030
        %v1037 = vsel %vm615, %v1011, 0
        %v1040 = vsel %vm615, %v1012, 0
        %v1043 = vsel %vm615, %v1013, 0
        %v1046 = vsel %vm615, %v1014, 0
        %v1049 = vsel %vm615, %v1015, 0
        %v1052 = vsel %vm615, %v1016, 0
        %v1055 = vsel %vm615, %v1017, 0
        %v1058 = vsel %vm615, %v1018, 0
        %1060 = vmatpush.bf16.msra.mxu0 0
        %1061 = vmatpush.bf16.msra.mxu0 0
        %1062 = vmatpush.bf16.msra.mxu0 0
        %1063 = vmatpush.bf16.msra.mxu0 0
        %1064 = vmatpush.bf16.msra.mxu0 0
        %1065 = vmatpush.bf16.msra.mxu0 0
        %1066 = vmatpush.bf16.msra.mxu0 %v1033
        %1067 = vmatpush.bf16.msra.mxu0 %v1032
        %1068 = vmatmul.bf16.gmra.mxu0 %v1037
        %v1069 = vpop.f32.mrf.mxu0
        %v1070 = vadd.f32 %v1023, %v1069
        %v1071 = vpop.f32.mrf.mxu0
        %v1072 = vadd.f32 %v1023, %v1071
        %1073 = vmatmul.bf16.gmra.mxu0 %v1040
        %v1074 = vpop.f32.mrf.mxu0
        %v1075 = vadd.f32 %v1023, %v1074
        %v1076 = vpop.f32.mrf.mxu0
        %v1077 = vadd.f32 %v1023, %v1076
        %1078 = vmatmul.bf16.gmra.mxu0 %v1043
        %v1079 = vpop.f32.mrf.mxu0
        %v1080 = vadd.f32 %v1023, %v1079
        %v1081 = vpop.f32.mrf.mxu0
        %v1082 = vadd.f32 %v1023, %v1081
        %1083 = vmatmul.bf16.gmra.mxu0 %v1046
        %v1084 = vpop.f32.mrf.mxu0
        %v1085 = vadd.f32 %v1023, %v1084
        %v1086 = vpop.f32.mrf.mxu0
        %v1087 = vadd.f32 %v1023, %v1086
        %1088 = vmatmul.bf16.gmra.mxu0 %v1049
        %v1089 = vpop.f32.mrf.mxu0
        %v1090 = vadd.f32 %v1023, %v1089
        %v1091 = vpop.f32.mrf.mxu0
        %v1092 = vadd.f32 %v1023, %v1091
        %1093 = vmatmul.bf16.gmra.mxu0 %v1052
        %v1094 = vpop.f32.mrf.mxu0
        %v1095 = vadd.f32 %v1023, %v1094
        %v1096 = vpop.f32.mrf.mxu0
        %v1097 = vadd.f32 %v1023, %v1096
        %1098 = vmatmul.bf16.gmra.mxu0 %v1055
        %v1099 = vpop.f32.mrf.mxu0
        %v1100 = vadd.f32 %v1023, %v1099
        %v1101 = vpop.f32.mrf.mxu0
        %v1102 = vadd.f32 %v1023, %v1101
        %1103 = vmatmul.bf16.gmra.mxu0 %v1058
        %v1104 = vpop.f32.mrf.mxu0
        %v1105 = vadd.f32 %v1023, %v1104
        %v1106 = vpop.f32.mrf.mxu0
        %v1107 = vadd.f32 %v1023, %v1106
        %1108 = vdwg.mxu0
        %s1109 = scalar_lea.vmem %s4, 16
        %v1110 = vld [vmem:[%s1109] sm:$0xf]
        %v1111 = vld [vmem:[%s1109 + $0x4] sm:$0xf]
        %v1112 = vld [vmem:[%s1109 + $0x8] sm:$0xf]
        %v1113 = vld [vmem:[%s1109 + $0xc] sm:$0xf]
        %v1114 = vperm.slane %v1009, 1
        %v1119 = vunpack.c.l.b16 %v1110
        %v1120 = vunpack.c.l.b16 %v1111
        %v1121 = vunpack.c.l.b16 %v1112
        %v1122 = vunpack.c.l.b16 %v1113
        %v1123 = vpack.c.b16 %v1120, %v1119
        %v1124 = vpack.c.b16 %v1122, %v1121
        %1127 = vmatpush.bf16.msra.mxu0 0
        %1128 = vmatpush.bf16.msra.mxu0 0
        %1129 = vmatpush.bf16.msra.mxu0 0
        %1130 = vmatpush.bf16.msra.mxu0 0
        %1131 = vmatpush.bf16.msra.mxu0 0
        %1132 = vmatpush.bf16.msra.mxu0 0
        %1133 = vmatpush.bf16.msra.mxu0 %v1124
        %1134 = vmatpush.bf16.msra.mxu0 %v1123
        %1135 = vmatmul.bf16.gmra.mxu0 %v1037
        %v1136 = vpop.f32.mrf.mxu0
        %v1137 = vadd.f32 %v1114, %v1136
        %v1138 = vpop.f32.mrf.mxu0
        %v1139 = vadd.f32 %v1114, %v1138
        %1140 = vmatmul.bf16.gmra.mxu0 %v1040
        %v1141 = vpop.f32.mrf.mxu0
        %v1142 = vadd.f32 %v1114, %v1141
        %v1143 = vpop.f32.mrf.mxu0
        %v1144 = vadd.f32 %v1114, %v1143
        %1145 = vmatmul.bf16.gmra.mxu0 %v1043
        %v1146 = vpop.f32.mrf.mxu0
        %v1147 = vadd.f32 %v1114, %v1146
        %v1148 = vpop.f32.mrf.mxu0
        %v1149 = vadd.f32 %v1114, %v1148
        %1150 = vmatmul.bf16.gmra.mxu0 %v1046
        %v1151 = vpop.f32.mrf.mxu0
        %v1152 = vadd.f32 %v1114, %v1151
        %v1153 = vpop.f32.mrf.mxu0
        %v1154 = vadd.f32 %v1114, %v1153
        %1155 = vmatmul.bf16.gmra.mxu0 %v1049
        %v1156 = vpop.f32.mrf.mxu0
        %v1157 = vadd.f32 %v1114, %v1156
        %v1158 = vpop.f32.mrf.mxu0
        %v1159 = vadd.f32 %v1114, %v1158
        %1160 = vmatmul.bf16.gmra.mxu0 %v1052
        %v1161 = vpop.f32.mrf.mxu0
        %v1162 = vadd.f32 %v1114, %v1161
        %v1163 = vpop.f32.mrf.mxu0
        %v1164 = vadd.f32 %v1114, %v1163
        %1165 = vmatmul.bf16.gmra.mxu0 %v1055
        %v1166 = vpop.f32.mrf.mxu0
        %v1167 = vadd.f32 %v1114, %v1166
        %v1168 = vpop.f32.mrf.mxu0
        %v1169 = vadd.f32 %v1114, %v1168
        %1170 = vmatmul.bf16.gmra.mxu0 %v1058
        %v1171 = vpop.f32.mrf.mxu0
        %v1172 = vadd.f32 %v1114, %v1171
        %v1173 = vpop.f32.mrf.mxu0
        %v1174 = vadd.f32 %v1114, %v1173
        %1175 = vdwg.mxu0
        %s1176 = scalar_lea.vmem %s4, 32
        %v1177 = vld [vmem:[%s1176] sm:$0xf]
        %v1178 = vld [vmem:[%s1176 + $0x4] sm:$0xf]
        %v1179 = vld [vmem:[%s1176 + $0x8] sm:$0xf]
        %v1180 = vld [vmem:[%s1176 + $0xc] sm:$0xf]
        %v1181 = vperm.slane %v1009, 2
        %v1186 = vunpack.c.l.b16 %v1177
        %v1187 = vunpack.c.l.b16 %v1178
        %v1188 = vunpack.c.l.b16 %v1179
        %v1189 = vunpack.c.l.b16 %v1180
        %v1190 = vpack.c.b16 %v1187, %v1186
        %v1191 = vpack.c.b16 %v1189, %v1188
        %1194 = vmatpush.bf16.msra.mxu0 0
        %1195 = vmatpush.bf16.msra.mxu0 0
        %1196 = vmatpush.bf16.msra.mxu0 0
        %1197 = vmatpush.bf16.msra.mxu0 0
        %1198 = vmatpush.bf16.msra.mxu0 0
        %1199 = vmatpush.bf16.msra.mxu0 0
        %1200 = vmatpush.bf16.msra.mxu0 %v1191
        %1201 = vmatpush.bf16.msra.mxu0 %v1190
        %1202 = vmatmul.bf16.gmra.mxu0 %v1037
        %v1203 = vpop.f32.mrf.mxu0
        %v1204 = vadd.f32 %v1181, %v1203
        %v1205 = vpop.f32.mrf.mxu0
        %v1206 = vadd.f32 %v1181, %v1205
        %1207 = vmatmul.bf16.gmra.mxu0 %v1040
        %v1208 = vpop.f32.mrf.mxu0
        %v1209 = vadd.f32 %v1181, %v1208
        %v1210 = vpop.f32.mrf.mxu0
        %v1211 = vadd.f32 %v1181, %v1210
        %1212 = vmatmul.bf16.gmra.mxu0 %v1043
        %v1213 = vpop.f32.mrf.mxu0
        %v1214 = vadd.f32 %v1181, %v1213
        %v1215 = vpop.f32.mrf.mxu0
        %v1216 = vadd.f32 %v1181, %v1215
        %1217 = vmatmul.bf16.gmra.mxu0 %v1046
        %v1218 = vpop.f32.mrf.mxu0
        %v1219 = vadd.f32 %v1181, %v1218
        %v1220 = vpop.f32.mrf.mxu0
        %v1221 = vadd.f32 %v1181, %v1220
        %1222 = vmatmul.bf16.gmra.mxu0 %v1049
        %v1223 = vpop.f32.mrf.mxu0
        %v1224 = vadd.f32 %v1181, %v1223
        %v1225 = vpop.f32.mrf.mxu0
        %v1226 = vadd.f32 %v1181, %v1225
        %1227 = vmatmul.bf16.gmra.mxu0 %v1052
        %v1228 = vpop.f32.mrf.mxu0
        %v1229 = vadd.f32 %v1181, %v1228
        %v1230 = vpop.f32.mrf.mxu0
        %v1231 = vadd.f32 %v1181, %v1230
        %1232 = vmatmul.bf16.gmra.mxu0 %v1055
        %v1233 = vpop.f32.mrf.mxu0
        %v1234 = vadd.f32 %v1181, %v1233
        %v1235 = vpop.f32.mrf.mxu0
        %v1236 = vadd.f32 %v1181, %v1235
        %1237 = vmatmul.bf16.gmra.mxu0 %v1058
        %v1238 = vpop.f32.mrf.mxu0
        %v1239 = vadd.f32 %v1181, %v1238
        %v1240 = vpop.f32.mrf.mxu0
        %v1241 = vadd.f32 %v1181, %v1240
        %1242 = vdwg.mxu0
        %1259 = vrot.lane.b32.xlu0 %v1070, 120
        %v1260 = vpop.permute.xlu0 %1259
        %1261 = vrot.lane.b32.xlu0 %v1072, 120
        %v1262 = vpop.permute.xlu0 %1261
        %1263 = vrot.lane.b32.xlu0 %v1075, 120
        %v1264 = vpop.permute.xlu0 %1263
        %1265 = vrot.lane.b32.xlu0 %v1077, 120
        %v1266 = vpop.permute.xlu0 %1265
        %1267 = vrot.lane.b32.xlu0 %v1080, 120
        %v1268 = vpop.permute.xlu0 %1267
        %1269 = vrot.lane.b32.xlu0 %v1082, 120
        %v1270 = vpop.permute.xlu0 %1269
        %1271 = vrot.lane.b32.xlu0 %v1085, 120
        %v1272 = vpop.permute.xlu0 %1271
        %1273 = vrot.lane.b32.xlu0 %v1087, 120
        %v1274 = vpop.permute.xlu0 %1273
        %1275 = vrot.lane.b32.xlu0 %v1090, 120
        %v1276 = vpop.permute.xlu0 %1275
        %1277 = vrot.lane.b32.xlu0 %v1092, 120
        %v1278 = vpop.permute.xlu0 %1277
        %1279 = vrot.lane.b32.xlu0 %v1095, 120
        %v1280 = vpop.permute.xlu0 %1279
        %1281 = vrot.lane.b32.xlu0 %v1097, 120
        %v1282 = vpop.permute.xlu0 %1281
        %1283 = vrot.lane.b32.xlu0 %v1100, 120
        %v1284 = vpop.permute.xlu0 %1283
        %1285 = vrot.lane.b32.xlu0 %v1102, 120
        %v1286 = vpop.permute.xlu0 %1285
        %1287 = vrot.lane.b32.xlu0 %v1105, 120
        %v1288 = vpop.permute.xlu0 %1287
        %1289 = vrot.lane.b32.xlu0 %v1107, 120
        %v1290 = vpop.permute.xlu0 %1289
        %1307 = vrot.lane.b32.xlu0 %v1070, 112
        %v1308 = vpop.permute.xlu0 %1307
        %1309 = vrot.lane.b32.xlu0 %v1072, 112
        %v1310 = vpop.permute.xlu0 %1309
        %1311 = vrot.lane.b32.xlu0 %v1075, 112
        %v1312 = vpop.permute.xlu0 %1311
        %1313 = vrot.lane.b32.xlu0 %v1077, 112
        %v1314 = vpop.permute.xlu0 %1313
        %1315 = vrot.lane.b32.xlu0 %v1080, 112
        %v1316 = vpop.permute.xlu0 %1315
        %1317 = vrot.lane.b32.xlu0 %v1082, 112
        %v1318 = vpop.permute.xlu0 %1317
        %1319 = vrot.lane.b32.xlu0 %v1085, 112
        %v1320 = vpop.permute.xlu0 %1319
        %1321 = vrot.lane.b32.xlu0 %v1087, 112
        %v1322 = vpop.permute.xlu0 %1321
        %1323 = vrot.lane.b32.xlu0 %v1090, 112
        %v1324 = vpop.permute.xlu0 %1323
        %1325 = vrot.lane.b32.xlu0 %v1092, 112
        %v1326 = vpop.permute.xlu0 %1325
        %1327 = vrot.lane.b32.xlu0 %v1095, 112
        %v1328 = vpop.permute.xlu0 %1327
        %1329 = vrot.lane.b32.xlu0 %v1097, 112
        %v1330 = vpop.permute.xlu0 %1329
        %1331 = vrot.lane.b32.xlu0 %v1100, 112
        %v1332 = vpop.permute.xlu0 %1331
        %1333 = vrot.lane.b32.xlu0 %v1102, 112
        %v1334 = vpop.permute.xlu0 %1333
        %1335 = vrot.lane.b32.xlu0 %v1105, 112
        %v1336 = vpop.permute.xlu0 %1335
        %1337 = vrot.lane.b32.xlu0 %v1107, 112
        %v1338 = vpop.permute.xlu0 %1337
        %1355 = vrot.lane.b32.xlu0 %v1070, 104
        %v1356 = vpop.permute.xlu0 %1355
        %1357 = vrot.lane.b32.xlu0 %v1072, 104
        %v1358 = vpop.permute.xlu0 %1357
        %1359 = vrot.lane.b32.xlu0 %v1075, 104
        %v1360 = vpop.permute.xlu0 %1359
        %1361 = vrot.lane.b32.xlu0 %v1077, 104
        %v1362 = vpop.permute.xlu0 %1361
        %1363 = vrot.lane.b32.xlu0 %v1080, 104
        %v1364 = vpop.permute.xlu0 %1363
        %1365 = vrot.lane.b32.xlu0 %v1082, 104
        %v1366 = vpop.permute.xlu0 %1365
        %1367 = vrot.lane.b32.xlu0 %v1085, 104
        %v1368 = vpop.permute.xlu0 %1367
        %1369 = vrot.lane.b32.xlu0 %v1087, 104
        %v1370 = vpop.permute.xlu0 %1369
        %1371 = vrot.lane.b32.xlu0 %v1090, 104
        %v1372 = vpop.permute.xlu0 %1371
        %1373 = vrot.lane.b32.xlu0 %v1092, 104
        %v1374 = vpop.permute.xlu0 %1373
        %1375 = vrot.lane.b32.xlu0 %v1095, 104
        %v1376 = vpop.permute.xlu0 %1375
        %1377 = vrot.lane.b32.xlu0 %v1097, 104
        %v1378 = vpop.permute.xlu0 %1377
        %1379 = vrot.lane.b32.xlu0 %v1100, 104
        %v1380 = vpop.permute.xlu0 %1379
        %1381 = vrot.lane.b32.xlu0 %v1102, 104
        %v1382 = vpop.permute.xlu0 %1381
        %1383 = vrot.lane.b32.xlu0 %v1105, 104
        %v1384 = vpop.permute.xlu0 %1383
        %1385 = vrot.lane.b32.xlu0 %v1107, 104
        %v1386 = vpop.permute.xlu0 %1385
        %v1403 = vpack.c.bf16 %v1070, %v1070
        %v1404 = vpack.c.bf16 %v1072, %v1072
        %v1405 = vpack.c.bf16 %v1260, %v1260
        %v1406 = vpack.c.bf16 %v1262, %v1262
        %v1407 = vpack.c.bf16 %v1308, %v1308
        %v1408 = vpack.c.bf16 %v1310, %v1310
        %v1409 = vpack.c.bf16 %v1356, %v1356
        %v1410 = vpack.c.bf16 %v1358, %v1358
        %v1411 = vpack.c.bf16 %v1075, %v1075
        %v1412 = vpack.c.bf16 %v1077, %v1077
        %v1413 = vpack.c.bf16 %v1264, %v1264
        %v1414 = vpack.c.bf16 %v1266, %v1266
        %v1415 = vpack.c.bf16 %v1312, %v1312
        %v1416 = vpack.c.bf16 %v1314, %v1314
        %v1417 = vpack.c.bf16 %v1360, %v1360
        %v1418 = vpack.c.bf16 %v1362, %v1362
        %v1419 = vpack.c.bf16 %v1080, %v1080
        %v1420 = vpack.c.bf16 %v1082, %v1082
        %v1421 = vpack.c.bf16 %v1268, %v1268
        %v1422 = vpack.c.bf16 %v1270, %v1270
        %v1423 = vpack.c.bf16 %v1316, %v1316
        %v1424 = vpack.c.bf16 %v1318, %v1318
        %v1425 = vpack.c.bf16 %v1364, %v1364
        %v1426 = vpack.c.bf16 %v1366, %v1366
        %v1427 = vpack.c.bf16 %v1085, %v1085
        %v1428 = vpack.c.bf16 %v1087, %v1087
        %v1429 = vpack.c.bf16 %v1272, %v1272
        %v1430 = vpack.c.bf16 %v1274, %v1274
        %v1431 = vpack.c.bf16 %v1320, %v1320
        %v1432 = vpack.c.bf16 %v1322, %v1322
        %v1433 = vpack.c.bf16 %v1368, %v1368
        %v1434 = vpack.c.bf16 %v1370, %v1370
        %v1435 = vpack.c.bf16 %v1090, %v1090
        %v1436 = vpack.c.bf16 %v1092, %v1092
        %v1437 = vpack.c.bf16 %v1276, %v1276
        %v1438 = vpack.c.bf16 %v1278, %v1278
        %v1439 = vpack.c.bf16 %v1324, %v1324
        %v1440 = vpack.c.bf16 %v1326, %v1326
        %v1441 = vpack.c.bf16 %v1372, %v1372
        %v1442 = vpack.c.bf16 %v1374, %v1374
        %v1443 = vpack.c.bf16 %v1095, %v1095
        %v1444 = vpack.c.bf16 %v1097, %v1097
        %v1445 = vpack.c.bf16 %v1280, %v1280
        %v1446 = vpack.c.bf16 %v1282, %v1282
        %v1447 = vpack.c.bf16 %v1328, %v1328
        %v1448 = vpack.c.bf16 %v1330, %v1330
        %v1449 = vpack.c.bf16 %v1376, %v1376
        %v1450 = vpack.c.bf16 %v1378, %v1378
        %v1451 = vpack.c.bf16 %v1100, %v1100
        %v1452 = vpack.c.bf16 %v1102, %v1102
        %v1453 = vpack.c.bf16 %v1284, %v1284
        %v1454 = vpack.c.bf16 %v1286, %v1286
        %v1455 = vpack.c.bf16 %v1332, %v1332
        %v1456 = vpack.c.bf16 %v1334, %v1334
        %v1457 = vpack.c.bf16 %v1380, %v1380
        %v1458 = vpack.c.bf16 %v1382, %v1382
        %v1459 = vpack.c.bf16 %v1105, %v1105
        %v1460 = vpack.c.bf16 %v1107, %v1107
        %v1461 = vpack.c.bf16 %v1288, %v1288
        %v1462 = vpack.c.bf16 %v1290, %v1290
        %v1463 = vpack.c.bf16 %v1336, %v1336
        %v1464 = vpack.c.bf16 %v1338, %v1338
        %v1465 = vpack.c.bf16 %v1384, %v1384
        %v1466 = vpack.c.bf16 %v1386, %v1386
        %1483 = vrot.lane.b32.xlu0 %v1137, 120
        %v1484 = vpop.permute.xlu0 %1483
        %1485 = vrot.lane.b32.xlu0 %v1139, 120
        %v1486 = vpop.permute.xlu0 %1485
        %1487 = vrot.lane.b32.xlu0 %v1142, 120
        %v1488 = vpop.permute.xlu0 %1487
        %1489 = vrot.lane.b32.xlu0 %v1144, 120
        %v1490 = vpop.permute.xlu0 %1489
        %1491 = vrot.lane.b32.xlu0 %v1147, 120
        %v1492 = vpop.permute.xlu0 %1491
        %1493 = vrot.lane.b32.xlu0 %v1149, 120
        %v1494 = vpop.permute.xlu0 %1493
        %1495 = vrot.lane.b32.xlu0 %v1152, 120
        %v1496 = vpop.permute.xlu0 %1495
        %1497 = vrot.lane.b32.xlu0 %v1154, 120
        %v1498 = vpop.permute.xlu0 %1497
        %1499 = vrot.lane.b32.xlu0 %v1157, 120
        %v1500 = vpop.permute.xlu0 %1499
        %1501 = vrot.lane.b32.xlu0 %v1159, 120
        %v1502 = vpop.permute.xlu0 %1501
        %1503 = vrot.lane.b32.xlu0 %v1162, 120
        %v1504 = vpop.permute.xlu0 %1503
        %1505 = vrot.lane.b32.xlu0 %v1164, 120
        %v1506 = vpop.permute.xlu0 %1505
        %1507 = vrot.lane.b32.xlu0 %v1167, 120
        %v1508 = vpop.permute.xlu0 %1507
        %1509 = vrot.lane.b32.xlu0 %v1169, 120
        %v1510 = vpop.permute.xlu0 %1509
        %1511 = vrot.lane.b32.xlu0 %v1172, 120
        %v1512 = vpop.permute.xlu0 %1511
        %1513 = vrot.lane.b32.xlu0 %v1174, 120
        %v1514 = vpop.permute.xlu0 %1513
        %1531 = vrot.lane.b32.xlu0 %v1137, 112
        %v1532 = vpop.permute.xlu0 %1531
        %1533 = vrot.lane.b32.xlu0 %v1139, 112
        %v1534 = vpop.permute.xlu0 %1533
        %1535 = vrot.lane.b32.xlu0 %v1142, 112
        %v1536 = vpop.permute.xlu0 %1535
        %1537 = vrot.lane.b32.xlu0 %v1144, 112
        %v1538 = vpop.permute.xlu0 %1537
        %1539 = vrot.lane.b32.xlu0 %v1147, 112
        %v1540 = vpop.permute.xlu0 %1539
        %1541 = vrot.lane.b32.xlu0 %v1149, 112
        %v1542 = vpop.permute.xlu0 %1541
        %1543 = vrot.lane.b32.xlu0 %v1152, 112
        %v1544 = vpop.permute.xlu0 %1543
        %1545 = vrot.lane.b32.xlu0 %v1154, 112
        %v1546 = vpop.permute.xlu0 %1545
        %1547 = vrot.lane.b32.xlu0 %v1157, 112
        %v1548 = vpop.permute.xlu0 %1547
        %1549 = vrot.lane.b32.xlu0 %v1159, 112
        %v1550 = vpop.permute.xlu0 %1549
        %1551 = vrot.lane.b32.xlu0 %v1162, 112
        %v1552 = vpop.permute.xlu0 %1551
        %1553 = vrot.lane.b32.xlu0 %v1164, 112
        %v1554 = vpop.permute.xlu0 %1553
        %1555 = vrot.lane.b32.xlu0 %v1167, 112
        %v1556 = vpop.permute.xlu0 %1555
        %1557 = vrot.lane.b32.xlu0 %v1169, 112
        %v1558 = vpop.permute.xlu0 %1557
        %1559 = vrot.lane.b32.xlu0 %v1172, 112
        %v1560 = vpop.permute.xlu0 %1559
        %1561 = vrot.lane.b32.xlu0 %v1174, 112
        %v1562 = vpop.permute.xlu0 %1561
        %1579 = vrot.lane.b32.xlu0 %v1137, 104
        %v1580 = vpop.permute.xlu0 %1579
        %1581 = vrot.lane.b32.xlu0 %v1139, 104
        %v1582 = vpop.permute.xlu0 %1581
        %1583 = vrot.lane.b32.xlu0 %v1142, 104
        %v1584 = vpop.permute.xlu0 %1583
        %1585 = vrot.lane.b32.xlu0 %v1144, 104
        %v1586 = vpop.permute.xlu0 %1585
        %1587 = vrot.lane.b32.xlu0 %v1147, 104
        %v1588 = vpop.permute.xlu0 %1587
        %1589 = vrot.lane.b32.xlu0 %v1149, 104
        %v1590 = vpop.permute.xlu0 %1589
        %1591 = vrot.lane.b32.xlu0 %v1152, 104
        %v1592 = vpop.permute.xlu0 %1591
        %1593 = vrot.lane.b32.xlu0 %v1154, 104
        %v1594 = vpop.permute.xlu0 %1593
        %1595 = vrot.lane.b32.xlu0 %v1157, 104
        %v1596 = vpop.permute.xlu0 %1595
        %1597 = vrot.lane.b32.xlu0 %v1159, 104
        %v1598 = vpop.permute.xlu0 %1597
        %1599 = vrot.lane.b32.xlu0 %v1162, 104
        %v1600 = vpop.permute.xlu0 %1599
        %1601 = vrot.lane.b32.xlu0 %v1164, 104
        %v1602 = vpop.permute.xlu0 %1601
        %1603 = vrot.lane.b32.xlu0 %v1167, 104
        %v1604 = vpop.permute.xlu0 %1603
        %1605 = vrot.lane.b32.xlu0 %v1169, 104
        %v1606 = vpop.permute.xlu0 %1605
        %1607 = vrot.lane.b32.xlu0 %v1172, 104
        %v1608 = vpop.permute.xlu0 %1607
        %1609 = vrot.lane.b32.xlu0 %v1174, 104
        %v1610 = vpop.permute.xlu0 %1609
        %v1627 = vpack.c.bf16 %v1137, %v1137
        %v1628 = vpack.c.bf16 %v1139, %v1139
        %v1629 = vpack.c.bf16 %v1484, %v1484
        %v1630 = vpack.c.bf16 %v1486, %v1486
        %v1631 = vpack.c.bf16 %v1532, %v1532
        %v1632 = vpack.c.bf16 %v1534, %v1534
        %v1633 = vpack.c.bf16 %v1580, %v1580
        %v1634 = vpack.c.bf16 %v1582, %v1582
        %v1635 = vpack.c.bf16 %v1142, %v1142
        %v1636 = vpack.c.bf16 %v1144, %v1144
        %v1637 = vpack.c.bf16 %v1488, %v1488
        %v1638 = vpack.c.bf16 %v1490, %v1490
        %v1639 = vpack.c.bf16 %v1536, %v1536
        %v1640 = vpack.c.bf16 %v1538, %v1538
        %v1641 = vpack.c.bf16 %v1584, %v1584
        %v1642 = vpack.c.bf16 %v1586, %v1586
        %v1643 = vpack.c.bf16 %v1147, %v1147
        %v1644 = vpack.c.bf16 %v1149, %v1149
        %v1645 = vpack.c.bf16 %v1492, %v1492
        %v1646 = vpack.c.bf16 %v1494, %v1494
        %v1647 = vpack.c.bf16 %v1540, %v1540
        %v1648 = vpack.c.bf16 %v1542, %v1542
        %v1649 = vpack.c.bf16 %v1588, %v1588
        %v1650 = vpack.c.bf16 %v1590, %v1590
        %v1651 = vpack.c.bf16 %v1152, %v1152
        %v1652 = vpack.c.bf16 %v1154, %v1154
        %v1653 = vpack.c.bf16 %v1496, %v1496
        %v1654 = vpack.c.bf16 %v1498, %v1498
        %v1655 = vpack.c.bf16 %v1544, %v1544
        %v1656 = vpack.c.bf16 %v1546, %v1546
        %v1657 = vpack.c.bf16 %v1592, %v1592
        %v1658 = vpack.c.bf16 %v1594, %v1594
        %v1659 = vpack.c.bf16 %v1157, %v1157
        %v1660 = vpack.c.bf16 %v1159, %v1159
        %v1661 = vpack.c.bf16 %v1500, %v1500
        %v1662 = vpack.c.bf16 %v1502, %v1502
        %v1663 = vpack.c.bf16 %v1548, %v1548
        %v1664 = vpack.c.bf16 %v1550, %v1550
        %v1665 = vpack.c.bf16 %v1596, %v1596
        %v1666 = vpack.c.bf16 %v1598, %v1598
        %v1667 = vpack.c.bf16 %v1162, %v1162
        %v1668 = vpack.c.bf16 %v1164, %v1164
        %v1669 = vpack.c.bf16 %v1504, %v1504
        %v1670 = vpack.c.bf16 %v1506, %v1506
        %v1671 = vpack.c.bf16 %v1552, %v1552
        %v1672 = vpack.c.bf16 %v1554, %v1554
        %v1673 = vpack.c.bf16 %v1600, %v1600
        %v1674 = vpack.c.bf16 %v1602, %v1602
        %v1675 = vpack.c.bf16 %v1167, %v1167
        %v1676 = vpack.c.bf16 %v1169, %v1169
        %v1677 = vpack.c.bf16 %v1508, %v1508
        %v1678 = vpack.c.bf16 %v1510, %v1510
        %v1679 = vpack.c.bf16 %v1556, %v1556
        %v1680 = vpack.c.bf16 %v1558, %v1558
        %v1681 = vpack.c.bf16 %v1604, %v1604
        %v1682 = vpack.c.bf16 %v1606, %v1606
        %v1683 = vpack.c.bf16 %v1172, %v1172
        %v1684 = vpack.c.bf16 %v1174, %v1174
        %v1685 = vpack.c.bf16 %v1512, %v1512
        %v1686 = vpack.c.bf16 %v1514, %v1514
        %v1687 = vpack.c.bf16 %v1560, %v1560
        %v1688 = vpack.c.bf16 %v1562, %v1562
        %v1689 = vpack.c.bf16 %v1608, %v1608
        %v1690 = vpack.c.bf16 %v1610, %v1610
        %1707 = vrot.lane.b32.xlu0 %v1204, 120
        %v1708 = vpop.permute.xlu0 %1707
        %1709 = vrot.lane.b32.xlu0 %v1206, 120
        %v1710 = vpop.permute.xlu0 %1709
        %1711 = vrot.lane.b32.xlu0 %v1209, 120
        %v1712 = vpop.permute.xlu0 %1711
        %1713 = vrot.lane.b32.xlu0 %v1211, 120
        %v1714 = vpop.permute.xlu0 %1713
        %1715 = vrot.lane.b32.xlu0 %v1214, 120
        %v1716 = vpop.permute.xlu0 %1715
        %1717 = vrot.lane.b32.xlu0 %v1216, 120
        %v1718 = vpop.permute.xlu0 %1717
        %1719 = vrot.lane.b32.xlu0 %v1219, 120
        %v1720 = vpop.permute.xlu0 %1719
        %1721 = vrot.lane.b32.xlu0 %v1221, 120
        %v1722 = vpop.permute.xlu0 %1721
        %1723 = vrot.lane.b32.xlu0 %v1224, 120
        %v1724 = vpop.permute.xlu0 %1723
        %1725 = vrot.lane.b32.xlu0 %v1226, 120
        %v1726 = vpop.permute.xlu0 %1725
        %1727 = vrot.lane.b32.xlu0 %v1229, 120
        %v1728 = vpop.permute.xlu0 %1727
        %1729 = vrot.lane.b32.xlu0 %v1231, 120
        %v1730 = vpop.permute.xlu0 %1729
        %1731 = vrot.lane.b32.xlu0 %v1234, 120
        %v1732 = vpop.permute.xlu0 %1731
        %1733 = vrot.lane.b32.xlu0 %v1236, 120
        %v1734 = vpop.permute.xlu0 %1733
        %1735 = vrot.lane.b32.xlu0 %v1239, 120
        %v1736 = vpop.permute.xlu0 %1735
        %1737 = vrot.lane.b32.xlu0 %v1241, 120
        %v1738 = vpop.permute.xlu0 %1737
        %1755 = vrot.lane.b32.xlu0 %v1204, 112
        %v1756 = vpop.permute.xlu0 %1755
        %1757 = vrot.lane.b32.xlu0 %v1206, 112
        %v1758 = vpop.permute.xlu0 %1757
        %1759 = vrot.lane.b32.xlu0 %v1209, 112
        %v1760 = vpop.permute.xlu0 %1759
        %1761 = vrot.lane.b32.xlu0 %v1211, 112
        %v1762 = vpop.permute.xlu0 %1761
        %1763 = vrot.lane.b32.xlu0 %v1214, 112
        %v1764 = vpop.permute.xlu0 %1763
        %1765 = vrot.lane.b32.xlu0 %v1216, 112
        %v1766 = vpop.permute.xlu0 %1765
        %1767 = vrot.lane.b32.xlu0 %v1219, 112
        %v1768 = vpop.permute.xlu0 %1767
        %1769 = vrot.lane.b32.xlu0 %v1221, 112
        %v1770 = vpop.permute.xlu0 %1769
        %1771 = vrot.lane.b32.xlu0 %v1224, 112
        %v1772 = vpop.permute.xlu0 %1771
        %1773 = vrot.lane.b32.xlu0 %v1226, 112
        %v1774 = vpop.permute.xlu0 %1773
        %1775 = vrot.lane.b32.xlu0 %v1229, 112
        %v1776 = vpop.permute.xlu0 %1775
        %1777 = vrot.lane.b32.xlu0 %v1231, 112
        %v1778 = vpop.permute.xlu0 %1777
        %1779 = vrot.lane.b32.xlu0 %v1234, 112
        %v1780 = vpop.permute.xlu0 %1779
        %1781 = vrot.lane.b32.xlu0 %v1236, 112
        %v1782 = vpop.permute.xlu0 %1781
        %1783 = vrot.lane.b32.xlu0 %v1239, 112
        %v1784 = vpop.permute.xlu0 %1783
        %1785 = vrot.lane.b32.xlu0 %v1241, 112
        %v1786 = vpop.permute.xlu0 %1785
        %1803 = vrot.lane.b32.xlu0 %v1204, 104
        %v1804 = vpop.permute.xlu0 %1803
        %1805 = vrot.lane.b32.xlu0 %v1206, 104
        %v1806 = vpop.permute.xlu0 %1805
        %1807 = vrot.lane.b32.xlu0 %v1209, 104
        %v1808 = vpop.permute.xlu0 %1807
        %1809 = vrot.lane.b32.xlu0 %v1211, 104
        %v1810 = vpop.permute.xlu0 %1809
        %1811 = vrot.lane.b32.xlu0 %v1214, 104
        %v1812 = vpop.permute.xlu0 %1811
        %1813 = vrot.lane.b32.xlu0 %v1216, 104
        %v1814 = vpop.permute.xlu0 %1813
        %1815 = vrot.lane.b32.xlu0 %v1219, 104
        %v1816 = vpop.permute.xlu0 %1815
        %1817 = vrot.lane.b32.xlu0 %v1221, 104
        %v1818 = vpop.permute.xlu0 %1817
        %1819 = vrot.lane.b32.xlu0 %v1224, 104
        %v1820 = vpop.permute.xlu0 %1819
        %1821 = vrot.lane.b32.xlu0 %v1226, 104
        %v1822 = vpop.permute.xlu0 %1821
        %1823 = vrot.lane.b32.xlu0 %v1229, 104
        %v1824 = vpop.permute.xlu0 %1823
        %1825 = vrot.lane.b32.xlu0 %v1231, 104
        %v1826 = vpop.permute.xlu0 %1825
        %1827 = vrot.lane.b32.xlu0 %v1234, 104
        %v1828 = vpop.permute.xlu0 %1827
        %1829 = vrot.lane.b32.xlu0 %v1236, 104
        %v1830 = vpop.permute.xlu0 %1829
        %1831 = vrot.lane.b32.xlu0 %v1239, 104
        %v1832 = vpop.permute.xlu0 %1831
        %1833 = vrot.lane.b32.xlu0 %v1241, 104
        %v1834 = vpop.permute.xlu0 %1833
        %v1851 = vpack.c.bf16 %v1204, %v1204
        %v1852 = vpack.c.bf16 %v1206, %v1206
        %v1853 = vpack.c.bf16 %v1708, %v1708
        %v1854 = vpack.c.bf16 %v1710, %v1710
        %v1855 = vpack.c.bf16 %v1756, %v1756
        %v1856 = vpack.c.bf16 %v1758, %v1758
        %v1857 = vpack.c.bf16 %v1804, %v1804
        %v1858 = vpack.c.bf16 %v1806, %v1806
        %v1859 = vpack.c.bf16 %v1209, %v1209
        %v1860 = vpack.c.bf16 %v1211, %v1211
        %v1861 = vpack.c.bf16 %v1712, %v1712
        %v1862 = vpack.c.bf16 %v1714, %v1714
        %v1863 = vpack.c.bf16 %v1760, %v1760
        %v1864 = vpack.c.bf16 %v1762, %v1762
        %v1865 = vpack.c.bf16 %v1808, %v1808
        %v1866 = vpack.c.bf16 %v1810, %v1810
        %v1867 = vpack.c.bf16 %v1214, %v1214
        %v1868 = vpack.c.bf16 %v1216, %v1216
        %v1869 = vpack.c.bf16 %v1716, %v1716
        %v1870 = vpack.c.bf16 %v1718, %v1718
        %v1871 = vpack.c.bf16 %v1764, %v1764
        %v1872 = vpack.c.bf16 %v1766, %v1766
        %v1873 = vpack.c.bf16 %v1812, %v1812
        %v1874 = vpack.c.bf16 %v1814, %v1814
        %v1875 = vpack.c.bf16 %v1219, %v1219
        %v1876 = vpack.c.bf16 %v1221, %v1221
        %v1877 = vpack.c.bf16 %v1720, %v1720
        %v1878 = vpack.c.bf16 %v1722, %v1722
        %v1879 = vpack.c.bf16 %v1768, %v1768
        %v1880 = vpack.c.bf16 %v1770, %v1770
        %v1881 = vpack.c.bf16 %v1816, %v1816
        %v1882 = vpack.c.bf16 %v1818, %v1818
        %v1883 = vpack.c.bf16 %v1224, %v1224
        %v1884 = vpack.c.bf16 %v1226, %v1226
        %v1885 = vpack.c.bf16 %v1724, %v1724
        %v1886 = vpack.c.bf16 %v1726, %v1726
        %v1887 = vpack.c.bf16 %v1772, %v1772
        %v1888 = vpack.c.bf16 %v1774, %v1774
        %v1889 = vpack.c.bf16 %v1820, %v1820
        %v1890 = vpack.c.bf16 %v1822, %v1822
        %v1891 = vpack.c.bf16 %v1229, %v1229
        %v1892 = vpack.c.bf16 %v1231, %v1231
        %v1893 = vpack.c.bf16 %v1728, %v1728
        %v1894 = vpack.c.bf16 %v1730, %v1730
        %v1895 = vpack.c.bf16 %v1776, %v1776
        %v1896 = vpack.c.bf16 %v1778, %v1778
        %v1897 = vpack.c.bf16 %v1824, %v1824
        %v1898 = vpack.c.bf16 %v1826, %v1826
        %v1899 = vpack.c.bf16 %v1234, %v1234
        %v1900 = vpack.c.bf16 %v1236, %v1236
        %v1901 = vpack.c.bf16 %v1732, %v1732
        %v1902 = vpack.c.bf16 %v1734, %v1734
        %v1903 = vpack.c.bf16 %v1780, %v1780
        %v1904 = vpack.c.bf16 %v1782, %v1782
        %v1905 = vpack.c.bf16 %v1828, %v1828
        %v1906 = vpack.c.bf16 %v1830, %v1830
        %v1907 = vpack.c.bf16 %v1239, %v1239
        %v1908 = vpack.c.bf16 %v1241, %v1241
        %v1909 = vpack.c.bf16 %v1736, %v1736
        %v1910 = vpack.c.bf16 %v1738, %v1738
        %v1911 = vpack.c.bf16 %v1784, %v1784
        %v1912 = vpack.c.bf16 %v1786, %v1786
        %v1913 = vpack.c.bf16 %v1832, %v1832
        %v1914 = vpack.c.bf16 %v1834, %v1834
        %v1917 = vunpack.c.l.b16 %v1403
        %v1918 = vunpack.c.l.b16 %v1404
        %v1919 = vpack.c.b16 %v1918, %v1917
        %v1922 = vunpack.c.l.b16 %v1627
        %v1923 = vunpack.c.l.b16 %v1628
        %v1924 = vpack.c.b16 %v1923, %v1922
        %vm1925 = vcmask 64512
        %v1927 = vsel %vm1925, %v1919, 0
        %v1930 = vsel %vm1925, %v1924, 0
        %1932 = vmatpush.bf16.xpose.msra.mxu0 0
        %1933 = vmatpush.bf16.xpose.msra.mxu0 0
        %1934 = vmatpush.bf16.xpose.msra.mxu0 0
        %1935 = vmatpush.bf16.xpose.msra.mxu0 0
        %1936 = vmatpush.bf16.xpose.msra.mxu0 0
        %1937 = vmatpush.bf16.xpose.msra.mxu0 0
        %1938 = vmatpush.bf16.xpose.msra.mxu0 0
        %1939 = vmatpush.bf16.xpose.msra.mxu0 %v1930
        %1940 = vmatmul.bf16.gmra.mxu0 %v1927
        %v1941 = vpop.f32.mrf.mxu0
        %v1942 = vadd.f32 0.0, %v1941
        %v1943 = vpop.f32.mrf.mxu0
        %v1944 = vadd.f32 0.0, %v1943
        %1945 = vdwg.mxu0
        %v1948 = vunpack.c.l.b16 %v1405
        %v1949 = vunpack.c.l.b16 %v1406
        %v1950 = vpack.c.b16 %v1949, %v1948
        %v1953 = vunpack.c.l.b16 %v1629
        %v1954 = vunpack.c.l.b16 %v1630
        %v1955 = vpack.c.b16 %v1954, %v1953
        %v1957 = vsel %vm1925, %v1950, 0
        %v1960 = vsel %vm1925, %v1955, 0
        %1962 = vmatpush.bf16.xpose.msra.mxu0 0
        %1963 = vmatpush.bf16.xpose.msra.mxu0 0
        %1964 = vmatpush.bf16.xpose.msra.mxu0 0
        %1965 = vmatpush.bf16.xpose.msra.mxu0 0
        %1966 = vmatpush.bf16.xpose.msra.mxu0 0
        %1967 = vmatpush.bf16.xpose.msra.mxu0 0
        %1968 = vmatpush.bf16.xpose.msra.mxu0 0
        %1969 = vmatpush.bf16.xpose.msra.mxu0 %v1960
        %1970 = vmatmul.bf16.gmra.mxu0 %v1957
        %v1971 = vpop.f32.mrf.mxu0
        %v1972 = vadd.f32 0.0, %v1971
        %v1973 = vpop.f32.mrf.mxu0
        %v1974 = vadd.f32 0.0, %v1973
        %1975 = vdwg.mxu0
        %v1978 = vunpack.c.l.b16 %v1407
        %v1979 = vunpack.c.l.b16 %v1408
        %v1980 = vpack.c.b16 %v1979, %v1978
        %v1983 = vunpack.c.l.b16 %v1631
        %v1984 = vunpack.c.l.b16 %v1632
        %v1985 = vpack.c.b16 %v1984, %v1983
        %v1987 = vsel %vm1925, %v1980, 0
        %v1990 = vsel %vm1925, %v1985, 0
        %1992 = vmatpush.bf16.xpose.msra.mxu0 0
        %1993 = vmatpush.bf16.xpose.msra.mxu0 0
        %1994 = vmatpush.bf16.xpose.msra.mxu0 0
        %1995 = vmatpush.bf16.xpose.msra.mxu0 0
        %1996 = vmatpush.bf16.xpose.msra.mxu0 0
        %1997 = vmatpush.bf16.xpose.msra.mxu0 0
        %1998 = vmatpush.bf16.xpose.msra.mxu0 0
        %1999 = vmatpush.bf16.xpose.msra.mxu0 %v1990
        %2000 = vmatmul.bf16.gmra.mxu0 %v1987
        %v2001 = vpop.f32.mrf.mxu0
        %v2002 = vadd.f32 0.0, %v2001
        %v2003 = vpop.f32.mrf.mxu0
        %v2004 = vadd.f32 0.0, %v2003
        %2005 = vdwg.mxu0
        %v2008 = vunpack.c.l.b16 %v1409
        %v2009 = vunpack.c.l.b16 %v1410
        %v2010 = vpack.c.b16 %v2009, %v2008
        %v2013 = vunpack.c.l.b16 %v1633
        %v2014 = vunpack.c.l.b16 %v1634
        %v2015 = vpack.c.b16 %v2014, %v2013
        %v2017 = vsel %vm1925, %v2010, 0
        %v2020 = vsel %vm1925, %v2015, 0
        %2022 = vmatpush.bf16.xpose.msra.mxu0 0
        %2023 = vmatpush.bf16.xpose.msra.mxu0 0
        %2024 = vmatpush.bf16.xpose.msra.mxu0 0
        %2025 = vmatpush.bf16.xpose.msra.mxu0 0
        %2026 = vmatpush.bf16.xpose.msra.mxu0 0
        %2027 = vmatpush.bf16.xpose.msra.mxu0 0
        %2028 = vmatpush.bf16.xpose.msra.mxu0 0
        %2029 = vmatpush.bf16.xpose.msra.mxu0 %v2020
        %2030 = vmatmul.bf16.gmra.mxu0 %v2017
        %v2031 = vpop.f32.mrf.mxu0
        %v2032 = vadd.f32 0.0, %v2031
        %v2033 = vpop.f32.mrf.mxu0
        %v2034 = vadd.f32 0.0, %v2033
        %2035 = vdwg.mxu0
        %v2038 = vunpack.c.l.b16 %v1411
        %v2039 = vunpack.c.l.b16 %v1412
        %v2040 = vpack.c.b16 %v2039, %v2038
        %v2043 = vunpack.c.l.b16 %v1635
        %v2044 = vunpack.c.l.b16 %v1636
        %v2045 = vpack.c.b16 %v2044, %v2043
        %v2047 = vsel %vm1925, %v2040, 0
        %v2050 = vsel %vm1925, %v2045, 0
        %2052 = vmatpush.bf16.xpose.msra.mxu0 0
        %2053 = vmatpush.bf16.xpose.msra.mxu0 0
        %2054 = vmatpush.bf16.xpose.msra.mxu0 0
        %2055 = vmatpush.bf16.xpose.msra.mxu0 0
        %2056 = vmatpush.bf16.xpose.msra.mxu0 0
        %2057 = vmatpush.bf16.xpose.msra.mxu0 0
        %2058 = vmatpush.bf16.xpose.msra.mxu0 0
        %2059 = vmatpush.bf16.xpose.msra.mxu0 %v2050
        %2060 = vmatmul.bf16.gmra.mxu0 %v2047
        %v2061 = vpop.f32.mrf.mxu0
        %v2062 = vadd.f32 0.0, %v2061
        %v2063 = vpop.f32.mrf.mxu0
        %v2064 = vadd.f32 0.0, %v2063
        %2065 = vdwg.mxu0
        %v2068 = vunpack.c.l.b16 %v1413
        %v2069 = vunpack.c.l.b16 %v1414
        %v2070 = vpack.c.b16 %v2069, %v2068
        %v2073 = vunpack.c.l.b16 %v1637
        %v2074 = vunpack.c.l.b16 %v1638
        %v2075 = vpack.c.b16 %v2074, %v2073
        %v2077 = vsel %vm1925, %v2070, 0
        %v2080 = vsel %vm1925, %v2075, 0
        %2082 = vmatpush.bf16.xpose.msra.mxu0 0
        %2083 = vmatpush.bf16.xpose.msra.mxu0 0
        %2084 = vmatpush.bf16.xpose.msra.mxu0 0
        %2085 = vmatpush.bf16.xpose.msra.mxu0 0
        %2086 = vmatpush.bf16.xpose.msra.mxu0 0
        %2087 = vmatpush.bf16.xpose.msra.mxu0 0
        %2088 = vmatpush.bf16.xpose.msra.mxu0 0
        %2089 = vmatpush.bf16.xpose.msra.mxu0 %v2080
        %2090 = vmatmul.bf16.gmra.mxu0 %v2077
        %v2091 = vpop.f32.mrf.mxu0
        %v2092 = vadd.f32 0.0, %v2091
        %v2093 = vpop.f32.mrf.mxu0
        %v2094 = vadd.f32 0.0, %v2093
        %2095 = vdwg.mxu0
        %v2098 = vunpack.c.l.b16 %v1415
        %v2099 = vunpack.c.l.b16 %v1416
        %v2100 = vpack.c.b16 %v2099, %v2098
        %v2103 = vunpack.c.l.b16 %v1639
        %v2104 = vunpack.c.l.b16 %v1640
        %v2105 = vpack.c.b16 %v2104, %v2103
        %v2107 = vsel %vm1925, %v2100, 0
        %v2110 = vsel %vm1925, %v2105, 0
        %2112 = vmatpush.bf16.xpose.msra.mxu0 0
        %2113 = vmatpush.bf16.xpose.msra.mxu0 0
        %2114 = vmatpush.bf16.xpose.msra.mxu0 0
        %2115 = vmatpush.bf16.xpose.msra.mxu0 0
        %2116 = vmatpush.bf16.xpose.msra.mxu0 0
        %2117 = vmatpush.bf16.xpose.msra.mxu0 0
        %2118 = vmatpush.bf16.xpose.msra.mxu0 0
        %2119 = vmatpush.bf16.xpose.msra.mxu0 %v2110
        %2120 = vmatmul.bf16.gmra.mxu0 %v2107
        %v2121 = vpop.f32.mrf.mxu0
        %v2122 = vadd.f32 0.0, %v2121
        %v2123 = vpop.f32.mrf.mxu0
        %v2124 = vadd.f32 0.0, %v2123
        %2125 = vdwg.mxu0
        %v2128 = vunpack.c.l.b16 %v1417
        %v2129 = vunpack.c.l.b16 %v1418
        %v2130 = vpack.c.b16 %v2129, %v2128
        %v2133 = vunpack.c.l.b16 %v1641
        %v2134 = vunpack.c.l.b16 %v1642
        %v2135 = vpack.c.b16 %v2134, %v2133
        %v2137 = vsel %vm1925, %v2130, 0
        %v2140 = vsel %vm1925, %v2135, 0
        %2142 = vmatpush.bf16.xpose.msra.mxu0 0
        %2143 = vmatpush.bf16.xpose.msra.mxu0 0
        %2144 = vmatpush.bf16.xpose.msra.mxu0 0
        %2145 = vmatpush.bf16.xpose.msra.mxu0 0
        %2146 = vmatpush.bf16.xpose.msra.mxu0 0
        %2147 = vmatpush.bf16.xpose.msra.mxu0 0
        %2148 = vmatpush.bf16.xpose.msra.mxu0 0
        %2149 = vmatpush.bf16.xpose.msra.mxu0 %v2140
        %2150 = vmatmul.bf16.gmra.mxu0 %v2137
        %v2151 = vpop.f32.mrf.mxu0
        %v2152 = vadd.f32 0.0, %v2151
        %v2153 = vpop.f32.mrf.mxu0
        %v2154 = vadd.f32 0.0, %v2153
        %2155 = vdwg.mxu0
        %v2158 = vunpack.c.l.b16 %v1419
        %v2159 = vunpack.c.l.b16 %v1420
        %v2160 = vpack.c.b16 %v2159, %v2158
        %v2163 = vunpack.c.l.b16 %v1643
        %v2164 = vunpack.c.l.b16 %v1644
        %v2165 = vpack.c.b16 %v2164, %v2163
        %v2167 = vsel %vm1925, %v2160, 0
        %v2170 = vsel %vm1925, %v2165, 0
        %2172 = vmatpush.bf16.xpose.msra.mxu0 0
        %2173 = vmatpush.bf16.xpose.msra.mxu0 0
        %2174 = vmatpush.bf16.xpose.msra.mxu0 0
        %2175 = vmatpush.bf16.xpose.msra.mxu0 0
        %2176 = vmatpush.bf16.xpose.msra.mxu0 0
        %2177 = vmatpush.bf16.xpose.msra.mxu0 0
        %2178 = vmatpush.bf16.xpose.msra.mxu0 0
        %2179 = vmatpush.bf16.xpose.msra.mxu0 %v2170
        %2180 = vmatmul.bf16.gmra.mxu0 %v2167
        %v2181 = vpop.f32.mrf.mxu0
        %v2182 = vadd.f32 0.0, %v2181
        %v2183 = vpop.f32.mrf.mxu0
        %v2184 = vadd.f32 0.0, %v2183
        %2185 = vdwg.mxu0
        %v2188 = vunpack.c.l.b16 %v1421
        %v2189 = vunpack.c.l.b16 %v1422
        %v2190 = vpack.c.b16 %v2189, %v2188
        %v2193 = vunpack.c.l.b16 %v1645
        %v2194 = vunpack.c.l.b16 %v1646
        %v2195 = vpack.c.b16 %v2194, %v2193
        %v2197 = vsel %vm1925, %v2190, 0
        %v2200 = vsel %vm1925, %v2195, 0
        %2202 = vmatpush.bf16.xpose.msra.mxu0 0
        %2203 = vmatpush.bf16.xpose.msra.mxu0 0
        %2204 = vmatpush.bf16.xpose.msra.mxu0 0
        %2205 = vmatpush.bf16.xpose.msra.mxu0 0
        %2206 = vmatpush.bf16.xpose.msra.mxu0 0
        %2207 = vmatpush.bf16.xpose.msra.mxu0 0
        %2208 = vmatpush.bf16.xpose.msra.mxu0 0
        %2209 = vmatpush.bf16.xpose.msra.mxu0 %v2200
        %2210 = vmatmul.bf16.gmra.mxu0 %v2197
        %v2211 = vpop.f32.mrf.mxu0
        %v2212 = vadd.f32 0.0, %v2211
        %v2213 = vpop.f32.mrf.mxu0
        %v2214 = vadd.f32 0.0, %v2213
        %2215 = vdwg.mxu0
        %v2218 = vunpack.c.l.b16 %v1423
        %v2219 = vunpack.c.l.b16 %v1424
        %v2220 = vpack.c.b16 %v2219, %v2218
        %v2223 = vunpack.c.l.b16 %v1647
        %v2224 = vunpack.c.l.b16 %v1648
        %v2225 = vpack.c.b16 %v2224, %v2223
        %v2227 = vsel %vm1925, %v2220, 0
        %v2230 = vsel %vm1925, %v2225, 0
        %2232 = vmatpush.bf16.xpose.msra.mxu0 0
        %2233 = vmatpush.bf16.xpose.msra.mxu0 0
        %2234 = vmatpush.bf16.xpose.msra.mxu0 0
        %2235 = vmatpush.bf16.xpose.msra.mxu0 0
        %2236 = vmatpush.bf16.xpose.msra.mxu0 0
        %2237 = vmatpush.bf16.xpose.msra.mxu0 0
        %2238 = vmatpush.bf16.xpose.msra.mxu0 0
        %2239 = vmatpush.bf16.xpose.msra.mxu0 %v2230
        %2240 = vmatmul.bf16.gmra.mxu0 %v2227
        %v2241 = vpop.f32.mrf.mxu0
        %v2242 = vadd.f32 0.0, %v2241
        %v2243 = vpop.f32.mrf.mxu0
        %v2244 = vadd.f32 0.0, %v2243
        %2245 = vdwg.mxu0
        %v2248 = vunpack.c.l.b16 %v1425
        %v2249 = vunpack.c.l.b16 %v1426
        %v2250 = vpack.c.b16 %v2249, %v2248
        %v2253 = vunpack.c.l.b16 %v1649
        %v2254 = vunpack.c.l.b16 %v1650
        %v2255 = vpack.c.b16 %v2254, %v2253
        %v2257 = vsel %vm1925, %v2250, 0
        %v2260 = vsel %vm1925, %v2255, 0
        %2262 = vmatpush.bf16.xpose.msra.mxu0 0
        %2263 = vmatpush.bf16.xpose.msra.mxu0 0
        %2264 = vmatpush.bf16.xpose.msra.mxu0 0
        %2265 = vmatpush.bf16.xpose.msra.mxu0 0
        %2266 = vmatpush.bf16.xpose.msra.mxu0 0
        %2267 = vmatpush.bf16.xpose.msra.mxu0 0
        %2268 = vmatpush.bf16.xpose.msra.mxu0 0
        %2269 = vmatpush.bf16.xpose.msra.mxu0 %v2260
        %2270 = vmatmul.bf16.gmra.mxu0 %v2257
        %v2271 = vpop.f32.mrf.mxu0
        %v2272 = vadd.f32 0.0, %v2271
        %v2273 = vpop.f32.mrf.mxu0
        %v2274 = vadd.f32 0.0, %v2273
        %2275 = vdwg.mxu0
        %v2278 = vunpack.c.l.b16 %v1427
        %v2279 = vunpack.c.l.b16 %v1428
        %v2280 = vpack.c.b16 %v2279, %v2278
        %v2283 = vunpack.c.l.b16 %v1651
        %v2284 = vunpack.c.l.b16 %v1652
        %v2285 = vpack.c.b16 %v2284, %v2283
        %v2287 = vsel %vm1925, %v2280, 0
        %v2290 = vsel %vm1925, %v2285, 0
        %2292 = vmatpush.bf16.xpose.msra.mxu0 0
        %2293 = vmatpush.bf16.xpose.msra.mxu0 0
        %2294 = vmatpush.bf16.xpose.msra.mxu0 0
        %2295 = vmatpush.bf16.xpose.msra.mxu0 0
        %2296 = vmatpush.bf16.xpose.msra.mxu0 0
        %2297 = vmatpush.bf16.xpose.msra.mxu0 0
        %2298 = vmatpush.bf16.xpose.msra.mxu0 0
        %2299 = vmatpush.bf16.xpose.msra.mxu0 %v2290
        %2300 = vmatmul.bf16.gmra.mxu0 %v2287
        %v2301 = vpop.f32.mrf.mxu0
        %v2302 = vadd.f32 0.0, %v2301
        %v2303 = vpop.f32.mrf.mxu0
        %v2304 = vadd.f32 0.0, %v2303
        %2305 = vdwg.mxu0
        %v2308 = vunpack.c.l.b16 %v1429
        %v2309 = vunpack.c.l.b16 %v1430
        %v2310 = vpack.c.b16 %v2309, %v2308
        %v2313 = vunpack.c.l.b16 %v1653
        %v2314 = vunpack.c.l.b16 %v1654
        %v2315 = vpack.c.b16 %v2314, %v2313
        %v2317 = vsel %vm1925, %v2310, 0
        %v2320 = vsel %vm1925, %v2315, 0
        %2322 = vmatpush.bf16.xpose.msra.mxu0 0
        %2323 = vmatpush.bf16.xpose.msra.mxu0 0
        %2324 = vmatpush.bf16.xpose.msra.mxu0 0
        %2325 = vmatpush.bf16.xpose.msra.mxu0 0
        %2326 = vmatpush.bf16.xpose.msra.mxu0 0
        %2327 = vmatpush.bf16.xpose.msra.mxu0 0
        %2328 = vmatpush.bf16.xpose.msra.mxu0 0
        %2329 = vmatpush.bf16.xpose.msra.mxu0 %v2320
        %2330 = vmatmul.bf16.gmra.mxu0 %v2317
        %v2331 = vpop.f32.mrf.mxu0
        %v2332 = vadd.f32 0.0, %v2331
        %v2333 = vpop.f32.mrf.mxu0
        %v2334 = vadd.f32 0.0, %v2333
        %2335 = vdwg.mxu0
        %v2338 = vunpack.c.l.b16 %v1431
        %v2339 = vunpack.c.l.b16 %v1432
        %v2340 = vpack.c.b16 %v2339, %v2338
        %v2343 = vunpack.c.l.b16 %v1655
        %v2344 = vunpack.c.l.b16 %v1656
        %v2345 = vpack.c.b16 %v2344, %v2343
        %v2347 = vsel %vm1925, %v2340, 0
        %v2350 = vsel %vm1925, %v2345, 0
        %2352 = vmatpush.bf16.xpose.msra.mxu0 0
        %2353 = vmatpush.bf16.xpose.msra.mxu0 0
        %2354 = vmatpush.bf16.xpose.msra.mxu0 0
        %2355 = vmatpush.bf16.xpose.msra.mxu0 0
        %2356 = vmatpush.bf16.xpose.msra.mxu0 0
        %2357 = vmatpush.bf16.xpose.msra.mxu0 0
        %2358 = vmatpush.bf16.xpose.msra.mxu0 0
        %2359 = vmatpush.bf16.xpose.msra.mxu0 %v2350
        %2360 = vmatmul.bf16.gmra.mxu0 %v2347
        %v2361 = vpop.f32.mrf.mxu0
        %v2362 = vadd.f32 0.0, %v2361
        %v2363 = vpop.f32.mrf.mxu0
        %v2364 = vadd.f32 0.0, %v2363
        %2365 = vdwg.mxu0
        %v2368 = vunpack.c.l.b16 %v1433
        %v2369 = vunpack.c.l.b16 %v1434
        %v2370 = vpack.c.b16 %v2369, %v2368
        %v2373 = vunpack.c.l.b16 %v1657
        %v2374 = vunpack.c.l.b16 %v1658
        %v2375 = vpack.c.b16 %v2374, %v2373
        %v2377 = vsel %vm1925, %v2370, 0
        %v2380 = vsel %vm1925, %v2375, 0
        %2382 = vmatpush.bf16.xpose.msra.mxu0 0
        %2383 = vmatpush.bf16.xpose.msra.mxu0 0
        %2384 = vmatpush.bf16.xpose.msra.mxu0 0
        %2385 = vmatpush.bf16.xpose.msra.mxu0 0
        %2386 = vmatpush.bf16.xpose.msra.mxu0 0
        %2387 = vmatpush.bf16.xpose.msra.mxu0 0
        %2388 = vmatpush.bf16.xpose.msra.mxu0 0
        %2389 = vmatpush.bf16.xpose.msra.mxu0 %v2380
        %2390 = vmatmul.bf16.gmra.mxu0 %v2377
        %v2391 = vpop.f32.mrf.mxu0
        %v2392 = vadd.f32 0.0, %v2391
        %v2393 = vpop.f32.mrf.mxu0
        %v2394 = vadd.f32 0.0, %v2393
        %2395 = vdwg.mxu0
        %v2398 = vunpack.c.l.b16 %v1435
        %v2399 = vunpack.c.l.b16 %v1436
        %v2400 = vpack.c.b16 %v2399, %v2398
        %v2403 = vunpack.c.l.b16 %v1659
        %v2404 = vunpack.c.l.b16 %v1660
        %v2405 = vpack.c.b16 %v2404, %v2403
        %v2407 = vsel %vm1925, %v2400, 0
        %v2410 = vsel %vm1925, %v2405, 0
        %2412 = vmatpush.bf16.xpose.msra.mxu0 0
        %2413 = vmatpush.bf16.xpose.msra.mxu0 0
        %2414 = vmatpush.bf16.xpose.msra.mxu0 0
        %2415 = vmatpush.bf16.xpose.msra.mxu0 0
        %2416 = vmatpush.bf16.xpose.msra.mxu0 0
        %2417 = vmatpush.bf16.xpose.msra.mxu0 0
        %2418 = vmatpush.bf16.xpose.msra.mxu0 0
        %2419 = vmatpush.bf16.xpose.msra.mxu0 %v2410
        %2420 = vmatmul.bf16.gmra.mxu0 %v2407
        %v2421 = vpop.f32.mrf.mxu0
        %v2422 = vadd.f32 0.0, %v2421
        %v2423 = vpop.f32.mrf.mxu0
        %v2424 = vadd.f32 0.0, %v2423
        %2425 = vdwg.mxu0
        %v2428 = vunpack.c.l.b16 %v1437
        %v2429 = vunpack.c.l.b16 %v1438
        %v2430 = vpack.c.b16 %v2429, %v2428
        %v2433 = vunpack.c.l.b16 %v1661
        %v2434 = vunpack.c.l.b16 %v1662
        %v2435 = vpack.c.b16 %v2434, %v2433
        %v2437 = vsel %vm1925, %v2430, 0
        %v2440 = vsel %vm1925, %v2435, 0
        %2442 = vmatpush.bf16.xpose.msra.mxu0 0
        %2443 = vmatpush.bf16.xpose.msra.mxu0 0
        %2444 = vmatpush.bf16.xpose.msra.mxu0 0
        %2445 = vmatpush.bf16.xpose.msra.mxu0 0
        %2446 = vmatpush.bf16.xpose.msra.mxu0 0
        %2447 = vmatpush.bf16.xpose.msra.mxu0 0
        %2448 = vmatpush.bf16.xpose.msra.mxu0 0
        %2449 = vmatpush.bf16.xpose.msra.mxu0 %v2440
        %2450 = vmatmul.bf16.gmra.mxu0 %v2437
        %v2451 = vpop.f32.mrf.mxu0
        %v2452 = vadd.f32 0.0, %v2451
        %v2453 = vpop.f32.mrf.mxu0
        %v2454 = vadd.f32 0.0, %v2453
        %2455 = vdwg.mxu0
        %v2458 = vunpack.c.l.b16 %v1439
        %v2459 = vunpack.c.l.b16 %v1440
        %v2460 = vpack.c.b16 %v2459, %v2458
        %v2463 = vunpack.c.l.b16 %v1663
        %v2464 = vunpack.c.l.b16 %v1664
        %v2465 = vpack.c.b16 %v2464, %v2463
        %v2467 = vsel %vm1925, %v2460, 0
        %v2470 = vsel %vm1925, %v2465, 0
        %2472 = vmatpush.bf16.xpose.msra.mxu0 0
        %2473 = vmatpush.bf16.xpose.msra.mxu0 0
        %2474 = vmatpush.bf16.xpose.msra.mxu0 0
        %2475 = vmatpush.bf16.xpose.msra.mxu0 0
        %2476 = vmatpush.bf16.xpose.msra.mxu0 0
        %2477 = vmatpush.bf16.xpose.msra.mxu0 0
        %2478 = vmatpush.bf16.xpose.msra.mxu0 0
        %2479 = vmatpush.bf16.xpose.msra.mxu0 %v2470
        %2480 = vmatmul.bf16.gmra.mxu0 %v2467
        %v2481 = vpop.f32.mrf.mxu0
        %v2482 = vadd.f32 0.0, %v2481
        %v2483 = vpop.f32.mrf.mxu0
        %v2484 = vadd.f32 0.0, %v2483
        %2485 = vdwg.mxu0
        %v2488 = vunpack.c.l.b16 %v1441
        %v2489 = vunpack.c.l.b16 %v1442
        %v2490 = vpack.c.b16 %v2489, %v2488
        %v2493 = vunpack.c.l.b16 %v1665
        %v2494 = vunpack.c.l.b16 %v1666
        %v2495 = vpack.c.b16 %v2494, %v2493
        %v2497 = vsel %vm1925, %v2490, 0
        %v2500 = vsel %vm1925, %v2495, 0
        %2502 = vmatpush.bf16.xpose.msra.mxu0 0
        %2503 = vmatpush.bf16.xpose.msra.mxu0 0
        %2504 = vmatpush.bf16.xpose.msra.mxu0 0
        %2505 = vmatpush.bf16.xpose.msra.mxu0 0
        %2506 = vmatpush.bf16.xpose.msra.mxu0 0
        %2507 = vmatpush.bf16.xpose.msra.mxu0 0
        %2508 = vmatpush.bf16.xpose.msra.mxu0 0
        %2509 = vmatpush.bf16.xpose.msra.mxu0 %v2500
        %2510 = vmatmul.bf16.gmra.mxu0 %v2497
        %v2511 = vpop.f32.mrf.mxu0
        %v2512 = vadd.f32 0.0, %v2511
        %v2513 = vpop.f32.mrf.mxu0
        %v2514 = vadd.f32 0.0, %v2513
        %2515 = vdwg.mxu0
        %v2518 = vunpack.c.l.b16 %v1443
        %v2519 = vunpack.c.l.b16 %v1444
        %v2520 = vpack.c.b16 %v2519, %v2518
        %v2523 = vunpack.c.l.b16 %v1667
        %v2524 = vunpack.c.l.b16 %v1668
        %v2525 = vpack.c.b16 %v2524, %v2523
        %v2527 = vsel %vm1925, %v2520, 0
        %v2530 = vsel %vm1925, %v2525, 0
        %2532 = vmatpush.bf16.xpose.msra.mxu0 0
        %2533 = vmatpush.bf16.xpose.msra.mxu0 0
        %2534 = vmatpush.bf16.xpose.msra.mxu0 0
        %2535 = vmatpush.bf16.xpose.msra.mxu0 0
        %2536 = vmatpush.bf16.xpose.msra.mxu0 0
        %2537 = vmatpush.bf16.xpose.msra.mxu0 0
        %2538 = vmatpush.bf16.xpose.msra.mxu0 0
        %2539 = vmatpush.bf16.xpose.msra.mxu0 %v2530
        %2540 = vmatmul.bf16.gmra.mxu0 %v2527
        %v2541 = vpop.f32.mrf.mxu0
        %v2542 = vadd.f32 0.0, %v2541
        %v2543 = vpop.f32.mrf.mxu0
        %v2544 = vadd.f32 0.0, %v2543
        %2545 = vdwg.mxu0
        %v2548 = vunpack.c.l.b16 %v1445
        %v2549 = vunpack.c.l.b16 %v1446
        %v2550 = vpack.c.b16 %v2549, %v2548
        %v2553 = vunpack.c.l.b16 %v1669
        %v2554 = vunpack.c.l.b16 %v1670
        %v2555 = vpack.c.b16 %v2554, %v2553
        %v2557 = vsel %vm1925, %v2550, 0
        %v2560 = vsel %vm1925, %v2555, 0
        %2562 = vmatpush.bf16.xpose.msra.mxu0 0
        %2563 = vmatpush.bf16.xpose.msra.mxu0 0
        %2564 = vmatpush.bf16.xpose.msra.mxu0 0
        %2565 = vmatpush.bf16.xpose.msra.mxu0 0
        %2566 = vmatpush.bf16.xpose.msra.mxu0 0
        %2567 = vmatpush.bf16.xpose.msra.mxu0 0
        %2568 = vmatpush.bf16.xpose.msra.mxu0 0
        %2569 = vmatpush.bf16.xpose.msra.mxu0 %v2560
        %2570 = vmatmul.bf16.gmra.mxu0 %v2557
        %v2571 = vpop.f32.mrf.mxu0
        %v2572 = vadd.f32 0.0, %v2571
        %v2573 = vpop.f32.mrf.mxu0
        %v2574 = vadd.f32 0.0, %v2573
        %2575 = vdwg.mxu0
        %v2578 = vunpack.c.l.b16 %v1447
        %v2579 = vunpack.c.l.b16 %v1448
        %v2580 = vpack.c.b16 %v2579, %v2578
        %v2583 = vunpack.c.l.b16 %v1671
        %v2584 = vunpack.c.l.b16 %v1672
        %v2585 = vpack.c.b16 %v2584, %v2583
        %v2587 = vsel %vm1925, %v2580, 0
        %v2590 = vsel %vm1925, %v2585, 0
        %2592 = vmatpush.bf16.xpose.msra.mxu0 0
        %2593 = vmatpush.bf16.xpose.msra.mxu0 0
        %2594 = vmatpush.bf16.xpose.msra.mxu0 0
        %2595 = vmatpush.bf16.xpose.msra.mxu0 0
        %2596 = vmatpush.bf16.xpose.msra.mxu0 0
        %2597 = vmatpush.bf16.xpose.msra.mxu0 0
        %2598 = vmatpush.bf16.xpose.msra.mxu0 0
        %2599 = vmatpush.bf16.xpose.msra.mxu0 %v2590
        %2600 = vmatmul.bf16.gmra.mxu0 %v2587
        %v2601 = vpop.f32.mrf.mxu0
        %v2602 = vadd.f32 0.0, %v2601
        %v2603 = vpop.f32.mrf.mxu0
        %v2604 = vadd.f32 0.0, %v2603
        %2605 = vdwg.mxu0
        %v2608 = vunpack.c.l.b16 %v1449
        %v2609 = vunpack.c.l.b16 %v1450
        %v2610 = vpack.c.b16 %v2609, %v2608
        %v2613 = vunpack.c.l.b16 %v1673
        %v2614 = vunpack.c.l.b16 %v1674
        %v2615 = vpack.c.b16 %v2614, %v2613
        %v2617 = vsel %vm1925, %v2610, 0
        %v2620 = vsel %vm1925, %v2615, 0
        %2622 = vmatpush.bf16.xpose.msra.mxu0 0
        %2623 = vmatpush.bf16.xpose.msra.mxu0 0
        %2624 = vmatpush.bf16.xpose.msra.mxu0 0
        %2625 = vmatpush.bf16.xpose.msra.mxu0 0
        %2626 = vmatpush.bf16.xpose.msra.mxu0 0
        %2627 = vmatpush.bf16.xpose.msra.mxu0 0
        %2628 = vmatpush.bf16.xpose.msra.mxu0 0
        %2629 = vmatpush.bf16.xpose.msra.mxu0 %v2620
        %2630 = vmatmul.bf16.gmra.mxu0 %v2617
        %v2631 = vpop.f32.mrf.mxu0
        %v2632 = vadd.f32 0.0, %v2631
        %v2633 = vpop.f32.mrf.mxu0
        %v2634 = vadd.f32 0.0, %v2633
        %2635 = vdwg.mxu0
        %v2638 = vunpack.c.l.b16 %v1451
        %v2639 = vunpack.c.l.b16 %v1452
        %v2640 = vpack.c.b16 %v2639, %v2638
        %v2643 = vunpack.c.l.b16 %v1675
        %v2644 = vunpack.c.l.b16 %v1676
        %v2645 = vpack.c.b16 %v2644, %v2643
        %v2647 = vsel %vm1925, %v2640, 0
        %v2650 = vsel %vm1925, %v2645, 0
        %2652 = vmatpush.bf16.xpose.msra.mxu0 0
        %2653 = vmatpush.bf16.xpose.msra.mxu0 0
        %2654 = vmatpush.bf16.xpose.msra.mxu0 0
        %2655 = vmatpush.bf16.xpose.msra.mxu0 0
        %2656 = vmatpush.bf16.xpose.msra.mxu0 0
        %2657 = vmatpush.bf16.xpose.msra.mxu0 0
        %2658 = vmatpush.bf16.xpose.msra.mxu0 0
        %2659 = vmatpush.bf16.xpose.msra.mxu0 %v2650
        %2660 = vmatmul.bf16.gmra.mxu0 %v2647
        %v2661 = vpop.f32.mrf.mxu0
        %v2662 = vadd.f32 0.0, %v2661
        %v2663 = vpop.f32.mrf.mxu0
        %v2664 = vadd.f32 0.0, %v2663
        %2665 = vdwg.mxu0
        %v2668 = vunpack.c.l.b16 %v1453
        %v2669 = vunpack.c.l.b16 %v1454
        %v2670 = vpack.c.b16 %v2669, %v2668
        %v2673 = vunpack.c.l.b16 %v1677
        %v2674 = vunpack.c.l.b16 %v1678
        %v2675 = vpack.c.b16 %v2674, %v2673
        %v2677 = vsel %vm1925, %v2670, 0
        %v2680 = vsel %vm1925, %v2675, 0
        %2682 = vmatpush.bf16.xpose.msra.mxu0 0
        %2683 = vmatpush.bf16.xpose.msra.mxu0 0
        %2684 = vmatpush.bf16.xpose.msra.mxu0 0
        %2685 = vmatpush.bf16.xpose.msra.mxu0 0
        %2686 = vmatpush.bf16.xpose.msra.mxu0 0
        %2687 = vmatpush.bf16.xpose.msra.mxu0 0
        %2688 = vmatpush.bf16.xpose.msra.mxu0 0
        %2689 = vmatpush.bf16.xpose.msra.mxu0 %v2680
        %2690 = vmatmul.bf16.gmra.mxu0 %v2677
        %v2691 = vpop.f32.mrf.mxu0
        %v2692 = vadd.f32 0.0, %v2691
        %v2693 = vpop.f32.mrf.mxu0
        %v2694 = vadd.f32 0.0, %v2693
        %2695 = vdwg.mxu0
        %v2698 = vunpack.c.l.b16 %v1455
        %v2699 = vunpack.c.l.b16 %v1456
        %v2700 = vpack.c.b16 %v2699, %v2698
        %v2703 = vunpack.c.l.b16 %v1679
        %v2704 = vunpack.c.l.b16 %v1680
        %v2705 = vpack.c.b16 %v2704, %v2703
        %v2707 = vsel %vm1925, %v2700, 0
        %v2710 = vsel %vm1925, %v2705, 0
        %2712 = vmatpush.bf16.xpose.msra.mxu0 0
        %2713 = vmatpush.bf16.xpose.msra.mxu0 0
        %2714 = vmatpush.bf16.xpose.msra.mxu0 0
        %2715 = vmatpush.bf16.xpose.msra.mxu0 0
        %2716 = vmatpush.bf16.xpose.msra.mxu0 0
        %2717 = vmatpush.bf16.xpose.msra.mxu0 0
        %2718 = vmatpush.bf16.xpose.msra.mxu0 0
        %2719 = vmatpush.bf16.xpose.msra.mxu0 %v2710
        %2720 = vmatmul.bf16.gmra.mxu0 %v2707
        %v2721 = vpop.f32.mrf.mxu0
        %v2722 = vadd.f32 0.0, %v2721
        %v2723 = vpop.f32.mrf.mxu0
        %v2724 = vadd.f32 0.0, %v2723
        %2725 = vdwg.mxu0
        %v2728 = vunpack.c.l.b16 %v1457
        %v2729 = vunpack.c.l.b16 %v1458
        %v2730 = vpack.c.b16 %v2729, %v2728
        %v2733 = vunpack.c.l.b16 %v1681
        %v2734 = vunpack.c.l.b16 %v1682
        %v2735 = vpack.c.b16 %v2734, %v2733
        %v2737 = vsel %vm1925, %v2730, 0
        %v2740 = vsel %vm1925, %v2735, 0
        %2742 = vmatpush.bf16.xpose.msra.mxu0 0
        %2743 = vmatpush.bf16.xpose.msra.mxu0 0
        %2744 = vmatpush.bf16.xpose.msra.mxu0 0
        %2745 = vmatpush.bf16.xpose.msra.mxu0 0
        %2746 = vmatpush.bf16.xpose.msra.mxu0 0
        %2747 = vmatpush.bf16.xpose.msra.mxu0 0
        %2748 = vmatpush.bf16.xpose.msra.mxu0 0
        %2749 = vmatpush.bf16.xpose.msra.mxu0 %v2740
        %2750 = vmatmul.bf16.gmra.mxu0 %v2737
        %v2751 = vpop.f32.mrf.mxu0
        %v2752 = vadd.f32 0.0, %v2751
        %v2753 = vpop.f32.mrf.mxu0
        %v2754 = vadd.f32 0.0, %v2753
        %2755 = vdwg.mxu0
        %v2758 = vunpack.c.l.b16 %v1459
        %v2759 = vunpack.c.l.b16 %v1460
        %v2760 = vpack.c.b16 %v2759, %v2758
        %v2763 = vunpack.c.l.b16 %v1683
        %v2764 = vunpack.c.l.b16 %v1684
        %v2765 = vpack.c.b16 %v2764, %v2763
        %v2767 = vsel %vm1925, %v2760, 0
        %v2770 = vsel %vm1925, %v2765, 0
        %2772 = vmatpush.bf16.xpose.msra.mxu0 0
        %2773 = vmatpush.bf16.xpose.msra.mxu0 0
        %2774 = vmatpush.bf16.xpose.msra.mxu0 0
        %2775 = vmatpush.bf16.xpose.msra.mxu0 0
        %2776 = vmatpush.bf16.xpose.msra.mxu0 0
        %2777 = vmatpush.bf16.xpose.msra.mxu0 0
        %2778 = vmatpush.bf16.xpose.msra.mxu0 0
        %2779 = vmatpush.bf16.xpose.msra.mxu0 %v2770
        %2780 = vmatmul.bf16.gmra.mxu0 %v2767
        %v2781 = vpop.f32.mrf.mxu0
        %v2782 = vadd.f32 0.0, %v2781
        %v2783 = vpop.f32.mrf.mxu0
        %v2784 = vadd.f32 0.0, %v2783
        %2785 = vdwg.mxu0
        %v2788 = vunpack.c.l.b16 %v1461
        %v2789 = vunpack.c.l.b16 %v1462
        %v2790 = vpack.c.b16 %v2789, %v2788
        %v2793 = vunpack.c.l.b16 %v1685
        %v2794 = vunpack.c.l.b16 %v1686
        %v2795 = vpack.c.b16 %v2794, %v2793
        %v2797 = vsel %vm1925, %v2790, 0
        %v2800 = vsel %vm1925, %v2795, 0
        %2802 = vmatpush.bf16.xpose.msra.mxu0 0
        %2803 = vmatpush.bf16.xpose.msra.mxu0 0
        %2804 = vmatpush.bf16.xpose.msra.mxu0 0
        %2805 = vmatpush.bf16.xpose.msra.mxu0 0
        %2806 = vmatpush.bf16.xpose.msra.mxu0 0
        %2807 = vmatpush.bf16.xpose.msra.mxu0 0
        %2808 = vmatpush.bf16.xpose.msra.mxu0 0
        %2809 = vmatpush.bf16.xpose.msra.mxu0 %v2800
        %2810 = vmatmul.bf16.gmra.mxu0 %v2797
        %v2811 = vpop.f32.mrf.mxu0
        %v2812 = vadd.f32 0.0, %v2811
        %v2813 = vpop.f32.mrf.mxu0
        %v2814 = vadd.f32 0.0, %v2813
        %2815 = vdwg.mxu0
        %v2818 = vunpack.c.l.b16 %v1463
        %v2819 = vunpack.c.l.b16 %v1464
        %v2820 = vpack.c.b16 %v2819, %v2818
        %v2823 = vunpack.c.l.b16 %v1687
        %v2824 = vunpack.c.l.b16 %v1688
        %v2825 = vpack.c.b16 %v2824, %v2823
        %v2827 = vsel %vm1925, %v2820, 0
        %v2830 = vsel %vm1925, %v2825, 0
        %2832 = vmatpush.bf16.xpose.msra.mxu0 0
        %2833 = vmatpush.bf16.xpose.msra.mxu0 0
        %2834 = vmatpush.bf16.xpose.msra.mxu0 0
        %2835 = vmatpush.bf16.xpose.msra.mxu0 0
        %2836 = vmatpush.bf16.xpose.msra.mxu0 0
        %2837 = vmatpush.bf16.xpose.msra.mxu0 0
        %2838 = vmatpush.bf16.xpose.msra.mxu0 0
        %2839 = vmatpush.bf16.xpose.msra.mxu0 %v2830
        %2840 = vmatmul.bf16.gmra.mxu0 %v2827
        %v2841 = vpop.f32.mrf.mxu0
        %v2842 = vadd.f32 0.0, %v2841
        %v2843 = vpop.f32.mrf.mxu0
        %v2844 = vadd.f32 0.0, %v2843
        %2845 = vdwg.mxu0
        %v2848 = vunpack.c.l.b16 %v1465
        %v2849 = vunpack.c.l.b16 %v1466
        %v2850 = vpack.c.b16 %v2849, %v2848
        %v2853 = vunpack.c.l.b16 %v1689
        %v2854 = vunpack.c.l.b16 %v1690
        %v2855 = vpack.c.b16 %v2854, %v2853
        %v2857 = vsel %vm1925, %v2850, 0
        %v2860 = vsel %vm1925, %v2855, 0
        %2862 = vmatpush.bf16.xpose.msra.mxu0 0
        %2863 = vmatpush.bf16.xpose.msra.mxu0 0
        %2864 = vmatpush.bf16.xpose.msra.mxu0 0
        %2865 = vmatpush.bf16.xpose.msra.mxu0 0
        %2866 = vmatpush.bf16.xpose.msra.mxu0 0
        %2867 = vmatpush.bf16.xpose.msra.mxu0 0
        %2868 = vmatpush.bf16.xpose.msra.mxu0 0
        %2869 = vmatpush.bf16.xpose.msra.mxu0 %v2860
        %2870 = vmatmul.bf16.gmra.mxu0 %v2857
        %v2871 = vpop.f32.mrf.mxu0
        %v2872 = vadd.f32 0.0, %v2871
        %v2873 = vpop.f32.mrf.mxu0
        %v2874 = vadd.f32 0.0, %v2873
        %2875 = vdwg.mxu0
        %v2876 = vmul.f32 %v1942, 0.35355338
        %v2877 = vmul.f32 %v1944, 0.35355338
        %v2878 = vmul.f32 %v1972, 0.35355338
        %v2879 = vmul.f32 %v1974, 0.35355338
        %v2880 = vmul.f32 %v2002, 0.35355338
        %v2881 = vmul.f32 %v2004, 0.35355338
        %v2882 = vmul.f32 %v2032, 0.35355338
        %v2883 = vmul.f32 %v2034, 0.35355338
        %v2884 = vmul.f32 %v2062, 0.35355338
        %v2885 = vmul.f32 %v2064, 0.35355338
        %v2886 = vmul.f32 %v2092, 0.35355338
        %v2887 = vmul.f32 %v2094, 0.35355338
        %v2888 = vmul.f32 %v2122, 0.35355338
        %v2889 = vmul.f32 %v2124, 0.35355338
        %v2890 = vmul.f32 %v2152, 0.35355338
        %v2891 = vmul.f32 %v2154, 0.35355338
        %v2892 = vmul.f32 %v2182, 0.35355338
        %v2893 = vmul.f32 %v2184, 0.35355338
        %v2894 = vmul.f32 %v2212, 0.35355338
        %v2895 = vmul.f32 %v2214, 0.35355338
        %v2896 = vmul.f32 %v2242, 0.35355338
        %v2897 = vmul.f32 %v2244, 0.35355338
        %v2898 = vmul.f32 %v2272, 0.35355338
        %v2899 = vmul.f32 %v2274, 0.35355338
        %v2900 = vmul.f32 %v2302, 0.35355338
        %v2901 = vmul.f32 %v2304, 0.35355338
        %v2902 = vmul.f32 %v2332, 0.35355338
        %v2903 = vmul.f32 %v2334, 0.35355338
        %v2904 = vmul.f32 %v2362, 0.35355338
        %v2905 = vmul.f32 %v2364, 0.35355338
        %v2906 = vmul.f32 %v2392, 0.35355338
        %v2907 = vmul.f32 %v2394, 0.35355338
        %v2908 = vmul.f32 %v2422, 0.35355338
        %v2909 = vmul.f32 %v2424, 0.35355338
        %v2910 = vmul.f32 %v2452, 0.35355338
        %v2911 = vmul.f32 %v2454, 0.35355338
        %v2912 = vmul.f32 %v2482, 0.35355338
        %v2913 = vmul.f32 %v2484, 0.35355338
        %v2914 = vmul.f32 %v2512, 0.35355338
        %v2915 = vmul.f32 %v2514, 0.35355338
        %v2916 = vmul.f32 %v2542, 0.35355338
        %v2917 = vmul.f32 %v2544, 0.35355338
        %v2918 = vmul.f32 %v2572, 0.35355338
        %v2919 = vmul.f32 %v2574, 0.35355338
        %v2920 = vmul.f32 %v2602, 0.35355338
        %v2921 = vmul.f32 %v2604, 0.35355338
        %v2922 = vmul.f32 %v2632, 0.35355338
        %v2923 = vmul.f32 %v2634, 0.35355338
        %v2924 = vmul.f32 %v2662, 0.35355338
        %v2925 = vmul.f32 %v2664, 0.35355338
        %v2926 = vmul.f32 %v2692, 0.35355338
        %v2927 = vmul.f32 %v2694, 0.35355338
        %v2928 = vmul.f32 %v2722, 0.35355338
        %v2929 = vmul.f32 %v2724, 0.35355338
        %v2930 = vmul.f32 %v2752, 0.35355338
        %v2931 = vmul.f32 %v2754, 0.35355338
        %v2932 = vmul.f32 %v2782, 0.35355338
        %v2933 = vmul.f32 %v2784, 0.35355338
        %v2934 = vmul.f32 %v2812, 0.35355338
        %v2935 = vmul.f32 %v2814, 0.35355338
        %v2936 = vmul.f32 %v2842, 0.35355338
        %v2937 = vmul.f32 %v2844, 0.35355338
        %v2938 = vmul.f32 %v2872, 0.35355338
        %v2939 = vmul.f32 %v2874, 0.35355338
        %v2941 = vrot.slane %v331, 1
        %v2942 = vrot.slane %v331, 2
        %v2943 = vrot.slane %v331, 3
        %v2944 = vrot.slane %v331, 4
        %v2945 = vrot.slane %v331, 5
        %v2946 = vrot.slane %v331, 6
        %v2947 = vrot.slane %v331, 7
        %v2948 = vperm.slane %v331, 0
        %v2949 = vperm.slane %v2941, 0
        %v2950 = vperm.slane %v2942, 0
        %v2951 = vperm.slane %v2943, 0
        %v2952 = vperm.slane %v2944, 0
        %v2953 = vperm.slane %v2945, 0
        %v2954 = vperm.slane %v2946, 0
        %v2955 = vperm.slane %v2947, 0
        %v2964 = vadd.f32 %v2876, %v2948
        %v2965 = vadd.f32 %v2877, %v2948
        %v2966 = vadd.f32 %v2878, %v2948
        %v2967 = vadd.f32 %v2879, %v2948
        %v2968 = vadd.f32 %v2880, %v2948
        %v2969 = vadd.f32 %v2881, %v2948
        %v2970 = vadd.f32 %v2882, %v2948
        %v2971 = vadd.f32 %v2883, %v2948
        %v2972 = vadd.f32 %v2884, %v2949
        %v2973 = vadd.f32 %v2885, %v2949
        %v2974 = vadd.f32 %v2886, %v2949
        %v2975 = vadd.f32 %v2887, %v2949
        %v2976 = vadd.f32 %v2888, %v2949
        %v2977 = vadd.f32 %v2889, %v2949
        %v2978 = vadd.f32 %v2890, %v2949
        %v2979 = vadd.f32 %v2891, %v2949
        %v2980 = vadd.f32 %v2892, %v2950
        %v2981 = vadd.f32 %v2893, %v2950
        %v2982 = vadd.f32 %v2894, %v2950
        %v2983 = vadd.f32 %v2895, %v2950
        %v2984 = vadd.f32 %v2896, %v2950
        %v2985 = vadd.f32 %v2897, %v2950
        %v2986 = vadd.f32 %v2898, %v2950
        %v2987 = vadd.f32 %v2899, %v2950
        %v2988 = vadd.f32 %v2900, %v2951
        %v2989 = vadd.f32 %v2901, %v2951
        %v2990 = vadd.f32 %v2902, %v2951
        %v2991 = vadd.f32 %v2903, %v2951
        %v2992 = vadd.f32 %v2904, %v2951
        %v2993 = vadd.f32 %v2905, %v2951
        %v2994 = vadd.f32 %v2906, %v2951
        %v2995 = vadd.f32 %v2907, %v2951
        %v2996 = vadd.f32 %v2908, %v2952
        %v2997 = vadd.f32 %v2909, %v2952
        %v2998 = vadd.f32 %v2910, %v2952
        %v2999 = vadd.f32 %v2911, %v2952
        %v3000 = vadd.f32 %v2912, %v2952
        %v3001 = vadd.f32 %v2913, %v2952
        %v3002 = vadd.f32 %v2914, %v2952
        %v3003 = vadd.f32 %v2915, %v2952
        %v3004 = vadd.f32 %v2916, %v2953
        %v3005 = vadd.f32 %v2917, %v2953
        %v3006 = vadd.f32 %v2918, %v2953
        %v3007 = vadd.f32 %v2919, %v2953
        %v3008 = vadd.f32 %v2920, %v2953
        %v3009 = vadd.f32 %v2921, %v2953
        %v3010 = vadd.f32 %v2922, %v2953
        %v3011 = vadd.f32 %v2923, %v2953
        %v3012 = vadd.f32 %v2924, %v2954
        %v3013 = vadd.f32 %v2925, %v2954
        %v3014 = vadd.f32 %v2926, %v2954
        %v3015 = vadd.f32 %v2927, %v2954
        %v3016 = vadd.f32 %v2928, %v2954
        %v3017 = vadd.f32 %v2929, %v2954
        %v3018 = vadd.f32 %v2930, %v2954
        %v3019 = vadd.f32 %v2931, %v2954
        %v3020 = vadd.f32 %v2932, %v2955
        %v3021 = vadd.f32 %v2933, %v2955
        %v3022 = vadd.f32 %v2934, %v2955
        %v3023 = vadd.f32 %v2935, %v2955
        %v3024 = vadd.f32 %v2936, %v2955
        %v3025 = vadd.f32 %v2937, %v2955
        %v3026 = vadd.f32 %v2938, %v2955
        %v3027 = vadd.f32 %v2939, %v2955
        %vm3028 = vcmask 130048
        %v3029 = vsel %vm3028, %v2964, -inf
        %3030 = vmax.xlane.f32.xlu0 %v3029
        %v3031 = vpop.xlane.xlu0 %3030
        %v3032 = vsel %vm3028, %v2965, -inf
        %3033 = vmax.xlane.f32.xlu0 %v3032
        %v3034 = vpop.xlane.xlu0 %3033
        %v3035 = vsel %vm3028, %v2966, -inf
        %3036 = vmax.xlane.f32.xlu0 %v3035
        %v3037 = vpop.xlane.xlu0 %3036
        %v3038 = vsel %vm3028, %v2967, -inf
        %3039 = vmax.xlane.f32.xlu0 %v3038
        %v3040 = vpop.xlane.xlu0 %3039
        %v3041 = vsel %vm3028, %v2968, -inf
        %3042 = vmax.xlane.f32.xlu0 %v3041
        %v3043 = vpop.xlane.xlu0 %3042
        %v3044 = vsel %vm3028, %v2969, -inf
        %3045 = vmax.xlane.f32.xlu0 %v3044
        %v3046 = vpop.xlane.xlu0 %3045
        %v3047 = vsel %vm3028, %v2970, -inf
        %3048 = vmax.xlane.f32.xlu0 %v3047
        %v3049 = vpop.xlane.xlu0 %3048
        %v3050 = vsel %vm3028, %v2971, -inf
        %3051 = vmax.xlane.f32.xlu0 %v3050
        %v3052 = vpop.xlane.xlu0 %3051
        %v3053 = vsel %vm3028, %v2972, -inf
        %3054 = vmax.xlane.f32.xlu0 %v3053
        %v3055 = vpop.xlane.xlu0 %3054
        %v3056 = vsel %vm3028, %v2973, -inf
        %3057 = vmax.xlane.f32.xlu0 %v3056
        %v3058 = vpop.xlane.xlu0 %3057
        %v3059 = vsel %vm3028, %v2974, -inf
        %3060 = vmax.xlane.f32.xlu0 %v3059
        %v3061 = vpop.xlane.xlu0 %3060
        %v3062 = vsel %vm3028, %v2975, -inf
        %3063 = vmax.xlane.f32.xlu0 %v3062
        %v3064 = vpop.xlane.xlu0 %3063
        %v3065 = vsel %vm3028, %v2976, -inf
        %3066 = vmax.xlane.f32.xlu0 %v3065
        %v3067 = vpop.xlane.xlu0 %3066
        %v3068 = vsel %vm3028, %v2977, -inf
        %3069 = vmax.xlane.f32.xlu0 %v3068
        %v3070 = vpop.xlane.xlu0 %3069
        %v3071 = vsel %vm3028, %v2978, -inf
        %3072 = vmax.xlane.f32.xlu0 %v3071
        %v3073 = vpop.xlane.xlu0 %3072
        %v3074 = vsel %vm3028, %v2979, -inf
        %3075 = vmax.xlane.f32.xlu0 %v3074
        %v3076 = vpop.xlane.xlu0 %3075
        %v3077 = vsel %vm3028, %v2980, -inf
        %3078 = vmax.xlane.f32.xlu0 %v3077
        %v3079 = vpop.xlane.xlu0 %3078
        %v3080 = vsel %vm3028, %v2981, -inf
        %3081 = vmax.xlane.f32.xlu0 %v3080
        %v3082 = vpop.xlane.xlu0 %3081
        %v3083 = vsel %vm3028, %v2982, -inf
        %3084 = vmax.xlane.f32.xlu0 %v3083
        %v3085 = vpop.xlane.xlu0 %3084
        %v3086 = vsel %vm3028, %v2983, -inf
        %3087 = vmax.xlane.f32.xlu0 %v3086
        %v3088 = vpop.xlane.xlu0 %3087
        %v3089 = vsel %vm3028, %v2984, -inf
        %3090 = vmax.xlane.f32.xlu0 %v3089
        %v3091 = vpop.xlane.xlu0 %3090
        %v3092 = vsel %vm3028, %v2985, -inf
        %3093 = vmax.xlane.f32.xlu0 %v3092
        %v3094 = vpop.xlane.xlu0 %3093
        %v3095 = vsel %vm3028, %v2986, -inf
        %3096 = vmax.xlane.f32.xlu0 %v3095
        %v3097 = vpop.xlane.xlu0 %3096
        %v3098 = vsel %vm3028, %v2987, -inf
        %3099 = vmax.xlane.f32.xlu0 %v3098
        %v3100 = vpop.xlane.xlu0 %3099
        %v3101 = vsel %vm3028, %v2988, -inf
        %3102 = vmax.xlane.f32.xlu0 %v3101
        %v3103 = vpop.xlane.xlu0 %3102
        %v3104 = vsel %vm3028, %v2989, -inf
        %3105 = vmax.xlane.f32.xlu0 %v3104
        %v3106 = vpop.xlane.xlu0 %3105
        %v3107 = vsel %vm3028, %v2990, -inf
        %3108 = vmax.xlane.f32.xlu0 %v3107
        %v3109 = vpop.xlane.xlu0 %3108
        %v3110 = vsel %vm3028, %v2991, -inf
        %3111 = vmax.xlane.f32.xlu0 %v3110
        %v3112 = vpop.xlane.xlu0 %3111
        %v3113 = vsel %vm3028, %v2992, -inf
        %3114 = vmax.xlane.f32.xlu0 %v3113
        %v3115 = vpop.xlane.xlu0 %3114
        %v3116 = vsel %vm3028, %v2993, -inf
        %3117 = vmax.xlane.f32.xlu0 %v3116
        %v3118 = vpop.xlane.xlu0 %3117
        %v3119 = vsel %vm3028, %v2994, -inf
        %3120 = vmax.xlane.f32.xlu0 %v3119
        %v3121 = vpop.xlane.xlu0 %3120
        %v3122 = vsel %vm3028, %v2995, -inf
        %3123 = vmax.xlane.f32.xlu0 %v3122
        %v3124 = vpop.xlane.xlu0 %3123
        %v3125 = vsel %vm3028, %v2996, -inf
        %3126 = vmax.xlane.f32.xlu0 %v3125
        %v3127 = vpop.xlane.xlu0 %3126
        %v3128 = vsel %vm3028, %v2997, -inf
        %3129 = vmax.xlane.f32.xlu0 %v3128
        %v3130 = vpop.xlane.xlu0 %3129
        %v3131 = vsel %vm3028, %v2998, -inf
        %3132 = vmax.xlane.f32.xlu0 %v3131
        %v3133 = vpop.xlane.xlu0 %3132
        %v3134 = vsel %vm3028, %v2999, -inf
        %3135 = vmax.xlane.f32.xlu0 %v3134
        %v3136 = vpop.xlane.xlu0 %3135
        %v3137 = vsel %vm3028, %v3000, -inf
        %3138 = vmax.xlane.f32.xlu0 %v3137
        %v3139 = vpop.xlane.xlu0 %3138
        %v3140 = vsel %vm3028, %v3001, -inf
        %3141 = vmax.xlane.f32.xlu0 %v3140
        %v3142 = vpop.xlane.xlu0 %3141
        %v3143 = vsel %vm3028, %v3002, -inf
        %3144 = vmax.xlane.f32.xlu0 %v3143
        %v3145 = vpop.xlane.xlu0 %3144
        %v3146 = vsel %vm3028, %v3003, -inf
        %3147 = vmax.xlane.f32.xlu0 %v3146
        %v3148 = vpop.xlane.xlu0 %3147
        %v3149 = vsel %vm3028, %v3004, -inf
        %3150 = vmax.xlane.f32.xlu0 %v3149
        %v3151 = vpop.xlane.xlu0 %3150
        %v3152 = vsel %vm3028, %v3005, -inf
        %3153 = vmax.xlane.f32.xlu0 %v3152
        %v3154 = vpop.xlane.xlu0 %3153
        %v3155 = vsel %vm3028, %v3006, -inf
        %3156 = vmax.xlane.f32.xlu0 %v3155
        %v3157 = vpop.xlane.xlu0 %3156
        %v3158 = vsel %vm3028, %v3007, -inf
        %3159 = vmax.xlane.f32.xlu0 %v3158
        %v3160 = vpop.xlane.xlu0 %3159
        %v3161 = vsel %vm3028, %v3008, -inf
        %3162 = vmax.xlane.f32.xlu0 %v3161
        %v3163 = vpop.xlane.xlu0 %3162
        %v3164 = vsel %vm3028, %v3009, -inf
        %3165 = vmax.xlane.f32.xlu0 %v3164
        %v3166 = vpop.xlane.xlu0 %3165
        %v3167 = vsel %vm3028, %v3010, -inf
        %3168 = vmax.xlane.f32.xlu0 %v3167
        %v3169 = vpop.xlane.xlu0 %3168
        %v3170 = vsel %vm3028, %v3011, -inf
        %3171 = vmax.xlane.f32.xlu0 %v3170
        %v3172 = vpop.xlane.xlu0 %3171
        %v3173 = vsel %vm3028, %v3012, -inf
        %3174 = vmax.xlane.f32.xlu0 %v3173
        %v3175 = vpop.xlane.xlu0 %3174
        %v3176 = vsel %vm3028, %v3013, -inf
        %3177 = vmax.xlane.f32.xlu0 %v3176
        %v3178 = vpop.xlane.xlu0 %3177
        %v3179 = vsel %vm3028, %v3014, -inf
        %3180 = vmax.xlane.f32.xlu0 %v3179
        %v3181 = vpop.xlane.xlu0 %3180
        %v3182 = vsel %vm3028, %v3015, -inf
        %3183 = vmax.xlane.f32.xlu0 %v3182
        %v3184 = vpop.xlane.xlu0 %3183
        %v3185 = vsel %vm3028, %v3016, -inf
        %3186 = vmax.xlane.f32.xlu0 %v3185
        %v3187 = vpop.xlane.xlu0 %3186
        %v3188 = vsel %vm3028, %v3017, -inf
        %3189 = vmax.xlane.f32.xlu0 %v3188
        %v3190 = vpop.xlane.xlu0 %3189
        %v3191 = vsel %vm3028, %v3018, -inf
        %3192 = vmax.xlane.f32.xlu0 %v3191
        %v3193 = vpop.xlane.xlu0 %3192
        %v3194 = vsel %vm3028, %v3019, -inf
        %3195 = vmax.xlane.f32.xlu0 %v3194
        %v3196 = vpop.xlane.xlu0 %3195
        %v3197 = vsel %vm3028, %v3020, -inf
        %3198 = vmax.xlane.f32.xlu0 %v3197
        %v3199 = vpop.xlane.xlu0 %3198
        %v3200 = vsel %vm3028, %v3021, -inf
        %3201 = vmax.xlane.f32.xlu0 %v3200
        %v3202 = vpop.xlane.xlu0 %3201
        %v3203 = vsel %vm3028, %v3022, -inf
        %3204 = vmax.xlane.f32.xlu0 %v3203
        %v3205 = vpop.xlane.xlu0 %3204
        %v3206 = vsel %vm3028, %v3023, -inf
        %3207 = vmax.xlane.f32.xlu0 %v3206
        %v3208 = vpop.xlane.xlu0 %3207
        %v3209 = vsel %vm3028, %v3024, -inf
        %3210 = vmax.xlane.f32.xlu0 %v3209
        %v3211 = vpop.xlane.xlu0 %3210
        %v3212 = vsel %vm3028, %v3025, -inf
        %3213 = vmax.xlane.f32.xlu0 %v3212
        %v3214 = vpop.xlane.xlu0 %3213
        %v3215 = vsel %vm3028, %v3026, -inf
        %3216 = vmax.xlane.f32.xlu0 %v3215
        %v3217 = vpop.xlane.xlu0 %3216
        %v3218 = vsel %vm3028, %v3027, -inf
        %3219 = vmax.xlane.f32.xlu0 %v3218
        %v3220 = vpop.xlane.xlu0 %3219
        %v3221 = vsub.f32 %v2964, %v3031
        %v3222 = vsub.f32 %v2965, %v3034
        %v3223 = vsub.f32 %v2966, %v3037
        %v3224 = vsub.f32 %v2967, %v3040
        %v3225 = vsub.f32 %v2968, %v3043
        %v3226 = vsub.f32 %v2969, %v3046
        %v3227 = vsub.f32 %v2970, %v3049
        %v3228 = vsub.f32 %v2971, %v3052
        %v3229 = vsub.f32 %v2972, %v3055
        %v3230 = vsub.f32 %v2973, %v3058
        %v3231 = vsub.f32 %v2974, %v3061
        %v3232 = vsub.f32 %v2975, %v3064
        %v3233 = vsub.f32 %v2976, %v3067
        %v3234 = vsub.f32 %v2977, %v3070
        %v3235 = vsub.f32 %v2978, %v3073
        %v3236 = vsub.f32 %v2979, %v3076
        %v3237 = vsub.f32 %v2980, %v3079
        %v3238 = vsub.f32 %v2981, %v3082
        %v3239 = vsub.f32 %v2982, %v3085
        %v3240 = vsub.f32 %v2983, %v3088
        %v3241 = vsub.f32 %v2984, %v3091
        %v3242 = vsub.f32 %v2985, %v3094
        %v3243 = vsub.f32 %v2986, %v3097
        %v3244 = vsub.f32 %v2987, %v3100
        %v3245 = vsub.f32 %v2988, %v3103
        %v3246 = vsub.f32 %v2989, %v3106
        %v3247 = vsub.f32 %v2990, %v3109
        %v3248 = vsub.f32 %v2991, %v3112
        %v3249 = vsub.f32 %v2992, %v3115
        %v3250 = vsub.f32 %v2993, %v3118
        %v3251 = vsub.f32 %v2994, %v3121
        %v3252 = vsub.f32 %v2995, %v3124
        %v3253 = vsub.f32 %v2996, %v3127
        %v3254 = vsub.f32 %v2997, %v3130
        %v3255 = vsub.f32 %v2998, %v3133
        %v3256 = vsub.f32 %v2999, %v3136
        %v3257 = vsub.f32 %v3000, %v3139
        %v3258 = vsub.f32 %v3001, %v3142
        %v3259 = vsub.f32 %v3002, %v3145
        %v3260 = vsub.f32 %v3003, %v3148
        %v3261 = vsub.f32 %v3004, %v3151
        %v3262 = vsub.f32 %v3005, %v3154
        %v3263 = vsub.f32 %v3006, %v3157
        %v3264 = vsub.f32 %v3007, %v3160
        %v3265 = vsub.f32 %v3008, %v3163
        %v3266 = vsub.f32 %v3009, %v3166
        %v3267 = vsub.f32 %v3010, %v3169
        %v3268 = vsub.f32 %v3011, %v3172
        %v3269 = vsub.f32 %v3012, %v3175
        %v3270 = vsub.f32 %v3013, %v3178
        %v3271 = vsub.f32 %v3014, %v3181
        %v3272 = vsub.f32 %v3015, %v3184
        %v3273 = vsub.f32 %v3016, %v3187
        %v3274 = vsub.f32 %v3017, %v3190
        %v3275 = vsub.f32 %v3018, %v3193
        %v3276 = vsub.f32 %v3019, %v3196
        %v3277 = vsub.f32 %v3020, %v3199
        %v3278 = vsub.f32 %v3021, %v3202
        %v3279 = vsub.f32 %v3022, %v3205
        %v3280 = vsub.f32 %v3023, %v3208
        %v3281 = vsub.f32 %v3024, %v3211
        %v3282 = vsub.f32 %v3025, %v3214
        %v3283 = vsub.f32 %v3026, %v3217
        %v3284 = vsub.f32 %v3027, %v3220
        %v3285 = vmul.f32 %v3221, 1.442695
        %v3286 = vpow.pop %v3285
        %v3287 = vmul.f32 %v3222, 1.442695
        %v3288 = vpow.pop %v3287
        %v3289 = vmul.f32 %v3223, 1.442695
        %v3290 = vpow.pop %v3289
        %v3291 = vmul.f32 %v3224, 1.442695
        %v3292 = vpow.pop %v3291
        %v3293 = vmul.f32 %v3225, 1.442695
        %v3294 = vpow.pop %v3293
        %v3295 = vmul.f32 %v3226, 1.442695
        %v3296 = vpow.pop %v3295
        %v3297 = vmul.f32 %v3227, 1.442695
        %v3298 = vpow.pop %v3297
        %v3299 = vmul.f32 %v3228, 1.442695
        %v3300 = vpow.pop %v3299
        %v3301 = vmul.f32 %v3229, 1.442695
        %v3302 = vpow.pop %v3301
        %v3303 = vmul.f32 %v3230, 1.442695
        %v3304 = vpow.pop %v3303
        %v3305 = vmul.f32 %v3231, 1.442695
        %v3306 = vpow.pop %v3305
        %v3307 = vmul.f32 %v3232, 1.442695
        %v3308 = vpow.pop %v3307
        %v3309 = vmul.f32 %v3233, 1.442695
        %v3310 = vpow.pop %v3309
        %v3311 = vmul.f32 %v3234, 1.442695
        %v3312 = vpow.pop %v3311
        %v3313 = vmul.f32 %v3235, 1.442695
        %v3314 = vpow.pop %v3313
        %v3315 = vmul.f32 %v3236, 1.442695
        %v3316 = vpow.pop %v3315
        %v3317 = vmul.f32 %v3237, 1.442695
        %v3318 = vpow.pop %v3317
        %v3319 = vmul.f32 %v3238, 1.442695
        %v3320 = vpow.pop %v3319
        %v3321 = vmul.f32 %v3239, 1.442695
        %v3322 = vpow.pop %v3321
        %v3323 = vmul.f32 %v3240, 1.442695
        %v3324 = vpow.pop %v3323
        %v3325 = vmul.f32 %v3241, 1.442695
        %v3326 = vpow.pop %v3325
        %v3327 = vmul.f32 %v3242, 1.442695
        %v3328 = vpow.pop %v3327
        %v3329 = vmul.f32 %v3243, 1.442695
        %v3330 = vpow.pop %v3329
        %v3331 = vmul.f32 %v3244, 1.442695
        %v3332 = vpow.pop %v3331
        %v3333 = vmul.f32 %v3245, 1.442695
        %v3334 = vpow.pop %v3333
        %v3335 = vmul.f32 %v3246, 1.442695
        %v3336 = vpow.pop %v3335
        %v3337 = vmul.f32 %v3247, 1.442695
        %v3338 = vpow.pop %v3337
        %v3339 = vmul.f32 %v3248, 1.442695
        %v3340 = vpow.pop %v3339
        %v3341 = vmul.f32 %v3249, 1.442695
        %v3342 = vpow.pop %v3341
        %v3343 = vmul.f32 %v3250, 1.442695
        %v3344 = vpow.pop %v3343
        %v3345 = vmul.f32 %v3251, 1.442695
        %v3346 = vpow.pop %v3345
        %v3347 = vmul.f32 %v3252, 1.442695
        %v3348 = vpow.pop %v3347
        %v3349 = vmul.f32 %v3253, 1.442695
        %v3350 = vpow.pop %v3349
        %v3351 = vmul.f32 %v3254, 1.442695
        %v3352 = vpow.pop %v3351
        %v3353 = vmul.f32 %v3255, 1.442695
        %v3354 = vpow.pop %v3353
        %v3355 = vmul.f32 %v3256, 1.442695
        %v3356 = vpow.pop %v3355
        %v3357 = vmul.f32 %v3257, 1.442695
        %v3358 = vpow.pop %v3357
        %v3359 = vmul.f32 %v3258, 1.442695
        %v3360 = vpow.pop %v3359
        %v3361 = vmul.f32 %v3259, 1.442695
        %v3362 = vpow.pop %v3361
        %v3363 = vmul.f32 %v3260, 1.442695
        %v3364 = vpow.pop %v3363
        %v3365 = vmul.f32 %v3261, 1.442695
        %v3366 = vpow.pop %v3365
        %v3367 = vmul.f32 %v3262, 1.442695
        %v3368 = vpow.pop %v3367
        %v3369 = vmul.f32 %v3263, 1.442695
        %v3370 = vpow.pop %v3369
        %v3371 = vmul.f32 %v3264, 1.442695
        %v3372 = vpow.pop %v3371
        %v3373 = vmul.f32 %v3265, 1.442695
        %v3374 = vpow.pop %v3373
        %v3375 = vmul.f32 %v3266, 1.442695
        %v3376 = vpow.pop %v3375
        %v3377 = vmul.f32 %v3267, 1.442695
        %v3378 = vpow.pop %v3377
        %v3379 = vmul.f32 %v3268, 1.442695
        %v3380 = vpow.pop %v3379
        %v3381 = vmul.f32 %v3269, 1.442695
        %v3382 = vpow.pop %v3381
        %v3383 = vmul.f32 %v3270, 1.442695
        %v3384 = vpow.pop %v3383
        %v3385 = vmul.f32 %v3271, 1.442695
        %v3386 = vpow.pop %v3385
        %v3387 = vmul.f32 %v3272, 1.442695
        %v3388 = vpow.pop %v3387
        %v3389 = vmul.f32 %v3273, 1.442695
        %v3390 = vpow.pop %v3389
        %v3391 = vmul.f32 %v3274, 1.442695
        %v3392 = vpow.pop %v3391
        %v3393 = vmul.f32 %v3275, 1.442695
        %v3394 = vpow.pop %v3393
        %v3395 = vmul.f32 %v3276, 1.442695
        %v3396 = vpow.pop %v3395
        %v3397 = vmul.f32 %v3277, 1.442695
        %v3398 = vpow.pop %v3397
        %v3399 = vmul.f32 %v3278, 1.442695
        %v3400 = vpow.pop %v3399
        %v3401 = vmul.f32 %v3279, 1.442695
        %v3402 = vpow.pop %v3401
        %v3403 = vmul.f32 %v3280, 1.442695
        %v3404 = vpow.pop %v3403
        %v3405 = vmul.f32 %v3281, 1.442695
        %v3406 = vpow.pop %v3405
        %v3407 = vmul.f32 %v3282, 1.442695
        %v3408 = vpow.pop %v3407
        %v3409 = vmul.f32 %v3283, 1.442695
        %v3410 = vpow.pop %v3409
        %v3411 = vmul.f32 %v3284, 1.442695
        %v3412 = vpow.pop %v3411
        %v3413 = vsel %vm3028, %v3286, 0.0
        %3414 = vadd.xlane.f32.xlu0 %v3413
        %v3415 = vpop.xlane.xlu0 %3414
        %v3416 = vsel %vm3028, %v3288, 0.0
        %3417 = vadd.xlane.f32.xlu0 %v3416
        %v3418 = vpop.xlane.xlu0 %3417
        %v3419 = vsel %vm3028, %v3290, 0.0
        %3420 = vadd.xlane.f32.xlu0 %v3419
        %v3421 = vpop.xlane.xlu0 %3420
        %v3422 = vsel %vm3028, %v3292, 0.0
        %3423 = vadd.xlane.f32.xlu0 %v3422
        %v3424 = vpop.xlane.xlu0 %3423
        %v3425 = vsel %vm3028, %v3294, 0.0
        %3426 = vadd.xlane.f32.xlu0 %v3425
        %v3427 = vpop.xlane.xlu0 %3426
        %v3428 = vsel %vm3028, %v3296, 0.0
        %3429 = vadd.xlane.f32.xlu0 %v3428
        %v3430 = vpop.xlane.xlu0 %3429
        %v3431 = vsel %vm3028, %v3298, 0.0
        %3432 = vadd.xlane.f32.xlu0 %v3431
        %v3433 = vpop.xlane.xlu0 %3432
        %v3434 = vsel %vm3028, %v3300, 0.0
        %3435 = vadd.xlane.f32.xlu0 %v3434
        %v3436 = vpop.xlane.xlu0 %3435
        %v3437 = vsel %vm3028, %v3302, 0.0
        %3438 = vadd.xlane.f32.xlu0 %v3437
        %v3439 = vpop.xlane.xlu0 %3438
        %v3440 = vsel %vm3028, %v3304, 0.0
        %3441 = vadd.xlane.f32.xlu0 %v3440
        %v3442 = vpop.xlane.xlu0 %3441
        %v3443 = vsel %vm3028, %v3306, 0.0
        %3444 = vadd.xlane.f32.xlu0 %v3443
        %v3445 = vpop.xlane.xlu0 %3444
        %v3446 = vsel %vm3028, %v3308, 0.0
        %3447 = vadd.xlane.f32.xlu0 %v3446
        %v3448 = vpop.xlane.xlu0 %3447
        %v3449 = vsel %vm3028, %v3310, 0.0
        %3450 = vadd.xlane.f32.xlu0 %v3449
        %v3451 = vpop.xlane.xlu0 %3450
        %v3452 = vsel %vm3028, %v3312, 0.0
        %3453 = vadd.xlane.f32.xlu0 %v3452
        %v3454 = vpop.xlane.xlu0 %3453
        %v3455 = vsel %vm3028, %v3314, 0.0
        %3456 = vadd.xlane.f32.xlu0 %v3455
        %v3457 = vpop.xlane.xlu0 %3456
        %v3458 = vsel %vm3028, %v3316, 0.0
        %3459 = vadd.xlane.f32.xlu0 %v3458
        %v3460 = vpop.xlane.xlu0 %3459
        %v3461 = vsel %vm3028, %v3318, 0.0
        %3462 = vadd.xlane.f32.xlu0 %v3461
        %v3463 = vpop.xlane.xlu0 %3462
        %v3464 = vsel %vm3028, %v3320, 0.0
        %3465 = vadd.xlane.f32.xlu0 %v3464
        %v3466 = vpop.xlane.xlu0 %3465
        %v3467 = vsel %vm3028, %v3322, 0.0
        %3468 = vadd.xlane.f32.xlu0 %v3467
        %v3469 = vpop.xlane.xlu0 %3468
        %v3470 = vsel %vm3028, %v3324, 0.0
        %3471 = vadd.xlane.f32.xlu0 %v3470
        %v3472 = vpop.xlane.xlu0 %3471
        %v3473 = vsel %vm3028, %v3326, 0.0
        %3474 = vadd.xlane.f32.xlu0 %v3473
        %v3475 = vpop.xlane.xlu0 %3474
        %v3476 = vsel %vm3028, %v3328, 0.0
        %3477 = vadd.xlane.f32.xlu0 %v3476
        %v3478 = vpop.xlane.xlu0 %3477
        %v3479 = vsel %vm3028, %v3330, 0.0
        %3480 = vadd.xlane.f32.xlu0 %v3479
        %v3481 = vpop.xlane.xlu0 %3480
        %v3482 = vsel %vm3028, %v3332, 0.0
        %3483 = vadd.xlane.f32.xlu0 %v3482
        %v3484 = vpop.xlane.xlu0 %3483
        %v3485 = vsel %vm3028, %v3334, 0.0
        %3486 = vadd.xlane.f32.xlu0 %v3485
        %v3487 = vpop.xlane.xlu0 %3486
        %v3488 = vsel %vm3028, %v3336, 0.0
        %3489 = vadd.xlane.f32.xlu0 %v3488
        %v3490 = vpop.xlane.xlu0 %3489
        %v3491 = vsel %vm3028, %v3338, 0.0
        %3492 = vadd.xlane.f32.xlu0 %v3491
        %v3493 = vpop.xlane.xlu0 %3492
        %v3494 = vsel %vm3028, %v3340, 0.0
        %3495 = vadd.xlane.f32.xlu0 %v3494
        %v3496 = vpop.xlane.xlu0 %3495
        %v3497 = vsel %vm3028, %v3342, 0.0
        %3498 = vadd.xlane.f32.xlu0 %v3497
        %v3499 = vpop.xlane.xlu0 %3498
        %v3500 = vsel %vm3028, %v3344, 0.0
        %3501 = vadd.xlane.f32.xlu0 %v3500
        %v3502 = vpop.xlane.xlu0 %3501
        %v3503 = vsel %vm3028, %v3346, 0.0
        %3504 = vadd.xlane.f32.xlu0 %v3503
        %v3505 = vpop.xlane.xlu0 %3504
        %v3506 = vsel %vm3028, %v3348, 0.0
        %3507 = vadd.xlane.f32.xlu0 %v3506
        %v3508 = vpop.xlane.xlu0 %3507
        %v3509 = vsel %vm3028, %v3350, 0.0
        %3510 = vadd.xlane.f32.xlu0 %v3509
        %v3511 = vpop.xlane.xlu0 %3510
        %v3512 = vsel %vm3028, %v3352, 0.0
        %3513 = vadd.xlane.f32.xlu0 %v3512
        %v3514 = vpop.xlane.xlu0 %3513
        %v3515 = vsel %vm3028, %v3354, 0.0
        %3516 = vadd.xlane.f32.xlu0 %v3515
        %v3517 = vpop.xlane.xlu0 %3516
        %v3518 = vsel %vm3028, %v3356, 0.0
        %3519 = vadd.xlane.f32.xlu0 %v3518
        %v3520 = vpop.xlane.xlu0 %3519
        %v3521 = vsel %vm3028, %v3358, 0.0
        %3522 = vadd.xlane.f32.xlu0 %v3521
        %v3523 = vpop.xlane.xlu0 %3522
        %v3524 = vsel %vm3028, %v3360, 0.0
        %3525 = vadd.xlane.f32.xlu0 %v3524
        %v3526 = vpop.xlane.xlu0 %3525
        %v3527 = vsel %vm3028, %v3362, 0.0
        %3528 = vadd.xlane.f32.xlu0 %v3527
        %v3529 = vpop.xlane.xlu0 %3528
        %v3530 = vsel %vm3028, %v3364, 0.0
        %3531 = vadd.xlane.f32.xlu0 %v3530
        %v3532 = vpop.xlane.xlu0 %3531
        %v3533 = vsel %vm3028, %v3366, 0.0
        %3534 = vadd.xlane.f32.xlu0 %v3533
        %v3535 = vpop.xlane.xlu0 %3534
        %v3536 = vsel %vm3028, %v3368, 0.0
        %3537 = vadd.xlane.f32.xlu0 %v3536
        %v3538 = vpop.xlane.xlu0 %3537
        %v3539 = vsel %vm3028, %v3370, 0.0
        %3540 = vadd.xlane.f32.xlu0 %v3539
        %v3541 = vpop.xlane.xlu0 %3540
        %v3542 = vsel %vm3028, %v3372, 0.0
        %3543 = vadd.xlane.f32.xlu0 %v3542
        %v3544 = vpop.xlane.xlu0 %3543
        %v3545 = vsel %vm3028, %v3374, 0.0
        %3546 = vadd.xlane.f32.xlu0 %v3545
        %v3547 = vpop.xlane.xlu0 %3546
        %v3548 = vsel %vm3028, %v3376, 0.0
        %3549 = vadd.xlane.f32.xlu0 %v3548
        %v3550 = vpop.xlane.xlu0 %3549
        %v3551 = vsel %vm3028, %v3378, 0.0
        %3552 = vadd.xlane.f32.xlu0 %v3551
        %v3553 = vpop.xlane.xlu0 %3552
        %v3554 = vsel %vm3028, %v3380, 0.0
        %3555 = vadd.xlane.f32.xlu0 %v3554
        %v3556 = vpop.xlane.xlu0 %3555
        %v3557 = vsel %vm3028, %v3382, 0.0
        %3558 = vadd.xlane.f32.xlu0 %v3557
        %v3559 = vpop.xlane.xlu0 %3558
        %v3560 = vsel %vm3028, %v3384, 0.0
        %3561 = vadd.xlane.f32.xlu0 %v3560
        %v3562 = vpop.xlane.xlu0 %3561
        %v3563 = vsel %vm3028, %v3386, 0.0
        %3564 = vadd.xlane.f32.xlu0 %v3563
        %v3565 = vpop.xlane.xlu0 %3564
        %v3566 = vsel %vm3028, %v3388, 0.0
        %3567 = vadd.xlane.f32.xlu0 %v3566
        %v3568 = vpop.xlane.xlu0 %3567
        %v3569 = vsel %vm3028, %v3390, 0.0
        %3570 = vadd.xlane.f32.xlu0 %v3569
        %v3571 = vpop.xlane.xlu0 %3570
        %v3572 = vsel %vm3028, %v3392, 0.0
        %3573 = vadd.xlane.f32.xlu0 %v3572
        %v3574 = vpop.xlane.xlu0 %3573
        %v3575 = vsel %vm3028, %v3394, 0.0
        %3576 = vadd.xlane.f32.xlu0 %v3575
        %v3577 = vpop.xlane.xlu0 %3576
        %v3578 = vsel %vm3028, %v3396, 0.0
        %3579 = vadd.xlane.f32.xlu0 %v3578
        %v3580 = vpop.xlane.xlu0 %3579
        %v3581 = vsel %vm3028, %v3398, 0.0
        %3582 = vadd.xlane.f32.xlu0 %v3581
        %v3583 = vpop.xlane.xlu0 %3582
        %v3584 = vsel %vm3028, %v3400, 0.0
        %3585 = vadd.xlane.f32.xlu0 %v3584
        %v3586 = vpop.xlane.xlu0 %3585
        %v3587 = vsel %vm3028, %v3402, 0.0
        %3588 = vadd.xlane.f32.xlu0 %v3587
        %v3589 = vpop.xlane.xlu0 %3588
        %v3590 = vsel %vm3028, %v3404, 0.0
        %3591 = vadd.xlane.f32.xlu0 %v3590
        %v3592 = vpop.xlane.xlu0 %3591
        %v3593 = vsel %vm3028, %v3406, 0.0
        %3594 = vadd.xlane.f32.xlu0 %v3593
        %v3595 = vpop.xlane.xlu0 %3594
        %v3596 = vsel %vm3028, %v3408, 0.0
        %3597 = vadd.xlane.f32.xlu0 %v3596
        %v3598 = vpop.xlane.xlu0 %3597
        %v3599 = vsel %vm3028, %v3410, 0.0
        %3600 = vadd.xlane.f32.xlu0 %v3599
        %v3601 = vpop.xlane.xlu0 %3600
        %v3602 = vsel %vm3028, %v3412, 0.0
        %3603 = vadd.xlane.f32.xlu0 %v3602
        %v3604 = vpop.xlane.xlu0 %3603
        %v3605 = vrcp.pop %v3415
        %v3606 = vrcp.pop %v3418
        %v3607 = vrcp.pop %v3421
        %v3608 = vrcp.pop %v3424
        %v3609 = vrcp.pop %v3427
        %v3610 = vrcp.pop %v3430
        %v3611 = vrcp.pop %v3433
        %v3612 = vrcp.pop %v3436
        %v3613 = vrcp.pop %v3439
        %v3614 = vrcp.pop %v3442
        %v3615 = vrcp.pop %v3445
        %v3616 = vrcp.pop %v3448
        %v3617 = vrcp.pop %v3451
        %v3618 = vrcp.pop %v3454
        %v3619 = vrcp.pop %v3457
        %v3620 = vrcp.pop %v3460
        %v3621 = vrcp.pop %v3463
        %v3622 = vrcp.pop %v3466
        %v3623 = vrcp.pop %v3469
        %v3624 = vrcp.pop %v3472
        %v3625 = vrcp.pop %v3475
        %v3626 = vrcp.pop %v3478
        %v3627 = vrcp.pop %v3481
        %v3628 = vrcp.pop %v3484
        %v3629 = vrcp.pop %v3487
        %v3630 = vrcp.pop %v3490
        %v3631 = vrcp.pop %v3493
        %v3632 = vrcp.pop %v3496
        %v3633 = vrcp.pop %v3499
        %v3634 = vrcp.pop %v3502
        %v3635 = vrcp.pop %v3505
        %v3636 = vrcp.pop %v3508
        %v3637 = vrcp.pop %v3511
        %v3638 = vrcp.pop %v3514
        %v3639 = vrcp.pop %v3517
        %v3640 = vrcp.pop %v3520
        %v3641 = vrcp.pop %v3523
        %v3642 = vrcp.pop %v3526
        %v3643 = vrcp.pop %v3529
        %v3644 = vrcp.pop %v3532
        %v3645 = vrcp.pop %v3535
        %v3646 = vrcp.pop %v3538
        %v3647 = vrcp.pop %v3541
        %v3648 = vrcp.pop %v3544
        %v3649 = vrcp.pop %v3547
        %v3650 = vrcp.pop %v3550
        %v3651 = vrcp.pop %v3553
        %v3652 = vrcp.pop %v3556
        %v3653 = vrcp.pop %v3559
        %v3654 = vrcp.pop %v3562
        %v3655 = vrcp.pop %v3565
        %v3656 = vrcp.pop %v3568
        %v3657 = vrcp.pop %v3571
        %v3658 = vrcp.pop %v3574
        %v3659 = vrcp.pop %v3577
        %v3660 = vrcp.pop %v3580
        %v3661 = vrcp.pop %v3583
        %v3662 = vrcp.pop %v3586
        %v3663 = vrcp.pop %v3589
        %v3664 = vrcp.pop %v3592
        %v3665 = vrcp.pop %v3595
        %v3666 = vrcp.pop %v3598
        %v3667 = vrcp.pop %v3601
        %v3668 = vrcp.pop %v3604
        %v3669 = vmul.f32 %v3286, %v3605
        %v3670 = vmul.f32 %v3288, %v3606
        %v3671 = vmul.f32 %v3290, %v3607
        %v3672 = vmul.f32 %v3292, %v3608
        %v3673 = vmul.f32 %v3294, %v3609
        %v3674 = vmul.f32 %v3296, %v3610
        %v3675 = vmul.f32 %v3298, %v3611
        %v3676 = vmul.f32 %v3300, %v3612
        %v3677 = vmul.f32 %v3302, %v3613
        %v3678 = vmul.f32 %v3304, %v3614
        %v3679 = vmul.f32 %v3306, %v3615
        %v3680 = vmul.f32 %v3308, %v3616
        %v3681 = vmul.f32 %v3310, %v3617
        %v3682 = vmul.f32 %v3312, %v3618
        %v3683 = vmul.f32 %v3314, %v3619
        %v3684 = vmul.f32 %v3316, %v3620
        %v3685 = vmul.f32 %v3318, %v3621
        %v3686 = vmul.f32 %v3320, %v3622
        %v3687 = vmul.f32 %v3322, %v3623
        %v3688 = vmul.f32 %v3324, %v3624
        %v3689 = vmul.f32 %v3326, %v3625
        %v3690 = vmul.f32 %v3328, %v3626
        %v3691 = vmul.f32 %v3330, %v3627
        %v3692 = vmul.f32 %v3332, %v3628
        %v3693 = vmul.f32 %v3334, %v3629
        %v3694 = vmul.f32 %v3336, %v3630
        %v3695 = vmul.f32 %v3338, %v3631
        %v3696 = vmul.f32 %v3340, %v3632
        %v3697 = vmul.f32 %v3342, %v3633
        %v3698 = vmul.f32 %v3344, %v3634
        %v3699 = vmul.f32 %v3346, %v3635
        %v3700 = vmul.f32 %v3348, %v3636
        %v3701 = vmul.f32 %v3350, %v3637
        %v3702 = vmul.f32 %v3352, %v3638
        %v3703 = vmul.f32 %v3354, %v3639
        %v3704 = vmul.f32 %v3356, %v3640
        %v3705 = vmul.f32 %v3358, %v3641
        %v3706 = vmul.f32 %v3360, %v3642
        %v3707 = vmul.f32 %v3362, %v3643
        %v3708 = vmul.f32 %v3364, %v3644
        %v3709 = vmul.f32 %v3366, %v3645
        %v3710 = vmul.f32 %v3368, %v3646
        %v3711 = vmul.f32 %v3370, %v3647
        %v3712 = vmul.f32 %v3372, %v3648
        %v3713 = vmul.f32 %v3374, %v3649
        %v3714 = vmul.f32 %v3376, %v3650
        %v3715 = vmul.f32 %v3378, %v3651
        %v3716 = vmul.f32 %v3380, %v3652
        %v3717 = vmul.f32 %v3382, %v3653
        %v3718 = vmul.f32 %v3384, %v3654
        %v3719 = vmul.f32 %v3386, %v3655
        %v3720 = vmul.f32 %v3388, %v3656
        %v3721 = vmul.f32 %v3390, %v3657
        %v3722 = vmul.f32 %v3392, %v3658
        %v3723 = vmul.f32 %v3394, %v3659
        %v3724 = vmul.f32 %v3396, %v3660
        %v3725 = vmul.f32 %v3398, %v3661
        %v3726 = vmul.f32 %v3400, %v3662
        %v3727 = vmul.f32 %v3402, %v3663
        %v3728 = vmul.f32 %v3404, %v3664
        %v3729 = vmul.f32 %v3406, %v3665
        %v3730 = vmul.f32 %v3408, %v3666
        %v3731 = vmul.f32 %v3410, %v3667
        %v3732 = vmul.f32 %v3412, %v3668
        %v3733 = vpack.c.bf16 %v3669, %v3669
        %v3734 = vpack.c.bf16 %v3670, %v3670
        %v3735 = vpack.c.bf16 %v3671, %v3671
        %v3736 = vpack.c.bf16 %v3672, %v3672
        %v3737 = vpack.c.bf16 %v3673, %v3673
        %v3738 = vpack.c.bf16 %v3674, %v3674
        %v3739 = vpack.c.bf16 %v3675, %v3675
        %v3740 = vpack.c.bf16 %v3676, %v3676
        %v3741 = vpack.c.bf16 %v3677, %v3677
        %v3742 = vpack.c.bf16 %v3678, %v3678
        %v3743 = vpack.c.bf16 %v3679, %v3679
        %v3744 = vpack.c.bf16 %v3680, %v3680
        %v3745 = vpack.c.bf16 %v3681, %v3681
        %v3746 = vpack.c.bf16 %v3682, %v3682
        %v3747 = vpack.c.bf16 %v3683, %v3683
        %v3748 = vpack.c.bf16 %v3684, %v3684
        %v3749 = vpack.c.bf16 %v3685, %v3685
        %v3750 = vpack.c.bf16 %v3686, %v3686
        %v3751 = vpack.c.bf16 %v3687, %v3687
        %v3752 = vpack.c.bf16 %v3688, %v3688
        %v3753 = vpack.c.bf16 %v3689, %v3689
        %v3754 = vpack.c.bf16 %v3690, %v3690
        %v3755 = vpack.c.bf16 %v3691, %v3691
        %v3756 = vpack.c.bf16 %v3692, %v3692
        %v3757 = vpack.c.bf16 %v3693, %v3693
        %v3758 = vpack.c.bf16 %v3694, %v3694
        %v3759 = vpack.c.bf16 %v3695, %v3695
        %v3760 = vpack.c.bf16 %v3696, %v3696
        %v3761 = vpack.c.bf16 %v3697, %v3697
        %v3762 = vpack.c.bf16 %v3698, %v3698
        %v3763 = vpack.c.bf16 %v3699, %v3699
        %v3764 = vpack.c.bf16 %v3700, %v3700
        %v3765 = vpack.c.bf16 %v3701, %v3701
        %v3766 = vpack.c.bf16 %v3702, %v3702
        %v3767 = vpack.c.bf16 %v3703, %v3703
        %v3768 = vpack.c.bf16 %v3704, %v3704
        %v3769 = vpack.c.bf16 %v3705, %v3705
        %v3770 = vpack.c.bf16 %v3706, %v3706
        %v3771 = vpack.c.bf16 %v3707, %v3707
        %v3772 = vpack.c.bf16 %v3708, %v3708
        %v3773 = vpack.c.bf16 %v3709, %v3709
        %v3774 = vpack.c.bf16 %v3710, %v3710
        %v3775 = vpack.c.bf16 %v3711, %v3711
        %v3776 = vpack.c.bf16 %v3712, %v3712
        %v3777 = vpack.c.bf16 %v3713, %v3713
        %v3778 = vpack.c.bf16 %v3714, %v3714
        %v3779 = vpack.c.bf16 %v3715, %v3715
        %v3780 = vpack.c.bf16 %v3716, %v3716
        %v3781 = vpack.c.bf16 %v3717, %v3717
        %v3782 = vpack.c.bf16 %v3718, %v3718
        %v3783 = vpack.c.bf16 %v3719, %v3719
        %v3784 = vpack.c.bf16 %v3720, %v3720
        %v3785 = vpack.c.bf16 %v3721, %v3721
        %v3786 = vpack.c.bf16 %v3722, %v3722
        %v3787 = vpack.c.bf16 %v3723, %v3723
        %v3788 = vpack.c.bf16 %v3724, %v3724
        %v3789 = vpack.c.bf16 %v3725, %v3725
        %v3790 = vpack.c.bf16 %v3726, %v3726
        %v3791 = vpack.c.bf16 %v3727, %v3727
        %v3792 = vpack.c.bf16 %v3728, %v3728
        %v3793 = vpack.c.bf16 %v3729, %v3729
        %v3794 = vpack.c.bf16 %v3730, %v3730
        %v3795 = vpack.c.bf16 %v3731, %v3731
        %v3796 = vpack.c.bf16 %v3732, %v3732
        %v3799 = vunpack.c.l.b16 %v3733
        %v3800 = vunpack.c.l.b16 %v3734
        %v3801 = vpack.c.b16 %v3800, %v3799
        %v3804 = vunpack.c.l.b16 %v1851
        %v3805 = vunpack.c.l.b16 %v1852
        %v3806 = vpack.c.b16 %v3805, %v3804
        %v3809 = vsel %vm3028, %v3801, 0
        %3811 = vmatpush.bf16.msra.mxu0 0
        %3812 = vmatpush.bf16.msra.mxu0 0
        %3813 = vmatpush.bf16.msra.mxu0 0
        %3814 = vmatpush.bf16.msra.mxu0 0
        %3815 = vmatpush.bf16.msra.mxu0 0
        %3816 = vmatpush.bf16.msra.mxu0 0
        %3817 = vmatpush.bf16.msra.mxu0 0
        %3818 = vmatpush.bf16.msra.mxu0 %v3806
        %3819 = vmatmul.bf16.gmra.mxu0 %v3809
        %v3820 = vpop.f32.mrf.mxu0
        %v3821 = vadd.f32 0.0, %v3820
        %v3822 = vpop.f32.mrf.mxu0
        %v3823 = vadd.f32 0.0, %v3822
        %3824 = vdwg.mxu0
        %v3827 = vunpack.c.l.b16 %v3735
        %v3828 = vunpack.c.l.b16 %v3736
        %v3829 = vpack.c.b16 %v3828, %v3827
        %v3832 = vunpack.c.l.b16 %v1853
        %v3833 = vunpack.c.l.b16 %v1854
        %v3834 = vpack.c.b16 %v3833, %v3832
        %v3837 = vsel %vm3028, %v3829, 0
        %3839 = vmatpush.bf16.msra.mxu0 0
        %3840 = vmatpush.bf16.msra.mxu0 0
        %3841 = vmatpush.bf16.msra.mxu0 0
        %3842 = vmatpush.bf16.msra.mxu0 0
        %3843 = vmatpush.bf16.msra.mxu0 0
        %3844 = vmatpush.bf16.msra.mxu0 0
        %3845 = vmatpush.bf16.msra.mxu0 0
        %3846 = vmatpush.bf16.msra.mxu0 %v3834
        %3847 = vmatmul.bf16.gmra.mxu0 %v3837
        %v3848 = vpop.f32.mrf.mxu0
        %v3849 = vadd.f32 0.0, %v3848
        %v3850 = vpop.f32.mrf.mxu0
        %v3851 = vadd.f32 0.0, %v3850
        %3852 = vdwg.mxu0
        %v3855 = vunpack.c.l.b16 %v3737
        %v3856 = vunpack.c.l.b16 %v3738
        %v3857 = vpack.c.b16 %v3856, %v3855
        %v3860 = vunpack.c.l.b16 %v1855
        %v3861 = vunpack.c.l.b16 %v1856
        %v3862 = vpack.c.b16 %v3861, %v3860
        %v3865 = vsel %vm3028, %v3857, 0
        %3867 = vmatpush.bf16.msra.mxu0 0
        %3868 = vmatpush.bf16.msra.mxu0 0
        %3869 = vmatpush.bf16.msra.mxu0 0
        %3870 = vmatpush.bf16.msra.mxu0 0
        %3871 = vmatpush.bf16.msra.mxu0 0
        %3872 = vmatpush.bf16.msra.mxu0 0
        %3873 = vmatpush.bf16.msra.mxu0 0
        %3874 = vmatpush.bf16.msra.mxu0 %v3862
        %3875 = vmatmul.bf16.gmra.mxu0 %v3865
        %v3876 = vpop.f32.mrf.mxu0
        %v3877 = vadd.f32 0.0, %v3876
        %v3878 = vpop.f32.mrf.mxu0
        %v3879 = vadd.f32 0.0, %v3878
        %3880 = vdwg.mxu0
        %v3883 = vunpack.c.l.b16 %v3739
        %v3884 = vunpack.c.l.b16 %v3740
        %v3885 = vpack.c.b16 %v3884, %v3883
        %v3888 = vunpack.c.l.b16 %v1857
        %v3889 = vunpack.c.l.b16 %v1858
        %v3890 = vpack.c.b16 %v3889, %v3888
        %v3893 = vsel %vm3028, %v3885, 0
        %3895 = vmatpush.bf16.msra.mxu0 0
        %3896 = vmatpush.bf16.msra.mxu0 0
        %3897 = vmatpush.bf16.msra.mxu0 0
        %3898 = vmatpush.bf16.msra.mxu0 0
        %3899 = vmatpush.bf16.msra.mxu0 0
        %3900 = vmatpush.bf16.msra.mxu0 0
        %3901 = vmatpush.bf16.msra.mxu0 0
        %3902 = vmatpush.bf16.msra.mxu0 %v3890
        %3903 = vmatmul.bf16.gmra.mxu0 %v3893
        %v3904 = vpop.f32.mrf.mxu0
        %v3905 = vadd.f32 0.0, %v3904
        %v3906 = vpop.f32.mrf.mxu0
        %v3907 = vadd.f32 0.0, %v3906
        %3908 = vdwg.mxu0
        %v3911 = vunpack.c.l.b16 %v3741
        %v3912 = vunpack.c.l.b16 %v3742
        %v3913 = vpack.c.b16 %v3912, %v3911
        %v3916 = vunpack.c.l.b16 %v1859
        %v3917 = vunpack.c.l.b16 %v1860
        %v3918 = vpack.c.b16 %v3917, %v3916
        %v3921 = vsel %vm3028, %v3913, 0
        %3923 = vmatpush.bf16.msra.mxu0 0
        %3924 = vmatpush.bf16.msra.mxu0 0
        %3925 = vmatpush.bf16.msra.mxu0 0
        %3926 = vmatpush.bf16.msra.mxu0 0
        %3927 = vmatpush.bf16.msra.mxu0 0
        %3928 = vmatpush.bf16.msra.mxu0 0
        %3929 = vmatpush.bf16.msra.mxu0 0
        %3930 = vmatpush.bf16.msra.mxu0 %v3918
        %3931 = vmatmul.bf16.gmra.mxu0 %v3921
        %v3932 = vpop.f32.mrf.mxu0
        %v3933 = vadd.f32 0.0, %v3932
        %v3934 = vpop.f32.mrf.mxu0
        %v3935 = vadd.f32 0.0, %v3934
        %3936 = vdwg.mxu0
        %v3939 = vunpack.c.l.b16 %v3743
        %v3940 = vunpack.c.l.b16 %v3744
        %v3941 = vpack.c.b16 %v3940, %v3939
        %v3944 = vunpack.c.l.b16 %v1861
        %v3945 = vunpack.c.l.b16 %v1862
        %v3946 = vpack.c.b16 %v3945, %v3944
        %v3949 = vsel %vm3028, %v3941, 0
        %3951 = vmatpush.bf16.msra.mxu0 0
        %3952 = vmatpush.bf16.msra.mxu0 0
        %3953 = vmatpush.bf16.msra.mxu0 0
        %3954 = vmatpush.bf16.msra.mxu0 0
        %3955 = vmatpush.bf16.msra.mxu0 0
        %3956 = vmatpush.bf16.msra.mxu0 0
        %3957 = vmatpush.bf16.msra.mxu0 0
        %3958 = vmatpush.bf16.msra.mxu0 %v3946
        %3959 = vmatmul.bf16.gmra.mxu0 %v3949
        %v3960 = vpop.f32.mrf.mxu0
        %v3961 = vadd.f32 0.0, %v3960
        %v3962 = vpop.f32.mrf.mxu0
        %v3963 = vadd.f32 0.0, %v3962
        %3964 = vdwg.mxu0
        %v3967 = vunpack.c.l.b16 %v3745
        %v3968 = vunpack.c.l.b16 %v3746
        %v3969 = vpack.c.b16 %v3968, %v3967
        %v3972 = vunpack.c.l.b16 %v1863
        %v3973 = vunpack.c.l.b16 %v1864
        %v3974 = vpack.c.b16 %v3973, %v3972
        %v3977 = vsel %vm3028, %v3969, 0
        %3979 = vmatpush.bf16.msra.mxu0 0
        %3980 = vmatpush.bf16.msra.mxu0 0
        %3981 = vmatpush.bf16.msra.mxu0 0
        %3982 = vmatpush.bf16.msra.mxu0 0
        %3983 = vmatpush.bf16.msra.mxu0 0
        %3984 = vmatpush.bf16.msra.mxu0 0
        %3985 = vmatpush.bf16.msra.mxu0 0
        %3986 = vmatpush.bf16.msra.mxu0 %v3974
        %3987 = vmatmul.bf16.gmra.mxu0 %v3977
        %v3988 = vpop.f32.mrf.mxu0
        %v3989 = vadd.f32 0.0, %v3988
        %v3990 = vpop.f32.mrf.mxu0
        %v3991 = vadd.f32 0.0, %v3990
        %3992 = vdwg.mxu0
        %v3995 = vunpack.c.l.b16 %v3747
        %v3996 = vunpack.c.l.b16 %v3748
        %v3997 = vpack.c.b16 %v3996, %v3995
        %v4000 = vunpack.c.l.b16 %v1865
        %v4001 = vunpack.c.l.b16 %v1866
        %v4002 = vpack.c.b16 %v4001, %v4000
        %v4005 = vsel %vm3028, %v3997, 0
        %4007 = vmatpush.bf16.msra.mxu0 0
        %4008 = vmatpush.bf16.msra.mxu0 0
        %4009 = vmatpush.bf16.msra.mxu0 0
        %4010 = vmatpush.bf16.msra.mxu0 0
        %4011 = vmatpush.bf16.msra.mxu0 0
        %4012 = vmatpush.bf16.msra.mxu0 0
        %4013 = vmatpush.bf16.msra.mxu0 0
        %4014 = vmatpush.bf16.msra.mxu0 %v4002
        %4015 = vmatmul.bf16.gmra.mxu0 %v4005
        %v4016 = vpop.f32.mrf.mxu0
        %v4017 = vadd.f32 0.0, %v4016
        %v4018 = vpop.f32.mrf.mxu0
        %v4019 = vadd.f32 0.0, %v4018
        %4020 = vdwg.mxu0
        %v4023 = vunpack.c.l.b16 %v3749
        %v4024 = vunpack.c.l.b16 %v3750
        %v4025 = vpack.c.b16 %v4024, %v4023
        %v4028 = vunpack.c.l.b16 %v1867
        %v4029 = vunpack.c.l.b16 %v1868
        %v4030 = vpack.c.b16 %v4029, %v4028
        %v4033 = vsel %vm3028, %v4025, 0
        %4035 = vmatpush.bf16.msra.mxu0 0
        %4036 = vmatpush.bf16.msra.mxu0 0
        %4037 = vmatpush.bf16.msra.mxu0 0
        %4038 = vmatpush.bf16.msra.mxu0 0
        %4039 = vmatpush.bf16.msra.mxu0 0
        %4040 = vmatpush.bf16.msra.mxu0 0
        %4041 = vmatpush.bf16.msra.mxu0 0
        %4042 = vmatpush.bf16.msra.mxu0 %v4030
        %4043 = vmatmul.bf16.gmra.mxu0 %v4033
        %v4044 = vpop.f32.mrf.mxu0
        %v4045 = vadd.f32 0.0, %v4044
        %v4046 = vpop.f32.mrf.mxu0
        %v4047 = vadd.f32 0.0, %v4046
        %4048 = vdwg.mxu0
        %v4051 = vunpack.c.l.b16 %v3751
        %v4052 = vunpack.c.l.b16 %v3752
        %v4053 = vpack.c.b16 %v4052, %v4051
        %v4056 = vunpack.c.l.b16 %v1869
        %v4057 = vunpack.c.l.b16 %v1870
        %v4058 = vpack.c.b16 %v4057, %v4056
        %v4061 = vsel %vm3028, %v4053, 0
        %4063 = vmatpush.bf16.msra.mxu0 0
        %4064 = vmatpush.bf16.msra.mxu0 0
        %4065 = vmatpush.bf16.msra.mxu0 0
        %4066 = vmatpush.bf16.msra.mxu0 0
        %4067 = vmatpush.bf16.msra.mxu0 0
        %4068 = vmatpush.bf16.msra.mxu0 0
        %4069 = vmatpush.bf16.msra.mxu0 0
        %4070 = vmatpush.bf16.msra.mxu0 %v4058
        %4071 = vmatmul.bf16.gmra.mxu0 %v4061
        %v4072 = vpop.f32.mrf.mxu0
        %v4073 = vadd.f32 0.0, %v4072
        %v4074 = vpop.f32.mrf.mxu0
        %v4075 = vadd.f32 0.0, %v4074
        %4076 = vdwg.mxu0
        %v4079 = vunpack.c.l.b16 %v3753
        %v4080 = vunpack.c.l.b16 %v3754
        %v4081 = vpack.c.b16 %v4080, %v4079
        %v4084 = vunpack.c.l.b16 %v1871
        %v4085 = vunpack.c.l.b16 %v1872
        %v4086 = vpack.c.b16 %v4085, %v4084
        %v4089 = vsel %vm3028, %v4081, 0
        %4091 = vmatpush.bf16.msra.mxu0 0
        %4092 = vmatpush.bf16.msra.mxu0 0
        %4093 = vmatpush.bf16.msra.mxu0 0
        %4094 = vmatpush.bf16.msra.mxu0 0
        %4095 = vmatpush.bf16.msra.mxu0 0
        %4096 = vmatpush.bf16.msra.mxu0 0
        %4097 = vmatpush.bf16.msra.mxu0 0
        %4098 = vmatpush.bf16.msra.mxu0 %v4086
        %4099 = vmatmul.bf16.gmra.mxu0 %v4089
        %v4100 = vpop.f32.mrf.mxu0
        %v4101 = vadd.f32 0.0, %v4100
        %v4102 = vpop.f32.mrf.mxu0
        %v4103 = vadd.f32 0.0, %v4102
        %4104 = vdwg.mxu0
        %v4107 = vunpack.c.l.b16 %v3755
        %v4108 = vunpack.c.l.b16 %v3756
        %v4109 = vpack.c.b16 %v4108, %v4107
        %v4112 = vunpack.c.l.b16 %v1873
        %v4113 = vunpack.c.l.b16 %v1874
        %v4114 = vpack.c.b16 %v4113, %v4112
        %v4117 = vsel %vm3028, %v4109, 0
        %4119 = vmatpush.bf16.msra.mxu0 0
        %4120 = vmatpush.bf16.msra.mxu0 0
        %4121 = vmatpush.bf16.msra.mxu0 0
        %4122 = vmatpush.bf16.msra.mxu0 0
        %4123 = vmatpush.bf16.msra.mxu0 0
        %4124 = vmatpush.bf16.msra.mxu0 0
        %4125 = vmatpush.bf16.msra.mxu0 0
        %4126 = vmatpush.bf16.msra.mxu0 %v4114
        %4127 = vmatmul.bf16.gmra.mxu0 %v4117
        %v4128 = vpop.f32.mrf.mxu0
        %v4129 = vadd.f32 0.0, %v4128
        %v4130 = vpop.f32.mrf.mxu0
        %v4131 = vadd.f32 0.0, %v4130
        %4132 = vdwg.mxu0
        %v4135 = vunpack.c.l.b16 %v3757
        %v4136 = vunpack.c.l.b16 %v3758
        %v4137 = vpack.c.b16 %v4136, %v4135
        %v4140 = vunpack.c.l.b16 %v1875
        %v4141 = vunpack.c.l.b16 %v1876
        %v4142 = vpack.c.b16 %v4141, %v4140
        %v4145 = vsel %vm3028, %v4137, 0
        %4147 = vmatpush.bf16.msra.mxu0 0
        %4148 = vmatpush.bf16.msra.mxu0 0
        %4149 = vmatpush.bf16.msra.mxu0 0
        %4150 = vmatpush.bf16.msra.mxu0 0
        %4151 = vmatpush.bf16.msra.mxu0 0
        %4152 = vmatpush.bf16.msra.mxu0 0
        %4153 = vmatpush.bf16.msra.mxu0 0
        %4154 = vmatpush.bf16.msra.mxu0 %v4142
        %4155 = vmatmul.bf16.gmra.mxu0 %v4145
        %v4156 = vpop.f32.mrf.mxu0
        %v4157 = vadd.f32 0.0, %v4156
        %v4158 = vpop.f32.mrf.mxu0
        %v4159 = vadd.f32 0.0, %v4158
        %4160 = vdwg.mxu0
        %v4163 = vunpack.c.l.b16 %v3759
        %v4164 = vunpack.c.l.b16 %v3760
        %v4165 = vpack.c.b16 %v4164, %v4163
        %v4168 = vunpack.c.l.b16 %v1877
        %v4169 = vunpack.c.l.b16 %v1878
        %v4170 = vpack.c.b16 %v4169, %v4168
        %v4173 = vsel %vm3028, %v4165, 0
        %4175 = vmatpush.bf16.msra.mxu0 0
        %4176 = vmatpush.bf16.msra.mxu0 0
        %4177 = vmatpush.bf16.msra.mxu0 0
        %4178 = vmatpush.bf16.msra.mxu0 0
        %4179 = vmatpush.bf16.msra.mxu0 0
        %4180 = vmatpush.bf16.msra.mxu0 0
        %4181 = vmatpush.bf16.msra.mxu0 0
        %4182 = vmatpush.bf16.msra.mxu0 %v4170
        %4183 = vmatmul.bf16.gmra.mxu0 %v4173
        %v4184 = vpop.f32.mrf.mxu0
        %v4185 = vadd.f32 0.0, %v4184
        %v4186 = vpop.f32.mrf.mxu0
        %v4187 = vadd.f32 0.0, %v4186
        %4188 = vdwg.mxu0
        %v4191 = vunpack.c.l.b16 %v3761
        %v4192 = vunpack.c.l.b16 %v3762
        %v4193 = vpack.c.b16 %v4192, %v4191
        %v4196 = vunpack.c.l.b16 %v1879
        %v4197 = vunpack.c.l.b16 %v1880
        %v4198 = vpack.c.b16 %v4197, %v4196
        %v4201 = vsel %vm3028, %v4193, 0
        %4203 = vmatpush.bf16.msra.mxu0 0
        %4204 = vmatpush.bf16.msra.mxu0 0
        %4205 = vmatpush.bf16.msra.mxu0 0
        %4206 = vmatpush.bf16.msra.mxu0 0
        %4207 = vmatpush.bf16.msra.mxu0 0
        %4208 = vmatpush.bf16.msra.mxu0 0
        %4209 = vmatpush.bf16.msra.mxu0 0
        %4210 = vmatpush.bf16.msra.mxu0 %v4198
        %4211 = vmatmul.bf16.gmra.mxu0 %v4201
        %v4212 = vpop.f32.mrf.mxu0
        %v4213 = vadd.f32 0.0, %v4212
        %v4214 = vpop.f32.mrf.mxu0
        %v4215 = vadd.f32 0.0, %v4214
        %4216 = vdwg.mxu0
        %v4219 = vunpack.c.l.b16 %v3763
        %v4220 = vunpack.c.l.b16 %v3764
        %v4221 = vpack.c.b16 %v4220, %v4219
        %v4224 = vunpack.c.l.b16 %v1881
        %v4225 = vunpack.c.l.b16 %v1882
        %v4226 = vpack.c.b16 %v4225, %v4224
        %v4229 = vsel %vm3028, %v4221, 0
        %4231 = vmatpush.bf16.msra.mxu0 0
        %4232 = vmatpush.bf16.msra.mxu0 0
        %4233 = vmatpush.bf16.msra.mxu0 0
        %4234 = vmatpush.bf16.msra.mxu0 0
        %4235 = vmatpush.bf16.msra.mxu0 0
        %4236 = vmatpush.bf16.msra.mxu0 0
        %4237 = vmatpush.bf16.msra.mxu0 0
        %4238 = vmatpush.bf16.msra.mxu0 %v4226
        %4239 = vmatmul.bf16.gmra.mxu0 %v4229
        %v4240 = vpop.f32.mrf.mxu0
        %v4241 = vadd.f32 0.0, %v4240
        %v4242 = vpop.f32.mrf.mxu0
        %v4243 = vadd.f32 0.0, %v4242
        %4244 = vdwg.mxu0
        %v4247 = vunpack.c.l.b16 %v3765
        %v4248 = vunpack.c.l.b16 %v3766
        %v4249 = vpack.c.b16 %v4248, %v4247
        %v4252 = vunpack.c.l.b16 %v1883
        %v4253 = vunpack.c.l.b16 %v1884
        %v4254 = vpack.c.b16 %v4253, %v4252
        %v4257 = vsel %vm3028, %v4249, 0
        %4259 = vmatpush.bf16.msra.mxu0 0
        %4260 = vmatpush.bf16.msra.mxu0 0
        %4261 = vmatpush.bf16.msra.mxu0 0
        %4262 = vmatpush.bf16.msra.mxu0 0
        %4263 = vmatpush.bf16.msra.mxu0 0
        %4264 = vmatpush.bf16.msra.mxu0 0
        %4265 = vmatpush.bf16.msra.mxu0 0
        %4266 = vmatpush.bf16.msra.mxu0 %v4254
        %4267 = vmatmul.bf16.gmra.mxu0 %v4257
        %v4268 = vpop.f32.mrf.mxu0
        %v4269 = vadd.f32 0.0, %v4268
        %v4270 = vpop.f32.mrf.mxu0
        %v4271 = vadd.f32 0.0, %v4270
        %4272 = vdwg.mxu0
        %v4275 = vunpack.c.l.b16 %v3767
        %v4276 = vunpack.c.l.b16 %v3768
        %v4277 = vpack.c.b16 %v4276, %v4275
        %v4280 = vunpack.c.l.b16 %v1885
        %v4281 = vunpack.c.l.b16 %v1886
        %v4282 = vpack.c.b16 %v4281, %v4280
        %v4285 = vsel %vm3028, %v4277, 0
        %4287 = vmatpush.bf16.msra.mxu0 0
        %4288 = vmatpush.bf16.msra.mxu0 0
        %4289 = vmatpush.bf16.msra.mxu0 0
        %4290 = vmatpush.bf16.msra.mxu0 0
        %4291 = vmatpush.bf16.msra.mxu0 0
        %4292 = vmatpush.bf16.msra.mxu0 0
        %4293 = vmatpush.bf16.msra.mxu0 0
        %4294 = vmatpush.bf16.msra.mxu0 %v4282
        %4295 = vmatmul.bf16.gmra.mxu0 %v4285
        %v4296 = vpop.f32.mrf.mxu0
        %v4297 = vadd.f32 0.0, %v4296
        %v4298 = vpop.f32.mrf.mxu0
        %v4299 = vadd.f32 0.0, %v4298
        %4300 = vdwg.mxu0
        %v4303 = vunpack.c.l.b16 %v3769
        %v4304 = vunpack.c.l.b16 %v3770
        %v4305 = vpack.c.b16 %v4304, %v4303
        %v4308 = vunpack.c.l.b16 %v1887
        %v4309 = vunpack.c.l.b16 %v1888
        %v4310 = vpack.c.b16 %v4309, %v4308
        %v4313 = vsel %vm3028, %v4305, 0
        %4315 = vmatpush.bf16.msra.mxu0 0
        %4316 = vmatpush.bf16.msra.mxu0 0
        %4317 = vmatpush.bf16.msra.mxu0 0
        %4318 = vmatpush.bf16.msra.mxu0 0
        %4319 = vmatpush.bf16.msra.mxu0 0
        %4320 = vmatpush.bf16.msra.mxu0 0
        %4321 = vmatpush.bf16.msra.mxu0 0
        %4322 = vmatpush.bf16.msra.mxu0 %v4310
        %4323 = vmatmul.bf16.gmra.mxu0 %v4313
        %v4324 = vpop.f32.mrf.mxu0
        %v4325 = vadd.f32 0.0, %v4324
        %v4326 = vpop.f32.mrf.mxu0
        %v4327 = vadd.f32 0.0, %v4326
        %4328 = vdwg.mxu0
        %v4331 = vunpack.c.l.b16 %v3771
        %v4332 = vunpack.c.l.b16 %v3772
        %v4333 = vpack.c.b16 %v4332, %v4331
        %v4336 = vunpack.c.l.b16 %v1889
        %v4337 = vunpack.c.l.b16 %v1890
        %v4338 = vpack.c.b16 %v4337, %v4336
        %v4341 = vsel %vm3028, %v4333, 0
        %4343 = vmatpush.bf16.msra.mxu0 0
        %4344 = vmatpush.bf16.msra.mxu0 0
        %4345 = vmatpush.bf16.msra.mxu0 0
        %4346 = vmatpush.bf16.msra.mxu0 0
        %4347 = vmatpush.bf16.msra.mxu0 0
        %4348 = vmatpush.bf16.msra.mxu0 0
        %4349 = vmatpush.bf16.msra.mxu0 0
        %4350 = vmatpush.bf16.msra.mxu0 %v4338
        %4351 = vmatmul.bf16.gmra.mxu0 %v4341
        %v4352 = vpop.f32.mrf.mxu0
        %v4353 = vadd.f32 0.0, %v4352
        %v4354 = vpop.f32.mrf.mxu0
        %v4355 = vadd.f32 0.0, %v4354
        %4356 = vdwg.mxu0
        %v4359 = vunpack.c.l.b16 %v3773
        %v4360 = vunpack.c.l.b16 %v3774
        %v4361 = vpack.c.b16 %v4360, %v4359
        %v4364 = vunpack.c.l.b16 %v1891
        %v4365 = vunpack.c.l.b16 %v1892
        %v4366 = vpack.c.b16 %v4365, %v4364
        %v4369 = vsel %vm3028, %v4361, 0
        %4371 = vmatpush.bf16.msra.mxu0 0
        %4372 = vmatpush.bf16.msra.mxu0 0
        %4373 = vmatpush.bf16.msra.mxu0 0
        %4374 = vmatpush.bf16.msra.mxu0 0
        %4375 = vmatpush.bf16.msra.mxu0 0
        %4376 = vmatpush.bf16.msra.mxu0 0
        %4377 = vmatpush.bf16.msra.mxu0 0
        %4378 = vmatpush.bf16.msra.mxu0 %v4366
        %4379 = vmatmul.bf16.gmra.mxu0 %v4369
        %v4380 = vpop.f32.mrf.mxu0
        %v4381 = vadd.f32 0.0, %v4380
        %v4382 = vpop.f32.mrf.mxu0
        %v4383 = vadd.f32 0.0, %v4382
        %4384 = vdwg.mxu0
        %v4387 = vunpack.c.l.b16 %v3775
        %v4388 = vunpack.c.l.b16 %v3776
        %v4389 = vpack.c.b16 %v4388, %v4387
        %v4392 = vunpack.c.l.b16 %v1893
        %v4393 = vunpack.c.l.b16 %v1894
        %v4394 = vpack.c.b16 %v4393, %v4392
        %v4397 = vsel %vm3028, %v4389, 0
        %4399 = vmatpush.bf16.msra.mxu0 0
        %4400 = vmatpush.bf16.msra.mxu0 0
        %4401 = vmatpush.bf16.msra.mxu0 0
        %4402 = vmatpush.bf16.msra.mxu0 0
        %4403 = vmatpush.bf16.msra.mxu0 0
        %4404 = vmatpush.bf16.msra.mxu0 0
        %4405 = vmatpush.bf16.msra.mxu0 0
        %4406 = vmatpush.bf16.msra.mxu0 %v4394
        %4407 = vmatmul.bf16.gmra.mxu0 %v4397
        %v4408 = vpop.f32.mrf.mxu0
        %v4409 = vadd.f32 0.0, %v4408
        %v4410 = vpop.f32.mrf.mxu0
        %v4411 = vadd.f32 0.0, %v4410
        %4412 = vdwg.mxu0
        %v4415 = vunpack.c.l.b16 %v3777
        %v4416 = vunpack.c.l.b16 %v3778
        %v4417 = vpack.c.b16 %v4416, %v4415
        %v4420 = vunpack.c.l.b16 %v1895
        %v4421 = vunpack.c.l.b16 %v1896
        %v4422 = vpack.c.b16 %v4421, %v4420
        %v4425 = vsel %vm3028, %v4417, 0
        %4427 = vmatpush.bf16.msra.mxu0 0
        %4428 = vmatpush.bf16.msra.mxu0 0
        %4429 = vmatpush.bf16.msra.mxu0 0
        %4430 = vmatpush.bf16.msra.mxu0 0
        %4431 = vmatpush.bf16.msra.mxu0 0
        %4432 = vmatpush.bf16.msra.mxu0 0
        %4433 = vmatpush.bf16.msra.mxu0 0
        %4434 = vmatpush.bf16.msra.mxu0 %v4422
        %4435 = vmatmul.bf16.gmra.mxu0 %v4425
        %v4436 = vpop.f32.mrf.mxu0
        %v4437 = vadd.f32 0.0, %v4436
        %v4438 = vpop.f32.mrf.mxu0
        %v4439 = vadd.f32 0.0, %v4438
        %4440 = vdwg.mxu0
        %v4443 = vunpack.c.l.b16 %v3779
        %v4444 = vunpack.c.l.b16 %v3780
        %v4445 = vpack.c.b16 %v4444, %v4443
        %v4448 = vunpack.c.l.b16 %v1897
        %v4449 = vunpack.c.l.b16 %v1898
        %v4450 = vpack.c.b16 %v4449, %v4448
        %v4453 = vsel %vm3028, %v4445, 0
        %4455 = vmatpush.bf16.msra.mxu0 0
        %4456 = vmatpush.bf16.msra.mxu0 0
        %4457 = vmatpush.bf16.msra.mxu0 0
        %4458 = vmatpush.bf16.msra.mxu0 0
        %4459 = vmatpush.bf16.msra.mxu0 0
        %4460 = vmatpush.bf16.msra.mxu0 0
        %4461 = vmatpush.bf16.msra.mxu0 0
        %4462 = vmatpush.bf16.msra.mxu0 %v4450
        %4463 = vmatmul.bf16.gmra.mxu0 %v4453
        %v4464 = vpop.f32.mrf.mxu0
        %v4465 = vadd.f32 0.0, %v4464
        %v4466 = vpop.f32.mrf.mxu0
        %v4467 = vadd.f32 0.0, %v4466
        %4468 = vdwg.mxu0
        %v4471 = vunpack.c.l.b16 %v3781
        %v4472 = vunpack.c.l.b16 %v3782
        %v4473 = vpack.c.b16 %v4472, %v4471
        %v4476 = vunpack.c.l.b16 %v1899
        %v4477 = vunpack.c.l.b16 %v1900
        %v4478 = vpack.c.b16 %v4477, %v4476
        %v4481 = vsel %vm3028, %v4473, 0
        %4483 = vmatpush.bf16.msra.mxu0 0
        %4484 = vmatpush.bf16.msra.mxu0 0
        %4485 = vmatpush.bf16.msra.mxu0 0
        %4486 = vmatpush.bf16.msra.mxu0 0
        %4487 = vmatpush.bf16.msra.mxu0 0
        %4488 = vmatpush.bf16.msra.mxu0 0
        %4489 = vmatpush.bf16.msra.mxu0 0
        %4490 = vmatpush.bf16.msra.mxu0 %v4478
        %4491 = vmatmul.bf16.gmra.mxu0 %v4481
        %v4492 = vpop.f32.mrf.mxu0
        %v4493 = vadd.f32 0.0, %v4492
        %v4494 = vpop.f32.mrf.mxu0
        %v4495 = vadd.f32 0.0, %v4494
        %4496 = vdwg.mxu0
        %v4499 = vunpack.c.l.b16 %v3783
        %v4500 = vunpack.c.l.b16 %v3784
        %v4501 = vpack.c.b16 %v4500, %v4499
        %v4504 = vunpack.c.l.b16 %v1901
        %v4505 = vunpack.c.l.b16 %v1902
        %v4506 = vpack.c.b16 %v4505, %v4504
        %v4509 = vsel %vm3028, %v4501, 0
        %4511 = vmatpush.bf16.msra.mxu0 0
        %4512 = vmatpush.bf16.msra.mxu0 0
        %4513 = vmatpush.bf16.msra.mxu0 0
        %4514 = vmatpush.bf16.msra.mxu0 0
        %4515 = vmatpush.bf16.msra.mxu0 0
        %4516 = vmatpush.bf16.msra.mxu0 0
        %4517 = vmatpush.bf16.msra.mxu0 0
        %4518 = vmatpush.bf16.msra.mxu0 %v4506
        %4519 = vmatmul.bf16.gmra.mxu0 %v4509
        %v4520 = vpop.f32.mrf.mxu0
        %v4521 = vadd.f32 0.0, %v4520
        %v4522 = vpop.f32.mrf.mxu0
        %v4523 = vadd.f32 0.0, %v4522
        %4524 = vdwg.mxu0
        %v4527 = vunpack.c.l.b16 %v3785
        %v4528 = vunpack.c.l.b16 %v3786
        %v4529 = vpack.c.b16 %v4528, %v4527
        %v4532 = vunpack.c.l.b16 %v1903
        %v4533 = vunpack.c.l.b16 %v1904
        %v4534 = vpack.c.b16 %v4533, %v4532
        %v4537 = vsel %vm3028, %v4529, 0
        %4539 = vmatpush.bf16.msra.mxu0 0
        %4540 = vmatpush.bf16.msra.mxu0 0
        %4541 = vmatpush.bf16.msra.mxu0 0
        %4542 = vmatpush.bf16.msra.mxu0 0
        %4543 = vmatpush.bf16.msra.mxu0 0
        %4544 = vmatpush.bf16.msra.mxu0 0
        %4545 = vmatpush.bf16.msra.mxu0 0
        %4546 = vmatpush.bf16.msra.mxu0 %v4534
        %4547 = vmatmul.bf16.gmra.mxu0 %v4537
        %v4548 = vpop.f32.mrf.mxu0
        %v4549 = vadd.f32 0.0, %v4548
        %v4550 = vpop.f32.mrf.mxu0
        %v4551 = vadd.f32 0.0, %v4550
        %4552 = vdwg.mxu0
        %v4555 = vunpack.c.l.b16 %v3787
        %v4556 = vunpack.c.l.b16 %v3788
        %v4557 = vpack.c.b16 %v4556, %v4555
        %v4560 = vunpack.c.l.b16 %v1905
        %v4561 = vunpack.c.l.b16 %v1906
        %v4562 = vpack.c.b16 %v4561, %v4560
        %v4565 = vsel %vm3028, %v4557, 0
        %4567 = vmatpush.bf16.msra.mxu0 0
        %4568 = vmatpush.bf16.msra.mxu0 0
        %4569 = vmatpush.bf16.msra.mxu0 0
        %4570 = vmatpush.bf16.msra.mxu0 0
        %4571 = vmatpush.bf16.msra.mxu0 0
        %4572 = vmatpush.bf16.msra.mxu0 0
        %4573 = vmatpush.bf16.msra.mxu0 0
        %4574 = vmatpush.bf16.msra.mxu0 %v4562
        %4575 = vmatmul.bf16.gmra.mxu0 %v4565
        %v4576 = vpop.f32.mrf.mxu0
        %v4577 = vadd.f32 0.0, %v4576
        %v4578 = vpop.f32.mrf.mxu0
        %v4579 = vadd.f32 0.0, %v4578
        %4580 = vdwg.mxu0
        %v4583 = vunpack.c.l.b16 %v3789
        %v4584 = vunpack.c.l.b16 %v3790
        %v4585 = vpack.c.b16 %v4584, %v4583
        %v4588 = vunpack.c.l.b16 %v1907
        %v4589 = vunpack.c.l.b16 %v1908
        %v4590 = vpack.c.b16 %v4589, %v4588
        %v4593 = vsel %vm3028, %v4585, 0
        %4595 = vmatpush.bf16.msra.mxu0 0
        %4596 = vmatpush.bf16.msra.mxu0 0
        %4597 = vmatpush.bf16.msra.mxu0 0
        %4598 = vmatpush.bf16.msra.mxu0 0
        %4599 = vmatpush.bf16.msra.mxu0 0
        %4600 = vmatpush.bf16.msra.mxu0 0
        %4601 = vmatpush.bf16.msra.mxu0 0
        %4602 = vmatpush.bf16.msra.mxu0 %v4590
        %4603 = vmatmul.bf16.gmra.mxu0 %v4593
        %v4604 = vpop.f32.mrf.mxu0
        %v4605 = vadd.f32 0.0, %v4604
        %v4606 = vpop.f32.mrf.mxu0
        %v4607 = vadd.f32 0.0, %v4606
        %4608 = vdwg.mxu0
        %v4611 = vunpack.c.l.b16 %v3791
        %v4612 = vunpack.c.l.b16 %v3792
        %v4613 = vpack.c.b16 %v4612, %v4611
        %v4616 = vunpack.c.l.b16 %v1909
        %v4617 = vunpack.c.l.b16 %v1910
        %v4618 = vpack.c.b16 %v4617, %v4616
        %v4621 = vsel %vm3028, %v4613, 0
        %4623 = vmatpush.bf16.msra.mxu0 0
        %4624 = vmatpush.bf16.msra.mxu0 0
        %4625 = vmatpush.bf16.msra.mxu0 0
        %4626 = vmatpush.bf16.msra.mxu0 0
        %4627 = vmatpush.bf16.msra.mxu0 0
        %4628 = vmatpush.bf16.msra.mxu0 0
        %4629 = vmatpush.bf16.msra.mxu0 0
        %4630 = vmatpush.bf16.msra.mxu0 %v4618
        %4631 = vmatmul.bf16.gmra.mxu0 %v4621
        %v4632 = vpop.f32.mrf.mxu0
        %v4633 = vadd.f32 0.0, %v4632
        %v4634 = vpop.f32.mrf.mxu0
        %v4635 = vadd.f32 0.0, %v4634
        %4636 = vdwg.mxu0
        %v4639 = vunpack.c.l.b16 %v3793
        %v4640 = vunpack.c.l.b16 %v3794
        %v4641 = vpack.c.b16 %v4640, %v4639
        %v4644 = vunpack.c.l.b16 %v1911
        %v4645 = vunpack.c.l.b16 %v1912
        %v4646 = vpack.c.b16 %v4645, %v4644
        %v4649 = vsel %vm3028, %v4641, 0
        %4651 = vmatpush.bf16.msra.mxu0 0
        %4652 = vmatpush.bf16.msra.mxu0 0
        %4653 = vmatpush.bf16.msra.mxu0 0
        %4654 = vmatpush.bf16.msra.mxu0 0
        %4655 = vmatpush.bf16.msra.mxu0 0
        %4656 = vmatpush.bf16.msra.mxu0 0
        %4657 = vmatpush.bf16.msra.mxu0 0
        %4658 = vmatpush.bf16.msra.mxu0 %v4646
        %4659 = vmatmul.bf16.gmra.mxu0 %v4649
        %v4660 = vpop.f32.mrf.mxu0
        %v4661 = vadd.f32 0.0, %v4660
        %v4662 = vpop.f32.mrf.mxu0
        %v4663 = vadd.f32 0.0, %v4662
        %4664 = vdwg.mxu0
        %v4667 = vunpack.c.l.b16 %v3795
        %v4668 = vunpack.c.l.b16 %v3796
        %v4669 = vpack.c.b16 %v4668, %v4667
        %v4672 = vunpack.c.l.b16 %v1913
        %v4673 = vunpack.c.l.b16 %v1914
        %v4674 = vpack.c.b16 %v4673, %v4672
        %v4677 = vsel %vm3028, %v4669, 0
        %4679 = vmatpush.bf16.msra.mxu0 0
        %4680 = vmatpush.bf16.msra.mxu0 0
        %4681 = vmatpush.bf16.msra.mxu0 0
        %4682 = vmatpush.bf16.msra.mxu0 0
        %4683 = vmatpush.bf16.msra.mxu0 0
        %4684 = vmatpush.bf16.msra.mxu0 0
        %4685 = vmatpush.bf16.msra.mxu0 0
        %4686 = vmatpush.bf16.msra.mxu0 %v4674
        %4687 = vmatmul.bf16.gmra.mxu0 %v4677
        %v4688 = vpop.f32.mrf.mxu0
        %v4689 = vadd.f32 0.0, %v4688
        %v4690 = vpop.f32.mrf.mxu0
        %v4691 = vadd.f32 0.0, %v4690
        %4692 = vdwg.mxu0
        %4709 = vrot.lane.b32.xlu0 %v3849, 8
        %v4710 = vpop.permute.xlu0 %4709
        %4711 = vrot.lane.b32.xlu0 %v3851, 8
        %v4712 = vpop.permute.xlu0 %4711
        %4713 = vrot.lane.b32.xlu0 %v3961, 8
        %v4714 = vpop.permute.xlu0 %4713
        %4715 = vrot.lane.b32.xlu0 %v3963, 8
        %v4716 = vpop.permute.xlu0 %4715
        %4717 = vrot.lane.b32.xlu0 %v4073, 8
        %v4718 = vpop.permute.xlu0 %4717
        %4719 = vrot.lane.b32.xlu0 %v4075, 8
        %v4720 = vpop.permute.xlu0 %4719
        %4721 = vrot.lane.b32.xlu0 %v4185, 8
        %v4722 = vpop.permute.xlu0 %4721
        %4723 = vrot.lane.b32.xlu0 %v4187, 8
        %v4724 = vpop.permute.xlu0 %4723
        %4725 = vrot.lane.b32.xlu0 %v4297, 8
        %v4726 = vpop.permute.xlu0 %4725
        %4727 = vrot.lane.b32.xlu0 %v4299, 8
        %v4728 = vpop.permute.xlu0 %4727
        %4729 = vrot.lane.b32.xlu0 %v4409, 8
        %v4730 = vpop.permute.xlu0 %4729
        %4731 = vrot.lane.b32.xlu0 %v4411, 8
        %v4732 = vpop.permute.xlu0 %4731
        %4733 = vrot.lane.b32.xlu0 %v4521, 8
        %v4734 = vpop.permute.xlu0 %4733
        %4735 = vrot.lane.b32.xlu0 %v4523, 8
        %v4736 = vpop.permute.xlu0 %4735
        %4737 = vrot.lane.b32.xlu0 %v4633, 8
        %v4738 = vpop.permute.xlu0 %4737
        %4739 = vrot.lane.b32.xlu0 %v4635, 8
        %v4740 = vpop.permute.xlu0 %4739
        %4773 = vrot.lane.b32.xlu0 %v3877, 16
        %v4774 = vpop.permute.xlu0 %4773
        %4775 = vrot.lane.b32.xlu0 %v3879, 16
        %v4776 = vpop.permute.xlu0 %4775
        %4777 = vrot.lane.b32.xlu0 %v3989, 16
        %v4778 = vpop.permute.xlu0 %4777
        %4779 = vrot.lane.b32.xlu0 %v3991, 16
        %v4780 = vpop.permute.xlu0 %4779
        %4781 = vrot.lane.b32.xlu0 %v4101, 16
        %v4782 = vpop.permute.xlu0 %4781
        %4783 = vrot.lane.b32.xlu0 %v4103, 16
        %v4784 = vpop.permute.xlu0 %4783
        %4785 = vrot.lane.b32.xlu0 %v4213, 16
        %v4786 = vpop.permute.xlu0 %4785
        %4787 = vrot.lane.b32.xlu0 %v4215, 16
        %v4788 = vpop.permute.xlu0 %4787
        %4789 = vrot.lane.b32.xlu0 %v4325, 16
        %v4790 = vpop.permute.xlu0 %4789
        %4791 = vrot.lane.b32.xlu0 %v4327, 16
        %v4792 = vpop.permute.xlu0 %4791
        %4793 = vrot.lane.b32.xlu0 %v4437, 16
        %v4794 = vpop.permute.xlu0 %4793
        %4795 = vrot.lane.b32.xlu0 %v4439, 16
        %v4796 = vpop.permute.xlu0 %4795
        %4797 = vrot.lane.b32.xlu0 %v4549, 16
        %v4798 = vpop.permute.xlu0 %4797
        %4799 = vrot.lane.b32.xlu0 %v4551, 16
        %v4800 = vpop.permute.xlu0 %4799
        %4801 = vrot.lane.b32.xlu0 %v4661, 16
        %v4802 = vpop.permute.xlu0 %4801
        %4803 = vrot.lane.b32.xlu0 %v4663, 16
        %v4804 = vpop.permute.xlu0 %4803
        %4837 = vrot.lane.b32.xlu0 %v3905, 24
        %v4838 = vpop.permute.xlu0 %4837
        %4839 = vrot.lane.b32.xlu0 %v3907, 24
        %v4840 = vpop.permute.xlu0 %4839
        %4841 = vrot.lane.b32.xlu0 %v4017, 24
        %v4842 = vpop.permute.xlu0 %4841
        %4843 = vrot.lane.b32.xlu0 %v4019, 24
        %v4844 = vpop.permute.xlu0 %4843
        %4845 = vrot.lane.b32.xlu0 %v4129, 24
        %v4846 = vpop.permute.xlu0 %4845
        %4847 = vrot.lane.b32.xlu0 %v4131, 24
        %v4848 = vpop.permute.xlu0 %4847
        %4849 = vrot.lane.b32.xlu0 %v4241, 24
        %v4850 = vpop.permute.xlu0 %4849
        %4851 = vrot.lane.b32.xlu0 %v4243, 24
        %v4852 = vpop.permute.xlu0 %4851
        %4853 = vrot.lane.b32.xlu0 %v4353, 24
        %v4854 = vpop.permute.xlu0 %4853
        %4855 = vrot.lane.b32.xlu0 %v4355, 24
        %v4856 = vpop.permute.xlu0 %4855
        %4857 = vrot.lane.b32.xlu0 %v4465, 24
        %v4858 = vpop.permute.xlu0 %4857
        %4859 = vrot.lane.b32.xlu0 %v4467, 24
        %v4860 = vpop.permute.xlu0 %4859
        %4861 = vrot.lane.b32.xlu0 %v4577, 24
        %v4862 = vpop.permute.xlu0 %4861
        %4863 = vrot.lane.b32.xlu0 %v4579, 24
        %v4864 = vpop.permute.xlu0 %4863
        %4865 = vrot.lane.b32.xlu0 %v4689, 24
        %v4866 = vpop.permute.xlu0 %4865
        %4867 = vrot.lane.b32.xlu0 %v4691, 24
        %v4868 = vpop.permute.xlu0 %4867
        %v4885 = vsel %vm1925, %v3821, %v4710
        %v4886 = vsel %vm1925, %v3823, %v4712
        %v4887 = vsel %vm1925, %v3933, %v4714
        %v4888 = vsel %vm1925, %v3935, %v4716
        %v4889 = vsel %vm1925, %v4045, %v4718
        %v4890 = vsel %vm1925, %v4047, %v4720
        %v4891 = vsel %vm1925, %v4157, %v4722
        %v4892 = vsel %vm1925, %v4159, %v4724
        %v4893 = vsel %vm1925, %v4269, %v4726
        %v4894 = vsel %vm1925, %v4271, %v4728
        %v4895 = vsel %vm1925, %v4381, %v4730
        %v4896 = vsel %vm1925, %v4383, %v4732
        %v4897 = vsel %vm1925, %v4493, %v4734
        %v4898 = vsel %vm1925, %v4495, %v4736
        %v4899 = vsel %vm1925, %v4605, %v4738
        %v4900 = vsel %vm1925, %v4607, %v4740
        %v4901 = vsel %vm3028, %v4885, %v4774
        %v4902 = vsel %vm3028, %v4886, %v4776
        %v4903 = vsel %vm3028, %v4887, %v4778
        %v4904 = vsel %vm3028, %v4888, %v4780
        %v4905 = vsel %vm3028, %v4889, %v4782
        %v4906 = vsel %vm3028, %v4890, %v4784
        %v4907 = vsel %vm3028, %v4891, %v4786
        %v4908 = vsel %vm3028, %v4892, %v4788
        %v4909 = vsel %vm3028, %v4893, %v4790
        %v4910 = vsel %vm3028, %v4894, %v4792
        %v4911 = vsel %vm3028, %v4895, %v4794
        %v4912 = vsel %vm3028, %v4896, %v4796
        %v4913 = vsel %vm3028, %v4897, %v4798
        %v4914 = vsel %vm3028, %v4898, %v4800
        %v4915 = vsel %vm3028, %v4899, %v4802
        %v4916 = vsel %vm3028, %v4900, %v4804
        %vm4917 = vcmask 195584
        %v4918 = vsel %vm4917, %v4901, %v4838
        %v4919 = vsel %vm4917, %v4902, %v4840
        %v4920 = vsel %vm4917, %v4903, %v4842
        %v4921 = vsel %vm4917, %v4904, %v4844
        %v4922 = vsel %vm4917, %v4905, %v4846
        %v4923 = vsel %vm4917, %v4906, %v4848
        %v4924 = vsel %vm4917, %v4907, %v4850
        %v4925 = vsel %vm4917, %v4908, %v4852
        %v4926 = vsel %vm4917, %v4909, %v4854
        %v4927 = vsel %vm4917, %v4910, %v4856
        %v4928 = vsel %vm4917, %v4911, %v4858
        %v4929 = vsel %vm4917, %v4912, %v4860
        %v4930 = vsel %vm4917, %v4913, %v4862
        %v4931 = vsel %vm4917, %v4914, %v4864
        %v4932 = vsel %vm4917, %v4915, %v4866
        %v4933 = vsel %vm4917, %v4916, %v4868
        %v4934 = vpack.c.bf16 %v4919, %v4918
        %v4935 = vpack.c.bf16 %v4921, %v4920
        %v4936 = vpack.c.bf16 %v4923, %v4922
        %v4937 = vpack.c.bf16 %v4925, %v4924
        %v4938 = vpack.c.bf16 %v4927, %v4926
        %v4939 = vpack.c.bf16 %v4929, %v4928
        %v4940 = vpack.c.bf16 %v4931, %v4930
        %v4941 = vpack.c.bf16 %v4933, %v4932
        %s4942 = scalar_lea.vmem %s4, 48
        %v4943 = vld [vmem:[%s4942] sm:$0xf]
        %v4944 = vld [vmem:[%s4942 + $0x4] sm:$0xf]
        %v4945 = vld [vmem:[%s4942 + $0x8] sm:$0xf]
        %v4946 = vld [vmem:[%s4942 + $0xc] sm:$0xf]
        %v4947 = vperm.slane %v1009, 3
        %v4952 = vunpack.c.l.b16 %v4943
        %v4953 = vunpack.c.l.b16 %v4944
        %v4954 = vunpack.c.l.b16 %v4945
        %v4955 = vunpack.c.l.b16 %v4946
        %v4956 = vpack.c.b16 %v4953, %v4952
        %v4957 = vpack.c.b16 %v4955, %v4954
        %v4961 = vsel %vm615, %v4934, 0
        %v4964 = vsel %vm615, %v4935, 0
        %v4967 = vsel %vm615, %v4936, 0
        %v4970 = vsel %vm615, %v4937, 0
        %v4973 = vsel %vm615, %v4938, 0
        %v4976 = vsel %vm615, %v4939, 0
        %v4979 = vsel %vm615, %v4940, 0
        %v4982 = vsel %vm615, %v4941, 0
        %4984 = vmatpush.bf16.msra.mxu0 0
        %4985 = vmatpush.bf16.msra.mxu0 0
        %4986 = vmatpush.bf16.msra.mxu0 0
        %4987 = vmatpush.bf16.msra.mxu0 0
        %4988 = vmatpush.bf16.msra.mxu0 0
        %4989 = vmatpush.bf16.msra.mxu0 0
        %4990 = vmatpush.bf16.msra.mxu0 %v4957
        %4991 = vmatpush.bf16.msra.mxu0 %v4956
        %4992 = vmatmul.bf16.gmra.mxu0 %v4961
        %v4993 = vpop.f32.mrf.mxu0
        %v4994 = vadd.f32 %v4947, %v4993
        %v4995 = vpop.f32.mrf.mxu0
        %v4996 = vadd.f32 %v4947, %v4995
        %4997 = vmatmul.bf16.gmra.mxu0 %v4964
        %v4998 = vpop.f32.mrf.mxu0
        %v4999 = vadd.f32 %v4947, %v4998
        %v5000 = vpop.f32.mrf.mxu0
        %v5001 = vadd.f32 %v4947, %v5000
        %5002 = vmatmul.bf16.gmra.mxu0 %v4967
        %v5003 = vpop.f32.mrf.mxu0
        %v5004 = vadd.f32 %v4947, %v5003
        %v5005 = vpop.f32.mrf.mxu0
        %v5006 = vadd.f32 %v4947, %v5005
        %5007 = vmatmul.bf16.gmra.mxu0 %v4970
        %v5008 = vpop.f32.mrf.mxu0
        %v5009 = vadd.f32 %v4947, %v5008
        %v5010 = vpop.f32.mrf.mxu0
        %v5011 = vadd.f32 %v4947, %v5010
        %5012 = vmatmul.bf16.gmra.mxu0 %v4973
        %v5013 = vpop.f32.mrf.mxu0
        %v5014 = vadd.f32 %v4947, %v5013
        %v5015 = vpop.f32.mrf.mxu0
        %v5016 = vadd.f32 %v4947, %v5015
        %5017 = vmatmul.bf16.gmra.mxu0 %v4976
        %v5018 = vpop.f32.mrf.mxu0
        %v5019 = vadd.f32 %v4947, %v5018
        %v5020 = vpop.f32.mrf.mxu0
        %v5021 = vadd.f32 %v4947, %v5020
        %5022 = vmatmul.bf16.gmra.mxu0 %v4979
        %v5023 = vpop.f32.mrf.mxu0
        %v5024 = vadd.f32 %v4947, %v5023
        %v5025 = vpop.f32.mrf.mxu0
        %v5026 = vadd.f32 %v4947, %v5025
        %5027 = vmatmul.bf16.gmra.mxu0 %v4982
        %v5028 = vpop.f32.mrf.mxu0
        %v5029 = vadd.f32 %v4947, %v5028
        %v5030 = vpop.f32.mrf.mxu0
        %v5031 = vadd.f32 %v4947, %v5030
        %5032 = vdwg.mxu0
        %v5033 = vadd.f32 %v993, %v4994
        %v5034 = vadd.f32 %v994, %v4996
        %v5035 = vadd.f32 %v995, %v4999
        %v5036 = vadd.f32 %v996, %v5001
        %v5037 = vadd.f32 %v997, %v5004
        %v5038 = vadd.f32 %v998, %v5006
        %v5039 = vadd.f32 %v999, %v5009
        %v5040 = vadd.f32 %v1000, %v5011
        %v5041 = vadd.f32 %v1001, %v5014
        %v5042 = vadd.f32 %v1002, %v5016
        %v5043 = vadd.f32 %v1003, %v5019
        %v5044 = vadd.f32 %v1004, %v5021
        %v5045 = vadd.f32 %v1005, %v5024
        %v5046 = vadd.f32 %v1006, %v5026
        %v5047 = vadd.f32 %v1007, %v5029
        %v5048 = vadd.f32 %v1008, %v5031
        %v5049 = vsel %vm615, %v5033, 0.0
        %5050 = vadd.xlane.f32.xlu0 %v5049
        %v5051 = vpop.xlane.xlu0 %5050
        %v5052 = vsel %vm615, %v5034, 0.0
        %5053 = vadd.xlane.f32.xlu0 %v5052
        %v5054 = vpop.xlane.xlu0 %5053
        %v5055 = vsel %vm615, %v5035, 0.0
        %5056 = vadd.xlane.f32.xlu0 %v5055
        %v5057 = vpop.xlane.xlu0 %5056
        %v5058 = vsel %vm615, %v5036, 0.0
        %5059 = vadd.xlane.f32.xlu0 %v5058
        %v5060 = vpop.xlane.xlu0 %5059
        %v5061 = vsel %vm615, %v5037, 0.0
        %5062 = vadd.xlane.f32.xlu0 %v5061
        %v5063 = vpop.xlane.xlu0 %5062
        %v5064 = vsel %vm615, %v5038, 0.0
        %5065 = vadd.xlane.f32.xlu0 %v5064
        %v5066 = vpop.xlane.xlu0 %5065
        %v5067 = vsel %vm615, %v5039, 0.0
        %5068 = vadd.xlane.f32.xlu0 %v5067
        %v5069 = vpop.xlane.xlu0 %5068
        %v5070 = vsel %vm615, %v5040, 0.0
        %5071 = vadd.xlane.f32.xlu0 %v5070
        %v5072 = vpop.xlane.xlu0 %5071
        %v5073 = vsel %vm615, %v5041, 0.0
        %5074 = vadd.xlane.f32.xlu0 %v5073
        %v5075 = vpop.xlane.xlu0 %5074
        %v5076 = vsel %vm615, %v5042, 0.0
        %5077 = vadd.xlane.f32.xlu0 %v5076
        %v5078 = vpop.xlane.xlu0 %5077
        %v5079 = vsel %vm615, %v5043, 0.0
        %5080 = vadd.xlane.f32.xlu0 %v5079
        %v5081 = vpop.xlane.xlu0 %5080
        %v5082 = vsel %vm615, %v5044, 0.0
        %5083 = vadd.xlane.f32.xlu0 %v5082
        %v5084 = vpop.xlane.xlu0 %5083
        %v5085 = vsel %vm615, %v5045, 0.0
        %5086 = vadd.xlane.f32.xlu0 %v5085
        %v5087 = vpop.xlane.xlu0 %5086
        %v5088 = vsel %vm615, %v5046, 0.0
        %5089 = vadd.xlane.f32.xlu0 %v5088
        %v5090 = vpop.xlane.xlu0 %5089
        %v5091 = vsel %vm615, %v5047, 0.0
        %5092 = vadd.xlane.f32.xlu0 %v5091
        %v5093 = vpop.xlane.xlu0 %5092
        %v5094 = vsel %vm615, %v5048, 0.0
        %5095 = vadd.xlane.f32.xlu0 %v5094
        %v5096 = vpop.xlane.xlu0 %5095
        %v5097 = vmul.f32 %v5051, %v670
        %v5098 = vmul.f32 %v5054, %v670
        %v5099 = vmul.f32 %v5057, %v670
        %v5100 = vmul.f32 %v5060, %v670
        %v5101 = vmul.f32 %v5063, %v670
        %v5102 = vmul.f32 %v5066, %v670
        %v5103 = vmul.f32 %v5069, %v670
        %v5104 = vmul.f32 %v5072, %v670
        %v5105 = vmul.f32 %v5075, %v670
        %v5106 = vmul.f32 %v5078, %v670
        %v5107 = vmul.f32 %v5081, %v670
        %v5108 = vmul.f32 %v5084, %v670
        %v5109 = vmul.f32 %v5087, %v670
        %v5110 = vmul.f32 %v5090, %v670
        %v5111 = vmul.f32 %v5093, %v670
        %v5112 = vmul.f32 %v5096, %v670
        %v5113 = vsub.f32 %v5033, %v5097
        %v5114 = vsub.f32 %v5034, %v5098
        %v5115 = vsub.f32 %v5035, %v5099
        %v5116 = vsub.f32 %v5036, %v5100
        %v5117 = vsub.f32 %v5037, %v5101
        %v5118 = vsub.f32 %v5038, %v5102
        %v5119 = vsub.f32 %v5039, %v5103
        %v5120 = vsub.f32 %v5040, %v5104
        %v5121 = vsub.f32 %v5041, %v5105
        %v5122 = vsub.f32 %v5042, %v5106
        %v5123 = vsub.f32 %v5043, %v5107
        %v5124 = vsub.f32 %v5044, %v5108
        %v5125 = vsub.f32 %v5045, %v5109
        %v5126 = vsub.f32 %v5046, %v5110
        %v5127 = vsub.f32 %v5047, %v5111
        %v5128 = vsub.f32 %v5048, %v5112
        %v5129 = vmul.f32 %v5113, %v5113
        %v5130 = vmul.f32 %v5114, %v5114
        %v5131 = vmul.f32 %v5115, %v5115
        %v5132 = vmul.f32 %v5116, %v5116
        %v5133 = vmul.f32 %v5117, %v5117
        %v5134 = vmul.f32 %v5118, %v5118
        %v5135 = vmul.f32 %v5119, %v5119
        %v5136 = vmul.f32 %v5120, %v5120
        %v5137 = vmul.f32 %v5121, %v5121
        %v5138 = vmul.f32 %v5122, %v5122
        %v5139 = vmul.f32 %v5123, %v5123
        %v5140 = vmul.f32 %v5124, %v5124
        %v5141 = vmul.f32 %v5125, %v5125
        %v5142 = vmul.f32 %v5126, %v5126
        %v5143 = vmul.f32 %v5127, %v5127
        %v5144 = vmul.f32 %v5128, %v5128
        %v5145 = vsel %vm615, %v5129, 0.0
        %5146 = vadd.xlane.f32.xlu0 %v5145
        %v5147 = vpop.xlane.xlu0 %5146
        %v5148 = vsel %vm615, %v5130, 0.0
        %5149 = vadd.xlane.f32.xlu0 %v5148
        %v5150 = vpop.xlane.xlu0 %5149
        %v5151 = vsel %vm615, %v5131, 0.0
        %5152 = vadd.xlane.f32.xlu0 %v5151
        %v5153 = vpop.xlane.xlu0 %5152
        %v5154 = vsel %vm615, %v5132, 0.0
        %5155 = vadd.xlane.f32.xlu0 %v5154
        %v5156 = vpop.xlane.xlu0 %5155
        %v5157 = vsel %vm615, %v5133, 0.0
        %5158 = vadd.xlane.f32.xlu0 %v5157
        %v5159 = vpop.xlane.xlu0 %5158
        %v5160 = vsel %vm615, %v5134, 0.0
        %5161 = vadd.xlane.f32.xlu0 %v5160
        %v5162 = vpop.xlane.xlu0 %5161
        %v5163 = vsel %vm615, %v5135, 0.0
        %5164 = vadd.xlane.f32.xlu0 %v5163
        %v5165 = vpop.xlane.xlu0 %5164
        %v5166 = vsel %vm615, %v5136, 0.0
        %5167 = vadd.xlane.f32.xlu0 %v5166
        %v5168 = vpop.xlane.xlu0 %5167
        %v5169 = vsel %vm615, %v5137, 0.0
        %5170 = vadd.xlane.f32.xlu0 %v5169
        %v5171 = vpop.xlane.xlu0 %5170
        %v5172 = vsel %vm615, %v5138, 0.0
        %5173 = vadd.xlane.f32.xlu0 %v5172
        %v5174 = vpop.xlane.xlu0 %5173
        %v5175 = vsel %vm615, %v5139, 0.0
        %5176 = vadd.xlane.f32.xlu0 %v5175
        %v5177 = vpop.xlane.xlu0 %5176
        %v5178 = vsel %vm615, %v5140, 0.0
        %5179 = vadd.xlane.f32.xlu0 %v5178
        %v5180 = vpop.xlane.xlu0 %5179
        %v5181 = vsel %vm615, %v5141, 0.0
        %5182 = vadd.xlane.f32.xlu0 %v5181
        %v5183 = vpop.xlane.xlu0 %5182
        %v5184 = vsel %vm615, %v5142, 0.0
        %5185 = vadd.xlane.f32.xlu0 %v5184
        %v5186 = vpop.xlane.xlu0 %5185
        %v5187 = vsel %vm615, %v5143, 0.0
        %5188 = vadd.xlane.f32.xlu0 %v5187
        %v5189 = vpop.xlane.xlu0 %5188
        %v5190 = vsel %vm615, %v5144, 0.0
        %5191 = vadd.xlane.f32.xlu0 %v5190
        %v5192 = vpop.xlane.xlu0 %5191
        %v5193 = vmul.f32 %v5147, %v670
        %v5194 = vmul.f32 %v5150, %v670
        %v5195 = vmul.f32 %v5153, %v670
        %v5196 = vmul.f32 %v5156, %v670
        %v5197 = vmul.f32 %v5159, %v670
        %v5198 = vmul.f32 %v5162, %v670
        %v5199 = vmul.f32 %v5165, %v670
        %v5200 = vmul.f32 %v5168, %v670
        %v5201 = vmul.f32 %v5171, %v670
        %v5202 = vmul.f32 %v5174, %v670
        %v5203 = vmul.f32 %v5177, %v670
        %v5204 = vmul.f32 %v5180, %v670
        %v5205 = vmul.f32 %v5183, %v670
        %v5206 = vmul.f32 %v5186, %v670
        %v5207 = vmul.f32 %v5189, %v670
        %v5208 = vmul.f32 %v5192, %v670
        %v5209 = vadd.f32 %v5193, 1e-05
        %v5210 = vadd.f32 %v5194, 1e-05
        %v5211 = vadd.f32 %v5195, 1e-05
        %v5212 = vadd.f32 %v5196, 1e-05
        %v5213 = vadd.f32 %v5197, 1e-05
        %v5214 = vadd.f32 %v5198, 1e-05
        %v5215 = vadd.f32 %v5199, 1e-05
        %v5216 = vadd.f32 %v5200, 1e-05
        %v5217 = vadd.f32 %v5201, 1e-05
        %v5218 = vadd.f32 %v5202, 1e-05
        %v5219 = vadd.f32 %v5203, 1e-05
        %v5220 = vadd.f32 %v5204, 1e-05
        %v5221 = vadd.f32 %v5205, 1e-05
        %v5222 = vadd.f32 %v5206, 1e-05
        %v5223 = vadd.f32 %v5207, 1e-05
        %v5224 = vadd.f32 %v5208, 1e-05
        %v5225 = vrsqrt.pop %v5209
        %v5226 = vmul.f32 %v5225, %v5209
        %v5227 = vmul.f32 %v5226, %v5225
        %v5228 = vmul.f32 0.5, %v5227
        %v5229 = vsub.f32 1.5, %v5228
        %v5230 = vmul.f32 %v5225, %v5229
        %vm5231 = vweird.f32 %v5209
        %vm5232 = vweird.f32 %v5225
        %vm5233 = vmor %vm5231, %vm5232
        %v5234 = vsel %vm5233, %v5225, %v5230
        %v5235 = vrsqrt.pop %v5210
        %v5236 = vmul.f32 %v5235, %v5210
        %v5237 = vmul.f32 %v5236, %v5235
        %v5238 = vmul.f32 0.5, %v5237
        %v5239 = vsub.f32 1.5, %v5238
        %v5240 = vmul.f32 %v5235, %v5239
        %vm5241 = vweird.f32 %v5210
        %vm5242 = vweird.f32 %v5235
        %vm5243 = vmor %vm5241, %vm5242
        %v5244 = vsel %vm5243, %v5235, %v5240
        %v5245 = vrsqrt.pop %v5211
        %v5246 = vmul.f32 %v5245, %v5211
        %v5247 = vmul.f32 %v5246, %v5245
        %v5248 = vmul.f32 0.5, %v5247
        %v5249 = vsub.f32 1.5, %v5248
        %v5250 = vmul.f32 %v5245, %v5249
        %vm5251 = vweird.f32 %v5211
        %vm5252 = vweird.f32 %v5245
        %vm5253 = vmor %vm5251, %vm5252
        %v5254 = vsel %vm5253, %v5245, %v5250
        %v5255 = vrsqrt.pop %v5212
        %v5256 = vmul.f32 %v5255, %v5212
        %v5257 = vmul.f32 %v5256, %v5255
        %v5258 = vmul.f32 0.5, %v5257
        %v5259 = vsub.f32 1.5, %v5258
        %v5260 = vmul.f32 %v5255, %v5259
        %vm5261 = vweird.f32 %v5212
        %vm5262 = vweird.f32 %v5255
        %vm5263 = vmor %vm5261, %vm5262
        %v5264 = vsel %vm5263, %v5255, %v5260
        %v5265 = vrsqrt.pop %v5213
        %v5266 = vmul.f32 %v5265, %v5213
        %v5267 = vmul.f32 %v5266, %v5265
        %v5268 = vmul.f32 0.5, %v5267
        %v5269 = vsub.f32 1.5, %v5268
        %v5270 = vmul.f32 %v5265, %v5269
        %vm5271 = vweird.f32 %v5213
        %vm5272 = vweird.f32 %v5265
        %vm5273 = vmor %vm5271, %vm5272
        %v5274 = vsel %vm5273, %v5265, %v5270
        %v5275 = vrsqrt.pop %v5214
        %v5276 = vmul.f32 %v5275, %v5214
        %v5277 = vmul.f32 %v5276, %v5275
        %v5278 = vmul.f32 0.5, %v5277
        %v5279 = vsub.f32 1.5, %v5278
        %v5280 = vmul.f32 %v5275, %v5279
        %vm5281 = vweird.f32 %v5214
        %vm5282 = vweird.f32 %v5275
        %vm5283 = vmor %vm5281, %vm5282
        %v5284 = vsel %vm5283, %v5275, %v5280
        %v5285 = vrsqrt.pop %v5215
        %v5286 = vmul.f32 %v5285, %v5215
        %v5287 = vmul.f32 %v5286, %v5285
        %v5288 = vmul.f32 0.5, %v5287
        %v5289 = vsub.f32 1.5, %v5288
        %v5290 = vmul.f32 %v5285, %v5289
        %vm5291 = vweird.f32 %v5215
        %vm5292 = vweird.f32 %v5285
        %vm5293 = vmor %vm5291, %vm5292
        %v5294 = vsel %vm5293, %v5285, %v5290
        %v5295 = vrsqrt.pop %v5216
        %v5296 = vmul.f32 %v5295, %v5216
        %v5297 = vmul.f32 %v5296, %v5295
        %v5298 = vmul.f32 0.5, %v5297
        %v5299 = vsub.f32 1.5, %v5298
        %v5300 = vmul.f32 %v5295, %v5299
        %vm5301 = vweird.f32 %v5216
        %vm5302 = vweird.f32 %v5295
        %vm5303 = vmor %vm5301, %vm5302
        %v5304 = vsel %vm5303, %v5295, %v5300
        %v5305 = vrsqrt.pop %v5217
        %v5306 = vmul.f32 %v5305, %v5217
        %v5307 = vmul.f32 %v5306, %v5305
        %v5308 = vmul.f32 0.5, %v5307
        %v5309 = vsub.f32 1.5, %v5308
        %v5310 = vmul.f32 %v5305, %v5309
        %vm5311 = vweird.f32 %v5217
        %vm5312 = vweird.f32 %v5305
        %vm5313 = vmor %vm5311, %vm5312
        %v5314 = vsel %vm5313, %v5305, %v5310
        %v5315 = vrsqrt.pop %v5218
        %v5316 = vmul.f32 %v5315, %v5218
        %v5317 = vmul.f32 %v5316, %v5315
        %v5318 = vmul.f32 0.5, %v5317
        %v5319 = vsub.f32 1.5, %v5318
        %v5320 = vmul.f32 %v5315, %v5319
        %vm5321 = vweird.f32 %v5218
        %vm5322 = vweird.f32 %v5315
        %vm5323 = vmor %vm5321, %vm5322
        %v5324 = vsel %vm5323, %v5315, %v5320
        %v5325 = vrsqrt.pop %v5219
        %v5326 = vmul.f32 %v5325, %v5219
        %v5327 = vmul.f32 %v5326, %v5325
        %v5328 = vmul.f32 0.5, %v5327
        %v5329 = vsub.f32 1.5, %v5328
        %v5330 = vmul.f32 %v5325, %v5329
        %vm5331 = vweird.f32 %v5219
        %vm5332 = vweird.f32 %v5325
        %vm5333 = vmor %vm5331, %vm5332
        %v5334 = vsel %vm5333, %v5325, %v5330
        %v5335 = vrsqrt.pop %v5220
        %v5336 = vmul.f32 %v5335, %v5220
        %v5337 = vmul.f32 %v5336, %v5335
        %v5338 = vmul.f32 0.5, %v5337
        %v5339 = vsub.f32 1.5, %v5338
        %v5340 = vmul.f32 %v5335, %v5339
        %vm5341 = vweird.f32 %v5220
        %vm5342 = vweird.f32 %v5335
        %vm5343 = vmor %vm5341, %vm5342
        %v5344 = vsel %vm5343, %v5335, %v5340
        %v5345 = vrsqrt.pop %v5221
        %v5346 = vmul.f32 %v5345, %v5221
        %v5347 = vmul.f32 %v5346, %v5345
        %v5348 = vmul.f32 0.5, %v5347
        %v5349 = vsub.f32 1.5, %v5348
        %v5350 = vmul.f32 %v5345, %v5349
        %vm5351 = vweird.f32 %v5221
        %vm5352 = vweird.f32 %v5345
        %vm5353 = vmor %vm5351, %vm5352
        %v5354 = vsel %vm5353, %v5345, %v5350
        %v5355 = vrsqrt.pop %v5222
        %v5356 = vmul.f32 %v5355, %v5222
        %v5357 = vmul.f32 %v5356, %v5355
        %v5358 = vmul.f32 0.5, %v5357
        %v5359 = vsub.f32 1.5, %v5358
        %v5360 = vmul.f32 %v5355, %v5359
        %vm5361 = vweird.f32 %v5222
        %vm5362 = vweird.f32 %v5355
        %vm5363 = vmor %vm5361, %vm5362
        %v5364 = vsel %vm5363, %v5355, %v5360
        %v5365 = vrsqrt.pop %v5223
        %v5366 = vmul.f32 %v5365, %v5223
        %v5367 = vmul.f32 %v5366, %v5365
        %v5368 = vmul.f32 0.5, %v5367
        %v5369 = vsub.f32 1.5, %v5368
        %v5370 = vmul.f32 %v5365, %v5369
        %vm5371 = vweird.f32 %v5223
        %vm5372 = vweird.f32 %v5365
        %vm5373 = vmor %vm5371, %vm5372
        %v5374 = vsel %vm5373, %v5365, %v5370
        %v5375 = vrsqrt.pop %v5224
        %v5376 = vmul.f32 %v5375, %v5224
        %v5377 = vmul.f32 %v5376, %v5375
        %v5378 = vmul.f32 0.5, %v5377
        %v5379 = vsub.f32 1.5, %v5378
        %v5380 = vmul.f32 %v5375, %v5379
        %vm5381 = vweird.f32 %v5224
        %vm5382 = vweird.f32 %v5375
        %vm5383 = vmor %vm5381, %vm5382
        %v5384 = vsel %vm5383, %v5375, %v5380
        %v5385 = vmul.f32 %v5113, %v5234
        %v5386 = vmul.f32 %v5114, %v5244
        %v5387 = vmul.f32 %v5115, %v5254
        %v5388 = vmul.f32 %v5116, %v5264
        %v5389 = vmul.f32 %v5117, %v5274
        %v5390 = vmul.f32 %v5118, %v5284
        %v5391 = vmul.f32 %v5119, %v5294
        %v5392 = vmul.f32 %v5120, %v5304
        %v5393 = vmul.f32 %v5121, %v5314
        %v5394 = vmul.f32 %v5122, %v5324
        %v5395 = vmul.f32 %v5123, %v5334
        %v5396 = vmul.f32 %v5124, %v5344
        %v5397 = vmul.f32 %v5125, %v5354
        %v5398 = vmul.f32 %v5126, %v5364
        %v5399 = vmul.f32 %v5127, %v5374
        %v5400 = vmul.f32 %v5128, %v5384
        %v5401 = vperm.slane %v1009, 4
        %v5402 = vmul.f32 %v5385, %v5401
        %v5403 = vmul.f32 %v5386, %v5401
        %v5404 = vmul.f32 %v5387, %v5401
        %v5405 = vmul.f32 %v5388, %v5401
        %v5406 = vmul.f32 %v5389, %v5401
        %v5407 = vmul.f32 %v5390, %v5401
        %v5408 = vmul.f32 %v5391, %v5401
        %v5409 = vmul.f32 %v5392, %v5401
        %v5410 = vmul.f32 %v5393, %v5401
        %v5411 = vmul.f32 %v5394, %v5401
        %v5412 = vmul.f32 %v5395, %v5401
        %v5413 = vmul.f32 %v5396, %v5401
        %v5414 = vmul.f32 %v5397, %v5401
        %v5415 = vmul.f32 %v5398, %v5401
        %v5416 = vmul.f32 %v5399, %v5401
        %v5417 = vmul.f32 %v5400, %v5401
        %v5418 = vperm.slane %v1009, 5
        %v5419 = vadd.f32 %v5402, %v5418
        %v5420 = vadd.f32 %v5403, %v5418
        %v5421 = vadd.f32 %v5404, %v5418
        %v5422 = vadd.f32 %v5405, %v5418
        %v5423 = vadd.f32 %v5406, %v5418
        %v5424 = vadd.f32 %v5407, %v5418
        %v5425 = vadd.f32 %v5408, %v5418
        %v5426 = vadd.f32 %v5409, %v5418
        %v5427 = vadd.f32 %v5410, %v5418
        %v5428 = vadd.f32 %v5411, %v5418
        %v5429 = vadd.f32 %v5412, %v5418
        %v5430 = vadd.f32 %v5413, %v5418
        %v5431 = vadd.f32 %v5414, %v5418
        %v5432 = vadd.f32 %v5415, %v5418
        %v5433 = vadd.f32 %v5416, %v5418
        %v5434 = vadd.f32 %v5417, %v5418
        %v5435 = vpack.c.bf16 %v5420, %v5419
        %v5436 = vpack.c.bf16 %v5422, %v5421
        %v5437 = vpack.c.bf16 %v5424, %v5423
        %v5438 = vpack.c.bf16 %v5426, %v5425
        %v5439 = vpack.c.bf16 %v5428, %v5427
        %v5440 = vpack.c.bf16 %v5430, %v5429
        %v5441 = vpack.c.bf16 %v5432, %v5431
        %v5442 = vpack.c.bf16 %v5434, %v5433
        %v5443 = vld [vmem:[%s6] sm:$0xf]
        %v5444 = vld [vmem:[%s6 + $0x4] sm:$0xf]
        %v5445 = vld [vmem:[%s6 + $0x8] sm:$0xf]
        %v5446 = vld [vmem:[%s6 + $0xc] sm:$0xf]
        %v5447 = vld [vmem:[%s7] sm:$0x1]
        %v5449 = vperm.slane %v5447, 0
        %v5455 = vunpack.c.l.b16 %v5443
        %v5456 = vunpack.c.l.b16 %v5444
        %v5457 = vunpack.c.l.b16 %v5445
        %v5458 = vunpack.c.l.b16 %v5446
        %v5459 = vpack.c.b16 %v5456, %v5455
        %v5460 = vpack.c.b16 %v5458, %v5457
        %v5464 = vsel %vm615, %v5435, 0
        %v5467 = vsel %vm615, %v5436, 0
        %v5470 = vsel %vm615, %v5437, 0
        %v5473 = vsel %vm615, %v5438, 0
        %v5476 = vsel %vm615, %v5439, 0
        %v5479 = vsel %vm615, %v5440, 0
        %v5482 = vsel %vm615, %v5441, 0
        %v5485 = vsel %vm615, %v5442, 0
        %5487 = vmatpush.bf16.msra.mxu0 0
        %5488 = vmatpush.bf16.msra.mxu0 0
        %5489 = vmatpush.bf16.msra.mxu0 0
        %5490 = vmatpush.bf16.msra.mxu0 0
        %5491 = vmatpush.bf16.msra.mxu0 0
        %5492 = vmatpush.bf16.msra.mxu0 0
        %5493 = vmatpush.bf16.msra.mxu0 %v5460
        %5494 = vmatpush.bf16.msra.mxu0 %v5459
        %5495 = vmatmul.bf16.gmra.mxu0 %v5464
        %v5496 = vpop.f32.mrf.mxu0
        %v5497 = vadd.f32 %v5449, %v5496
        %v5498 = vpop.f32.mrf.mxu0
        %v5499 = vadd.f32 %v5449, %v5498
        %5500 = vmatmul.bf16.gmra.mxu0 %v5467
        %v5501 = vpop.f32.mrf.mxu0
        %v5502 = vadd.f32 %v5449, %v5501
        %v5503 = vpop.f32.mrf.mxu0
        %v5504 = vadd.f32 %v5449, %v5503
        %5505 = vmatmul.bf16.gmra.mxu0 %v5470
        %v5506 = vpop.f32.mrf.mxu0
        %v5507 = vadd.f32 %v5449, %v5506
        %v5508 = vpop.f32.mrf.mxu0
        %v5509 = vadd.f32 %v5449, %v5508
        %5510 = vmatmul.bf16.gmra.mxu0 %v5473
        %v5511 = vpop.f32.mrf.mxu0
        %v5512 = vadd.f32 %v5449, %v5511
        %v5513 = vpop.f32.mrf.mxu0
        %v5514 = vadd.f32 %v5449, %v5513
        %5515 = vmatmul.bf16.gmra.mxu0 %v5476
        %v5516 = vpop.f32.mrf.mxu0
        %v5517 = vadd.f32 %v5449, %v5516
        %v5518 = vpop.f32.mrf.mxu0
        %v5519 = vadd.f32 %v5449, %v5518
        %5520 = vmatmul.bf16.gmra.mxu0 %v5479
        %v5521 = vpop.f32.mrf.mxu0
        %v5522 = vadd.f32 %v5449, %v5521
        %v5523 = vpop.f32.mrf.mxu0
        %v5524 = vadd.f32 %v5449, %v5523
        %5525 = vmatmul.bf16.gmra.mxu0 %v5482
        %v5526 = vpop.f32.mrf.mxu0
        %v5527 = vadd.f32 %v5449, %v5526
        %v5528 = vpop.f32.mrf.mxu0
        %v5529 = vadd.f32 %v5449, %v5528
        %5530 = vmatmul.bf16.gmra.mxu0 %v5485
        %v5531 = vpop.f32.mrf.mxu0
        %v5532 = vadd.f32 %v5449, %v5531
        %v5533 = vpop.f32.mrf.mxu0
        %v5534 = vadd.f32 %v5449, %v5533
        %5535 = vdwg.mxu0
        %v5536 = vmul.f32 %v5497, %v5497
        %v5537 = vmul.f32 %v5499, %v5499
        %v5538 = vmul.f32 %v5502, %v5502
        %v5539 = vmul.f32 %v5504, %v5504
        %v5540 = vmul.f32 %v5507, %v5507
        %v5541 = vmul.f32 %v5509, %v5509
        %v5542 = vmul.f32 %v5512, %v5512
        %v5543 = vmul.f32 %v5514, %v5514
        %v5544 = vmul.f32 %v5517, %v5517
        %v5545 = vmul.f32 %v5519, %v5519
        %v5546 = vmul.f32 %v5522, %v5522
        %v5547 = vmul.f32 %v5524, %v5524
        %v5548 = vmul.f32 %v5527, %v5527
        %v5549 = vmul.f32 %v5529, %v5529
        %v5550 = vmul.f32 %v5532, %v5532
        %v5551 = vmul.f32 %v5534, %v5534
        %v5552 = vmul.f32 %v5497, %v5536
        %v5553 = vmul.f32 %v5499, %v5537
        %v5554 = vmul.f32 %v5502, %v5538
        %v5555 = vmul.f32 %v5504, %v5539
        %v5556 = vmul.f32 %v5507, %v5540
        %v5557 = vmul.f32 %v5509, %v5541
        %v5558 = vmul.f32 %v5512, %v5542
        %v5559 = vmul.f32 %v5514, %v5543
        %v5560 = vmul.f32 %v5517, %v5544
        %v5561 = vmul.f32 %v5519, %v5545
        %v5562 = vmul.f32 %v5522, %v5546
        %v5563 = vmul.f32 %v5524, %v5547
        %v5564 = vmul.f32 %v5527, %v5548
        %v5565 = vmul.f32 %v5529, %v5549
        %v5566 = vmul.f32 %v5532, %v5550
        %v5567 = vmul.f32 %v5534, %v5551
        %v5568 = vmul.f32 %v5552, 0.044715
        %v5569 = vmul.f32 %v5553, 0.044715
        %v5570 = vmul.f32 %v5554, 0.044715
        %v5571 = vmul.f32 %v5555, 0.044715
        %v5572 = vmul.f32 %v5556, 0.044715
        %v5573 = vmul.f32 %v5557, 0.044715
        %v5574 = vmul.f32 %v5558, 0.044715
        %v5575 = vmul.f32 %v5559, 0.044715
        %v5576 = vmul.f32 %v5560, 0.044715
        %v5577 = vmul.f32 %v5561, 0.044715
        %v5578 = vmul.f32 %v5562, 0.044715
        %v5579 = vmul.f32 %v5563, 0.044715
        %v5580 = vmul.f32 %v5564, 0.044715
        %v5581 = vmul.f32 %v5565, 0.044715
        %v5582 = vmul.f32 %v5566, 0.044715
        %v5583 = vmul.f32 %v5567, 0.044715
        %v5584 = vadd.f32 %v5497, %v5568
        %v5585 = vadd.f32 %v5499, %v5569
        %v5586 = vadd.f32 %v5502, %v5570
        %v5587 = vadd.f32 %v5504, %v5571
        %v5588 = vadd.f32 %v5507, %v5572
        %v5589 = vadd.f32 %v5509, %v5573
        %v5590 = vadd.f32 %v5512, %v5574
        %v5591 = vadd.f32 %v5514, %v5575
        %v5592 = vadd.f32 %v5517, %v5576
        %v5593 = vadd.f32 %v5519, %v5577
        %v5594 = vadd.f32 %v5522, %v5578
        %v5595 = vadd.f32 %v5524, %v5579
        %v5596 = vadd.f32 %v5527, %v5580
        %v5597 = vadd.f32 %v5529, %v5581
        %v5598 = vadd.f32 %v5532, %v5582
        %v5599 = vadd.f32 %v5534, %v5583
        %v5600 = vmul.f32 %v5584, 0.7978846
        %v5601 = vmul.f32 %v5585, 0.7978846
        %v5602 = vmul.f32 %v5586, 0.7978846
        %v5603 = vmul.f32 %v5587, 0.7978846
        %v5604 = vmul.f32 %v5588, 0.7978846
        %v5605 = vmul.f32 %v5589, 0.7978846
        %v5606 = vmul.f32 %v5590, 0.7978846
        %v5607 = vmul.f32 %v5591, 0.7978846
        %v5608 = vmul.f32 %v5592, 0.7978846
        %v5609 = vmul.f32 %v5593, 0.7978846
        %v5610 = vmul.f32 %v5594, 0.7978846
        %v5611 = vmul.f32 %v5595, 0.7978846
        %v5612 = vmul.f32 %v5596, 0.7978846
        %v5613 = vmul.f32 %v5597, 0.7978846
        %v5614 = vmul.f32 %v5598, 0.7978846
        %v5615 = vmul.f32 %v5599, 0.7978846
        %v5616 = vtanh.pop %v5600
        %v5617 = vtanh.pop %v5601
        %v5618 = vtanh.pop %v5602
        %v5619 = vtanh.pop %v5603
        %v5620 = vtanh.pop %v5604
        %v5621 = vtanh.pop %v5605
        %v5622 = vtanh.pop %v5606
        %v5623 = vtanh.pop %v5607
        %v5624 = vtanh.pop %v5608
        %v5625 = vtanh.pop %v5609
        %v5626 = vtanh.pop %v5610
        %v5627 = vtanh.pop %v5611
        %v5628 = vtanh.pop %v5612
        %v5629 = vtanh.pop %v5613
        %v5630 = vtanh.pop %v5614
        %v5631 = vtanh.pop %v5615
        %v5632 = vadd.f32 %v5616, 1.0
        %v5633 = vadd.f32 %v5617, 1.0
        %v5634 = vadd.f32 %v5618, 1.0
        %v5635 = vadd.f32 %v5619, 1.0
        %v5636 = vadd.f32 %v5620, 1.0
        %v5637 = vadd.f32 %v5621, 1.0
        %v5638 = vadd.f32 %v5622, 1.0
        %v5639 = vadd.f32 %v5623, 1.0
        %v5640 = vadd.f32 %v5624, 1.0
        %v5641 = vadd.f32 %v5625, 1.0
        %v5642 = vadd.f32 %v5626, 1.0
        %v5643 = vadd.f32 %v5627, 1.0
        %v5644 = vadd.f32 %v5628, 1.0
        %v5645 = vadd.f32 %v5629, 1.0
        %v5646 = vadd.f32 %v5630, 1.0
        %v5647 = vadd.f32 %v5631, 1.0
        %v5648 = vmul.f32 %v5632, 0.5
        %v5649 = vmul.f32 %v5633, 0.5
        %v5650 = vmul.f32 %v5634, 0.5
        %v5651 = vmul.f32 %v5635, 0.5
        %v5652 = vmul.f32 %v5636, 0.5
        %v5653 = vmul.f32 %v5637, 0.5
        %v5654 = vmul.f32 %v5638, 0.5
        %v5655 = vmul.f32 %v5639, 0.5
        %v5656 = vmul.f32 %v5640, 0.5
        %v5657 = vmul.f32 %v5641, 0.5
        %v5658 = vmul.f32 %v5642, 0.5
        %v5659 = vmul.f32 %v5643, 0.5
        %v5660 = vmul.f32 %v5644, 0.5
        %v5661 = vmul.f32 %v5645, 0.5
        %v5662 = vmul.f32 %v5646, 0.5
        %v5663 = vmul.f32 %v5647, 0.5
        %v5664 = vmul.f32 %v5497, %v5648
        %v5665 = vmul.f32 %v5499, %v5649
        %v5666 = vmul.f32 %v5502, %v5650
        %v5667 = vmul.f32 %v5504, %v5651
        %v5668 = vmul.f32 %v5507, %v5652
        %v5669 = vmul.f32 %v5509, %v5653
        %v5670 = vmul.f32 %v5512, %v5654
        %v5671 = vmul.f32 %v5514, %v5655
        %v5672 = vmul.f32 %v5517, %v5656
        %v5673 = vmul.f32 %v5519, %v5657
        %v5674 = vmul.f32 %v5522, %v5658
        %v5675 = vmul.f32 %v5524, %v5659
        %v5676 = vmul.f32 %v5527, %v5660
        %v5677 = vmul.f32 %v5529, %v5661
        %v5678 = vmul.f32 %v5532, %v5662
        %v5679 = vmul.f32 %v5534, %v5663
        %v5680 = vpack.c.bf16 %v5665, %v5664
        %v5681 = vpack.c.bf16 %v5667, %v5666
        %v5682 = vpack.c.bf16 %v5669, %v5668
        %v5683 = vpack.c.bf16 %v5671, %v5670
        %v5684 = vpack.c.bf16 %v5673, %v5672
        %v5685 = vpack.c.bf16 %v5675, %v5674
        %v5686 = vpack.c.bf16 %v5677, %v5676
        %v5687 = vpack.c.bf16 %v5679, %v5678
        %v5688 = vld [vmem:[%s8] sm:$0xf]
        %v5689 = vld [vmem:[%s8 + $0x4] sm:$0xf]
        %v5690 = vld [vmem:[%s8 + $0x8] sm:$0xf]
        %v5691 = vld [vmem:[%s8 + $0xc] sm:$0xf]
        %v5692 = vld [vmem:[%s8 + $0x10] sm:$0xf]
        %v5693 = vld [vmem:[%s8 + $0x14] sm:$0xf]
        %v5694 = vld [vmem:[%s8 + $0x18] sm:$0xf]
        %v5695 = vld [vmem:[%s8 + $0x1c] sm:$0xf]
        %v5696 = vperm.slane %v1009, 6
        %v5705 = vunpack.c.l.b16 %v5688
        %v5706 = vunpack.c.l.b16 %v5689
        %v5707 = vunpack.c.l.b16 %v5690
        %v5708 = vunpack.c.l.b16 %v5691
        %v5709 = vunpack.c.l.b16 %v5692
        %v5710 = vunpack.c.l.b16 %v5693
        %v5711 = vunpack.c.l.b16 %v5694
        %v5712 = vunpack.c.l.b16 %v5695
        %v5713 = vpack.c.b16 %v5706, %v5705
        %v5714 = vpack.c.b16 %v5708, %v5707
        %v5715 = vpack.c.b16 %v5710, %v5709
        %v5716 = vpack.c.b16 %v5712, %v5711
        %vm5721 = vcmask 523264
        %v5723 = vsel %vm5721, %v5680, 0
        %v5726 = vsel %vm5721, %v5681, 0
        %v5729 = vsel %vm5721, %v5682, 0
        %v5732 = vsel %vm5721, %v5683, 0
        %v5735 = vsel %vm5721, %v5684, 0
        %v5738 = vsel %vm5721, %v5685, 0
        %v5741 = vsel %vm5721, %v5686, 0
        %v5744 = vsel %vm5721, %v5687, 0
        %5746 = vmatpush.bf16.msra.mxu0 0
        %5747 = vmatpush.bf16.msra.mxu0 0
        %5748 = vmatpush.bf16.msra.mxu0 0
        %5749 = vmatpush.bf16.msra.mxu0 0
        %5750 = vmatpush.bf16.msra.mxu0 %v5716
        %5751 = vmatpush.bf16.msra.mxu0 %v5715
        %5752 = vmatpush.bf16.msra.mxu0 %v5714
        %5753 = vmatpush.bf16.msra.mxu0 %v5713
        %5754 = vmatmul.bf16.gmra.mxu0 %v5723
        %v5755 = vpop.f32.mrf.mxu0
        %v5756 = vadd.f32 %v5696, %v5755
        %v5757 = vpop.f32.mrf.mxu0
        %v5758 = vadd.f32 %v5696, %v5757
        %5759 = vmatmul.bf16.gmra.mxu0 %v5726
        %v5760 = vpop.f32.mrf.mxu0
        %v5761 = vadd.f32 %v5696, %v5760
        %v5762 = vpop.f32.mrf.mxu0
        %v5763 = vadd.f32 %v5696, %v5762
        %5764 = vmatmul.bf16.gmra.mxu0 %v5729
        %v5765 = vpop.f32.mrf.mxu0
        %v5766 = vadd.f32 %v5696, %v5765
        %v5767 = vpop.f32.mrf.mxu0
        %v5768 = vadd.f32 %v5696, %v5767
        %5769 = vmatmul.bf16.gmra.mxu0 %v5732
        %v5770 = vpop.f32.mrf.mxu0
        %v5771 = vadd.f32 %v5696, %v5770
        %v5772 = vpop.f32.mrf.mxu0
        %v5773 = vadd.f32 %v5696, %v5772
        %5774 = vmatmul.bf16.gmra.mxu0 %v5735
        %v5775 = vpop.f32.mrf.mxu0
        %v5776 = vadd.f32 %v5696, %v5775
        %v5777 = vpop.f32.mrf.mxu0
        %v5778 = vadd.f32 %v5696, %v5777
        %5779 = vmatmul.bf16.gmra.mxu0 %v5738
        %v5780 = vpop.f32.mrf.mxu0
        %v5781 = vadd.f32 %v5696, %v5780
        %v5782 = vpop.f32.mrf.mxu0
        %v5783 = vadd.f32 %v5696, %v5782
        %5784 = vmatmul.bf16.gmra.mxu0 %v5741
        %v5785 = vpop.f32.mrf.mxu0
        %v5786 = vadd.f32 %v5696, %v5785
        %v5787 = vpop.f32.mrf.mxu0
        %v5788 = vadd.f32 %v5696, %v5787
        %5789 = vmatmul.bf16.gmra.mxu0 %v5744
        %v5790 = vpop.f32.mrf.mxu0
        %v5791 = vadd.f32 %v5696, %v5790
        %v5792 = vpop.f32.mrf.mxu0
        %v5793 = vadd.f32 %v5696, %v5792
        %5794 = vdwg.mxu0
        %v5795 = vadd.f32 %v5419, %v5756
        %v5796 = vadd.f32 %v5420, %v5758
        %v5797 = vadd.f32 %v5421, %v5761
        %v5798 = vadd.f32 %v5422, %v5763
        %v5799 = vadd.f32 %v5423, %v5766
        %v5800 = vadd.f32 %v5424, %v5768
        %v5801 = vadd.f32 %v5425, %v5771
        %v5802 = vadd.f32 %v5426, %v5773
        %v5803 = vadd.f32 %v5427, %v5776
        %v5804 = vadd.f32 %v5428, %v5778
        %v5805 = vadd.f32 %v5429, %v5781
        %v5806 = vadd.f32 %v5430, %v5783
        %v5807 = vadd.f32 %v5431, %v5786
        %v5808 = vadd.f32 %v5432, %v5788
        %v5809 = vadd.f32 %v5433, %v5791
        %v5810 = vadd.f32 %v5434, %v5793
        %v5811 = vsel %vm615, %v5795, 0.0
        %5812 = vadd.xlane.f32.xlu0 %v5811
        %v5813 = vpop.xlane.xlu0 %5812
        %v5814 = vsel %vm615, %v5796, 0.0
        %5815 = vadd.xlane.f32.xlu0 %v5814
        %v5816 = vpop.xlane.xlu0 %5815
        %v5817 = vsel %vm615, %v5797, 0.0
        %5818 = vadd.xlane.f32.xlu0 %v5817
        %v5819 = vpop.xlane.xlu0 %5818
        %v5820 = vsel %vm615, %v5798, 0.0
        %5821 = vadd.xlane.f32.xlu0 %v5820
        %v5822 = vpop.xlane.xlu0 %5821
        %v5823 = vsel %vm615, %v5799, 0.0
        %5824 = vadd.xlane.f32.xlu0 %v5823
        %v5825 = vpop.xlane.xlu0 %5824
        %v5826 = vsel %vm615, %v5800, 0.0
        %5827 = vadd.xlane.f32.xlu0 %v5826
        %v5828 = vpop.xlane.xlu0 %5827
        %v5829 = vsel %vm615, %v5801, 0.0
        %5830 = vadd.xlane.f32.xlu0 %v5829
        %v5831 = vpop.xlane.xlu0 %5830
        %v5832 = vsel %vm615, %v5802, 0.0
        %5833 = vadd.xlane.f32.xlu0 %v5832
        %v5834 = vpop.xlane.xlu0 %5833
        %v5835 = vsel %vm615, %v5803, 0.0
        %5836 = vadd.xlane.f32.xlu0 %v5835
        %v5837 = vpop.xlane.xlu0 %5836
        %v5838 = vsel %vm615, %v5804, 0.0
        %5839 = vadd.xlane.f32.xlu0 %v5838
        %v5840 = vpop.xlane.xlu0 %5839
        %v5841 = vsel %vm615, %v5805, 0.0
        %5842 = vadd.xlane.f32.xlu0 %v5841
        %v5843 = vpop.xlane.xlu0 %5842
        %v5844 = vsel %vm615, %v5806, 0.0
        %5845 = vadd.xlane.f32.xlu0 %v5844
        %v5846 = vpop.xlane.xlu0 %5845
        %v5847 = vsel %vm615, %v5807, 0.0
        %5848 = vadd.xlane.f32.xlu0 %v5847
        %v5849 = vpop.xlane.xlu0 %5848
        %v5850 = vsel %vm615, %v5808, 0.0
        %5851 = vadd.xlane.f32.xlu0 %v5850
        %v5852 = vpop.xlane.xlu0 %5851
        %v5853 = vsel %vm615, %v5809, 0.0
        %5854 = vadd.xlane.f32.xlu0 %v5853
        %v5855 = vpop.xlane.xlu0 %5854
        %v5856 = vsel %vm615, %v5810, 0.0
        %5857 = vadd.xlane.f32.xlu0 %v5856
        %v5858 = vpop.xlane.xlu0 %5857
        %v5859 = vmul.f32 %v5813, %v670
        %v5860 = vmul.f32 %v5816, %v670
        %v5861 = vmul.f32 %v5819, %v670
        %v5862 = vmul.f32 %v5822, %v670
        %v5863 = vmul.f32 %v5825, %v670
        %v5864 = vmul.f32 %v5828, %v670
        %v5865 = vmul.f32 %v5831, %v670
        %v5866 = vmul.f32 %v5834, %v670
        %v5867 = vmul.f32 %v5837, %v670
        %v5868 = vmul.f32 %v5840, %v670
        %v5869 = vmul.f32 %v5843, %v670
        %v5870 = vmul.f32 %v5846, %v670
        %v5871 = vmul.f32 %v5849, %v670
        %v5872 = vmul.f32 %v5852, %v670
        %v5873 = vmul.f32 %v5855, %v670
        %v5874 = vmul.f32 %v5858, %v670
        %v5875 = vsub.f32 %v5795, %v5859
        %v5876 = vsub.f32 %v5796, %v5860
        %v5877 = vsub.f32 %v5797, %v5861
        %v5878 = vsub.f32 %v5798, %v5862
        %v5879 = vsub.f32 %v5799, %v5863
        %v5880 = vsub.f32 %v5800, %v5864
        %v5881 = vsub.f32 %v5801, %v5865
        %v5882 = vsub.f32 %v5802, %v5866
        %v5883 = vsub.f32 %v5803, %v5867
        %v5884 = vsub.f32 %v5804, %v5868
        %v5885 = vsub.f32 %v5805, %v5869
        %v5886 = vsub.f32 %v5806, %v5870
        %v5887 = vsub.f32 %v5807, %v5871
        %v5888 = vsub.f32 %v5808, %v5872
        %v5889 = vsub.f32 %v5809, %v5873
        %v5890 = vsub.f32 %v5810, %v5874
        %v5891 = vmul.f32 %v5875, %v5875
        %v5892 = vmul.f32 %v5876, %v5876
        %v5893 = vmul.f32 %v5877, %v5877
        %v5894 = vmul.f32 %v5878, %v5878
        %v5895 = vmul.f32 %v5879, %v5879
        %v5896 = vmul.f32 %v5880, %v5880
        %v5897 = vmul.f32 %v5881, %v5881
        %v5898 = vmul.f32 %v5882, %v5882
        %v5899 = vmul.f32 %v5883, %v5883
        %v5900 = vmul.f32 %v5884, %v5884
        %v5901 = vmul.f32 %v5885, %v5885
        %v5902 = vmul.f32 %v5886, %v5886
        %v5903 = vmul.f32 %v5887, %v5887
        %v5904 = vmul.f32 %v5888, %v5888
        %v5905 = vmul.f32 %v5889, %v5889
        %v5906 = vmul.f32 %v5890, %v5890
        %v5907 = vsel %vm615, %v5891, 0.0
        %5908 = vadd.xlane.f32.xlu0 %v5907
        %v5909 = vpop.xlane.xlu0 %5908
        %v5910 = vsel %vm615, %v5892, 0.0
        %5911 = vadd.xlane.f32.xlu0 %v5910
        %v5912 = vpop.xlane.xlu0 %5911
        %v5913 = vsel %vm615, %v5893, 0.0
        %5914 = vadd.xlane.f32.xlu0 %v5913
        %v5915 = vpop.xlane.xlu0 %5914
        %v5916 = vsel %vm615, %v5894, 0.0
        %5917 = vadd.xlane.f32.xlu0 %v5916
        %v5918 = vpop.xlane.xlu0 %5917
        %v5919 = vsel %vm615, %v5895, 0.0
        %5920 = vadd.xlane.f32.xlu0 %v5919
        %v5921 = vpop.xlane.xlu0 %5920
        %v5922 = vsel %vm615, %v5896, 0.0
        %5923 = vadd.xlane.f32.xlu0 %v5922
        %v5924 = vpop.xlane.xlu0 %5923
        %v5925 = vsel %vm615, %v5897, 0.0
        %5926 = vadd.xlane.f32.xlu0 %v5925
        %v5927 = vpop.xlane.xlu0 %5926
        %v5928 = vsel %vm615, %v5898, 0.0
        %5929 = vadd.xlane.f32.xlu0 %v5928
        %v5930 = vpop.xlane.xlu0 %5929
        %v5931 = vsel %vm615, %v5899, 0.0
        %5932 = vadd.xlane.f32.xlu0 %v5931
        %v5933 = vpop.xlane.xlu0 %5932
        %v5934 = vsel %vm615, %v5900, 0.0
        %5935 = vadd.xlane.f32.xlu0 %v5934
        %v5936 = vpop.xlane.xlu0 %5935
        %v5937 = vsel %vm615, %v5901, 0.0
        %5938 = vadd.xlane.f32.xlu0 %v5937
        %v5939 = vpop.xlane.xlu0 %5938
        %v5940 = vsel %vm615, %v5902, 0.0
        %5941 = vadd.xlane.f32.xlu0 %v5940
        %v5942 = vpop.xlane.xlu0 %5941
        %v5943 = vsel %vm615, %v5903, 0.0
        %5944 = vadd.xlane.f32.xlu0 %v5943
        %v5945 = vpop.xlane.xlu0 %5944
        %v5946 = vsel %vm615, %v5904, 0.0
        %5947 = vadd.xlane.f32.xlu0 %v5946
        %v5948 = vpop.xlane.xlu0 %5947
        %v5949 = vsel %vm615, %v5905, 0.0
        %5950 = vadd.xlane.f32.xlu0 %v5949
        %v5951 = vpop.xlane.xlu0 %5950
        %v5952 = vsel %vm615, %v5906, 0.0
        %5953 = vadd.xlane.f32.xlu0 %v5952
        %v5954 = vpop.xlane.xlu0 %5953
        %v5955 = vmul.f32 %v5909, %v670
        %v5956 = vmul.f32 %v5912, %v670
        %v5957 = vmul.f32 %v5915, %v670
        %v5958 = vmul.f32 %v5918, %v670
        %v5959 = vmul.f32 %v5921, %v670
        %v5960 = vmul.f32 %v5924, %v670
        %v5961 = vmul.f32 %v5927, %v670
        %v5962 = vmul.f32 %v5930, %v670
        %v5963 = vmul.f32 %v5933, %v670
        %v5964 = vmul.f32 %v5936, %v670
        %v5965 = vmul.f32 %v5939, %v670
        %v5966 = vmul.f32 %v5942, %v670
        %v5967 = vmul.f32 %v5945, %v670
        %v5968 = vmul.f32 %v5948, %v670
        %v5969 = vmul.f32 %v5951, %v670
        %v5970 = vmul.f32 %v5954, %v670
        %v5971 = vadd.f32 %v5955, 1e-05
        %v5972 = vadd.f32 %v5956, 1e-05
        %v5973 = vadd.f32 %v5957, 1e-05
        %v5974 = vadd.f32 %v5958, 1e-05
        %v5975 = vadd.f32 %v5959, 1e-05
        %v5976 = vadd.f32 %v5960, 1e-05
        %v5977 = vadd.f32 %v5961, 1e-05
        %v5978 = vadd.f32 %v5962, 1e-05
        %v5979 = vadd.f32 %v5963, 1e-05
        %v5980 = vadd.f32 %v5964, 1e-05
        %v5981 = vadd.f32 %v5965, 1e-05
        %v5982 = vadd.f32 %v5966, 1e-05
        %v5983 = vadd.f32 %v5967, 1e-05
        %v5984 = vadd.f32 %v5968, 1e-05
        %v5985 = vadd.f32 %v5969, 1e-05
        %v5986 = vadd.f32 %v5970, 1e-05
        %v5987 = vrsqrt.pop %v5971
        %v5988 = vmul.f32 %v5987, %v5971
        %v5989 = vmul.f32 %v5988, %v5987
        %v5990 = vmul.f32 0.5, %v5989
        %v5991 = vsub.f32 1.5, %v5990
        %v5992 = vmul.f32 %v5987, %v5991
        %vm5993 = vweird.f32 %v5971
        %vm5994 = vweird.f32 %v5987
        %vm5995 = vmor %vm5993, %vm5994
        %v5996 = vsel %vm5995, %v5987, %v5992
        %v5997 = vrsqrt.pop %v5972
        %v5998 = vmul.f32 %v5997, %v5972
        %v5999 = vmul.f32 %v5998, %v5997
        %v6000 = vmul.f32 0.5, %v5999
        %v6001 = vsub.f32 1.5, %v6000
        %v6002 = vmul.f32 %v5997, %v6001
        %vm6003 = vweird.f32 %v5972
        %vm6004 = vweird.f32 %v5997
        %vm6005 = vmor %vm6003, %vm6004
        %v6006 = vsel %vm6005, %v5997, %v6002
        %v6007 = vrsqrt.pop %v5973
        %v6008 = vmul.f32 %v6007, %v5973
        %v6009 = vmul.f32 %v6008, %v6007
        %v6010 = vmul.f32 0.5, %v6009
        %v6011 = vsub.f32 1.5, %v6010
        %v6012 = vmul.f32 %v6007, %v6011
        %vm6013 = vweird.f32 %v5973
        %vm6014 = vweird.f32 %v6007
        %vm6015 = vmor %vm6013, %vm6014
        %v6016 = vsel %vm6015, %v6007, %v6012
        %v6017 = vrsqrt.pop %v5974
        %v6018 = vmul.f32 %v6017, %v5974
        %v6019 = vmul.f32 %v6018, %v6017
        %v6020 = vmul.f32 0.5, %v6019
        %v6021 = vsub.f32 1.5, %v6020
        %v6022 = vmul.f32 %v6017, %v6021
        %vm6023 = vweird.f32 %v5974
        %vm6024 = vweird.f32 %v6017
        %vm6025 = vmor %vm6023, %vm6024
        %v6026 = vsel %vm6025, %v6017, %v6022
        %v6027 = vrsqrt.pop %v5975
        %v6028 = vmul.f32 %v6027, %v5975
        %v6029 = vmul.f32 %v6028, %v6027
        %v6030 = vmul.f32 0.5, %v6029
        %v6031 = vsub.f32 1.5, %v6030
        %v6032 = vmul.f32 %v6027, %v6031
        %vm6033 = vweird.f32 %v5975
        %vm6034 = vweird.f32 %v6027
        %vm6035 = vmor %vm6033, %vm6034
        %v6036 = vsel %vm6035, %v6027, %v6032
        %v6037 = vrsqrt.pop %v5976
        %v6038 = vmul.f32 %v6037, %v5976
        %v6039 = vmul.f32 %v6038, %v6037
        %v6040 = vmul.f32 0.5, %v6039
        %v6041 = vsub.f32 1.5, %v6040
        %v6042 = vmul.f32 %v6037, %v6041
        %vm6043 = vweird.f32 %v5976
        %vm6044 = vweird.f32 %v6037
        %vm6045 = vmor %vm6043, %vm6044
        %v6046 = vsel %vm6045, %v6037, %v6042
        %v6047 = vrsqrt.pop %v5977
        %v6048 = vmul.f32 %v6047, %v5977
        %v6049 = vmul.f32 %v6048, %v6047
        %v6050 = vmul.f32 0.5, %v6049
        %v6051 = vsub.f32 1.5, %v6050
        %v6052 = vmul.f32 %v6047, %v6051
        %vm6053 = vweird.f32 %v5977
        %vm6054 = vweird.f32 %v6047
        %vm6055 = vmor %vm6053, %vm6054
        %v6056 = vsel %vm6055, %v6047, %v6052
        %v6057 = vrsqrt.pop %v5978
        %v6058 = vmul.f32 %v6057, %v5978
        %v6059 = vmul.f32 %v6058, %v6057
        %v6060 = vmul.f32 0.5, %v6059
        %v6061 = vsub.f32 1.5, %v6060
        %v6062 = vmul.f32 %v6057, %v6061
        %vm6063 = vweird.f32 %v5978
        %vm6064 = vweird.f32 %v6057
        %vm6065 = vmor %vm6063, %vm6064
        %v6066 = vsel %vm6065, %v6057, %v6062
        %v6067 = vrsqrt.pop %v5979
        %v6068 = vmul.f32 %v6067, %v5979
        %v6069 = vmul.f32 %v6068, %v6067
        %v6070 = vmul.f32 0.5, %v6069
        %v6071 = vsub.f32 1.5, %v6070
        %v6072 = vmul.f32 %v6067, %v6071
        %vm6073 = vweird.f32 %v5979
        %vm6074 = vweird.f32 %v6067
        %vm6075 = vmor %vm6073, %vm6074
        %v6076 = vsel %vm6075, %v6067, %v6072
        %v6077 = vrsqrt.pop %v5980
        %v6078 = vmul.f32 %v6077, %v5980
        %v6079 = vmul.f32 %v6078, %v6077
        %v6080 = vmul.f32 0.5, %v6079
        %v6081 = vsub.f32 1.5, %v6080
        %v6082 = vmul.f32 %v6077, %v6081
        %vm6083 = vweird.f32 %v5980
        %vm6084 = vweird.f32 %v6077
        %vm6085 = vmor %vm6083, %vm6084
        %v6086 = vsel %vm6085, %v6077, %v6082
        %v6087 = vrsqrt.pop %v5981
        %v6088 = vmul.f32 %v6087, %v5981
        %v6089 = vmul.f32 %v6088, %v6087
        %v6090 = vmul.f32 0.5, %v6089
        %v6091 = vsub.f32 1.5, %v6090
        %v6092 = vmul.f32 %v6087, %v6091
        %vm6093 = vweird.f32 %v5981
        %vm6094 = vweird.f32 %v6087
        %vm6095 = vmor %vm6093, %vm6094
        %v6096 = vsel %vm6095, %v6087, %v6092
        %v6097 = vrsqrt.pop %v5982
        %v6098 = vmul.f32 %v6097, %v5982
        %v6099 = vmul.f32 %v6098, %v6097
        %v6100 = vmul.f32 0.5, %v6099
        %v6101 = vsub.f32 1.5, %v6100
        %v6102 = vmul.f32 %v6097, %v6101
        %vm6103 = vweird.f32 %v5982
        %vm6104 = vweird.f32 %v6097
        %vm6105 = vmor %vm6103, %vm6104
        %v6106 = vsel %vm6105, %v6097, %v6102
        %v6107 = vrsqrt.pop %v5983
        %v6108 = vmul.f32 %v6107, %v5983
        %v6109 = vmul.f32 %v6108, %v6107
        %v6110 = vmul.f32 0.5, %v6109
        %v6111 = vsub.f32 1.5, %v6110
        %v6112 = vmul.f32 %v6107, %v6111
        %vm6113 = vweird.f32 %v5983
        %vm6114 = vweird.f32 %v6107
        %vm6115 = vmor %vm6113, %vm6114
        %v6116 = vsel %vm6115, %v6107, %v6112
        %v6117 = vrsqrt.pop %v5984
        %v6118 = vmul.f32 %v6117, %v5984
        %v6119 = vmul.f32 %v6118, %v6117
        %v6120 = vmul.f32 0.5, %v6119
        %v6121 = vsub.f32 1.5, %v6120
        %v6122 = vmul.f32 %v6117, %v6121
        %vm6123 = vweird.f32 %v5984
        %vm6124 = vweird.f32 %v6117
        %vm6125 = vmor %vm6123, %vm6124
        %v6126 = vsel %vm6125, %v6117, %v6122
        %v6127 = vrsqrt.pop %v5985
        %v6128 = vmul.f32 %v6127, %v5985
        %v6129 = vmul.f32 %v6128, %v6127
        %v6130 = vmul.f32 0.5, %v6129
        %v6131 = vsub.f32 1.5, %v6130
        %v6132 = vmul.f32 %v6127, %v6131
        %vm6133 = vweird.f32 %v5985
        %vm6134 = vweird.f32 %v6127
        %vm6135 = vmor %vm6133, %vm6134
        %v6136 = vsel %vm6135, %v6127, %v6132
        %v6137 = vrsqrt.pop %v5986
        %v6138 = vmul.f32 %v6137, %v5986
        %v6139 = vmul.f32 %v6138, %v6137
        %v6140 = vmul.f32 0.5, %v6139
        %v6141 = vsub.f32 1.5, %v6140
        %v6142 = vmul.f32 %v6137, %v6141
        %vm6143 = vweird.f32 %v5986
        %vm6144 = vweird.f32 %v6137
        %vm6145 = vmor %vm6143, %vm6144
        %v6146 = vsel %vm6145, %v6137, %v6142
        %v6147 = vmul.f32 %v5875, %v5996
        %v6148 = vmul.f32 %v5876, %v6006
        %v6149 = vmul.f32 %v5877, %v6016
        %v6150 = vmul.f32 %v5878, %v6026
        %v6151 = vmul.f32 %v5879, %v6036
        %v6152 = vmul.f32 %v5880, %v6046
        %v6153 = vmul.f32 %v5881, %v6056
        %v6154 = vmul.f32 %v5882, %v6066
        %v6155 = vmul.f32 %v5883, %v6076
        %v6156 = vmul.f32 %v5884, %v6086
        %v6157 = vmul.f32 %v5885, %v6096
        %v6158 = vmul.f32 %v5886, %v6106
        %v6159 = vmul.f32 %v5887, %v6116
        %v6160 = vmul.f32 %v5888, %v6126
        %v6161 = vmul.f32 %v5889, %v6136
        %v6162 = vmul.f32 %v5890, %v6146
        %v6163 = vperm.slane %v1009, 7
        %v6164 = vmul.f32 %v6147, %v6163
        %v6165 = vmul.f32 %v6148, %v6163
        %v6166 = vmul.f32 %v6149, %v6163
        %v6167 = vmul.f32 %v6150, %v6163
        %v6168 = vmul.f32 %v6151, %v6163
        %v6169 = vmul.f32 %v6152, %v6163
        %v6170 = vmul.f32 %v6153, %v6163
        %v6171 = vmul.f32 %v6154, %v6163
        %v6172 = vmul.f32 %v6155, %v6163
        %v6173 = vmul.f32 %v6156, %v6163
        %v6174 = vmul.f32 %v6157, %v6163
        %v6175 = vmul.f32 %v6158, %v6163
        %v6176 = vmul.f32 %v6159, %v6163
        %v6177 = vmul.f32 %v6160, %v6163
        %v6178 = vmul.f32 %v6161, %v6163
        %v6179 = vmul.f32 %v6162, %v6163
        %v6180 = vperm.slane %v1010, 0
        %v6181 = vadd.f32 %v6164, %v6180
        %v6182 = vadd.f32 %v6165, %v6180
        %v6183 = vadd.f32 %v6166, %v6180
        %v6184 = vadd.f32 %v6167, %v6180
        %v6185 = vadd.f32 %v6168, %v6180
        %v6186 = vadd.f32 %v6169, %v6180
        %v6187 = vadd.f32 %v6170, %v6180
        %v6188 = vadd.f32 %v6171, %v6180
        %v6189 = vadd.f32 %v6172, %v6180
        %v6190 = vadd.f32 %v6173, %v6180
        %v6191 = vadd.f32 %v6174, %v6180
        %v6192 = vadd.f32 %v6175, %v6180
        %v6193 = vadd.f32 %v6176, %v6180
        %v6194 = vadd.f32 %v6177, %v6180
        %v6195 = vadd.f32 %v6178, %v6180
        %v6196 = vadd.f32 %v6179, %v6180
        %s6197 = scalar_lea.vmem %s5, 16
        %v6198 = vld [vmem:[%s6197] sm:$0xff]
        %v6199 = vld [vmem:[%s6197 + $0x8] sm:$0x1]
        %v6200 = vpack.c.bf16 %v6182, %v6181
        %v6201 = vpack.c.bf16 %v6184, %v6183
        %v6202 = vpack.c.bf16 %v6186, %v6185
        %v6203 = vpack.c.bf16 %v6188, %v6187
        %v6204 = vpack.c.bf16 %v6190, %v6189
        %v6205 = vpack.c.bf16 %v6192, %v6191
        %v6206 = vpack.c.bf16 %v6194, %v6193
        %v6207 = vpack.c.bf16 %v6196, %v6195
        %s6208 = scalar_lea.vmem %s4, 64
        %v6209 = vld [vmem:[%s6208] sm:$0xf]
        %v6210 = vld [vmem:[%s6208 + $0x4] sm:$0xf]
        %v6211 = vld [vmem:[%s6208 + $0x8] sm:$0xf]
        %v6212 = vld [vmem:[%s6208 + $0xc] sm:$0xf]
        %v6213 = vperm.slane %v6198, 0
        %v6218 = vunpack.c.l.b16 %v6209
        %v6219 = vunpack.c.l.b16 %v6210
        %v6220 = vunpack.c.l.b16 %v6211
        %v6221 = vunpack.c.l.b16 %v6212
        %v6222 = vpack.c.b16 %v6219, %v6218
        %v6223 = vpack.c.b16 %v6221, %v6220
        %v6227 = vsel %vm615, %v6200, 0
        %v6230 = vsel %vm615, %v6201, 0
        %v6233 = vsel %vm615, %v6202, 0
        %v6236 = vsel %vm615, %v6203, 0
        %v6239 = vsel %vm615, %v6204, 0
        %v6242 = vsel %vm615, %v6205, 0
        %v6245 = vsel %vm615, %v6206, 0
        %v6248 = vsel %vm615, %v6207, 0
        %6250 = vmatpush.bf16.msra.mxu0 0
        %6251 = vmatpush.bf16.msra.mxu0 0
        %6252 = vmatpush.bf16.msra.mxu0 0
        %6253 = vmatpush.bf16.msra.mxu0 0
        %6254 = vmatpush.bf16.msra.mxu0 0
        %6255 = vmatpush.bf16.msra.mxu0 0
        %6256 = vmatpush.bf16.msra.mxu0 %v6223
        %6257 = vmatpush.bf16.msra.mxu0 %v6222
        %6258 = vmatmul.bf16.gmra.mxu0 %v6227
        %v6259 = vpop.f32.mrf.mxu0
        %v6260 = vadd.f32 %v6213, %v6259
        %v6261 = vpop.f32.mrf.mxu0
        %v6262 = vadd.f32 %v6213, %v6261
        %6263 = vmatmul.bf16.gmra.mxu0 %v6230
        %v6264 = vpop.f32.mrf.mxu0
        %v6265 = vadd.f32 %v6213, %v6264
        %v6266 = vpop.f32.mrf.mxu0
        %v6267 = vadd.f32 %v6213, %v6266
        %6268 = vmatmul.bf16.gmra.mxu0 %v6233
        %v6269 = vpop.f32.mrf.mxu0
        %v6270 = vadd.f32 %v6213, %v6269
        %v6271 = vpop.f32.mrf.mxu0
        %v6272 = vadd.f32 %v6213, %v6271
        %6273 = vmatmul.bf16.gmra.mxu0 %v6236
        %v6274 = vpop.f32.mrf.mxu0
        %v6275 = vadd.f32 %v6213, %v6274
        %v6276 = vpop.f32.mrf.mxu0
        %v6277 = vadd.f32 %v6213, %v6276
        %6278 = vmatmul.bf16.gmra.mxu0 %v6239
        %v6279 = vpop.f32.mrf.mxu0
        %v6280 = vadd.f32 %v6213, %v6279
        %v6281 = vpop.f32.mrf.mxu0
        %v6282 = vadd.f32 %v6213, %v6281
        %6283 = vmatmul.bf16.gmra.mxu0 %v6242
        %v6284 = vpop.f32.mrf.mxu0
        %v6285 = vadd.f32 %v6213, %v6284
        %v6286 = vpop.f32.mrf.mxu0
        %v6287 = vadd.f32 %v6213, %v6286
        %6288 = vmatmul.bf16.gmra.mxu0 %v6245
        %v6289 = vpop.f32.mrf.mxu0
        %v6290 = vadd.f32 %v6213, %v6289
        %v6291 = vpop.f32.mrf.mxu0
        %v6292 = vadd.f32 %v6213, %v6291
        %6293 = vmatmul.bf16.gmra.mxu0 %v6248
        %v6294 = vpop.f32.mrf.mxu0
        %v6295 = vadd.f32 %v6213, %v6294
        %v6296 = vpop.f32.mrf.mxu0
        %v6297 = vadd.f32 %v6213, %v6296
        %6298 = vdwg.mxu0
        %s6299 = scalar_lea.vmem %s4, 80
        %v6300 = vld [vmem:[%s6299] sm:$0xf]
        %v6301 = vld [vmem:[%s6299 + $0x4] sm:$0xf]
        %v6302 = vld [vmem:[%s6299 + $0x8] sm:$0xf]
        %v6303 = vld [vmem:[%s6299 + $0xc] sm:$0xf]
        %v6304 = vperm.slane %v6198, 1
        %v6309 = vunpack.c.l.b16 %v6300
        %v6310 = vunpack.c.l.b16 %v6301
        %v6311 = vunpack.c.l.b16 %v6302
        %v6312 = vunpack.c.l.b16 %v6303
        %v6313 = vpack.c.b16 %v6310, %v6309
        %v6314 = vpack.c.b16 %v6312, %v6311
        %6317 = vmatpush.bf16.msra.mxu0 0
        %6318 = vmatpush.bf16.msra.mxu0 0
        %6319 = vmatpush.bf16.msra.mxu0 0
        %6320 = vmatpush.bf16.msra.mxu0 0
        %6321 = vmatpush.bf16.msra.mxu0 0
        %6322 = vmatpush.bf16.msra.mxu0 0
        %6323 = vmatpush.bf16.msra.mxu0 %v6314
        %6324 = vmatpush.bf16.msra.mxu0 %v6313
        %6325 = vmatmul.bf16.gmra.mxu0 %v6227
        %v6326 = vpop.f32.mrf.mxu0
        %v6327 = vadd.f32 %v6304, %v6326
        %v6328 = vpop.f32.mrf.mxu0
        %v6329 = vadd.f32 %v6304, %v6328
        %6330 = vmatmul.bf16.gmra.mxu0 %v6230
        %v6331 = vpop.f32.mrf.mxu0
        %v6332 = vadd.f32 %v6304, %v6331
        %v6333 = vpop.f32.mrf.mxu0
        %v6334 = vadd.f32 %v6304, %v6333
        %6335 = vmatmul.bf16.gmra.mxu0 %v6233
        %v6336 = vpop.f32.mrf.mxu0
        %v6337 = vadd.f32 %v6304, %v6336
        %v6338 = vpop.f32.mrf.mxu0
        %v6339 = vadd.f32 %v6304, %v6338
        %6340 = vmatmul.bf16.gmra.mxu0 %v6236
        %v6341 = vpop.f32.mrf.mxu0
        %v6342 = vadd.f32 %v6304, %v6341
        %v6343 = vpop.f32.mrf.mxu0
        %v6344 = vadd.f32 %v6304, %v6343
        %6345 = vmatmul.bf16.gmra.mxu0 %v6239
        %v6346 = vpop.f32.mrf.mxu0
        %v6347 = vadd.f32 %v6304, %v6346
        %v6348 = vpop.f32.mrf.mxu0
        %v6349 = vadd.f32 %v6304, %v6348
        %6350 = vmatmul.bf16.gmra.mxu0 %v6242
        %v6351 = vpop.f32.mrf.mxu0
        %v6352 = vadd.f32 %v6304, %v6351
        %v6353 = vpop.f32.mrf.mxu0
        %v6354 = vadd.f32 %v6304, %v6353
        %6355 = vmatmul.bf16.gmra.mxu0 %v6245
        %v6356 = vpop.f32.mrf.mxu0
        %v6357 = vadd.f32 %v6304, %v6356
        %v6358 = vpop.f32.mrf.mxu0
        %v6359 = vadd.f32 %v6304, %v6358
        %6360 = vmatmul.bf16.gmra.mxu0 %v6248
        %v6361 = vpop.f32.mrf.mxu0
        %v6362 = vadd.f32 %v6304, %v6361
        %v6363 = vpop.f32.mrf.mxu0
        %v6364 = vadd.f32 %v6304, %v6363
        %6365 = vdwg.mxu0
        %s6366 = scalar_lea.vmem %s4, 96
        %v6367 = vld [vmem:[%s6366] sm:$0xf]
        %v6368 = vld [vmem:[%s6366 + $0x4] sm:$0xf]
        %v6369 = vld [vmem:[%s6366 + $0x8] sm:$0xf]
        %v6370 = vld [vmem:[%s6366 + $0xc] sm:$0xf]
        %v6371 = vperm.slane %v6198, 2
        %v6376 = vunpack.c.l.b16 %v6367
        %v6377 = vunpack.c.l.b16 %v6368
        %v6378 = vunpack.c.l.b16 %v6369
        %v6379 = vunpack.c.l.b16 %v6370
        %v6380 = vpack.c.b16 %v6377, %v6376
        %v6381 = vpack.c.b16 %v6379, %v6378
        %6384 = vmatpush.bf16.msra.mxu0 0
        %6385 = vmatpush.bf16.msra.mxu0 0
        %6386 = vmatpush.bf16.msra.mxu0 0
        %6387 = vmatpush.bf16.msra.mxu0 0
        %6388 = vmatpush.bf16.msra.mxu0 0
        %6389 = vmatpush.bf16.msra.mxu0 0
        %6390 = vmatpush.bf16.msra.mxu0 %v6381
        %6391 = vmatpush.bf16.msra.mxu0 %v6380
        %6392 = vmatmul.bf16.gmra.mxu0 %v6227
        %v6393 = vpop.f32.mrf.mxu0
        %v6394 = vadd.f32 %v6371, %v6393
        %v6395 = vpop.f32.mrf.mxu0
        %v6396 = vadd.f32 %v6371, %v6395
        %6397 = vmatmul.bf16.gmra.mxu0 %v6230
        %v6398 = vpop.f32.mrf.mxu0
        %v6399 = vadd.f32 %v6371, %v6398
        %v6400 = vpop.f32.mrf.mxu0
        %v6401 = vadd.f32 %v6371, %v6400
        %6402 = vmatmul.bf16.gmra.mxu0 %v6233
        %v6403 = vpop.f32.mrf.mxu0
        %v6404 = vadd.f32 %v6371, %v6403
        %v6405 = vpop.f32.mrf.mxu0
        %v6406 = vadd.f32 %v6371, %v6405
        %6407 = vmatmul.bf16.gmra.mxu0 %v6236
        %v6408 = vpop.f32.mrf.mxu0
        %v6409 = vadd.f32 %v6371, %v6408
        %v6410 = vpop.f32.mrf.mxu0
        %v6411 = vadd.f32 %v6371, %v6410
        %6412 = vmatmul.bf16.gmra.mxu0 %v6239
        %v6413 = vpop.f32.mrf.mxu0
        %v6414 = vadd.f32 %v6371, %v6413
        %v6415 = vpop.f32.mrf.mxu0
        %v6416 = vadd.f32 %v6371, %v6415
        %6417 = vmatmul.bf16.gmra.mxu0 %v6242
        %v6418 = vpop.f32.mrf.mxu0
        %v6419 = vadd.f32 %v6371, %v6418
        %v6420 = vpop.f32.mrf.mxu0
        %v6421 = vadd.f32 %v6371, %v6420
        %6422 = vmatmul.bf16.gmra.mxu0 %v6245
        %v6423 = vpop.f32.mrf.mxu0
        %v6424 = vadd.f32 %v6371, %v6423
        %v6425 = vpop.f32.mrf.mxu0
        %v6426 = vadd.f32 %v6371, %v6425
        %6427 = vmatmul.bf16.gmra.mxu0 %v6248
        %v6428 = vpop.f32.mrf.mxu0
        %v6429 = vadd.f32 %v6371, %v6428
        %v6430 = vpop.f32.mrf.mxu0
        %v6431 = vadd.f32 %v6371, %v6430
        %6432 = vdwg.mxu0
        %6449 = vrot.lane.b32.xlu0 %v6260, 120
        %v6450 = vpop.permute.xlu0 %6449
        %6451 = vrot.lane.b32.xlu0 %v6262, 120
        %v6452 = vpop.permute.xlu0 %6451
        %6453 = vrot.lane.b32.xlu0 %v6265, 120
        %v6454 = vpop.permute.xlu0 %6453
        %6455 = vrot.lane.b32.xlu0 %v6267, 120
        %v6456 = vpop.permute.xlu0 %6455
        %6457 = vrot.lane.b32.xlu0 %v6270, 120
        %v6458 = vpop.permute.xlu0 %6457
        %6459 = vrot.lane.b32.xlu0 %v6272, 120
        %v6460 = vpop.permute.xlu0 %6459
        %6461 = vrot.lane.b32.xlu0 %v6275, 120
        %v6462 = vpop.permute.xlu0 %6461
        %6463 = vrot.lane.b32.xlu0 %v6277, 120
        %v6464 = vpop.permute.xlu0 %6463
        %6465 = vrot.lane.b32.xlu0 %v6280, 120
        %v6466 = vpop.permute.xlu0 %6465
        %6467 = vrot.lane.b32.xlu0 %v6282, 120
        %v6468 = vpop.permute.xlu0 %6467
        %6469 = vrot.lane.b32.xlu0 %v6285, 120
        %v6470 = vpop.permute.xlu0 %6469
        %6471 = vrot.lane.b32.xlu0 %v6287, 120
        %v6472 = vpop.permute.xlu0 %6471
        %6473 = vrot.lane.b32.xlu0 %v6290, 120
        %v6474 = vpop.permute.xlu0 %6473
        %6475 = vrot.lane.b32.xlu0 %v6292, 120
        %v6476 = vpop.permute.xlu0 %6475
        %6477 = vrot.lane.b32.xlu0 %v6295, 120
        %v6478 = vpop.permute.xlu0 %6477
        %6479 = vrot.lane.b32.xlu0 %v6297, 120
        %v6480 = vpop.permute.xlu0 %6479
        %6497 = vrot.lane.b32.xlu0 %v6260, 112
        %v6498 = vpop.permute.xlu0 %6497
        %6499 = vrot.lane.b32.xlu0 %v6262, 112
        %v6500 = vpop.permute.xlu0 %6499
        %6501 = vrot.lane.b32.xlu0 %v6265, 112
        %v6502 = vpop.permute.xlu0 %6501
        %6503 = vrot.lane.b32.xlu0 %v6267, 112
        %v6504 = vpop.permute.xlu0 %6503
        %6505 = vrot.lane.b32.xlu0 %v6270, 112
        %v6506 = vpop.permute.xlu0 %6505
        %6507 = vrot.lane.b32.xlu0 %v6272, 112
        %v6508 = vpop.permute.xlu0 %6507
        %6509 = vrot.lane.b32.xlu0 %v6275, 112
        %v6510 = vpop.permute.xlu0 %6509
        %6511 = vrot.lane.b32.xlu0 %v6277, 112
        %v6512 = vpop.permute.xlu0 %6511
        %6513 = vrot.lane.b32.xlu0 %v6280, 112
        %v6514 = vpop.permute.xlu0 %6513
        %6515 = vrot.lane.b32.xlu0 %v6282, 112
        %v6516 = vpop.permute.xlu0 %6515
        %6517 = vrot.lane.b32.xlu0 %v6285, 112
        %v6518 = vpop.permute.xlu0 %6517
        %6519 = vrot.lane.b32.xlu0 %v6287, 112
        %v6520 = vpop.permute.xlu0 %6519
        %6521 = vrot.lane.b32.xlu0 %v6290, 112
        %v6522 = vpop.permute.xlu0 %6521
        %6523 = vrot.lane.b32.xlu0 %v6292, 112
        %v6524 = vpop.permute.xlu0 %6523
        %6525 = vrot.lane.b32.xlu0 %v6295, 112
        %v6526 = vpop.permute.xlu0 %6525
        %6527 = vrot.lane.b32.xlu0 %v6297, 112
        %v6528 = vpop.permute.xlu0 %6527
        %6545 = vrot.lane.b32.xlu0 %v6260, 104
        %v6546 = vpop.permute.xlu0 %6545
        %6547 = vrot.lane.b32.xlu0 %v6262, 104
        %v6548 = vpop.permute.xlu0 %6547
        %6549 = vrot.lane.b32.xlu0 %v6265, 104
        %v6550 = vpop.permute.xlu0 %6549
        %6551 = vrot.lane.b32.xlu0 %v6267, 104
        %v6552 = vpop.permute.xlu0 %6551
        %6553 = vrot.lane.b32.xlu0 %v6270, 104
        %v6554 = vpop.permute.xlu0 %6553
        %6555 = vrot.lane.b32.xlu0 %v6272, 104
        %v6556 = vpop.permute.xlu0 %6555
        %6557 = vrot.lane.b32.xlu0 %v6275, 104
        %v6558 = vpop.permute.xlu0 %6557
        %6559 = vrot.lane.b32.xlu0 %v6277, 104
        %v6560 = vpop.permute.xlu0 %6559
        %6561 = vrot.lane.b32.xlu0 %v6280, 104
        %v6562 = vpop.permute.xlu0 %6561
        %6563 = vrot.lane.b32.xlu0 %v6282, 104
        %v6564 = vpop.permute.xlu0 %6563
        %6565 = vrot.lane.b32.xlu0 %v6285, 104
        %v6566 = vpop.permute.xlu0 %6565
        %6567 = vrot.lane.b32.xlu0 %v6287, 104
        %v6568 = vpop.permute.xlu0 %6567
        %6569 = vrot.lane.b32.xlu0 %v6290, 104
        %v6570 = vpop.permute.xlu0 %6569
        %6571 = vrot.lane.b32.xlu0 %v6292, 104
        %v6572 = vpop.permute.xlu0 %6571
        %6573 = vrot.lane.b32.xlu0 %v6295, 104
        %v6574 = vpop.permute.xlu0 %6573
        %6575 = vrot.lane.b32.xlu0 %v6297, 104
        %v6576 = vpop.permute.xlu0 %6575
        %v6593 = vpack.c.bf16 %v6260, %v6260
        %v6594 = vpack.c.bf16 %v6262, %v6262
        %v6595 = vpack.c.bf16 %v6450, %v6450
        %v6596 = vpack.c.bf16 %v6452, %v6452
        %v6597 = vpack.c.bf16 %v6498, %v6498
        %v6598 = vpack.c.bf16 %v6500, %v6500
        %v6599 = vpack.c.bf16 %v6546, %v6546
        %v6600 = vpack.c.bf16 %v6548, %v6548
        %v6601 = vpack.c.bf16 %v6265, %v6265
        %v6602 = vpack.c.bf16 %v6267, %v6267
        %v6603 = vpack.c.bf16 %v6454, %v6454
        %v6604 = vpack.c.bf16 %v6456, %v6456
        %v6605 = vpack.c.bf16 %v6502, %v6502
        %v6606 = vpack.c.bf16 %v6504, %v6504
        %v6607 = vpack.c.bf16 %v6550, %v6550
        %v6608 = vpack.c.bf16 %v6552, %v6552
        %v6609 = vpack.c.bf16 %v6270, %v6270
        %v6610 = vpack.c.bf16 %v6272, %v6272
        %v6611 = vpack.c.bf16 %v6458, %v6458
        %v6612 = vpack.c.bf16 %v6460, %v6460
        %v6613 = vpack.c.bf16 %v6506, %v6506
        %v6614 = vpack.c.bf16 %v6508, %v6508
        %v6615 = vpack.c.bf16 %v6554, %v6554
        %v6616 = vpack.c.bf16 %v6556, %v6556
        %v6617 = vpack.c.bf16 %v6275, %v6275
        %v6618 = vpack.c.bf16 %v6277, %v6277
        %v6619 = vpack.c.bf16 %v6462, %v6462
        %v6620 = vpack.c.bf16 %v6464, %v6464
        %v6621 = vpack.c.bf16 %v6510, %v6510
        %v6622 = vpack.c.bf16 %v6512, %v6512
        %v6623 = vpack.c.bf16 %v6558, %v6558
        %v6624 = vpack.c.bf16 %v6560, %v6560
        %v6625 = vpack.c.bf16 %v6280, %v6280
        %v6626 = vpack.c.bf16 %v6282, %v6282
        %v6627 = vpack.c.bf16 %v6466, %v6466
        %v6628 = vpack.c.bf16 %v6468, %v6468
        %v6629 = vpack.c.bf16 %v6514, %v6514
        %v6630 = vpack.c.bf16 %v6516, %v6516
        %v6631 = vpack.c.bf16 %v6562, %v6562
        %v6632 = vpack.c.bf16 %v6564, %v6564
        %v6633 = vpack.c.bf16 %v6285, %v6285
        %v6634 = vpack.c.bf16 %v6287, %v6287
        %v6635 = vpack.c.bf16 %v6470, %v6470
        %v6636 = vpack.c.bf16 %v6472, %v6472
        %v6637 = vpack.c.bf16 %v6518, %v6518
        %v6638 = vpack.c.bf16 %v6520, %v6520
        %v6639 = vpack.c.bf16 %v6566, %v6566
        %v6640 = vpack.c.bf16 %v6568, %v6568
        %v6641 = vpack.c.bf16 %v6290, %v6290
        %v6642 = vpack.c.bf16 %v6292, %v6292
        %v6643 = vpack.c.bf16 %v6474, %v6474
        %v6644 = vpack.c.bf16 %v6476, %v6476
        %v6645 = vpack.c.bf16 %v6522, %v6522
        %v6646 = vpack.c.bf16 %v6524, %v6524
        %v6647 = vpack.c.bf16 %v6570, %v6570
        %v6648 = vpack.c.bf16 %v6572, %v6572
        %v6649 = vpack.c.bf16 %v6295, %v6295
        %v6650 = vpack.c.bf16 %v6297, %v6297
        %v6651 = vpack.c.bf16 %v6478, %v6478
        %v6652 = vpack.c.bf16 %v6480, %v6480
        %v6653 = vpack.c.bf16 %v6526, %v6526
        %v6654 = vpack.c.bf16 %v6528, %v6528
        %v6655 = vpack.c.bf16 %v6574, %v6574
        %v6656 = vpack.c.bf16 %v6576, %v6576
        %6673 = vrot.lane.b32.xlu0 %v6327, 120
        %v6674 = vpop.permute.xlu0 %6673
        %6675 = vrot.lane.b32.xlu0 %v6329, 120
        %v6676 = vpop.permute.xlu0 %6675
        %6677 = vrot.lane.b32.xlu0 %v6332, 120
        %v6678 = vpop.permute.xlu0 %6677
        %6679 = vrot.lane.b32.xlu0 %v6334, 120
        %v6680 = vpop.permute.xlu0 %6679
        %6681 = vrot.lane.b32.xlu0 %v6337, 120
        %v6682 = vpop.permute.xlu0 %6681
        %6683 = vrot.lane.b32.xlu0 %v6339, 120
        %v6684 = vpop.permute.xlu0 %6683
        %6685 = vrot.lane.b32.xlu0 %v6342, 120
        %v6686 = vpop.permute.xlu0 %6685
        %6687 = vrot.lane.b32.xlu0 %v6344, 120
        %v6688 = vpop.permute.xlu0 %6687
        %6689 = vrot.lane.b32.xlu0 %v6347, 120
        %v6690 = vpop.permute.xlu0 %6689
        %6691 = vrot.lane.b32.xlu0 %v6349, 120
        %v6692 = vpop.permute.xlu0 %6691
        %6693 = vrot.lane.b32.xlu0 %v6352, 120
        %v6694 = vpop.permute.xlu0 %6693
        %6695 = vrot.lane.b32.xlu0 %v6354, 120
        %v6696 = vpop.permute.xlu0 %6695
        %6697 = vrot.lane.b32.xlu0 %v6357, 120
        %v6698 = vpop.permute.xlu0 %6697
        %6699 = vrot.lane.b32.xlu0 %v6359, 120
        %v6700 = vpop.permute.xlu0 %6699
        %6701 = vrot.lane.b32.xlu0 %v6362, 120
        %v6702 = vpop.permute.xlu0 %6701
        %6703 = vrot.lane.b32.xlu0 %v6364, 120
        %v6704 = vpop.permute.xlu0 %6703
        %6721 = vrot.lane.b32.xlu0 %v6327, 112
        %v6722 = vpop.permute.xlu0 %6721
        %6723 = vrot.lane.b32.xlu0 %v6329, 112
        %v6724 = vpop.permute.xlu0 %6723
        %6725 = vrot.lane.b32.xlu0 %v6332, 112
        %v6726 = vpop.permute.xlu0 %6725
        %6727 = vrot.lane.b32.xlu0 %v6334, 112
        %v6728 = vpop.permute.xlu0 %6727
        %6729 = vrot.lane.b32.xlu0 %v6337, 112
        %v6730 = vpop.permute.xlu0 %6729
        %6731 = vrot.lane.b32.xlu0 %v6339, 112
        %v6732 = vpop.permute.xlu0 %6731
        %6733 = vrot.lane.b32.xlu0 %v6342, 112
        %v6734 = vpop.permute.xlu0 %6733
        %6735 = vrot.lane.b32.xlu0 %v6344, 112
        %v6736 = vpop.permute.xlu0 %6735
        %6737 = vrot.lane.b32.xlu0 %v6347, 112
        %v6738 = vpop.permute.xlu0 %6737
        %6739 = vrot.lane.b32.xlu0 %v6349, 112
        %v6740 = vpop.permute.xlu0 %6739
        %6741 = vrot.lane.b32.xlu0 %v6352, 112
        %v6742 = vpop.permute.xlu0 %6741
        %6743 = vrot.lane.b32.xlu0 %v6354, 112
        %v6744 = vpop.permute.xlu0 %6743
        %6745 = vrot.lane.b32.xlu0 %v6357, 112
        %v6746 = vpop.permute.xlu0 %6745
        %6747 = vrot.lane.b32.xlu0 %v6359, 112
        %v6748 = vpop.permute.xlu0 %6747
        %6749 = vrot.lane.b32.xlu0 %v6362, 112
        %v6750 = vpop.permute.xlu0 %6749
        %6751 = vrot.lane.b32.xlu0 %v6364, 112
        %v6752 = vpop.permute.xlu0 %6751
        %6769 = vrot.lane.b32.xlu0 %v6327, 104
        %v6770 = vpop.permute.xlu0 %6769
        %6771 = vrot.lane.b32.xlu0 %v6329, 104
        %v6772 = vpop.permute.xlu0 %6771
        %6773 = vrot.lane.b32.xlu0 %v6332, 104
        %v6774 = vpop.permute.xlu0 %6773
        %6775 = vrot.lane.b32.xlu0 %v6334, 104
        %v6776 = vpop.permute.xlu0 %6775
        %6777 = vrot.lane.b32.xlu0 %v6337, 104
        %v6778 = vpop.permute.xlu0 %6777
        %6779 = vrot.lane.b32.xlu0 %v6339, 104
        %v6780 = vpop.permute.xlu0 %6779
        %6781 = vrot.lane.b32.xlu0 %v6342, 104
        %v6782 = vpop.permute.xlu0 %6781
        %6783 = vrot.lane.b32.xlu0 %v6344, 104
        %v6784 = vpop.permute.xlu0 %6783
        %6785 = vrot.lane.b32.xlu0 %v6347, 104
        %v6786 = vpop.permute.xlu0 %6785
        %6787 = vrot.lane.b32.xlu0 %v6349, 104
        %v6788 = vpop.permute.xlu0 %6787
        %6789 = vrot.lane.b32.xlu0 %v6352, 104
        %v6790 = vpop.permute.xlu0 %6789
        %6791 = vrot.lane.b32.xlu0 %v6354, 104
        %v6792 = vpop.permute.xlu0 %6791
        %6793 = vrot.lane.b32.xlu0 %v6357, 104
        %v6794 = vpop.permute.xlu0 %6793
        %6795 = vrot.lane.b32.xlu0 %v6359, 104
        %v6796 = vpop.permute.xlu0 %6795
        %6797 = vrot.lane.b32.xlu0 %v6362, 104
        %v6798 = vpop.permute.xlu0 %6797
        %6799 = vrot.lane.b32.xlu0 %v6364, 104
        %v6800 = vpop.permute.xlu0 %6799
        %v6817 = vpack.c.bf16 %v6327, %v6327
        %v6818 = vpack.c.bf16 %v6329, %v6329
        %v6819 = vpack.c.bf16 %v6674, %v6674
        %v6820 = vpack.c.bf16 %v6676, %v6676
        %v6821 = vpack.c.bf16 %v6722, %v6722
        %v6822 = vpack.c.bf16 %v6724, %v6724
        %v6823 = vpack.c.bf16 %v6770, %v6770
        %v6824 = vpack.c.bf16 %v6772, %v6772
        %v6825 = vpack.c.bf16 %v6332, %v6332
        %v6826 = vpack.c.bf16 %v6334, %v6334
        %v6827 = vpack.c.bf16 %v6678, %v6678
        %v6828 = vpack.c.bf16 %v6680, %v6680
        %v6829 = vpack.c.bf16 %v6726, %v6726
        %v6830 = vpack.c.bf16 %v6728, %v6728
        %v6831 = vpack.c.bf16 %v6774, %v6774
        %v6832 = vpack.c.bf16 %v6776, %v6776
        %v6833 = vpack.c.bf16 %v6337, %v6337
        %v6834 = vpack.c.bf16 %v6339, %v6339
        %v6835 = vpack.c.bf16 %v6682, %v6682
        %v6836 = vpack.c.bf16 %v6684, %v6684
        %v6837 = vpack.c.bf16 %v6730, %v6730
        %v6838 = vpack.c.bf16 %v6732, %v6732
        %v6839 = vpack.c.bf16 %v6778, %v6778
        %v6840 = vpack.c.bf16 %v6780, %v6780
        %v6841 = vpack.c.bf16 %v6342, %v6342
        %v6842 = vpack.c.bf16 %v6344, %v6344
        %v6843 = vpack.c.bf16 %v6686, %v6686
        %v6844 = vpack.c.bf16 %v6688, %v6688
        %v6845 = vpack.c.bf16 %v6734, %v6734
        %v6846 = vpack.c.bf16 %v6736, %v6736
        %v6847 = vpack.c.bf16 %v6782, %v6782
        %v6848 = vpack.c.bf16 %v6784, %v6784
        %v6849 = vpack.c.bf16 %v6347, %v6347
        %v6850 = vpack.c.bf16 %v6349, %v6349
        %v6851 = vpack.c.bf16 %v6690, %v6690
        %v6852 = vpack.c.bf16 %v6692, %v6692
        %v6853 = vpack.c.bf16 %v6738, %v6738
        %v6854 = vpack.c.bf16 %v6740, %v6740
        %v6855 = vpack.c.bf16 %v6786, %v6786
        %v6856 = vpack.c.bf16 %v6788, %v6788
        %v6857 = vpack.c.bf16 %v6352, %v6352
        %v6858 = vpack.c.bf16 %v6354, %v6354
        %v6859 = vpack.c.bf16 %v6694, %v6694
        %v6860 = vpack.c.bf16 %v6696, %v6696
        %v6861 = vpack.c.bf16 %v6742, %v6742
        %v6862 = vpack.c.bf16 %v6744, %v6744
        %v6863 = vpack.c.bf16 %v6790, %v6790
        %v6864 = vpack.c.bf16 %v6792, %v6792
        %v6865 = vpack.c.bf16 %v6357, %v6357
        %v6866 = vpack.c.bf16 %v6359, %v6359
        %v6867 = vpack.c.bf16 %v6698, %v6698
        %v6868 = vpack.c.bf16 %v6700, %v6700
        %v6869 = vpack.c.bf16 %v6746, %v6746
        %v6870 = vpack.c.bf16 %v6748, %v6748
        %v6871 = vpack.c.bf16 %v6794, %v6794
        %v6872 = vpack.c.bf16 %v6796, %v6796
        %v6873 = vpack.c.bf16 %v6362, %v6362
        %v6874 = vpack.c.bf16 %v6364, %v6364
        %v6875 = vpack.c.bf16 %v6702, %v6702
        %v6876 = vpack.c.bf16 %v6704, %v6704
        %v6877 = vpack.c.bf16 %v6750, %v6750
        %v6878 = vpack.c.bf16 %v6752, %v6752
        %v6879 = vpack.c.bf16 %v6798, %v6798
        %v6880 = vpack.c.bf16 %v6800, %v6800
        %6897 = vrot.lane.b32.xlu0 %v6394, 120
        %v6898 = vpop.permute.xlu0 %6897
        %6899 = vrot.lane.b32.xlu0 %v6396, 120
        %v6900 = vpop.permute.xlu0 %6899
        %6901 = vrot.lane.b32.xlu0 %v6399, 120
        %v6902 = vpop.permute.xlu0 %6901
        %6903 = vrot.lane.b32.xlu0 %v6401, 120
        %v6904 = vpop.permute.xlu0 %6903
        %6905 = vrot.lane.b32.xlu0 %v6404, 120
        %v6906 = vpop.permute.xlu0 %6905
        %6907 = vrot.lane.b32.xlu0 %v6406, 120
        %v6908 = vpop.permute.xlu0 %6907
        %6909 = vrot.lane.b32.xlu0 %v6409, 120
        %v6910 = vpop.permute.xlu0 %6909
        %6911 = vrot.lane.b32.xlu0 %v6411, 120
        %v6912 = vpop.permute.xlu0 %6911
        %6913 = vrot.lane.b32.xlu0 %v6414, 120
        %v6914 = vpop.permute.xlu0 %6913
        %6915 = vrot.lane.b32.xlu0 %v6416, 120
        %v6916 = vpop.permute.xlu0 %6915
        %6917 = vrot.lane.b32.xlu0 %v6419, 120
        %v6918 = vpop.permute.xlu0 %6917
        %6919 = vrot.lane.b32.xlu0 %v6421, 120
        %v6920 = vpop.permute.xlu0 %6919
        %6921 = vrot.lane.b32.xlu0 %v6424, 120
        %v6922 = vpop.permute.xlu0 %6921
        %6923 = vrot.lane.b32.xlu0 %v6426, 120
        %v6924 = vpop.permute.xlu0 %6923
        %6925 = vrot.lane.b32.xlu0 %v6429, 120
        %v6926 = vpop.permute.xlu0 %6925
        %6927 = vrot.lane.b32.xlu0 %v6431, 120
        %v6928 = vpop.permute.xlu0 %6927
        %6945 = vrot.lane.b32.xlu0 %v6394, 112
        %v6946 = vpop.permute.xlu0 %6945
        %6947 = vrot.lane.b32.xlu0 %v6396, 112
        %v6948 = vpop.permute.xlu0 %6947
        %6949 = vrot.lane.b32.xlu0 %v6399, 112
        %v6950 = vpop.permute.xlu0 %6949
        %6951 = vrot.lane.b32.xlu0 %v6401, 112
        %v6952 = vpop.permute.xlu0 %6951
        %6953 = vrot.lane.b32.xlu0 %v6404, 112
        %v6954 = vpop.permute.xlu0 %6953
        %6955 = vrot.lane.b32.xlu0 %v6406, 112
        %v6956 = vpop.permute.xlu0 %6955
        %6957 = vrot.lane.b32.xlu0 %v6409, 112
        %v6958 = vpop.permute.xlu0 %6957
        %6959 = vrot.lane.b32.xlu0 %v6411, 112
        %v6960 = vpop.permute.xlu0 %6959
        %6961 = vrot.lane.b32.xlu0 %v6414, 112
        %v6962 = vpop.permute.xlu0 %6961
        %6963 = vrot.lane.b32.xlu0 %v6416, 112
        %v6964 = vpop.permute.xlu0 %6963
        %6965 = vrot.lane.b32.xlu0 %v6419, 112
        %v6966 = vpop.permute.xlu0 %6965
        %6967 = vrot.lane.b32.xlu0 %v6421, 112
        %v6968 = vpop.permute.xlu0 %6967
        %6969 = vrot.lane.b32.xlu0 %v6424, 112
        %v6970 = vpop.permute.xlu0 %6969
        %6971 = vrot.lane.b32.xlu0 %v6426, 112
        %v6972 = vpop.permute.xlu0 %6971
        %6973 = vrot.lane.b32.xlu0 %v6429, 112
        %v6974 = vpop.permute.xlu0 %6973
        %6975 = vrot.lane.b32.xlu0 %v6431, 112
        %v6976 = vpop.permute.xlu0 %6975
        %6993 = vrot.lane.b32.xlu0 %v6394, 104
        %v6994 = vpop.permute.xlu0 %6993
        %6995 = vrot.lane.b32.xlu0 %v6396, 104
        %v6996 = vpop.permute.xlu0 %6995
        %6997 = vrot.lane.b32.xlu0 %v6399, 104
        %v6998 = vpop.permute.xlu0 %6997
        %6999 = vrot.lane.b32.xlu0 %v6401, 104
        %v7000 = vpop.permute.xlu0 %6999
        %7001 = vrot.lane.b32.xlu0 %v6404, 104
        %v7002 = vpop.permute.xlu0 %7001
        %7003 = vrot.lane.b32.xlu0 %v6406, 104
        %v7004 = vpop.permute.xlu0 %7003
        %7005 = vrot.lane.b32.xlu0 %v6409, 104
        %v7006 = vpop.permute.xlu0 %7005
        %7007 = vrot.lane.b32.xlu0 %v6411, 104
        %v7008 = vpop.permute.xlu0 %7007
        %7009 = vrot.lane.b32.xlu0 %v6414, 104
        %v7010 = vpop.permute.xlu0 %7009
        %7011 = vrot.lane.b32.xlu0 %v6416, 104
        %v7012 = vpop.permute.xlu0 %7011
        %7013 = vrot.lane.b32.xlu0 %v6419, 104
        %v7014 = vpop.permute.xlu0 %7013
        %7015 = vrot.lane.b32.xlu0 %v6421, 104
        %v7016 = vpop.permute.xlu0 %7015
        %7017 = vrot.lane.b32.xlu0 %v6424, 104
        %v7018 = vpop.permute.xlu0 %7017
        %7019 = vrot.lane.b32.xlu0 %v6426, 104
        %v7020 = vpop.permute.xlu0 %7019
        %7021 = vrot.lane.b32.xlu0 %v6429, 104
        %v7022 = vpop.permute.xlu0 %7021
        %7023 = vrot.lane.b32.xlu0 %v6431, 104
        %v7024 = vpop.permute.xlu0 %7023
        %v7041 = vpack.c.bf16 %v6394, %v6394
        %v7042 = vpack.c.bf16 %v6396, %v6396
        %v7043 = vpack.c.bf16 %v6898, %v6898
        %v7044 = vpack.c.bf16 %v6900, %v6900
        %v7045 = vpack.c.bf16 %v6946, %v6946
        %v7046 = vpack.c.bf16 %v6948, %v6948
        %v7047 = vpack.c.bf16 %v6994, %v6994
        %v7048 = vpack.c.bf16 %v6996, %v6996
        %v7049 = vpack.c.bf16 %v6399, %v6399
        %v7050 = vpack.c.bf16 %v6401, %v6401
        %v7051 = vpack.c.bf16 %v6902, %v6902
        %v7052 = vpack.c.bf16 %v6904, %v6904
        %v7053 = vpack.c.bf16 %v6950, %v6950
        %v7054 = vpack.c.bf16 %v6952, %v6952
        %v7055 = vpack.c.bf16 %v6998, %v6998
        %v7056 = vpack.c.bf16 %v7000, %v7000
        %v7057 = vpack.c.bf16 %v6404, %v6404
        %v7058 = vpack.c.bf16 %v6406, %v6406
        %v7059 = vpack.c.bf16 %v6906, %v6906
        %v7060 = vpack.c.bf16 %v6908, %v6908
        %v7061 = vpack.c.bf16 %v6954, %v6954
        %v7062 = vpack.c.bf16 %v6956, %v6956
        %v7063 = vpack.c.bf16 %v7002, %v7002
        %v7064 = vpack.c.bf16 %v7004, %v7004
        %v7065 = vpack.c.bf16 %v6409, %v6409
        %v7066 = vpack.c.bf16 %v6411, %v6411
        %v7067 = vpack.c.bf16 %v6910, %v6910
        %v7068 = vpack.c.bf16 %v6912, %v6912
        %v7069 = vpack.c.bf16 %v6958, %v6958
        %v7070 = vpack.c.bf16 %v6960, %v6960
        %v7071 = vpack.c.bf16 %v7006, %v7006
        %v7072 = vpack.c.bf16 %v7008, %v7008
        %v7073 = vpack.c.bf16 %v6414, %v6414
        %v7074 = vpack.c.bf16 %v6416, %v6416
        %v7075 = vpack.c.bf16 %v6914, %v6914
        %v7076 = vpack.c.bf16 %v6916, %v6916
        %v7077 = vpack.c.bf16 %v6962, %v6962
        %v7078 = vpack.c.bf16 %v6964, %v6964
        %v7079 = vpack.c.bf16 %v7010, %v7010
        %v7080 = vpack.c.bf16 %v7012, %v7012
        %v7081 = vpack.c.bf16 %v6419, %v6419
        %v7082 = vpack.c.bf16 %v6421, %v6421
        %v7083 = vpack.c.bf16 %v6918, %v6918
        %v7084 = vpack.c.bf16 %v6920, %v6920
        %v7085 = vpack.c.bf16 %v6966, %v6966
        %v7086 = vpack.c.bf16 %v6968, %v6968
        %v7087 = vpack.c.bf16 %v7014, %v7014
        %v7088 = vpack.c.bf16 %v7016, %v7016
        %v7089 = vpack.c.bf16 %v6424, %v6424
        %v7090 = vpack.c.bf16 %v6426, %v6426
        %v7091 = vpack.c.bf16 %v6922, %v6922
        %v7092 = vpack.c.bf16 %v6924, %v6924
        %v7093 = vpack.c.bf16 %v6970, %v6970
        %v7094 = vpack.c.bf16 %v6972, %v6972
        %v7095 = vpack.c.bf16 %v7018, %v7018
        %v7096 = vpack.c.bf16 %v7020, %v7020
        %v7097 = vpack.c.bf16 %v6429, %v6429
        %v7098 = vpack.c.bf16 %v6431, %v6431
        %v7099 = vpack.c.bf16 %v6926, %v6926
        %v7100 = vpack.c.bf16 %v6928, %v6928
        %v7101 = vpack.c.bf16 %v6974, %v6974
        %v7102 = vpack.c.bf16 %v6976, %v6976
        %v7103 = vpack.c.bf16 %v7022, %v7022
        %v7104 = vpack.c.bf16 %v7024, %v7024
        %v7107 = vunpack.c.l.b16 %v6593
        %v7108 = vunpack.c.l.b16 %v6594
        %v7109 = vpack.c.b16 %v7108, %v7107
        %v7112 = vunpack.c.l.b16 %v6817
        %v7113 = vunpack.c.l.b16 %v6818
        %v7114 = vpack.c.b16 %v7113, %v7112
        %v7116 = vsel %vm1925, %v7109, 0
        %v7119 = vsel %vm1925, %v7114, 0
        %7121 = vmatpush.bf16.xpose.msra.mxu0 0
        %7122 = vmatpush.bf16.xpose.msra.mxu0 0
        %7123 = vmatpush.bf16.xpose.msra.mxu0 0
        %7124 = vmatpush.bf16.xpose.msra.mxu0 0
        %7125 = vmatpush.bf16.xpose.msra.mxu0 0
        %7126 = vmatpush.bf16.xpose.msra.mxu0 0
        %7127 = vmatpush.bf16.xpose.msra.mxu0 0
        %7128 = vmatpush.bf16.xpose.msra.mxu0 %v7119
        %7129 = vmatmul.bf16.gmra.mxu0 %v7116
        %v7130 = vpop.f32.mrf.mxu0
        %v7131 = vadd.f32 0.0, %v7130
        %v7132 = vpop.f32.mrf.mxu0
        %v7133 = vadd.f32 0.0, %v7132
        %7134 = vdwg.mxu0
        %v7137 = vunpack.c.l.b16 %v6595
        %v7138 = vunpack.c.l.b16 %v6596
        %v7139 = vpack.c.b16 %v7138, %v7137
        %v7142 = vunpack.c.l.b16 %v6819
        %v7143 = vunpack.c.l.b16 %v6820
        %v7144 = vpack.c.b16 %v7143, %v7142
        %v7146 = vsel %vm1925, %v7139, 0
        %v7149 = vsel %vm1925, %v7144, 0
        %7151 = vmatpush.bf16.xpose.msra.mxu0 0
        %7152 = vmatpush.bf16.xpose.msra.mxu0 0
        %7153 = vmatpush.bf16.xpose.msra.mxu0 0
        %7154 = vmatpush.bf16.xpose.msra.mxu0 0
        %7155 = vmatpush.bf16.xpose.msra.mxu0 0
        %7156 = vmatpush.bf16.xpose.msra.mxu0 0
        %7157 = vmatpush.bf16.xpose.msra.mxu0 0
        %7158 = vmatpush.bf16.xpose.msra.mxu0 %v7149
        %7159 = vmatmul.bf16.gmra.mxu0 %v7146
        %v7160 = vpop.f32.mrf.mxu0
        %v7161 = vadd.f32 0.0, %v7160
        %v7162 = vpop.f32.mrf.mxu0
        %v7163 = vadd.f32 0.0, %v7162
        %7164 = vdwg.mxu0
        %v7167 = vunpack.c.l.b16 %v6597
        %v7168 = vunpack.c.l.b16 %v6598
        %v7169 = vpack.c.b16 %v7168, %v7167
        %v7172 = vunpack.c.l.b16 %v6821
        %v7173 = vunpack.c.l.b16 %v6822
        %v7174 = vpack.c.b16 %v7173, %v7172
        %v7176 = vsel %vm1925, %v7169, 0
        %v7179 = vsel %vm1925, %v7174, 0
        %7181 = vmatpush.bf16.xpose.msra.mxu0 0
        %7182 = vmatpush.bf16.xpose.msra.mxu0 0
        %7183 = vmatpush.bf16.xpose.msra.mxu0 0
        %7184 = vmatpush.bf16.xpose.msra.mxu0 0
        %7185 = vmatpush.bf16.xpose.msra.mxu0 0
        %7186 = vmatpush.bf16.xpose.msra.mxu0 0
        %7187 = vmatpush.bf16.xpose.msra.mxu0 0
        %7188 = vmatpush.bf16.xpose.msra.mxu0 %v7179
        %7189 = vmatmul.bf16.gmra.mxu0 %v7176
        %v7190 = vpop.f32.mrf.mxu0
        %v7191 = vadd.f32 0.0, %v7190
        %v7192 = vpop.f32.mrf.mxu0
        %v7193 = vadd.f32 0.0, %v7192
        %7194 = vdwg.mxu0
        %v7197 = vunpack.c.l.b16 %v6599
        %v7198 = vunpack.c.l.b16 %v6600
        %v7199 = vpack.c.b16 %v7198, %v7197
        %v7202 = vunpack.c.l.b16 %v6823
        %v7203 = vunpack.c.l.b16 %v6824
        %v7204 = vpack.c.b16 %v7203, %v7202
        %v7206 = vsel %vm1925, %v7199, 0
        %v7209 = vsel %vm1925, %v7204, 0
        %7211 = vmatpush.bf16.xpose.msra.mxu0 0
        %7212 = vmatpush.bf16.xpose.msra.mxu0 0
        %7213 = vmatpush.bf16.xpose.msra.mxu0 0
        %7214 = vmatpush.bf16.xpose.msra.mxu0 0
        %7215 = vmatpush.bf16.xpose.msra.mxu0 0
        %7216 = vmatpush.bf16.xpose.msra.mxu0 0
        %7217 = vmatpush.bf16.xpose.msra.mxu0 0
        %7218 = vmatpush.bf16.xpose.msra.mxu0 %v7209
        %7219 = vmatmul.bf16.gmra.mxu0 %v7206
        %v7220 = vpop.f32.mrf.mxu0
        %v7221 = vadd.f32 0.0, %v7220
        %v7222 = vpop.f32.mrf.mxu0
        %v7223 = vadd.f32 0.0, %v7222
        %7224 = vdwg.mxu0
        %v7227 = vunpack.c.l.b16 %v6601
        %v7228 = vunpack.c.l.b16 %v6602
        %v7229 = vpack.c.b16 %v7228, %v7227
        %v7232 = vunpack.c.l.b16 %v6825
        %v7233 = vunpack.c.l.b16 %v6826
        %v7234 = vpack.c.b16 %v7233, %v7232
        %v7236 = vsel %vm1925, %v7229, 0
        %v7239 = vsel %vm1925, %v7234, 0
        %7241 = vmatpush.bf16.xpose.msra.mxu0 0
        %7242 = vmatpush.bf16.xpose.msra.mxu0 0
        %7243 = vmatpush.bf16.xpose.msra.mxu0 0
        %7244 = vmatpush.bf16.xpose.msra.mxu0 0
        %7245 = vmatpush.bf16.xpose.msra.mxu0 0
        %7246 = vmatpush.bf16.xpose.msra.mxu0 0
        %7247 = vmatpush.bf16.xpose.msra.mxu0 0
        %7248 = vmatpush.bf16.xpose.msra.mxu0 %v7239
        %7249 = vmatmul.bf16.gmra.mxu0 %v7236
        %v7250 = vpop.f32.mrf.mxu0
        %v7251 = vadd.f32 0.0, %v7250
        %v7252 = vpop.f32.mrf.mxu0
        %v7253 = vadd.f32 0.0, %v7252
        %7254 = vdwg.mxu0
        %v7257 = vunpack.c.l.b16 %v6603
        %v7258 = vunpack.c.l.b16 %v6604
        %v7259 = vpack.c.b16 %v7258, %v7257
        %v7262 = vunpack.c.l.b16 %v6827
        %v7263 = vunpack.c.l.b16 %v6828
        %v7264 = vpack.c.b16 %v7263, %v7262
        %v7266 = vsel %vm1925, %v7259, 0
        %v7269 = vsel %vm1925, %v7264, 0
        %7271 = vmatpush.bf16.xpose.msra.mxu0 0
        %7272 = vmatpush.bf16.xpose.msra.mxu0 0
        %7273 = vmatpush.bf16.xpose.msra.mxu0 0
        %7274 = vmatpush.bf16.xpose.msra.mxu0 0
        %7275 = vmatpush.bf16.xpose.msra.mxu0 0
        %7276 = vmatpush.bf16.xpose.msra.mxu0 0
        %7277 = vmatpush.bf16.xpose.msra.mxu0 0
        %7278 = vmatpush.bf16.xpose.msra.mxu0 %v7269
        %7279 = vmatmul.bf16.gmra.mxu0 %v7266
        %v7280 = vpop.f32.mrf.mxu0
        %v7281 = vadd.f32 0.0, %v7280
        %v7282 = vpop.f32.mrf.mxu0
        %v7283 = vadd.f32 0.0, %v7282
        %7284 = vdwg.mxu0
        %v7287 = vunpack.c.l.b16 %v6605
        %v7288 = vunpack.c.l.b16 %v6606
        %v7289 = vpack.c.b16 %v7288, %v7287
        %v7292 = vunpack.c.l.b16 %v6829
        %v7293 = vunpack.c.l.b16 %v6830
        %v7294 = vpack.c.b16 %v7293, %v7292
        %v7296 = vsel %vm1925, %v7289, 0
        %v7299 = vsel %vm1925, %v7294, 0
        %7301 = vmatpush.bf16.xpose.msra.mxu0 0
        %7302 = vmatpush.bf16.xpose.msra.mxu0 0
        %7303 = vmatpush.bf16.xpose.msra.mxu0 0
        %7304 = vmatpush.bf16.xpose.msra.mxu0 0
        %7305 = vmatpush.bf16.xpose.msra.mxu0 0
        %7306 = vmatpush.bf16.xpose.msra.mxu0 0
        %7307 = vmatpush.bf16.xpose.msra.mxu0 0
        %7308 = vmatpush.bf16.xpose.msra.mxu0 %v7299
        %7309 = vmatmul.bf16.gmra.mxu0 %v7296
        %v7310 = vpop.f32.mrf.mxu0
        %v7311 = vadd.f32 0.0, %v7310
        %v7312 = vpop.f32.mrf.mxu0
        %v7313 = vadd.f32 0.0, %v7312
        %7314 = vdwg.mxu0
        %v7317 = vunpack.c.l.b16 %v6607
        %v7318 = vunpack.c.l.b16 %v6608
        %v7319 = vpack.c.b16 %v7318, %v7317
        %v7322 = vunpack.c.l.b16 %v6831
        %v7323 = vunpack.c.l.b16 %v6832
        %v7324 = vpack.c.b16 %v7323, %v7322
        %v7326 = vsel %vm1925, %v7319, 0
        %v7329 = vsel %vm1925, %v7324, 0
        %7331 = vmatpush.bf16.xpose.msra.mxu0 0
        %7332 = vmatpush.bf16.xpose.msra.mxu0 0
        %7333 = vmatpush.bf16.xpose.msra.mxu0 0
        %7334 = vmatpush.bf16.xpose.msra.mxu0 0
        %7335 = vmatpush.bf16.xpose.msra.mxu0 0
        %7336 = vmatpush.bf16.xpose.msra.mxu0 0
        %7337 = vmatpush.bf16.xpose.msra.mxu0 0
        %7338 = vmatpush.bf16.xpose.msra.mxu0 %v7329
        %7339 = vmatmul.bf16.gmra.mxu0 %v7326
        %v7340 = vpop.f32.mrf.mxu0
        %v7341 = vadd.f32 0.0, %v7340
        %v7342 = vpop.f32.mrf.mxu0
        %v7343 = vadd.f32 0.0, %v7342
        %7344 = vdwg.mxu0
        %v7347 = vunpack.c.l.b16 %v6609
        %v7348 = vunpack.c.l.b16 %v6610
        %v7349 = vpack.c.b16 %v7348, %v7347
        %v7352 = vunpack.c.l.b16 %v6833
        %v7353 = vunpack.c.l.b16 %v6834
        %v7354 = vpack.c.b16 %v7353, %v7352
        %v7356 = vsel %vm1925, %v7349, 0
        %v7359 = vsel %vm1925, %v7354, 0
        %7361 = vmatpush.bf16.xpose.msra.mxu0 0
        %7362 = vmatpush.bf16.xpose.msra.mxu0 0
        %7363 = vmatpush.bf16.xpose.msra.mxu0 0
        %7364 = vmatpush.bf16.xpose.msra.mxu0 0
        %7365 = vmatpush.bf16.xpose.msra.mxu0 0
        %7366 = vmatpush.bf16.xpose.msra.mxu0 0
        %7367 = vmatpush.bf16.xpose.msra.mxu0 0
        %7368 = vmatpush.bf16.xpose.msra.mxu0 %v7359
        %7369 = vmatmul.bf16.gmra.mxu0 %v7356
        %v7370 = vpop.f32.mrf.mxu0
        %v7371 = vadd.f32 0.0, %v7370
        %v7372 = vpop.f32.mrf.mxu0
        %v7373 = vadd.f32 0.0, %v7372
        %7374 = vdwg.mxu0
        %v7377 = vunpack.c.l.b16 %v6611
        %v7378 = vunpack.c.l.b16 %v6612
        %v7379 = vpack.c.b16 %v7378, %v7377
        %v7382 = vunpack.c.l.b16 %v6835
        %v7383 = vunpack.c.l.b16 %v6836
        %v7384 = vpack.c.b16 %v7383, %v7382
        %v7386 = vsel %vm1925, %v7379, 0
        %v7389 = vsel %vm1925, %v7384, 0
        %7391 = vmatpush.bf16.xpose.msra.mxu0 0
        %7392 = vmatpush.bf16.xpose.msra.mxu0 0
        %7393 = vmatpush.bf16.xpose.msra.mxu0 0
        %7394 = vmatpush.bf16.xpose.msra.mxu0 0
        %7395 = vmatpush.bf16.xpose.msra.mxu0 0
        %7396 = vmatpush.bf16.xpose.msra.mxu0 0
        %7397 = vmatpush.bf16.xpose.msra.mxu0 0
        %7398 = vmatpush.bf16.xpose.msra.mxu0 %v7389
        %7399 = vmatmul.bf16.gmra.mxu0 %v7386
        %v7400 = vpop.f32.mrf.mxu0
        %v7401 = vadd.f32 0.0, %v7400
        %v7402 = vpop.f32.mrf.mxu0
        %v7403 = vadd.f32 0.0, %v7402
        %7404 = vdwg.mxu0
        %v7407 = vunpack.c.l.b16 %v6613
        %v7408 = vunpack.c.l.b16 %v6614
        %v7409 = vpack.c.b16 %v7408, %v7407
        %v7412 = vunpack.c.l.b16 %v6837
        %v7413 = vunpack.c.l.b16 %v6838
        %v7414 = vpack.c.b16 %v7413, %v7412
        %v7416 = vsel %vm1925, %v7409, 0
        %v7419 = vsel %vm1925, %v7414, 0
        %7421 = vmatpush.bf16.xpose.msra.mxu0 0
        %7422 = vmatpush.bf16.xpose.msra.mxu0 0
        %7423 = vmatpush.bf16.xpose.msra.mxu0 0
        %7424 = vmatpush.bf16.xpose.msra.mxu0 0
        %7425 = vmatpush.bf16.xpose.msra.mxu0 0
        %7426 = vmatpush.bf16.xpose.msra.mxu0 0
        %7427 = vmatpush.bf16.xpose.msra.mxu0 0
        %7428 = vmatpush.bf16.xpose.msra.mxu0 %v7419
        %7429 = vmatmul.bf16.gmra.mxu0 %v7416
        %v7430 = vpop.f32.mrf.mxu0
        %v7431 = vadd.f32 0.0, %v7430
        %v7432 = vpop.f32.mrf.mxu0
        %v7433 = vadd.f32 0.0, %v7432
        %7434 = vdwg.mxu0
        %v7437 = vunpack.c.l.b16 %v6615
        %v7438 = vunpack.c.l.b16 %v6616
        %v7439 = vpack.c.b16 %v7438, %v7437
        %v7442 = vunpack.c.l.b16 %v6839
        %v7443 = vunpack.c.l.b16 %v6840
        %v7444 = vpack.c.b16 %v7443, %v7442
        %v7446 = vsel %vm1925, %v7439, 0
        %v7449 = vsel %vm1925, %v7444, 0
        %7451 = vmatpush.bf16.xpose.msra.mxu0 0
        %7452 = vmatpush.bf16.xpose.msra.mxu0 0
        %7453 = vmatpush.bf16.xpose.msra.mxu0 0
        %7454 = vmatpush.bf16.xpose.msra.mxu0 0
        %7455 = vmatpush.bf16.xpose.msra.mxu0 0
        %7456 = vmatpush.bf16.xpose.msra.mxu0 0
        %7457 = vmatpush.bf16.xpose.msra.mxu0 0
        %7458 = vmatpush.bf16.xpose.msra.mxu0 %v7449
        %7459 = vmatmul.bf16.gmra.mxu0 %v7446
        %v7460 = vpop.f32.mrf.mxu0
        %v7461 = vadd.f32 0.0, %v7460
        %v7462 = vpop.f32.mrf.mxu0
        %v7463 = vadd.f32 0.0, %v7462
        %7464 = vdwg.mxu0
        %v7467 = vunpack.c.l.b16 %v6617
        %v7468 = vunpack.c.l.b16 %v6618
        %v7469 = vpack.c.b16 %v7468, %v7467
        %v7472 = vunpack.c.l.b16 %v6841
        %v7473 = vunpack.c.l.b16 %v6842
        %v7474 = vpack.c.b16 %v7473, %v7472
        %v7476 = vsel %vm1925, %v7469, 0
        %v7479 = vsel %vm1925, %v7474, 0
        %7481 = vmatpush.bf16.xpose.msra.mxu0 0
        %7482 = vmatpush.bf16.xpose.msra.mxu0 0
        %7483 = vmatpush.bf16.xpose.msra.mxu0 0
        %7484 = vmatpush.bf16.xpose.msra.mxu0 0
        %7485 = vmatpush.bf16.xpose.msra.mxu0 0
        %7486 = vmatpush.bf16.xpose.msra.mxu0 0
        %7487 = vmatpush.bf16.xpose.msra.mxu0 0
        %7488 = vmatpush.bf16.xpose.msra.mxu0 %v7479
        %7489 = vmatmul.bf16.gmra.mxu0 %v7476
        %v7490 = vpop.f32.mrf.mxu0
        %v7491 = vadd.f32 0.0, %v7490
        %v7492 = vpop.f32.mrf.mxu0
        %v7493 = vadd.f32 0.0, %v7492
        %7494 = vdwg.mxu0
        %v7497 = vunpack.c.l.b16 %v6619
        %v7498 = vunpack.c.l.b16 %v6620
        %v7499 = vpack.c.b16 %v7498, %v7497
        %v7502 = vunpack.c.l.b16 %v6843
        %v7503 = vunpack.c.l.b16 %v6844
        %v7504 = vpack.c.b16 %v7503, %v7502
        %v7506 = vsel %vm1925, %v7499, 0
        %v7509 = vsel %vm1925, %v7504, 0
        %7511 = vmatpush.bf16.xpose.msra.mxu0 0
        %7512 = vmatpush.bf16.xpose.msra.mxu0 0
        %7513 = vmatpush.bf16.xpose.msra.mxu0 0
        %7514 = vmatpush.bf16.xpose.msra.mxu0 0
        %7515 = vmatpush.bf16.xpose.msra.mxu0 0
        %7516 = vmatpush.bf16.xpose.msra.mxu0 0
        %7517 = vmatpush.bf16.xpose.msra.mxu0 0
        %7518 = vmatpush.bf16.xpose.msra.mxu0 %v7509
        %7519 = vmatmul.bf16.gmra.mxu0 %v7506
        %v7520 = vpop.f32.mrf.mxu0
        %v7521 = vadd.f32 0.0, %v7520
        %v7522 = vpop.f32.mrf.mxu0
        %v7523 = vadd.f32 0.0, %v7522
        %7524 = vdwg.mxu0
        %v7527 = vunpack.c.l.b16 %v6621
        %v7528 = vunpack.c.l.b16 %v6622
        %v7529 = vpack.c.b16 %v7528, %v7527
        %v7532 = vunpack.c.l.b16 %v6845
        %v7533 = vunpack.c.l.b16 %v6846
        %v7534 = vpack.c.b16 %v7533, %v7532
        %v7536 = vsel %vm1925, %v7529, 0
        %v7539 = vsel %vm1925, %v7534, 0
        %7541 = vmatpush.bf16.xpose.msra.mxu0 0
        %7542 = vmatpush.bf16.xpose.msra.mxu0 0
        %7543 = vmatpush.bf16.xpose.msra.mxu0 0
        %7544 = vmatpush.bf16.xpose.msra.mxu0 0
        %7545 = vmatpush.bf16.xpose.msra.mxu0 0
        %7546 = vmatpush.bf16.xpose.msra.mxu0 0
        %7547 = vmatpush.bf16.xpose.msra.mxu0 0
        %7548 = vmatpush.bf16.xpose.msra.mxu0 %v7539
        %7549 = vmatmul.bf16.gmra.mxu0 %v7536
        %v7550 = vpop.f32.mrf.mxu0
        %v7551 = vadd.f32 0.0, %v7550
        %v7552 = vpop.f32.mrf.mxu0
        %v7553 = vadd.f32 0.0, %v7552
        %7554 = vdwg.mxu0
        %v7557 = vunpack.c.l.b16 %v6623
        %v7558 = vunpack.c.l.b16 %v6624
        %v7559 = vpack.c.b16 %v7558, %v7557
        %v7562 = vunpack.c.l.b16 %v6847
        %v7563 = vunpack.c.l.b16 %v6848
        %v7564 = vpack.c.b16 %v7563, %v7562
        %v7566 = vsel %vm1925, %v7559, 0
        %v7569 = vsel %vm1925, %v7564, 0
        %7571 = vmatpush.bf16.xpose.msra.mxu0 0
        %7572 = vmatpush.bf16.xpose.msra.mxu0 0
        %7573 = vmatpush.bf16.xpose.msra.mxu0 0
        %7574 = vmatpush.bf16.xpose.msra.mxu0 0
        %7575 = vmatpush.bf16.xpose.msra.mxu0 0
        %7576 = vmatpush.bf16.xpose.msra.mxu0 0
        %7577 = vmatpush.bf16.xpose.msra.mxu0 0
        %7578 = vmatpush.bf16.xpose.msra.mxu0 %v7569
        %7579 = vmatmul.bf16.gmra.mxu0 %v7566
        %v7580 = vpop.f32.mrf.mxu0
        %v7581 = vadd.f32 0.0, %v7580
        %v7582 = vpop.f32.mrf.mxu0
        %v7583 = vadd.f32 0.0, %v7582
        %7584 = vdwg.mxu0
        %v7587 = vunpack.c.l.b16 %v6625
        %v7588 = vunpack.c.l.b16 %v6626
        %v7589 = vpack.c.b16 %v7588, %v7587
        %v7592 = vunpack.c.l.b16 %v6849
        %v7593 = vunpack.c.l.b16 %v6850
        %v7594 = vpack.c.b16 %v7593, %v7592
        %v7596 = vsel %vm1925, %v7589, 0
        %v7599 = vsel %vm1925, %v7594, 0
        %7601 = vmatpush.bf16.xpose.msra.mxu0 0
        %7602 = vmatpush.bf16.xpose.msra.mxu0 0
        %7603 = vmatpush.bf16.xpose.msra.mxu0 0
        %7604 = vmatpush.bf16.xpose.msra.mxu0 0
        %7605 = vmatpush.bf16.xpose.msra.mxu0 0
        %7606 = vmatpush.bf16.xpose.msra.mxu0 0
        %7607 = vmatpush.bf16.xpose.msra.mxu0 0
        %7608 = vmatpush.bf16.xpose.msra.mxu0 %v7599
        %7609 = vmatmul.bf16.gmra.mxu0 %v7596
        %v7610 = vpop.f32.mrf.mxu0
        %v7611 = vadd.f32 0.0, %v7610
        %v7612 = vpop.f32.mrf.mxu0
        %v7613 = vadd.f32 0.0, %v7612
        %7614 = vdwg.mxu0
        %v7617 = vunpack.c.l.b16 %v6627
        %v7618 = vunpack.c.l.b16 %v6628
        %v7619 = vpack.c.b16 %v7618, %v7617
        %v7622 = vunpack.c.l.b16 %v6851
        %v7623 = vunpack.c.l.b16 %v6852
        %v7624 = vpack.c.b16 %v7623, %v7622
        %v7626 = vsel %vm1925, %v7619, 0
        %v7629 = vsel %vm1925, %v7624, 0
        %7631 = vmatpush.bf16.xpose.msra.mxu0 0
        %7632 = vmatpush.bf16.xpose.msra.mxu0 0
        %7633 = vmatpush.bf16.xpose.msra.mxu0 0
        %7634 = vmatpush.bf16.xpose.msra.mxu0 0
        %7635 = vmatpush.bf16.xpose.msra.mxu0 0
        %7636 = vmatpush.bf16.xpose.msra.mxu0 0
        %7637 = vmatpush.bf16.xpose.msra.mxu0 0
        %7638 = vmatpush.bf16.xpose.msra.mxu0 %v7629
        %7639 = vmatmul.bf16.gmra.mxu0 %v7626
        %v7640 = vpop.f32.mrf.mxu0
        %v7641 = vadd.f32 0.0, %v7640
        %v7642 = vpop.f32.mrf.mxu0
        %v7643 = vadd.f32 0.0, %v7642
        %7644 = vdwg.mxu0
        %v7647 = vunpack.c.l.b16 %v6629
        %v7648 = vunpack.c.l.b16 %v6630
        %v7649 = vpack.c.b16 %v7648, %v7647
        %v7652 = vunpack.c.l.b16 %v6853
        %v7653 = vunpack.c.l.b16 %v6854
        %v7654 = vpack.c.b16 %v7653, %v7652
        %v7656 = vsel %vm1925, %v7649, 0
        %v7659 = vsel %vm1925, %v7654, 0
        %7661 = vmatpush.bf16.xpose.msra.mxu0 0
        %7662 = vmatpush.bf16.xpose.msra.mxu0 0
        %7663 = vmatpush.bf16.xpose.msra.mxu0 0
        %7664 = vmatpush.bf16.xpose.msra.mxu0 0
        %7665 = vmatpush.bf16.xpose.msra.mxu0 0
        %7666 = vmatpush.bf16.xpose.msra.mxu0 0
        %7667 = vmatpush.bf16.xpose.msra.mxu0 0
        %7668 = vmatpush.bf16.xpose.msra.mxu0 %v7659
        %7669 = vmatmul.bf16.gmra.mxu0 %v7656
        %v7670 = vpop.f32.mrf.mxu0
        %v7671 = vadd.f32 0.0, %v7670
        %v7672 = vpop.f32.mrf.mxu0
        %v7673 = vadd.f32 0.0, %v7672
        %7674 = vdwg.mxu0
        %v7677 = vunpack.c.l.b16 %v6631
        %v7678 = vunpack.c.l.b16 %v6632
        %v7679 = vpack.c.b16 %v7678, %v7677
        %v7682 = vunpack.c.l.b16 %v6855
        %v7683 = vunpack.c.l.b16 %v6856
        %v7684 = vpack.c.b16 %v7683, %v7682
        %v7686 = vsel %vm1925, %v7679, 0
        %v7689 = vsel %vm1925, %v7684, 0
        %7691 = vmatpush.bf16.xpose.msra.mxu0 0
        %7692 = vmatpush.bf16.xpose.msra.mxu0 0
        %7693 = vmatpush.bf16.xpose.msra.mxu0 0
        %7694 = vmatpush.bf16.xpose.msra.mxu0 0
        %7695 = vmatpush.bf16.xpose.msra.mxu0 0
        %7696 = vmatpush.bf16.xpose.msra.mxu0 0
        %7697 = vmatpush.bf16.xpose.msra.mxu0 0
        %7698 = vmatpush.bf16.xpose.msra.mxu0 %v7689
        %7699 = vmatmul.bf16.gmra.mxu0 %v7686
        %v7700 = vpop.f32.mrf.mxu0
        %v7701 = vadd.f32 0.0, %v7700
        %v7702 = vpop.f32.mrf.mxu0
        %v7703 = vadd.f32 0.0, %v7702
        %7704 = vdwg.mxu0
        %v7707 = vunpack.c.l.b16 %v6633
        %v7708 = vunpack.c.l.b16 %v6634
        %v7709 = vpack.c.b16 %v7708, %v7707
        %v7712 = vunpack.c.l.b16 %v6857
        %v7713 = vunpack.c.l.b16 %v6858
        %v7714 = vpack.c.b16 %v7713, %v7712
        %v7716 = vsel %vm1925, %v7709, 0
        %v7719 = vsel %vm1925, %v7714, 0
        %7721 = vmatpush.bf16.xpose.msra.mxu0 0
        %7722 = vmatpush.bf16.xpose.msra.mxu0 0
        %7723 = vmatpush.bf16.xpose.msra.mxu0 0
        %7724 = vmatpush.bf16.xpose.msra.mxu0 0
        %7725 = vmatpush.bf16.xpose.msra.mxu0 0
        %7726 = vmatpush.bf16.xpose.msra.mxu0 0
        %7727 = vmatpush.bf16.xpose.msra.mxu0 0
        %7728 = vmatpush.bf16.xpose.msra.mxu0 %v7719
        %7729 = vmatmul.bf16.gmra.mxu0 %v7716
        %v7730 = vpop.f32.mrf.mxu0
        %v7731 = vadd.f32 0.0, %v7730
        %v7732 = vpop.f32.mrf.mxu0
        %v7733 = vadd.f32 0.0, %v7732
        %7734 = vdwg.mxu0
        %v7737 = vunpack.c.l.b16 %v6635
        %v7738 = vunpack.c.l.b16 %v6636
        %v7739 = vpack.c.b16 %v7738, %v7737
        %v7742 = vunpack.c.l.b16 %v6859
        %v7743 = vunpack.c.l.b16 %v6860
        %v7744 = vpack.c.b16 %v7743, %v7742
        %v7746 = vsel %vm1925, %v7739, 0
        %v7749 = vsel %vm1925, %v7744, 0
        %7751 = vmatpush.bf16.xpose.msra.mxu0 0
        %7752 = vmatpush.bf16.xpose.msra.mxu0 0
        %7753 = vmatpush.bf16.xpose.msra.mxu0 0
        %7754 = vmatpush.bf16.xpose.msra.mxu0 0
        %7755 = vmatpush.bf16.xpose.msra.mxu0 0
        %7756 = vmatpush.bf16.xpose.msra.mxu0 0
        %7757 = vmatpush.bf16.xpose.msra.mxu0 0
        %7758 = vmatpush.bf16.xpose.msra.mxu0 %v7749
        %7759 = vmatmul.bf16.gmra.mxu0 %v7746
        %v7760 = vpop.f32.mrf.mxu0
        %v7761 = vadd.f32 0.0, %v7760
        %v7762 = vpop.f32.mrf.mxu0
        %v7763 = vadd.f32 0.0, %v7762
        %7764 = vdwg.mxu0
        %v7767 = vunpack.c.l.b16 %v6637
        %v7768 = vunpack.c.l.b16 %v6638
        %v7769 = vpack.c.b16 %v7768, %v7767
        %v7772 = vunpack.c.l.b16 %v6861
        %v7773 = vunpack.c.l.b16 %v6862
        %v7774 = vpack.c.b16 %v7773, %v7772
        %v7776 = vsel %vm1925, %v7769, 0
        %v7779 = vsel %vm1925, %v7774, 0
        %7781 = vmatpush.bf16.xpose.msra.mxu0 0
        %7782 = vmatpush.bf16.xpose.msra.mxu0 0
        %7783 = vmatpush.bf16.xpose.msra.mxu0 0
        %7784 = vmatpush.bf16.xpose.msra.mxu0 0
        %7785 = vmatpush.bf16.xpose.msra.mxu0 0
        %7786 = vmatpush.bf16.xpose.msra.mxu0 0
        %7787 = vmatpush.bf16.xpose.msra.mxu0 0
        %7788 = vmatpush.bf16.xpose.msra.mxu0 %v7779
        %7789 = vmatmul.bf16.gmra.mxu0 %v7776
        %v7790 = vpop.f32.mrf.mxu0
        %v7791 = vadd.f32 0.0, %v7790
        %v7792 = vpop.f32.mrf.mxu0
        %v7793 = vadd.f32 0.0, %v7792
        %7794 = vdwg.mxu0
        %v7797 = vunpack.c.l.b16 %v6639
        %v7798 = vunpack.c.l.b16 %v6640
        %v7799 = vpack.c.b16 %v7798, %v7797
        %v7802 = vunpack.c.l.b16 %v6863
        %v7803 = vunpack.c.l.b16 %v6864
        %v7804 = vpack.c.b16 %v7803, %v7802
        %v7806 = vsel %vm1925, %v7799, 0
        %v7809 = vsel %vm1925, %v7804, 0
        %7811 = vmatpush.bf16.xpose.msra.mxu0 0
        %7812 = vmatpush.bf16.xpose.msra.mxu0 0
        %7813 = vmatpush.bf16.xpose.msra.mxu0 0
        %7814 = vmatpush.bf16.xpose.msra.mxu0 0
        %7815 = vmatpush.bf16.xpose.msra.mxu0 0
        %7816 = vmatpush.bf16.xpose.msra.mxu0 0
        %7817 = vmatpush.bf16.xpose.msra.mxu0 0
        %7818 = vmatpush.bf16.xpose.msra.mxu0 %v7809
        %7819 = vmatmul.bf16.gmra.mxu0 %v7806
        %v7820 = vpop.f32.mrf.mxu0
        %v7821 = vadd.f32 0.0, %v7820
        %v7822 = vpop.f32.mrf.mxu0
        %v7823 = vadd.f32 0.0, %v7822
        %7824 = vdwg.mxu0
        %v7827 = vunpack.c.l.b16 %v6641
        %v7828 = vunpack.c.l.b16 %v6642
        %v7829 = vpack.c.b16 %v7828, %v7827
        %v7832 = vunpack.c.l.b16 %v6865
        %v7833 = vunpack.c.l.b16 %v6866
        %v7834 = vpack.c.b16 %v7833, %v7832
        %v7836 = vsel %vm1925, %v7829, 0
        %v7839 = vsel %vm1925, %v7834, 0
        %7841 = vmatpush.bf16.xpose.msra.mxu0 0
        %7842 = vmatpush.bf16.xpose.msra.mxu0 0
        %7843 = vmatpush.bf16.xpose.msra.mxu0 0
        %7844 = vmatpush.bf16.xpose.msra.mxu0 0
        %7845 = vmatpush.bf16.xpose.msra.mxu0 0
        %7846 = vmatpush.bf16.xpose.msra.mxu0 0
        %7847 = vmatpush.bf16.xpose.msra.mxu0 0
        %7848 = vmatpush.bf16.xpose.msra.mxu0 %v7839
        %7849 = vmatmul.bf16.gmra.mxu0 %v7836
        %v7850 = vpop.f32.mrf.mxu0
        %v7851 = vadd.f32 0.0, %v7850
        %v7852 = vpop.f32.mrf.mxu0
        %v7853 = vadd.f32 0.0, %v7852
        %7854 = vdwg.mxu0
        %v7857 = vunpack.c.l.b16 %v6643
        %v7858 = vunpack.c.l.b16 %v6644
        %v7859 = vpack.c.b16 %v7858, %v7857
        %v7862 = vunpack.c.l.b16 %v6867
        %v7863 = vunpack.c.l.b16 %v6868
        %v7864 = vpack.c.b16 %v7863, %v7862
        %v7866 = vsel %vm1925, %v7859, 0
        %v7869 = vsel %vm1925, %v7864, 0
        %7871 = vmatpush.bf16.xpose.msra.mxu0 0
        %7872 = vmatpush.bf16.xpose.msra.mxu0 0
        %7873 = vmatpush.bf16.xpose.msra.mxu0 0
        %7874 = vmatpush.bf16.xpose.msra.mxu0 0
        %7875 = vmatpush.bf16.xpose.msra.mxu0 0
        %7876 = vmatpush.bf16.xpose.msra.mxu0 0
        %7877 = vmatpush.bf16.xpose.msra.mxu0 0
        %7878 = vmatpush.bf16.xpose.msra.mxu0 %v7869
        %7879 = vmatmul.bf16.gmra.mxu0 %v7866
        %v7880 = vpop.f32.mrf.mxu0
        %v7881 = vadd.f32 0.0, %v7880
        %v7882 = vpop.f32.mrf.mxu0
        %v7883 = vadd.f32 0.0, %v7882
        %7884 = vdwg.mxu0
        %v7887 = vunpack.c.l.b16 %v6645
        %v7888 = vunpack.c.l.b16 %v6646
        %v7889 = vpack.c.b16 %v7888, %v7887
        %v7892 = vunpack.c.l.b16 %v6869
        %v7893 = vunpack.c.l.b16 %v6870
        %v7894 = vpack.c.b16 %v7893, %v7892
        %v7896 = vsel %vm1925, %v7889, 0
        %v7899 = vsel %vm1925, %v7894, 0
        %7901 = vmatpush.bf16.xpose.msra.mxu0 0
        %7902 = vmatpush.bf16.xpose.msra.mxu0 0
        %7903 = vmatpush.bf16.xpose.msra.mxu0 0
        %7904 = vmatpush.bf16.xpose.msra.mxu0 0
        %7905 = vmatpush.bf16.xpose.msra.mxu0 0
        %7906 = vmatpush.bf16.xpose.msra.mxu0 0
        %7907 = vmatpush.bf16.xpose.msra.mxu0 0
        %7908 = vmatpush.bf16.xpose.msra.mxu0 %v7899
        %7909 = vmatmul.bf16.gmra.mxu0 %v7896
        %v7910 = vpop.f32.mrf.mxu0
        %v7911 = vadd.f32 0.0, %v7910
        %v7912 = vpop.f32.mrf.mxu0
        %v7913 = vadd.f32 0.0, %v7912
        %7914 = vdwg.mxu0
        %v7917 = vunpack.c.l.b16 %v6647
        %v7918 = vunpack.c.l.b16 %v6648
        %v7919 = vpack.c.b16 %v7918, %v7917
        %v7922 = vunpack.c.l.b16 %v6871
        %v7923 = vunpack.c.l.b16 %v6872
        %v7924 = vpack.c.b16 %v7923, %v7922
        %v7926 = vsel %vm1925, %v7919, 0
        %v7929 = vsel %vm1925, %v7924, 0
        %7931 = vmatpush.bf16.xpose.msra.mxu0 0
        %7932 = vmatpush.bf16.xpose.msra.mxu0 0
        %7933 = vmatpush.bf16.xpose.msra.mxu0 0
        %7934 = vmatpush.bf16.xpose.msra.mxu0 0
        %7935 = vmatpush.bf16.xpose.msra.mxu0 0
        %7936 = vmatpush.bf16.xpose.msra.mxu0 0
        %7937 = vmatpush.bf16.xpose.msra.mxu0 0
        %7938 = vmatpush.bf16.xpose.msra.mxu0 %v7929
        %7939 = vmatmul.bf16.gmra.mxu0 %v7926
        %v7940 = vpop.f32.mrf.mxu0
        %v7941 = vadd.f32 0.0, %v7940
        %v7942 = vpop.f32.mrf.mxu0
        %v7943 = vadd.f32 0.0, %v7942
        %7944 = vdwg.mxu0
        %v7947 = vunpack.c.l.b16 %v6649
        %v7948 = vunpack.c.l.b16 %v6650
        %v7949 = vpack.c.b16 %v7948, %v7947
        %v7952 = vunpack.c.l.b16 %v6873
        %v7953 = vunpack.c.l.b16 %v6874
        %v7954 = vpack.c.b16 %v7953, %v7952
        %v7956 = vsel %vm1925, %v7949, 0
        %v7959 = vsel %vm1925, %v7954, 0
        %7961 = vmatpush.bf16.xpose.msra.mxu0 0
        %7962 = vmatpush.bf16.xpose.msra.mxu0 0
        %7963 = vmatpush.bf16.xpose.msra.mxu0 0
        %7964 = vmatpush.bf16.xpose.msra.mxu0 0
        %7965 = vmatpush.bf16.xpose.msra.mxu0 0
        %7966 = vmatpush.bf16.xpose.msra.mxu0 0
        %7967 = vmatpush.bf16.xpose.msra.mxu0 0
        %7968 = vmatpush.bf16.xpose.msra.mxu0 %v7959
        %7969 = vmatmul.bf16.gmra.mxu0 %v7956
        %v7970 = vpop.f32.mrf.mxu0
        %v7971 = vadd.f32 0.0, %v7970
        %v7972 = vpop.f32.mrf.mxu0
        %v7973 = vadd.f32 0.0, %v7972
        %7974 = vdwg.mxu0
        %v7977 = vunpack.c.l.b16 %v6651
        %v7978 = vunpack.c.l.b16 %v6652
        %v7979 = vpack.c.b16 %v7978, %v7977
        %v7982 = vunpack.c.l.b16 %v6875
        %v7983 = vunpack.c.l.b16 %v6876
        %v7984 = vpack.c.b16 %v7983, %v7982
        %v7986 = vsel %vm1925, %v7979, 0
        %v7989 = vsel %vm1925, %v7984, 0
        %7991 = vmatpush.bf16.xpose.msra.mxu0 0
        %7992 = vmatpush.bf16.xpose.msra.mxu0 0
        %7993 = vmatpush.bf16.xpose.msra.mxu0 0
        %7994 = vmatpush.bf16.xpose.msra.mxu0 0
        %7995 = vmatpush.bf16.xpose.msra.mxu0 0
        %7996 = vmatpush.bf16.xpose.msra.mxu0 0
        %7997 = vmatpush.bf16.xpose.msra.mxu0 0
        %7998 = vmatpush.bf16.xpose.msra.mxu0 %v7989
        %7999 = vmatmul.bf16.gmra.mxu0 %v7986
        %v8000 = vpop.f32.mrf.mxu0
        %v8001 = vadd.f32 0.0, %v8000
        %v8002 = vpop.f32.mrf.mxu0
        %v8003 = vadd.f32 0.0, %v8002
        %8004 = vdwg.mxu0
        %v8007 = vunpack.c.l.b16 %v6653
        %v8008 = vunpack.c.l.b16 %v6654
        %v8009 = vpack.c.b16 %v8008, %v8007
        %v8012 = vunpack.c.l.b16 %v6877
        %v8013 = vunpack.c.l.b16 %v6878
        %v8014 = vpack.c.b16 %v8013, %v8012
        %v8016 = vsel %vm1925, %v8009, 0
        %v8019 = vsel %vm1925, %v8014, 0
        %8021 = vmatpush.bf16.xpose.msra.mxu0 0
        %8022 = vmatpush.bf16.xpose.msra.mxu0 0
        %8023 = vmatpush.bf16.xpose.msra.mxu0 0
        %8024 = vmatpush.bf16.xpose.msra.mxu0 0
        %8025 = vmatpush.bf16.xpose.msra.mxu0 0
        %8026 = vmatpush.bf16.xpose.msra.mxu0 0
        %8027 = vmatpush.bf16.xpose.msra.mxu0 0
        %8028 = vmatpush.bf16.xpose.msra.mxu0 %v8019
        %8029 = vmatmul.bf16.gmra.mxu0 %v8016
        %v8030 = vpop.f32.mrf.mxu0
        %v8031 = vadd.f32 0.0, %v8030
        %v8032 = vpop.f32.mrf.mxu0
        %v8033 = vadd.f32 0.0, %v8032
        %8034 = vdwg.mxu0
        %v8037 = vunpack.c.l.b16 %v6655
        %v8038 = vunpack.c.l.b16 %v6656
        %v8039 = vpack.c.b16 %v8038, %v8037
        %v8042 = vunpack.c.l.b16 %v6879
        %v8043 = vunpack.c.l.b16 %v6880
        %v8044 = vpack.c.b16 %v8043, %v8042
        %v8046 = vsel %vm1925, %v8039, 0
        %v8049 = vsel %vm1925, %v8044, 0
        %8051 = vmatpush.bf16.xpose.msra.mxu0 0
        %8052 = vmatpush.bf16.xpose.msra.mxu0 0
        %8053 = vmatpush.bf16.xpose.msra.mxu0 0
        %8054 = vmatpush.bf16.xpose.msra.mxu0 0
        %8055 = vmatpush.bf16.xpose.msra.mxu0 0
        %8056 = vmatpush.bf16.xpose.msra.mxu0 0
        %8057 = vmatpush.bf16.xpose.msra.mxu0 0
        %8058 = vmatpush.bf16.xpose.msra.mxu0 %v8049
        %8059 = vmatmul.bf16.gmra.mxu0 %v8046
        %v8060 = vpop.f32.mrf.mxu0
        %v8061 = vadd.f32 0.0, %v8060
        %v8062 = vpop.f32.mrf.mxu0
        %v8063 = vadd.f32 0.0, %v8062
        %8064 = vdwg.mxu0
        %v8065 = vmul.f32 %v7131, 0.35355338
        %v8066 = vmul.f32 %v7133, 0.35355338
        %v8067 = vmul.f32 %v7161, 0.35355338
        %v8068 = vmul.f32 %v7163, 0.35355338
        %v8069 = vmul.f32 %v7191, 0.35355338
        %v8070 = vmul.f32 %v7193, 0.35355338
        %v8071 = vmul.f32 %v7221, 0.35355338
        %v8072 = vmul.f32 %v7223, 0.35355338
        %v8073 = vmul.f32 %v7251, 0.35355338
        %v8074 = vmul.f32 %v7253, 0.35355338
        %v8075 = vmul.f32 %v7281, 0.35355338
        %v8076 = vmul.f32 %v7283, 0.35355338
        %v8077 = vmul.f32 %v7311, 0.35355338
        %v8078 = vmul.f32 %v7313, 0.35355338
        %v8079 = vmul.f32 %v7341, 0.35355338
        %v8080 = vmul.f32 %v7343, 0.35355338
        %v8081 = vmul.f32 %v7371, 0.35355338
        %v8082 = vmul.f32 %v7373, 0.35355338
        %v8083 = vmul.f32 %v7401, 0.35355338
        %v8084 = vmul.f32 %v7403, 0.35355338
        %v8085 = vmul.f32 %v7431, 0.35355338
        %v8086 = vmul.f32 %v7433, 0.35355338
        %v8087 = vmul.f32 %v7461, 0.35355338
        %v8088 = vmul.f32 %v7463, 0.35355338
        %v8089 = vmul.f32 %v7491, 0.35355338
        %v8090 = vmul.f32 %v7493, 0.35355338
        %v8091 = vmul.f32 %v7521, 0.35355338
        %v8092 = vmul.f32 %v7523, 0.35355338
        %v8093 = vmul.f32 %v7551, 0.35355338
        %v8094 = vmul.f32 %v7553, 0.35355338
        %v8095 = vmul.f32 %v7581, 0.35355338
        %v8096 = vmul.f32 %v7583, 0.35355338
        %v8097 = vmul.f32 %v7611, 0.35355338
        %v8098 = vmul.f32 %v7613, 0.35355338
        %v8099 = vmul.f32 %v7641, 0.35355338
        %v8100 = vmul.f32 %v7643, 0.35355338
        %v8101 = vmul.f32 %v7671, 0.35355338
        %v8102 = vmul.f32 %v7673, 0.35355338
        %v8103 = vmul.f32 %v7701, 0.35355338
        %v8104 = vmul.f32 %v7703, 0.35355338
        %v8105 = vmul.f32 %v7731, 0.35355338
        %v8106 = vmul.f32 %v7733, 0.35355338
        %v8107 = vmul.f32 %v7761, 0.35355338
        %v8108 = vmul.f32 %v7763, 0.35355338
        %v8109 = vmul.f32 %v7791, 0.35355338
        %v8110 = vmul.f32 %v7793, 0.35355338
        %v8111 = vmul.f32 %v7821, 0.35355338
        %v8112 = vmul.f32 %v7823, 0.35355338
        %v8113 = vmul.f32 %v7851, 0.35355338
        %v8114 = vmul.f32 %v7853, 0.35355338
        %v8115 = vmul.f32 %v7881, 0.35355338
        %v8116 = vmul.f32 %v7883, 0.35355338
        %v8117 = vmul.f32 %v7911, 0.35355338
        %v8118 = vmul.f32 %v7913, 0.35355338
        %v8119 = vmul.f32 %v7941, 0.35355338
        %v8120 = vmul.f32 %v7943, 0.35355338
        %v8121 = vmul.f32 %v7971, 0.35355338
        %v8122 = vmul.f32 %v7973, 0.35355338
        %v8123 = vmul.f32 %v8001, 0.35355338
        %v8124 = vmul.f32 %v8003, 0.35355338
        %v8125 = vmul.f32 %v8031, 0.35355338
        %v8126 = vmul.f32 %v8033, 0.35355338
        %v8127 = vmul.f32 %v8061, 0.35355338
        %v8128 = vmul.f32 %v8063, 0.35355338
        %v8129 = vadd.f32 %v8065, %v2948
        %v8130 = vadd.f32 %v8066, %v2948
        %v8131 = vadd.f32 %v8067, %v2948
        %v8132 = vadd.f32 %v8068, %v2948
        %v8133 = vadd.f32 %v8069, %v2948
        %v8134 = vadd.f32 %v8070, %v2948
        %v8135 = vadd.f32 %v8071, %v2948
        %v8136 = vadd.f32 %v8072, %v2948
        %v8137 = vadd.f32 %v8073, %v2949
        %v8138 = vadd.f32 %v8074, %v2949
        %v8139 = vadd.f32 %v8075, %v2949
        %v8140 = vadd.f32 %v8076, %v2949
        %v8141 = vadd.f32 %v8077, %v2949
        %v8142 = vadd.f32 %v8078, %v2949
        %v8143 = vadd.f32 %v8079, %v2949
        %v8144 = vadd.f32 %v8080, %v2949
        %v8145 = vadd.f32 %v8081, %v2950
        %v8146 = vadd.f32 %v8082, %v2950
        %v8147 = vadd.f32 %v8083, %v2950
        %v8148 = vadd.f32 %v8084, %v2950
        %v8149 = vadd.f32 %v8085, %v2950
        %v8150 = vadd.f32 %v8086, %v2950
        %v8151 = vadd.f32 %v8087, %v2950
        %v8152 = vadd.f32 %v8088, %v2950
        %v8153 = vadd.f32 %v8089, %v2951
        %v8154 = vadd.f32 %v8090, %v2951
        %v8155 = vadd.f32 %v8091, %v2951
        %v8156 = vadd.f32 %v8092, %v2951
        %v8157 = vadd.f32 %v8093, %v2951
        %v8158 = vadd.f32 %v8094, %v2951
        %v8159 = vadd.f32 %v8095, %v2951
        %v8160 = vadd.f32 %v8096, %v2951
        %v8161 = vadd.f32 %v8097, %v2952
        %v8162 = vadd.f32 %v8098, %v2952
        %v8163 = vadd.f32 %v8099, %v2952
        %v8164 = vadd.f32 %v8100, %v2952
        %v8165 = vadd.f32 %v8101, %v2952
        %v8166 = vadd.f32 %v8102, %v2952
        %v8167 = vadd.f32 %v8103, %v2952
        %v8168 = vadd.f32 %v8104, %v2952
        %v8169 = vadd.f32 %v8105, %v2953
        %v8170 = vadd.f32 %v8106, %v2953
        %v8171 = vadd.f32 %v8107, %v2953
        %v8172 = vadd.f32 %v8108, %v2953
        %v8173 = vadd.f32 %v8109, %v2953
        %v8174 = vadd.f32 %v8110, %v2953
        %v8175 = vadd.f32 %v8111, %v2953
        %v8176 = vadd.f32 %v8112, %v2953
        %v8177 = vadd.f32 %v8113, %v2954
        %v8178 = vadd.f32 %v8114, %v2954
        %v8179 = vadd.f32 %v8115, %v2954
        %v8180 = vadd.f32 %v8116, %v2954
        %v8181 = vadd.f32 %v8117, %v2954
        %v8182 = vadd.f32 %v8118, %v2954
        %v8183 = vadd.f32 %v8119, %v2954
        %v8184 = vadd.f32 %v8120, %v2954
        %v8185 = vadd.f32 %v8121, %v2955
        %v8186 = vadd.f32 %v8122, %v2955
        %v8187 = vadd.f32 %v8123, %v2955
        %v8188 = vadd.f32 %v8124, %v2955
        %v8189 = vadd.f32 %v8125, %v2955
        %v8190 = vadd.f32 %v8126, %v2955
        %v8191 = vadd.f32 %v8127, %v2955
        %v8192 = vadd.f32 %v8128, %v2955
        %v8193 = vsel %vm3028, %v8129, -inf
        %8194 = vmax.xlane.f32.xlu0 %v8193
        %v8195 = vpop.xlane.xlu0 %8194
        %v8196 = vsel %vm3028, %v8130, -inf
        %8197 = vmax.xlane.f32.xlu0 %v8196
        %v8198 = vpop.xlane.xlu0 %8197
        %v8199 = vsel %vm3028, %v8131, -inf
        %8200 = vmax.xlane.f32.xlu0 %v8199
        %v8201 = vpop.xlane.xlu0 %8200
        %v8202 = vsel %vm3028, %v8132, -inf
        %8203 = vmax.xlane.f32.xlu0 %v8202
        %v8204 = vpop.xlane.xlu0 %8203
        %v8205 = vsel %vm3028, %v8133, -inf
        %8206 = vmax.xlane.f32.xlu0 %v8205
        %v8207 = vpop.xlane.xlu0 %8206
        %v8208 = vsel %vm3028, %v8134, -inf
        %8209 = vmax.xlane.f32.xlu0 %v8208
        %v8210 = vpop.xlane.xlu0 %8209
        %v8211 = vsel %vm3028, %v8135, -inf
        %8212 = vmax.xlane.f32.xlu0 %v8211
        %v8213 = vpop.xlane.xlu0 %8212
        %v8214 = vsel %vm3028, %v8136, -inf
        %8215 = vmax.xlane.f32.xlu0 %v8214
        %v8216 = vpop.xlane.xlu0 %8215
        %v8217 = vsel %vm3028, %v8137, -inf
        %8218 = vmax.xlane.f32.xlu0 %v8217
        %v8219 = vpop.xlane.xlu0 %8218
        %v8220 = vsel %vm3028, %v8138, -inf
        %8221 = vmax.xlane.f32.xlu0 %v8220
        %v8222 = vpop.xlane.xlu0 %8221
        %v8223 = vsel %vm3028, %v8139, -inf
        %8224 = vmax.xlane.f32.xlu0 %v8223
        %v8225 = vpop.xlane.xlu0 %8224
        %v8226 = vsel %vm3028, %v8140, -inf
        %8227 = vmax.xlane.f32.xlu0 %v8226
        %v8228 = vpop.xlane.xlu0 %8227
        %v8229 = vsel %vm3028, %v8141, -inf
        %8230 = vmax.xlane.f32.xlu0 %v8229
        %v8231 = vpop.xlane.xlu0 %8230
        %v8232 = vsel %vm3028, %v8142, -inf
        %8233 = vmax.xlane.f32.xlu0 %v8232
        %v8234 = vpop.xlane.xlu0 %8233
        %v8235 = vsel %vm3028, %v8143, -inf
        %8236 = vmax.xlane.f32.xlu0 %v8235
        %v8237 = vpop.xlane.xlu0 %8236
        %v8238 = vsel %vm3028, %v8144, -inf
        %8239 = vmax.xlane.f32.xlu0 %v8238
        %v8240 = vpop.xlane.xlu0 %8239
        %v8241 = vsel %vm3028, %v8145, -inf
        %8242 = vmax.xlane.f32.xlu0 %v8241
        %v8243 = vpop.xlane.xlu0 %8242
        %v8244 = vsel %vm3028, %v8146, -inf
        %8245 = vmax.xlane.f32.xlu0 %v8244
        %v8246 = vpop.xlane.xlu0 %8245
        %v8247 = vsel %vm3028, %v8147, -inf
        %8248 = vmax.xlane.f32.xlu0 %v8247
        %v8249 = vpop.xlane.xlu0 %8248
        %v8250 = vsel %vm3028, %v8148, -inf
        %8251 = vmax.xlane.f32.xlu0 %v8250
        %v8252 = vpop.xlane.xlu0 %8251
        %v8253 = vsel %vm3028, %v8149, -inf
        %8254 = vmax.xlane.f32.xlu0 %v8253
        %v8255 = vpop.xlane.xlu0 %8254
        %v8256 = vsel %vm3028, %v8150, -inf
        %8257 = vmax.xlane.f32.xlu0 %v8256
        %v8258 = vpop.xlane.xlu0 %8257
        %v8259 = vsel %vm3028, %v8151, -inf
        %8260 = vmax.xlane.f32.xlu0 %v8259
        %v8261 = vpop.xlane.xlu0 %8260
        %v8262 = vsel %vm3028, %v8152, -inf
        %8263 = vmax.xlane.f32.xlu0 %v8262
        %v8264 = vpop.xlane.xlu0 %8263
        %v8265 = vsel %vm3028, %v8153, -inf
        %8266 = vmax.xlane.f32.xlu0 %v8265
        %v8267 = vpop.xlane.xlu0 %8266
        %v8268 = vsel %vm3028, %v8154, -inf
        %8269 = vmax.xlane.f32.xlu0 %v8268
        %v8270 = vpop.xlane.xlu0 %8269
        %v8271 = vsel %vm3028, %v8155, -inf
        %8272 = vmax.xlane.f32.xlu0 %v8271
        %v8273 = vpop.xlane.xlu0 %8272
        %v8274 = vsel %vm3028, %v8156, -inf
        %8275 = vmax.xlane.f32.xlu0 %v8274
        %v8276 = vpop.xlane.xlu0 %8275
        %v8277 = vsel %vm3028, %v8157, -inf
        %8278 = vmax.xlane.f32.xlu0 %v8277
        %v8279 = vpop.xlane.xlu0 %8278
        %v8280 = vsel %vm3028, %v8158, -inf
        %8281 = vmax.xlane.f32.xlu0 %v8280
        %v8282 = vpop.xlane.xlu0 %8281
        %v8283 = vsel %vm3028, %v8159, -inf
        %8284 = vmax.xlane.f32.xlu0 %v8283
        %v8285 = vpop.xlane.xlu0 %8284
        %v8286 = vsel %vm3028, %v8160, -inf
        %8287 = vmax.xlane.f32.xlu0 %v8286
        %v8288 = vpop.xlane.xlu0 %8287
        %v8289 = vsel %vm3028, %v8161, -inf
        %8290 = vmax.xlane.f32.xlu0 %v8289
        %v8291 = vpop.xlane.xlu0 %8290
        %v8292 = vsel %vm3028, %v8162, -inf
        %8293 = vmax.xlane.f32.xlu0 %v8292
        %v8294 = vpop.xlane.xlu0 %8293
        %v8295 = vsel %vm3028, %v8163, -inf
        %8296 = vmax.xlane.f32.xlu0 %v8295
        %v8297 = vpop.xlane.xlu0 %8296
        %v8298 = vsel %vm3028, %v8164, -inf
        %8299 = vmax.xlane.f32.xlu0 %v8298
        %v8300 = vpop.xlane.xlu0 %8299
        %v8301 = vsel %vm3028, %v8165, -inf
        %8302 = vmax.xlane.f32.xlu0 %v8301
        %v8303 = vpop.xlane.xlu0 %8302
        %v8304 = vsel %vm3028, %v8166, -inf
        %8305 = vmax.xlane.f32.xlu0 %v8304
        %v8306 = vpop.xlane.xlu0 %8305
        %v8307 = vsel %vm3028, %v8167, -inf
        %8308 = vmax.xlane.f32.xlu0 %v8307
        %v8309 = vpop.xlane.xlu0 %8308
        %v8310 = vsel %vm3028, %v8168, -inf
        %8311 = vmax.xlane.f32.xlu0 %v8310
        %v8312 = vpop.xlane.xlu0 %8311
        %v8313 = vsel %vm3028, %v8169, -inf
        %8314 = vmax.xlane.f32.xlu0 %v8313
        %v8315 = vpop.xlane.xlu0 %8314
        %v8316 = vsel %vm3028, %v8170, -inf
        %8317 = vmax.xlane.f32.xlu0 %v8316
        %v8318 = vpop.xlane.xlu0 %8317
        %v8319 = vsel %vm3028, %v8171, -inf
        %8320 = vmax.xlane.f32.xlu0 %v8319
        %v8321 = vpop.xlane.xlu0 %8320
        %v8322 = vsel %vm3028, %v8172, -inf
        %8323 = vmax.xlane.f32.xlu0 %v8322
        %v8324 = vpop.xlane.xlu0 %8323
        %v8325 = vsel %vm3028, %v8173, -inf
        %8326 = vmax.xlane.f32.xlu0 %v8325
        %v8327 = vpop.xlane.xlu0 %8326
        %v8328 = vsel %vm3028, %v8174, -inf
        %8329 = vmax.xlane.f32.xlu0 %v8328
        %v8330 = vpop.xlane.xlu0 %8329
        %v8331 = vsel %vm3028, %v8175, -inf
        %8332 = vmax.xlane.f32.xlu0 %v8331
        %v8333 = vpop.xlane.xlu0 %8332
        %v8334 = vsel %vm3028, %v8176, -inf
        %8335 = vmax.xlane.f32.xlu0 %v8334
        %v8336 = vpop.xlane.xlu0 %8335
        %v8337 = vsel %vm3028, %v8177, -inf
        %8338 = vmax.xlane.f32.xlu0 %v8337
        %v8339 = vpop.xlane.xlu0 %8338
        %v8340 = vsel %vm3028, %v8178, -inf
        %8341 = vmax.xlane.f32.xlu0 %v8340
        %v8342 = vpop.xlane.xlu0 %8341
        %v8343 = vsel %vm3028, %v8179, -inf
        %8344 = vmax.xlane.f32.xlu0 %v8343
        %v8345 = vpop.xlane.xlu0 %8344
        %v8346 = vsel %vm3028, %v8180, -inf
        %8347 = vmax.xlane.f32.xlu0 %v8346
        %v8348 = vpop.xlane.xlu0 %8347
        %v8349 = vsel %vm3028, %v8181, -inf
        %8350 = vmax.xlane.f32.xlu0 %v8349
        %v8351 = vpop.xlane.xlu0 %8350
        %v8352 = vsel %vm3028, %v8182, -inf
        %8353 = vmax.xlane.f32.xlu0 %v8352
        %v8354 = vpop.xlane.xlu0 %8353
        %v8355 = vsel %vm3028, %v8183, -inf
        %8356 = vmax.xlane.f32.xlu0 %v8355
        %v8357 = vpop.xlane.xlu0 %8356
        %v8358 = vsel %vm3028, %v8184, -inf
        %8359 = vmax.xlane.f32.xlu0 %v8358
        %v8360 = vpop.xlane.xlu0 %8359
        %v8361 = vsel %vm3028, %v8185, -inf
        %8362 = vmax.xlane.f32.xlu0 %v8361
        %v8363 = vpop.xlane.xlu0 %8362
        %v8364 = vsel %vm3028, %v8186, -inf
        %8365 = vmax.xlane.f32.xlu0 %v8364
        %v8366 = vpop.xlane.xlu0 %8365
        %v8367 = vsel %vm3028, %v8187, -inf
        %8368 = vmax.xlane.f32.xlu0 %v8367
        %v8369 = vpop.xlane.xlu0 %8368
        %v8370 = vsel %vm3028, %v8188, -inf
        %8371 = vmax.xlane.f32.xlu0 %v8370
        %v8372 = vpop.xlane.xlu0 %8371
        %v8373 = vsel %vm3028, %v8189, -inf
        %8374 = vmax.xlane.f32.xlu0 %v8373
        %v8375 = vpop.xlane.xlu0 %8374
        %v8376 = vsel %vm3028, %v8190, -inf
        %8377 = vmax.xlane.f32.xlu0 %v8376
        %v8378 = vpop.xlane.xlu0 %8377
        %v8379 = vsel %vm3028, %v8191, -inf
        %8380 = vmax.xlane.f32.xlu0 %v8379
        %v8381 = vpop.xlane.xlu0 %8380
        %v8382 = vsel %vm3028, %v8192, -inf
        %8383 = vmax.xlane.f32.xlu0 %v8382
        %v8384 = vpop.xlane.xlu0 %8383
        %v8385 = vsub.f32 %v8129, %v8195
        %v8386 = vsub.f32 %v8130, %v8198
        %v8387 = vsub.f32 %v8131, %v8201
        %v8388 = vsub.f32 %v8132, %v8204
        %v8389 = vsub.f32 %v8133, %v8207
        %v8390 = vsub.f32 %v8134, %v8210
        %v8391 = vsub.f32 %v8135, %v8213
        %v8392 = vsub.f32 %v8136, %v8216
        %v8393 = vsub.f32 %v8137, %v8219
        %v8394 = vsub.f32 %v8138, %v8222
        %v8395 = vsub.f32 %v8139, %v8225
        %v8396 = vsub.f32 %v8140, %v8228
        %v8397 = vsub.f32 %v8141, %v8231
        %v8398 = vsub.f32 %v8142, %v8234
        %v8399 = vsub.f32 %v8143, %v8237
        %v8400 = vsub.f32 %v8144, %v8240
        %v8401 = vsub.f32 %v8145, %v8243
        %v8402 = vsub.f32 %v8146, %v8246
        %v8403 = vsub.f32 %v8147, %v8249
        %v8404 = vsub.f32 %v8148, %v8252
        %v8405 = vsub.f32 %v8149, %v8255
        %v8406 = vsub.f32 %v8150, %v8258
        %v8407 = vsub.f32 %v8151, %v8261
        %v8408 = vsub.f32 %v8152, %v8264
        %v8409 = vsub.f32 %v8153, %v8267
        %v8410 = vsub.f32 %v8154, %v8270
        %v8411 = vsub.f32 %v8155, %v8273
        %v8412 = vsub.f32 %v8156, %v8276
        %v8413 = vsub.f32 %v8157, %v8279
        %v8414 = vsub.f32 %v8158, %v8282
        %v8415 = vsub.f32 %v8159, %v8285
        %v8416 = vsub.f32 %v8160, %v8288
        %v8417 = vsub.f32 %v8161, %v8291
        %v8418 = vsub.f32 %v8162, %v8294
        %v8419 = vsub.f32 %v8163, %v8297
        %v8420 = vsub.f32 %v8164, %v8300
        %v8421 = vsub.f32 %v8165, %v8303
        %v8422 = vsub.f32 %v8166, %v8306
        %v8423 = vsub.f32 %v8167, %v8309
        %v8424 = vsub.f32 %v8168, %v8312
        %v8425 = vsub.f32 %v8169, %v8315
        %v8426 = vsub.f32 %v8170, %v8318
        %v8427 = vsub.f32 %v8171, %v8321
        %v8428 = vsub.f32 %v8172, %v8324
        %v8429 = vsub.f32 %v8173, %v8327
        %v8430 = vsub.f32 %v8174, %v8330
        %v8431 = vsub.f32 %v8175, %v8333
        %v8432 = vsub.f32 %v8176, %v8336
        %v8433 = vsub.f32 %v8177, %v8339
        %v8434 = vsub.f32 %v8178, %v8342
        %v8435 = vsub.f32 %v8179, %v8345
        %v8436 = vsub.f32 %v8180, %v8348
        %v8437 = vsub.f32 %v8181, %v8351
        %v8438 = vsub.f32 %v8182, %v8354
        %v8439 = vsub.f32 %v8183, %v8357
        %v8440 = vsub.f32 %v8184, %v8360
        %v8441 = vsub.f32 %v8185, %v8363
        %v8442 = vsub.f32 %v8186, %v8366
        %v8443 = vsub.f32 %v8187, %v8369
        %v8444 = vsub.f32 %v8188, %v8372
        %v8445 = vsub.f32 %v8189, %v8375
        %v8446 = vsub.f32 %v8190, %v8378
        %v8447 = vsub.f32 %v8191, %v8381
        %v8448 = vsub.f32 %v8192, %v8384
        %v8449 = vmul.f32 %v8385, 1.442695
        %v8450 = vpow.pop %v8449
        %v8451 = vmul.f32 %v8386, 1.442695
        %v8452 = vpow.pop %v8451
        %v8453 = vmul.f32 %v8387, 1.442695
        %v8454 = vpow.pop %v8453
        %v8455 = vmul.f32 %v8388, 1.442695
        %v8456 = vpow.pop %v8455
        %v8457 = vmul.f32 %v8389, 1.442695
        %v8458 = vpow.pop %v8457
        %v8459 = vmul.f32 %v8390, 1.442695
        %v8460 = vpow.pop %v8459
        %v8461 = vmul.f32 %v8391, 1.442695
        %v8462 = vpow.pop %v8461
        %v8463 = vmul.f32 %v8392, 1.442695
        %v8464 = vpow.pop %v8463
        %v8465 = vmul.f32 %v8393, 1.442695
        %v8466 = vpow.pop %v8465
        %v8467 = vmul.f32 %v8394, 1.442695
        %v8468 = vpow.pop %v8467
        %v8469 = vmul.f32 %v8395, 1.442695
        %v8470 = vpow.pop %v8469
        %v8471 = vmul.f32 %v8396, 1.442695
        %v8472 = vpow.pop %v8471
        %v8473 = vmul.f32 %v8397, 1.442695
        %v8474 = vpow.pop %v8473
        %v8475 = vmul.f32 %v8398, 1.442695
        %v8476 = vpow.pop %v8475
        %v8477 = vmul.f32 %v8399, 1.442695
        %v8478 = vpow.pop %v8477
        %v8479 = vmul.f32 %v8400, 1.442695
        %v8480 = vpow.pop %v8479
        %v8481 = vmul.f32 %v8401, 1.442695
        %v8482 = vpow.pop %v8481
        %v8483 = vmul.f32 %v8402, 1.442695
        %v8484 = vpow.pop %v8483
        %v8485 = vmul.f32 %v8403, 1.442695
        %v8486 = vpow.pop %v8485
        %v8487 = vmul.f32 %v8404, 1.442695
        %v8488 = vpow.pop %v8487
        %v8489 = vmul.f32 %v8405, 1.442695
        %v8490 = vpow.pop %v8489
        %v8491 = vmul.f32 %v8406, 1.442695
        %v8492 = vpow.pop %v8491
        %v8493 = vmul.f32 %v8407, 1.442695
        %v8494 = vpow.pop %v8493
        %v8495 = vmul.f32 %v8408, 1.442695
        %v8496 = vpow.pop %v8495
        %v8497 = vmul.f32 %v8409, 1.442695
        %v8498 = vpow.pop %v8497
        %v8499 = vmul.f32 %v8410, 1.442695
        %v8500 = vpow.pop %v8499
        %v8501 = vmul.f32 %v8411, 1.442695
        %v8502 = vpow.pop %v8501
        %v8503 = vmul.f32 %v8412, 1.442695
        %v8504 = vpow.pop %v8503
        %v8505 = vmul.f32 %v8413, 1.442695
        %v8506 = vpow.pop %v8505
        %v8507 = vmul.f32 %v8414, 1.442695
        %v8508 = vpow.pop %v8507
        %v8509 = vmul.f32 %v8415, 1.442695
        %v8510 = vpow.pop %v8509
        %v8511 = vmul.f32 %v8416, 1.442695
        %v8512 = vpow.pop %v8511
        %v8513 = vmul.f32 %v8417, 1.442695
        %v8514 = vpow.pop %v8513
        %v8515 = vmul.f32 %v8418, 1.442695
        %v8516 = vpow.pop %v8515
        %v8517 = vmul.f32 %v8419, 1.442695
        %v8518 = vpow.pop %v8517
        %v8519 = vmul.f32 %v8420, 1.442695
        %v8520 = vpow.pop %v8519
        %v8521 = vmul.f32 %v8421, 1.442695
        %v8522 = vpow.pop %v8521
        %v8523 = vmul.f32 %v8422, 1.442695
        %v8524 = vpow.pop %v8523
        %v8525 = vmul.f32 %v8423, 1.442695
        %v8526 = vpow.pop %v8525
        %v8527 = vmul.f32 %v8424, 1.442695
        %v8528 = vpow.pop %v8527
        %v8529 = vmul.f32 %v8425, 1.442695
        %v8530 = vpow.pop %v8529
        %v8531 = vmul.f32 %v8426, 1.442695
        %v8532 = vpow.pop %v8531
        %v8533 = vmul.f32 %v8427, 1.442695
        %v8534 = vpow.pop %v8533
        %v8535 = vmul.f32 %v8428, 1.442695
        %v8536 = vpow.pop %v8535
        %v8537 = vmul.f32 %v8429, 1.442695
        %v8538 = vpow.pop %v8537
        %v8539 = vmul.f32 %v8430, 1.442695
        %v8540 = vpow.pop %v8539
        %v8541 = vmul.f32 %v8431, 1.442695
        %v8542 = vpow.pop %v8541
        %v8543 = vmul.f32 %v8432, 1.442695
        %v8544 = vpow.pop %v8543
        %v8545 = vmul.f32 %v8433, 1.442695
        %v8546 = vpow.pop %v8545
        %v8547 = vmul.f32 %v8434, 1.442695
        %v8548 = vpow.pop %v8547
        %v8549 = vmul.f32 %v8435, 1.442695
        %v8550 = vpow.pop %v8549
        %v8551 = vmul.f32 %v8436, 1.442695
        %v8552 = vpow.pop %v8551
        %v8553 = vmul.f32 %v8437, 1.442695
        %v8554 = vpow.pop %v8553
        %v8555 = vmul.f32 %v8438, 1.442695
        %v8556 = vpow.pop %v8555
        %v8557 = vmul.f32 %v8439, 1.442695
        %v8558 = vpow.pop %v8557
        %v8559 = vmul.f32 %v8440, 1.442695
        %v8560 = vpow.pop %v8559
        %v8561 = vmul.f32 %v8441, 1.442695
        %v8562 = vpow.pop %v8561
        %v8563 = vmul.f32 %v8442, 1.442695
        %v8564 = vpow.pop %v8563
        %v8565 = vmul.f32 %v8443, 1.442695
        %v8566 = vpow.pop %v8565
        %v8567 = vmul.f32 %v8444, 1.442695
        %v8568 = vpow.pop %v8567
        %v8569 = vmul.f32 %v8445, 1.442695
        %v8570 = vpow.pop %v8569
        %v8571 = vmul.f32 %v8446, 1.442695
        %v8572 = vpow.pop %v8571
        %v8573 = vmul.f32 %v8447, 1.442695
        %v8574 = vpow.pop %v8573
        %v8575 = vmul.f32 %v8448, 1.442695
        %v8576 = vpow.pop %v8575
        %v8577 = vsel %vm3028, %v8450, 0.0
        %8578 = vadd.xlane.f32.xlu0 %v8577
        %v8579 = vpop.xlane.xlu0 %8578
        %v8580 = vsel %vm3028, %v8452, 0.0
        %8581 = vadd.xlane.f32.xlu0 %v8580
        %v8582 = vpop.xlane.xlu0 %8581
        %v8583 = vsel %vm3028, %v8454, 0.0
        %8584 = vadd.xlane.f32.xlu0 %v8583
        %v8585 = vpop.xlane.xlu0 %8584
        %v8586 = vsel %vm3028, %v8456, 0.0
        %8587 = vadd.xlane.f32.xlu0 %v8586
        %v8588 = vpop.xlane.xlu0 %8587
        %v8589 = vsel %vm3028, %v8458, 0.0
        %8590 = vadd.xlane.f32.xlu0 %v8589
        %v8591 = vpop.xlane.xlu0 %8590
        %v8592 = vsel %vm3028, %v8460, 0.0
        %8593 = vadd.xlane.f32.xlu0 %v8592
        %v8594 = vpop.xlane.xlu0 %8593
        %v8595 = vsel %vm3028, %v8462, 0.0
        %8596 = vadd.xlane.f32.xlu0 %v8595
        %v8597 = vpop.xlane.xlu0 %8596
        %v8598 = vsel %vm3028, %v8464, 0.0
        %8599 = vadd.xlane.f32.xlu0 %v8598
        %v8600 = vpop.xlane.xlu0 %8599
        %v8601 = vsel %vm3028, %v8466, 0.0
        %8602 = vadd.xlane.f32.xlu0 %v8601
        %v8603 = vpop.xlane.xlu0 %8602
        %v8604 = vsel %vm3028, %v8468, 0.0
        %8605 = vadd.xlane.f32.xlu0 %v8604
        %v8606 = vpop.xlane.xlu0 %8605
        %v8607 = vsel %vm3028, %v8470, 0.0
        %8608 = vadd.xlane.f32.xlu0 %v8607
        %v8609 = vpop.xlane.xlu0 %8608
        %v8610 = vsel %vm3028, %v8472, 0.0
        %8611 = vadd.xlane.f32.xlu0 %v8610
        %v8612 = vpop.xlane.xlu0 %8611
        %v8613 = vsel %vm3028, %v8474, 0.0
        %8614 = vadd.xlane.f32.xlu0 %v8613
        %v8615 = vpop.xlane.xlu0 %8614
        %v8616 = vsel %vm3028, %v8476, 0.0
        %8617 = vadd.xlane.f32.xlu0 %v8616
        %v8618 = vpop.xlane.xlu0 %8617
        %v8619 = vsel %vm3028, %v8478, 0.0
        %8620 = vadd.xlane.f32.xlu0 %v8619
        %v8621 = vpop.xlane.xlu0 %8620
        %v8622 = vsel %vm3028, %v8480, 0.0
        %8623 = vadd.xlane.f32.xlu0 %v8622
        %v8624 = vpop.xlane.xlu0 %8623
        %v8625 = vsel %vm3028, %v8482, 0.0
        %8626 = vadd.xlane.f32.xlu0 %v8625
        %v8627 = vpop.xlane.xlu0 %8626
        %v8628 = vsel %vm3028, %v8484, 0.0
        %8629 = vadd.xlane.f32.xlu0 %v8628
        %v8630 = vpop.xlane.xlu0 %8629
        %v8631 = vsel %vm3028, %v8486, 0.0
        %8632 = vadd.xlane.f32.xlu0 %v8631
        %v8633 = vpop.xlane.xlu0 %8632
        %v8634 = vsel %vm3028, %v8488, 0.0
        %8635 = vadd.xlane.f32.xlu0 %v8634
        %v8636 = vpop.xlane.xlu0 %8635
        %v8637 = vsel %vm3028, %v8490, 0.0
        %8638 = vadd.xlane.f32.xlu0 %v8637
        %v8639 = vpop.xlane.xlu0 %8638
        %v8640 = vsel %vm3028, %v8492, 0.0
        %8641 = vadd.xlane.f32.xlu0 %v8640
        %v8642 = vpop.xlane.xlu0 %8641
        %v8643 = vsel %vm3028, %v8494, 0.0
        %8644 = vadd.xlane.f32.xlu0 %v8643
        %v8645 = vpop.xlane.xlu0 %8644
        %v8646 = vsel %vm3028, %v8496, 0.0
        %8647 = vadd.xlane.f32.xlu0 %v8646
        %v8648 = vpop.xlane.xlu0 %8647
        %v8649 = vsel %vm3028, %v8498, 0.0
        %8650 = vadd.xlane.f32.xlu0 %v8649
        %v8651 = vpop.xlane.xlu0 %8650
        %v8652 = vsel %vm3028, %v8500, 0.0
        %8653 = vadd.xlane.f32.xlu0 %v8652
        %v8654 = vpop.xlane.xlu0 %8653
        %v8655 = vsel %vm3028, %v8502, 0.0
        %8656 = vadd.xlane.f32.xlu0 %v8655
        %v8657 = vpop.xlane.xlu0 %8656
        %v8658 = vsel %vm3028, %v8504, 0.0
        %8659 = vadd.xlane.f32.xlu0 %v8658
        %v8660 = vpop.xlane.xlu0 %8659
        %v8661 = vsel %vm3028, %v8506, 0.0
        %8662 = vadd.xlane.f32.xlu0 %v8661
        %v8663 = vpop.xlane.xlu0 %8662
        %v8664 = vsel %vm3028, %v8508, 0.0
        %8665 = vadd.xlane.f32.xlu0 %v8664
        %v8666 = vpop.xlane.xlu0 %8665
        %v8667 = vsel %vm3028, %v8510, 0.0
        %8668 = vadd.xlane.f32.xlu0 %v8667
        %v8669 = vpop.xlane.xlu0 %8668
        %v8670 = vsel %vm3028, %v8512, 0.0
        %8671 = vadd.xlane.f32.xlu0 %v8670
        %v8672 = vpop.xlane.xlu0 %8671
        %v8673 = vsel %vm3028, %v8514, 0.0
        %8674 = vadd.xlane.f32.xlu0 %v8673
        %v8675 = vpop.xlane.xlu0 %8674
        %v8676 = vsel %vm3028, %v8516, 0.0
        %8677 = vadd.xlane.f32.xlu0 %v8676
        %v8678 = vpop.xlane.xlu0 %8677
        %v8679 = vsel %vm3028, %v8518, 0.0
        %8680 = vadd.xlane.f32.xlu0 %v8679
        %v8681 = vpop.xlane.xlu0 %8680
        %v8682 = vsel %vm3028, %v8520, 0.0
        %8683 = vadd.xlane.f32.xlu0 %v8682
        %v8684 = vpop.xlane.xlu0 %8683
        %v8685 = vsel %vm3028, %v8522, 0.0
        %8686 = vadd.xlane.f32.xlu0 %v8685
        %v8687 = vpop.xlane.xlu0 %8686
        %v8688 = vsel %vm3028, %v8524, 0.0
        %8689 = vadd.xlane.f32.xlu0 %v8688
        %v8690 = vpop.xlane.xlu0 %8689
        %v8691 = vsel %vm3028, %v8526, 0.0
        %8692 = vadd.xlane.f32.xlu0 %v8691
        %v8693 = vpop.xlane.xlu0 %8692
        %v8694 = vsel %vm3028, %v8528, 0.0
        %8695 = vadd.xlane.f32.xlu0 %v8694
        %v8696 = vpop.xlane.xlu0 %8695
        %v8697 = vsel %vm3028, %v8530, 0.0
        %8698 = vadd.xlane.f32.xlu0 %v8697
        %v8699 = vpop.xlane.xlu0 %8698
        %v8700 = vsel %vm3028, %v8532, 0.0
        %8701 = vadd.xlane.f32.xlu0 %v8700
        %v8702 = vpop.xlane.xlu0 %8701
        %v8703 = vsel %vm3028, %v8534, 0.0
        %8704 = vadd.xlane.f32.xlu0 %v8703
        %v8705 = vpop.xlane.xlu0 %8704
        %v8706 = vsel %vm3028, %v8536, 0.0
        %8707 = vadd.xlane.f32.xlu0 %v8706
        %v8708 = vpop.xlane.xlu0 %8707
        %v8709 = vsel %vm3028, %v8538, 0.0
        %8710 = vadd.xlane.f32.xlu0 %v8709
        %v8711 = vpop.xlane.xlu0 %8710
        %v8712 = vsel %vm3028, %v8540, 0.0
        %8713 = vadd.xlane.f32.xlu0 %v8712
        %v8714 = vpop.xlane.xlu0 %8713
        %v8715 = vsel %vm3028, %v8542, 0.0
        %8716 = vadd.xlane.f32.xlu0 %v8715
        %v8717 = vpop.xlane.xlu0 %8716
        %v8718 = vsel %vm3028, %v8544, 0.0
        %8719 = vadd.xlane.f32.xlu0 %v8718
        %v8720 = vpop.xlane.xlu0 %8719
        %v8721 = vsel %vm3028, %v8546, 0.0
        %8722 = vadd.xlane.f32.xlu0 %v8721
        %v8723 = vpop.xlane.xlu0 %8722
        %v8724 = vsel %vm3028, %v8548, 0.0
        %8725 = vadd.xlane.f32.xlu0 %v8724
        %v8726 = vpop.xlane.xlu0 %8725
        %v8727 = vsel %vm3028, %v8550, 0.0
        %8728 = vadd.xlane.f32.xlu0 %v8727
        %v8729 = vpop.xlane.xlu0 %8728
        %v8730 = vsel %vm3028, %v8552, 0.0
        %8731 = vadd.xlane.f32.xlu0 %v8730
        %v8732 = vpop.xlane.xlu0 %8731
        %v8733 = vsel %vm3028, %v8554, 0.0
        %8734 = vadd.xlane.f32.xlu0 %v8733
        %v8735 = vpop.xlane.xlu0 %8734
        %v8736 = vsel %vm3028, %v8556, 0.0
        %8737 = vadd.xlane.f32.xlu0 %v8736
        %v8738 = vpop.xlane.xlu0 %8737
        %v8739 = vsel %vm3028, %v8558, 0.0
        %8740 = vadd.xlane.f32.xlu0 %v8739
        %v8741 = vpop.xlane.xlu0 %8740
        %v8742 = vsel %vm3028, %v8560, 0.0
        %8743 = vadd.xlane.f32.xlu0 %v8742
        %v8744 = vpop.xlane.xlu0 %8743
        %v8745 = vsel %vm3028, %v8562, 0.0
        %8746 = vadd.xlane.f32.xlu0 %v8745
        %v8747 = vpop.xlane.xlu0 %8746
        %v8748 = vsel %vm3028, %v8564, 0.0
        %8749 = vadd.xlane.f32.xlu0 %v8748
        %v8750 = vpop.xlane.xlu0 %8749
        %v8751 = vsel %vm3028, %v8566, 0.0
        %8752 = vadd.xlane.f32.xlu0 %v8751
        %v8753 = vpop.xlane.xlu0 %8752
        %v8754 = vsel %vm3028, %v8568, 0.0
        %8755 = vadd.xlane.f32.xlu0 %v8754
        %v8756 = vpop.xlane.xlu0 %8755
        %v8757 = vsel %vm3028, %v8570, 0.0
        %8758 = vadd.xlane.f32.xlu0 %v8757
        %v8759 = vpop.xlane.xlu0 %8758
        %v8760 = vsel %vm3028, %v8572, 0.0
        %8761 = vadd.xlane.f32.xlu0 %v8760
        %v8762 = vpop.xlane.xlu0 %8761
        %v8763 = vsel %vm3028, %v8574, 0.0
        %8764 = vadd.xlane.f32.xlu0 %v8763
        %v8765 = vpop.xlane.xlu0 %8764
        %v8766 = vsel %vm3028, %v8576, 0.0
        %8767 = vadd.xlane.f32.xlu0 %v8766
        %v8768 = vpop.xlane.xlu0 %8767
        %v8769 = vrcp.pop %v8579
        %v8770 = vrcp.pop %v8582
        %v8771 = vrcp.pop %v8585
        %v8772 = vrcp.pop %v8588
        %v8773 = vrcp.pop %v8591
        %v8774 = vrcp.pop %v8594
        %v8775 = vrcp.pop %v8597
        %v8776 = vrcp.pop %v8600
        %v8777 = vrcp.pop %v8603
        %v8778 = vrcp.pop %v8606
        %v8779 = vrcp.pop %v8609
        %v8780 = vrcp.pop %v8612
        %v8781 = vrcp.pop %v8615
        %v8782 = vrcp.pop %v8618
        %v8783 = vrcp.pop %v8621
        %v8784 = vrcp.pop %v8624
        %v8785 = vrcp.pop %v8627
        %v8786 = vrcp.pop %v8630
        %v8787 = vrcp.pop %v8633
        %v8788 = vrcp.pop %v8636
        %v8789 = vrcp.pop %v8639
        %v8790 = vrcp.pop %v8642
        %v8791 = vrcp.pop %v8645
        %v8792 = vrcp.pop %v8648
        %v8793 = vrcp.pop %v8651
        %v8794 = vrcp.pop %v8654
        %v8795 = vrcp.pop %v8657
        %v8796 = vrcp.pop %v8660
        %v8797 = vrcp.pop %v8663
        %v8798 = vrcp.pop %v8666
        %v8799 = vrcp.pop %v8669
        %v8800 = vrcp.pop %v8672
        %v8801 = vrcp.pop %v8675
        %v8802 = vrcp.pop %v8678
        %v8803 = vrcp.pop %v8681
        %v8804 = vrcp.pop %v8684
        %v8805 = vrcp.pop %v8687
        %v8806 = vrcp.pop %v8690
        %v8807 = vrcp.pop %v8693
        %v8808 = vrcp.pop %v8696
        %v8809 = vrcp.pop %v8699
        %v8810 = vrcp.pop %v8702
        %v8811 = vrcp.pop %v8705
        %v8812 = vrcp.pop %v8708
        %v8813 = vrcp.pop %v8711
        %v8814 = vrcp.pop %v8714
        %v8815 = vrcp.pop %v8717
        %v8816 = vrcp.pop %v8720
        %v8817 = vrcp.pop %v8723
        %v8818 = vrcp.pop %v8726
        %v8819 = vrcp.pop %v8729
        %v8820 = vrcp.pop %v8732
        %v8821 = vrcp.pop %v8735
        %v8822 = vrcp.pop %v8738
        %v8823 = vrcp.pop %v8741
        %v8824 = vrcp.pop %v8744
        %v8825 = vrcp.pop %v8747
        %v8826 = vrcp.pop %v8750
        %v8827 = vrcp.pop %v8753
        %v8828 = vrcp.pop %v8756
        %v8829 = vrcp.pop %v8759
        %v8830 = vrcp.pop %v8762
        %v8831 = vrcp.pop %v8765
        %v8832 = vrcp.pop %v8768
        %v8833 = vmul.f32 %v8450, %v8769
        %v8834 = vmul.f32 %v8452, %v8770
        %v8835 = vmul.f32 %v8454, %v8771
        %v8836 = vmul.f32 %v8456, %v8772
        %v8837 = vmul.f32 %v8458, %v8773
        %v8838 = vmul.f32 %v8460, %v8774
        %v8839 = vmul.f32 %v8462, %v8775
        %v8840 = vmul.f32 %v8464, %v8776
        %v8841 = vmul.f32 %v8466, %v8777
        %v8842 = vmul.f32 %v8468, %v8778
        %v8843 = vmul.f32 %v8470, %v8779
        %v8844 = vmul.f32 %v8472, %v8780
        %v8845 = vmul.f32 %v8474, %v8781
        %v8846 = vmul.f32 %v8476, %v8782
        %v8847 = vmul.f32 %v8478, %v8783
        %v8848 = vmul.f32 %v8480, %v8784
        %v8849 = vmul.f32 %v8482, %v8785
        %v8850 = vmul.f32 %v8484, %v8786
        %v8851 = vmul.f32 %v8486, %v8787
        %v8852 = vmul.f32 %v8488, %v8788
        %v8853 = vmul.f32 %v8490, %v8789
        %v8854 = vmul.f32 %v8492, %v8790
        %v8855 = vmul.f32 %v8494, %v8791
        %v8856 = vmul.f32 %v8496, %v8792
        %v8857 = vmul.f32 %v8498, %v8793
        %v8858 = vmul.f32 %v8500, %v8794
        %v8859 = vmul.f32 %v8502, %v8795
        %v8860 = vmul.f32 %v8504, %v8796
        %v8861 = vmul.f32 %v8506, %v8797
        %v8862 = vmul.f32 %v8508, %v8798
        %v8863 = vmul.f32 %v8510, %v8799
        %v8864 = vmul.f32 %v8512, %v8800
        %v8865 = vmul.f32 %v8514, %v8801
        %v8866 = vmul.f32 %v8516, %v8802
        %v8867 = vmul.f32 %v8518, %v8803
        %v8868 = vmul.f32 %v8520, %v8804
        %v8869 = vmul.f32 %v8522, %v8805
        %v8870 = vmul.f32 %v8524, %v8806
        %v8871 = vmul.f32 %v8526, %v8807
        %v8872 = vmul.f32 %v8528, %v8808
        %v8873 = vmul.f32 %v8530, %v8809
        %v8874 = vmul.f32 %v8532, %v8810
        %v8875 = vmul.f32 %v8534, %v8811
        %v8876 = vmul.f32 %v8536, %v8812
        %v8877 = vmul.f32 %v8538, %v8813
        %v8878 = vmul.f32 %v8540, %v8814
        %v8879 = vmul.f32 %v8542, %v8815
        %v8880 = vmul.f32 %v8544, %v8816
        %v8881 = vmul.f32 %v8546, %v8817
        %v8882 = vmul.f32 %v8548, %v8818
        %v8883 = vmul.f32 %v8550, %v8819
        %v8884 = vmul.f32 %v8552, %v8820
        %v8885 = vmul.f32 %v8554, %v8821
        %v8886 = vmul.f32 %v8556, %v8822
        %v8887 = vmul.f32 %v8558, %v8823
        %v8888 = vmul.f32 %v8560, %v8824
        %v8889 = vmul.f32 %v8562, %v8825
        %v8890 = vmul.f32 %v8564, %v8826
        %v8891 = vmul.f32 %v8566, %v8827
        %v8892 = vmul.f32 %v8568, %v8828
        %v8893 = vmul.f32 %v8570, %v8829
        %v8894 = vmul.f32 %v8572, %v8830
        %v8895 = vmul.f32 %v8574, %v8831
        %v8896 = vmul.f32 %v8576, %v8832
        %v8897 = vpack.c.bf16 %v8833, %v8833
        %v8898 = vpack.c.bf16 %v8834, %v8834
        %v8899 = vpack.c.bf16 %v8835, %v8835
        %v8900 = vpack.c.bf16 %v8836, %v8836
        %v8901 = vpack.c.bf16 %v8837, %v8837
        %v8902 = vpack.c.bf16 %v8838, %v8838
        %v8903 = vpack.c.bf16 %v8839, %v8839
        %v8904 = vpack.c.bf16 %v8840, %v8840
        %v8905 = vpack.c.bf16 %v8841, %v8841
        %v8906 = vpack.c.bf16 %v8842, %v8842
        %v8907 = vpack.c.bf16 %v8843, %v8843
        %v8908 = vpack.c.bf16 %v8844, %v8844
        %v8909 = vpack.c.bf16 %v8845, %v8845
        %v8910 = vpack.c.bf16 %v8846, %v8846
        %v8911 = vpack.c.bf16 %v8847, %v8847
        %v8912 = vpack.c.bf16 %v8848, %v8848
        %v8913 = vpack.c.bf16 %v8849, %v8849
        %v8914 = vpack.c.bf16 %v8850, %v8850
        %v8915 = vpack.c.bf16 %v8851, %v8851
        %v8916 = vpack.c.bf16 %v8852, %v8852
        %v8917 = vpack.c.bf16 %v8853, %v8853
        %v8918 = vpack.c.bf16 %v8854, %v8854
        %v8919 = vpack.c.bf16 %v8855, %v8855
        %v8920 = vpack.c.bf16 %v8856, %v8856
        %v8921 = vpack.c.bf16 %v8857, %v8857
        %v8922 = vpack.c.bf16 %v8858, %v8858
        %v8923 = vpack.c.bf16 %v8859, %v8859
        %v8924 = vpack.c.bf16 %v8860, %v8860
        %v8925 = vpack.c.bf16 %v8861, %v8861
        %v8926 = vpack.c.bf16 %v8862, %v8862
        %v8927 = vpack.c.bf16 %v8863, %v8863
        %v8928 = vpack.c.bf16 %v8864, %v8864
        %v8929 = vpack.c.bf16 %v8865, %v8865
        %v8930 = vpack.c.bf16 %v8866, %v8866
        %v8931 = vpack.c.bf16 %v8867, %v8867
        %v8932 = vpack.c.bf16 %v8868, %v8868
        %v8933 = vpack.c.bf16 %v8869, %v8869
        %v8934 = vpack.c.bf16 %v8870, %v8870
        %v8935 = vpack.c.bf16 %v8871, %v8871
        %v8936 = vpack.c.bf16 %v8872, %v8872
        %v8937 = vpack.c.bf16 %v8873, %v8873
        %v8938 = vpack.c.bf16 %v8874, %v8874
        %v8939 = vpack.c.bf16 %v8875, %v8875
        %v8940 = vpack.c.bf16 %v8876, %v8876
        %v8941 = vpack.c.bf16 %v8877, %v8877
        %v8942 = vpack.c.bf16 %v8878, %v8878
        %v8943 = vpack.c.bf16 %v8879, %v8879
        %v8944 = vpack.c.bf16 %v8880, %v8880
        %v8945 = vpack.c.bf16 %v8881, %v8881
        %v8946 = vpack.c.bf16 %v8882, %v8882
        %v8947 = vpack.c.bf16 %v8883, %v8883
        %v8948 = vpack.c.bf16 %v8884, %v8884
        %v8949 = vpack.c.bf16 %v8885, %v8885
        %v8950 = vpack.c.bf16 %v8886, %v8886
        %v8951 = vpack.c.bf16 %v8887, %v8887
        %v8952 = vpack.c.bf16 %v8888, %v8888
        %v8953 = vpack.c.bf16 %v8889, %v8889
        %v8954 = vpack.c.bf16 %v8890, %v8890
        %v8955 = vpack.c.bf16 %v8891, %v8891
        %v8956 = vpack.c.bf16 %v8892, %v8892
        %v8957 = vpack.c.bf16 %v8893, %v8893
        %v8958 = vpack.c.bf16 %v8894, %v8894
        %v8959 = vpack.c.bf16 %v8895, %v8895
        %v8960 = vpack.c.bf16 %v8896, %v8896
        %v8963 = vunpack.c.l.b16 %v8897
        %v8964 = vunpack.c.l.b16 %v8898
        %v8965 = vpack.c.b16 %v8964, %v8963
        %v8968 = vunpack.c.l.b16 %v7041
        %v8969 = vunpack.c.l.b16 %v7042
        %v8970 = vpack.c.b16 %v8969, %v8968
        %v8973 = vsel %vm3028, %v8965, 0
        %8975 = vmatpush.bf16.msra.mxu0 0
        %8976 = vmatpush.bf16.msra.mxu0 0
        %8977 = vmatpush.bf16.msra.mxu0 0
        %8978 = vmatpush.bf16.msra.mxu0 0
        %8979 = vmatpush.bf16.msra.mxu0 0
        %8980 = vmatpush.bf16.msra.mxu0 0
        %8981 = vmatpush.bf16.msra.mxu0 0
        %8982 = vmatpush.bf16.msra.mxu0 %v8970
        %8983 = vmatmul.bf16.gmra.mxu0 %v8973
        %v8984 = vpop.f32.mrf.mxu0
        %v8985 = vadd.f32 0.0, %v8984
        %v8986 = vpop.f32.mrf.mxu0
        %v8987 = vadd.f32 0.0, %v8986
        %8988 = vdwg.mxu0
        %v8991 = vunpack.c.l.b16 %v8899
        %v8992 = vunpack.c.l.b16 %v8900
        %v8993 = vpack.c.b16 %v8992, %v8991
        %v8996 = vunpack.c.l.b16 %v7043
        %v8997 = vunpack.c.l.b16 %v7044
        %v8998 = vpack.c.b16 %v8997, %v8996
        %v9001 = vsel %vm3028, %v8993, 0
        %9003 = vmatpush.bf16.msra.mxu0 0
        %9004 = vmatpush.bf16.msra.mxu0 0
        %9005 = vmatpush.bf16.msra.mxu0 0
        %9006 = vmatpush.bf16.msra.mxu0 0
        %9007 = vmatpush.bf16.msra.mxu0 0
        %9008 = vmatpush.bf16.msra.mxu0 0
        %9009 = vmatpush.bf16.msra.mxu0 0
        %9010 = vmatpush.bf16.msra.mxu0 %v8998
        %9011 = vmatmul.bf16.gmra.mxu0 %v9001
        %v9012 = vpop.f32.mrf.mxu0
        %v9013 = vadd.f32 0.0, %v9012
        %v9014 = vpop.f32.mrf.mxu0
        %v9015 = vadd.f32 0.0, %v9014
        %9016 = vdwg.mxu0
        %v9019 = vunpack.c.l.b16 %v8901
        %v9020 = vunpack.c.l.b16 %v8902
        %v9021 = vpack.c.b16 %v9020, %v9019
        %v9024 = vunpack.c.l.b16 %v7045
        %v9025 = vunpack.c.l.b16 %v7046
        %v9026 = vpack.c.b16 %v9025, %v9024
        %v9029 = vsel %vm3028, %v9021, 0
        %9031 = vmatpush.bf16.msra.mxu0 0
        %9032 = vmatpush.bf16.msra.mxu0 0
        %9033 = vmatpush.bf16.msra.mxu0 0
        %9034 = vmatpush.bf16.msra.mxu0 0
        %9035 = vmatpush.bf16.msra.mxu0 0
        %9036 = vmatpush.bf16.msra.mxu0 0
        %9037 = vmatpush.bf16.msra.mxu0 0
        %9038 = vmatpush.bf16.msra.mxu0 %v9026
        %9039 = vmatmul.bf16.gmra.mxu0 %v9029
        %v9040 = vpop.f32.mrf.mxu0
        %v9041 = vadd.f32 0.0, %v9040
        %v9042 = vpop.f32.mrf.mxu0
        %v9043 = vadd.f32 0.0, %v9042
        %9044 = vdwg.mxu0
        %v9047 = vunpack.c.l.b16 %v8903
        %v9048 = vunpack.c.l.b16 %v8904
        %v9049 = vpack.c.b16 %v9048, %v9047
        %v9052 = vunpack.c.l.b16 %v7047
        %v9053 = vunpack.c.l.b16 %v7048
        %v9054 = vpack.c.b16 %v9053, %v9052
        %v9057 = vsel %vm3028, %v9049, 0
        %9059 = vmatpush.bf16.msra.mxu0 0
        %9060 = vmatpush.bf16.msra.mxu0 0
        %9061 = vmatpush.bf16.msra.mxu0 0
        %9062 = vmatpush.bf16.msra.mxu0 0
        %9063 = vmatpush.bf16.msra.mxu0 0
        %9064 = vmatpush.bf16.msra.mxu0 0
        %9065 = vmatpush.bf16.msra.mxu0 0
        %9066 = vmatpush.bf16.msra.mxu0 %v9054
        %9067 = vmatmul.bf16.gmra.mxu0 %v9057
        %v9068 = vpop.f32.mrf.mxu0
        %v9069 = vadd.f32 0.0, %v9068
        %v9070 = vpop.f32.mrf.mxu0
        %v9071 = vadd.f32 0.0, %v9070
        %9072 = vdwg.mxu0
        %v9075 = vunpack.c.l.b16 %v8905
        %v9076 = vunpack.c.l.b16 %v8906
        %v9077 = vpack.c.b16 %v9076, %v9075
        %v9080 = vunpack.c.l.b16 %v7049
        %v9081 = vunpack.c.l.b16 %v7050
        %v9082 = vpack.c.b16 %v9081, %v9080
        %v9085 = vsel %vm3028, %v9077, 0
        %9087 = vmatpush.bf16.msra.mxu0 0
        %9088 = vmatpush.bf16.msra.mxu0 0
        %9089 = vmatpush.bf16.msra.mxu0 0
        %9090 = vmatpush.bf16.msra.mxu0 0
        %9091 = vmatpush.bf16.msra.mxu0 0
        %9092 = vmatpush.bf16.msra.mxu0 0
        %9093 = vmatpush.bf16.msra.mxu0 0
        %9094 = vmatpush.bf16.msra.mxu0 %v9082
        %9095 = vmatmul.bf16.gmra.mxu0 %v9085
        %v9096 = vpop.f32.mrf.mxu0
        %v9097 = vadd.f32 0.0, %v9096
        %v9098 = vpop.f32.mrf.mxu0
        %v9099 = vadd.f32 0.0, %v9098
        %9100 = vdwg.mxu0
        %v9103 = vunpack.c.l.b16 %v8907
        %v9104 = vunpack.c.l.b16 %v8908
        %v9105 = vpack.c.b16 %v9104, %v9103
        %v9108 = vunpack.c.l.b16 %v7051
        %v9109 = vunpack.c.l.b16 %v7052
        %v9110 = vpack.c.b16 %v9109, %v9108
        %v9113 = vsel %vm3028, %v9105, 0
        %9115 = vmatpush.bf16.msra.mxu0 0
        %9116 = vmatpush.bf16.msra.mxu0 0
        %9117 = vmatpush.bf16.msra.mxu0 0
        %9118 = vmatpush.bf16.msra.mxu0 0
        %9119 = vmatpush.bf16.msra.mxu0 0
        %9120 = vmatpush.bf16.msra.mxu0 0
        %9121 = vmatpush.bf16.msra.mxu0 0
        %9122 = vmatpush.bf16.msra.mxu0 %v9110
        %9123 = vmatmul.bf16.gmra.mxu0 %v9113
        %v9124 = vpop.f32.mrf.mxu0
        %v9125 = vadd.f32 0.0, %v9124
        %v9126 = vpop.f32.mrf.mxu0
        %v9127 = vadd.f32 0.0, %v9126
        %9128 = vdwg.mxu0
        %v9131 = vunpack.c.l.b16 %v8909
        %v9132 = vunpack.c.l.b16 %v8910
        %v9133 = vpack.c.b16 %v9132, %v9131
        %v9136 = vunpack.c.l.b16 %v7053
        %v9137 = vunpack.c.l.b16 %v7054
        %v9138 = vpack.c.b16 %v9137, %v9136
        %v9141 = vsel %vm3028, %v9133, 0
        %9143 = vmatpush.bf16.msra.mxu0 0
        %9144 = vmatpush.bf16.msra.mxu0 0
        %9145 = vmatpush.bf16.msra.mxu0 0
        %9146 = vmatpush.bf16.msra.mxu0 0
        %9147 = vmatpush.bf16.msra.mxu0 0
        %9148 = vmatpush.bf16.msra.mxu0 0
        %9149 = vmatpush.bf16.msra.mxu0 0
        %9150 = vmatpush.bf16.msra.mxu0 %v9138
        %9151 = vmatmul.bf16.gmra.mxu0 %v9141
        %v9152 = vpop.f32.mrf.mxu0
        %v9153 = vadd.f32 0.0, %v9152
        %v9154 = vpop.f32.mrf.mxu0
        %v9155 = vadd.f32 0.0, %v9154
        %9156 = vdwg.mxu0
        %v9159 = vunpack.c.l.b16 %v8911
        %v9160 = vunpack.c.l.b16 %v8912
        %v9161 = vpack.c.b16 %v9160, %v9159
        %v9164 = vunpack.c.l.b16 %v7055
        %v9165 = vunpack.c.l.b16 %v7056
        %v9166 = vpack.c.b16 %v9165, %v9164
        %v9169 = vsel %vm3028, %v9161, 0
        %9171 = vmatpush.bf16.msra.mxu0 0
        %9172 = vmatpush.bf16.msra.mxu0 0
        %9173 = vmatpush.bf16.msra.mxu0 0
        %9174 = vmatpush.bf16.msra.mxu0 0
        %9175 = vmatpush.bf16.msra.mxu0 0
        %9176 = vmatpush.bf16.msra.mxu0 0
        %9177 = vmatpush.bf16.msra.mxu0 0
        %9178 = vmatpush.bf16.msra.mxu0 %v9166
        %9179 = vmatmul.bf16.gmra.mxu0 %v9169
        %v9180 = vpop.f32.mrf.mxu0
        %v9181 = vadd.f32 0.0, %v9180
        %v9182 = vpop.f32.mrf.mxu0
        %v9183 = vadd.f32 0.0, %v9182
        %9184 = vdwg.mxu0
        %v9187 = vunpack.c.l.b16 %v8913
        %v9188 = vunpack.c.l.b16 %v8914
        %v9189 = vpack.c.b16 %v9188, %v9187
        %v9192 = vunpack.c.l.b16 %v7057
        %v9193 = vunpack.c.l.b16 %v7058
        %v9194 = vpack.c.b16 %v9193, %v9192
        %v9197 = vsel %vm3028, %v9189, 0
        %9199 = vmatpush.bf16.msra.mxu0 0
        %9200 = vmatpush.bf16.msra.mxu0 0
        %9201 = vmatpush.bf16.msra.mxu0 0
        %9202 = vmatpush.bf16.msra.mxu0 0
        %9203 = vmatpush.bf16.msra.mxu0 0
        %9204 = vmatpush.bf16.msra.mxu0 0
        %9205 = vmatpush.bf16.msra.mxu0 0
        %9206 = vmatpush.bf16.msra.mxu0 %v9194
        %9207 = vmatmul.bf16.gmra.mxu0 %v9197
        %v9208 = vpop.f32.mrf.mxu0
        %v9209 = vadd.f32 0.0, %v9208
        %v9210 = vpop.f32.mrf.mxu0
        %v9211 = vadd.f32 0.0, %v9210
        %9212 = vdwg.mxu0
        %v9215 = vunpack.c.l.b16 %v8915
        %v9216 = vunpack.c.l.b16 %v8916
        %v9217 = vpack.c.b16 %v9216, %v9215
        %v9220 = vunpack.c.l.b16 %v7059
        %v9221 = vunpack.c.l.b16 %v7060
        %v9222 = vpack.c.b16 %v9221, %v9220
        %v9225 = vsel %vm3028, %v9217, 0
        %9227 = vmatpush.bf16.msra.mxu0 0
        %9228 = vmatpush.bf16.msra.mxu0 0
        %9229 = vmatpush.bf16.msra.mxu0 0
        %9230 = vmatpush.bf16.msra.mxu0 0
        %9231 = vmatpush.bf16.msra.mxu0 0
        %9232 = vmatpush.bf16.msra.mxu0 0
        %9233 = vmatpush.bf16.msra.mxu0 0
        %9234 = vmatpush.bf16.msra.mxu0 %v9222
        %9235 = vmatmul.bf16.gmra.mxu0 %v9225
        %v9236 = vpop.f32.mrf.mxu0
        %v9237 = vadd.f32 0.0, %v9236
        %v9238 = vpop.f32.mrf.mxu0
        %v9239 = vadd.f32 0.0, %v9238
        %9240 = vdwg.mxu0
        %v9243 = vunpack.c.l.b16 %v8917
        %v9244 = vunpack.c.l.b16 %v8918
        %v9245 = vpack.c.b16 %v9244, %v9243
        %v9248 = vunpack.c.l.b16 %v7061
        %v9249 = vunpack.c.l.b16 %v7062
        %v9250 = vpack.c.b16 %v9249, %v9248
        %v9253 = vsel %vm3028, %v9245, 0
        %9255 = vmatpush.bf16.msra.mxu0 0
        %9256 = vmatpush.bf16.msra.mxu0 0
        %9257 = vmatpush.bf16.msra.mxu0 0
        %9258 = vmatpush.bf16.msra.mxu0 0
        %9259 = vmatpush.bf16.msra.mxu0 0
        %9260 = vmatpush.bf16.msra.mxu0 0
        %9261 = vmatpush.bf16.msra.mxu0 0
        %9262 = vmatpush.bf16.msra.mxu0 %v9250
        %9263 = vmatmul.bf16.gmra.mxu0 %v9253
        %v9264 = vpop.f32.mrf.mxu0
        %v9265 = vadd.f32 0.0, %v9264
        %v9266 = vpop.f32.mrf.mxu0
        %v9267 = vadd.f32 0.0, %v9266
        %9268 = vdwg.mxu0
        %v9271 = vunpack.c.l.b16 %v8919
        %v9272 = vunpack.c.l.b16 %v8920
        %v9273 = vpack.c.b16 %v9272, %v9271
        %v9276 = vunpack.c.l.b16 %v7063
        %v9277 = vunpack.c.l.b16 %v7064
        %v9278 = vpack.c.b16 %v9277, %v9276
        %v9281 = vsel %vm3028, %v9273, 0
        %9283 = vmatpush.bf16.msra.mxu0 0
        %9284 = vmatpush.bf16.msra.mxu0 0
        %9285 = vmatpush.bf16.msra.mxu0 0
        %9286 = vmatpush.bf16.msra.mxu0 0
        %9287 = vmatpush.bf16.msra.mxu0 0
        %9288 = vmatpush.bf16.msra.mxu0 0
        %9289 = vmatpush.bf16.msra.mxu0 0
        %9290 = vmatpush.bf16.msra.mxu0 %v9278
        %9291 = vmatmul.bf16.gmra.mxu0 %v9281
        %v9292 = vpop.f32.mrf.mxu0
        %v9293 = vadd.f32 0.0, %v9292
        %v9294 = vpop.f32.mrf.mxu0
        %v9295 = vadd.f32 0.0, %v9294
        %9296 = vdwg.mxu0
        %v9299 = vunpack.c.l.b16 %v8921
        %v9300 = vunpack.c.l.b16 %v8922
        %v9301 = vpack.c.b16 %v9300, %v9299
        %v9304 = vunpack.c.l.b16 %v7065
        %v9305 = vunpack.c.l.b16 %v7066
        %v9306 = vpack.c.b16 %v9305, %v9304
        %v9309 = vsel %vm3028, %v9301, 0
        %9311 = vmatpush.bf16.msra.mxu0 0
        %9312 = vmatpush.bf16.msra.mxu0 0
        %9313 = vmatpush.bf16.msra.mxu0 0
        %9314 = vmatpush.bf16.msra.mxu0 0
        %9315 = vmatpush.bf16.msra.mxu0 0
        %9316 = vmatpush.bf16.msra.mxu0 0
        %9317 = vmatpush.bf16.msra.mxu0 0
        %9318 = vmatpush.bf16.msra.mxu0 %v9306
        %9319 = vmatmul.bf16.gmra.mxu0 %v9309
        %v9320 = vpop.f32.mrf.mxu0
        %v9321 = vadd.f32 0.0, %v9320
        %v9322 = vpop.f32.mrf.mxu0
        %v9323 = vadd.f32 0.0, %v9322
        %9324 = vdwg.mxu0
        %v9327 = vunpack.c.l.b16 %v8923
        %v9328 = vunpack.c.l.b16 %v8924
        %v9329 = vpack.c.b16 %v9328, %v9327
        %v9332 = vunpack.c.l.b16 %v7067
        %v9333 = vunpack.c.l.b16 %v7068
        %v9334 = vpack.c.b16 %v9333, %v9332
        %v9337 = vsel %vm3028, %v9329, 0
        %9339 = vmatpush.bf16.msra.mxu0 0
        %9340 = vmatpush.bf16.msra.mxu0 0
        %9341 = vmatpush.bf16.msra.mxu0 0
        %9342 = vmatpush.bf16.msra.mxu0 0
        %9343 = vmatpush.bf16.msra.mxu0 0
        %9344 = vmatpush.bf16.msra.mxu0 0
        %9345 = vmatpush.bf16.msra.mxu0 0
        %9346 = vmatpush.bf16.msra.mxu0 %v9334
        %9347 = vmatmul.bf16.gmra.mxu0 %v9337
        %v9348 = vpop.f32.mrf.mxu0
        %v9349 = vadd.f32 0.0, %v9348
        %v9350 = vpop.f32.mrf.mxu0
        %v9351 = vadd.f32 0.0, %v9350
        %9352 = vdwg.mxu0
        %v9355 = vunpack.c.l.b16 %v8925
        %v9356 = vunpack.c.l.b16 %v8926
        %v9357 = vpack.c.b16 %v9356, %v9355
        %v9360 = vunpack.c.l.b16 %v7069
        %v9361 = vunpack.c.l.b16 %v7070
        %v9362 = vpack.c.b16 %v9361, %v9360
        %v9365 = vsel %vm3028, %v9357, 0
        %9367 = vmatpush.bf16.msra.mxu0 0
        %9368 = vmatpush.bf16.msra.mxu0 0
        %9369 = vmatpush.bf16.msra.mxu0 0
        %9370 = vmatpush.bf16.msra.mxu0 0
        %9371 = vmatpush.bf16.msra.mxu0 0
        %9372 = vmatpush.bf16.msra.mxu0 0
        %9373 = vmatpush.bf16.msra.mxu0 0
        %9374 = vmatpush.bf16.msra.mxu0 %v9362
        %9375 = vmatmul.bf16.gmra.mxu0 %v9365
        %v9376 = vpop.f32.mrf.mxu0
        %v9377 = vadd.f32 0.0, %v9376
        %v9378 = vpop.f32.mrf.mxu0
        %v9379 = vadd.f32 0.0, %v9378
        %9380 = vdwg.mxu0
        %v9383 = vunpack.c.l.b16 %v8927
        %v9384 = vunpack.c.l.b16 %v8928
        %v9385 = vpack.c.b16 %v9384, %v9383
        %v9388 = vunpack.c.l.b16 %v7071
        %v9389 = vunpack.c.l.b16 %v7072
        %v9390 = vpack.c.b16 %v9389, %v9388
        %v9393 = vsel %vm3028, %v9385, 0
        %9395 = vmatpush.bf16.msra.mxu0 0
        %9396 = vmatpush.bf16.msra.mxu0 0
        %9397 = vmatpush.bf16.msra.mxu0 0
        %9398 = vmatpush.bf16.msra.mxu0 0
        %9399 = vmatpush.bf16.msra.mxu0 0
        %9400 = vmatpush.bf16.msra.mxu0 0
        %9401 = vmatpush.bf16.msra.mxu0 0
        %9402 = vmatpush.bf16.msra.mxu0 %v9390
        %9403 = vmatmul.bf16.gmra.mxu0 %v9393
        %v9404 = vpop.f32.mrf.mxu0
        %v9405 = vadd.f32 0.0, %v9404
        %v9406 = vpop.f32.mrf.mxu0
        %v9407 = vadd.f32 0.0, %v9406
        %9408 = vdwg.mxu0
        %v9411 = vunpack.c.l.b16 %v8929
        %v9412 = vunpack.c.l.b16 %v8930
        %v9413 = vpack.c.b16 %v9412, %v9411
        %v9416 = vunpack.c.l.b16 %v7073
        %v9417 = vunpack.c.l.b16 %v7074
        %v9418 = vpack.c.b16 %v9417, %v9416
        %v9421 = vsel %vm3028, %v9413, 0
        %9423 = vmatpush.bf16.msra.mxu0 0
        %9424 = vmatpush.bf16.msra.mxu0 0
        %9425 = vmatpush.bf16.msra.mxu0 0
        %9426 = vmatpush.bf16.msra.mxu0 0
        %9427 = vmatpush.bf16.msra.mxu0 0
        %9428 = vmatpush.bf16.msra.mxu0 0
        %9429 = vmatpush.bf16.msra.mxu0 0
        %9430 = vmatpush.bf16.msra.mxu0 %v9418
        %9431 = vmatmul.bf16.gmra.mxu0 %v9421
        %v9432 = vpop.f32.mrf.mxu0
        %v9433 = vadd.f32 0.0, %v9432
        %v9434 = vpop.f32.mrf.mxu0
        %v9435 = vadd.f32 0.0, %v9434
        %9436 = vdwg.mxu0
        %v9439 = vunpack.c.l.b16 %v8931
        %v9440 = vunpack.c.l.b16 %v8932
        %v9441 = vpack.c.b16 %v9440, %v9439
        %v9444 = vunpack.c.l.b16 %v7075
        %v9445 = vunpack.c.l.b16 %v7076
        %v9446 = vpack.c.b16 %v9445, %v9444
        %v9449 = vsel %vm3028, %v9441, 0
        %9451 = vmatpush.bf16.msra.mxu0 0
        %9452 = vmatpush.bf16.msra.mxu0 0
        %9453 = vmatpush.bf16.msra.mxu0 0
        %9454 = vmatpush.bf16.msra.mxu0 0
        %9455 = vmatpush.bf16.msra.mxu0 0
        %9456 = vmatpush.bf16.msra.mxu0 0
        %9457 = vmatpush.bf16.msra.mxu0 0
        %9458 = vmatpush.bf16.msra.mxu0 %v9446
        %9459 = vmatmul.bf16.gmra.mxu0 %v9449
        %v9460 = vpop.f32.mrf.mxu0
        %v9461 = vadd.f32 0.0, %v9460
        %v9462 = vpop.f32.mrf.mxu0
        %v9463 = vadd.f32 0.0, %v9462
        %9464 = vdwg.mxu0
        %v9467 = vunpack.c.l.b16 %v8933
        %v9468 = vunpack.c.l.b16 %v8934
        %v9469 = vpack.c.b16 %v9468, %v9467
        %v9472 = vunpack.c.l.b16 %v7077
        %v9473 = vunpack.c.l.b16 %v7078
        %v9474 = vpack.c.b16 %v9473, %v9472
        %v9477 = vsel %vm3028, %v9469, 0
        %9479 = vmatpush.bf16.msra.mxu0 0
        %9480 = vmatpush.bf16.msra.mxu0 0
        %9481 = vmatpush.bf16.msra.mxu0 0
        %9482 = vmatpush.bf16.msra.mxu0 0
        %9483 = vmatpush.bf16.msra.mxu0 0
        %9484 = vmatpush.bf16.msra.mxu0 0
        %9485 = vmatpush.bf16.msra.mxu0 0
        %9486 = vmatpush.bf16.msra.mxu0 %v9474
        %9487 = vmatmul.bf16.gmra.mxu0 %v9477
        %v9488 = vpop.f32.mrf.mxu0
        %v9489 = vadd.f32 0.0, %v9488
        %v9490 = vpop.f32.mrf.mxu0
        %v9491 = vadd.f32 0.0, %v9490
        %9492 = vdwg.mxu0
        %v9495 = vunpack.c.l.b16 %v8935
        %v9496 = vunpack.c.l.b16 %v8936
        %v9497 = vpack.c.b16 %v9496, %v9495
        %v9500 = vunpack.c.l.b16 %v7079
        %v9501 = vunpack.c.l.b16 %v7080
        %v9502 = vpack.c.b16 %v9501, %v9500
        %v9505 = vsel %vm3028, %v9497, 0
        %9507 = vmatpush.bf16.msra.mxu0 0
        %9508 = vmatpush.bf16.msra.mxu0 0
        %9509 = vmatpush.bf16.msra.mxu0 0
        %9510 = vmatpush.bf16.msra.mxu0 0
        %9511 = vmatpush.bf16.msra.mxu0 0
        %9512 = vmatpush.bf16.msra.mxu0 0
        %9513 = vmatpush.bf16.msra.mxu0 0
        %9514 = vmatpush.bf16.msra.mxu0 %v9502
        %9515 = vmatmul.bf16.gmra.mxu0 %v9505
        %v9516 = vpop.f32.mrf.mxu0
        %v9517 = vadd.f32 0.0, %v9516
        %v9518 = vpop.f32.mrf.mxu0
        %v9519 = vadd.f32 0.0, %v9518
        %9520 = vdwg.mxu0
        %v9523 = vunpack.c.l.b16 %v8937
        %v9524 = vunpack.c.l.b16 %v8938
        %v9525 = vpack.c.b16 %v9524, %v9523
        %v9528 = vunpack.c.l.b16 %v7081
        %v9529 = vunpack.c.l.b16 %v7082
        %v9530 = vpack.c.b16 %v9529, %v9528
        %v9533 = vsel %vm3028, %v9525, 0
        %9535 = vmatpush.bf16.msra.mxu0 0
        %9536 = vmatpush.bf16.msra.mxu0 0
        %9537 = vmatpush.bf16.msra.mxu0 0
        %9538 = vmatpush.bf16.msra.mxu0 0
        %9539 = vmatpush.bf16.msra.mxu0 0
        %9540 = vmatpush.bf16.msra.mxu0 0
        %9541 = vmatpush.bf16.msra.mxu0 0
        %9542 = vmatpush.bf16.msra.mxu0 %v9530
        %9543 = vmatmul.bf16.gmra.mxu0 %v9533
        %v9544 = vpop.f32.mrf.mxu0
        %v9545 = vadd.f32 0.0, %v9544
        %v9546 = vpop.f32.mrf.mxu0
        %v9547 = vadd.f32 0.0, %v9546
        %9548 = vdwg.mxu0
        %v9551 = vunpack.c.l.b16 %v8939
        %v9552 = vunpack.c.l.b16 %v8940
        %v9553 = vpack.c.b16 %v9552, %v9551
        %v9556 = vunpack.c.l.b16 %v7083
        %v9557 = vunpack.c.l.b16 %v7084
        %v9558 = vpack.c.b16 %v9557, %v9556
        %v9561 = vsel %vm3028, %v9553, 0
        %9563 = vmatpush.bf16.msra.mxu0 0
        %9564 = vmatpush.bf16.msra.mxu0 0
        %9565 = vmatpush.bf16.msra.mxu0 0
        %9566 = vmatpush.bf16.msra.mxu0 0
        %9567 = vmatpush.bf16.msra.mxu0 0
        %9568 = vmatpush.bf16.msra.mxu0 0
        %9569 = vmatpush.bf16.msra.mxu0 0
        %9570 = vmatpush.bf16.msra.mxu0 %v9558
        %9571 = vmatmul.bf16.gmra.mxu0 %v9561
        %v9572 = vpop.f32.mrf.mxu0
        %v9573 = vadd.f32 0.0, %v9572
        %v9574 = vpop.f32.mrf.mxu0
        %v9575 = vadd.f32 0.0, %v9574
        %9576 = vdwg.mxu0
        %v9579 = vunpack.c.l.b16 %v8941
        %v9580 = vunpack.c.l.b16 %v8942
        %v9581 = vpack.c.b16 %v9580, %v9579
        %v9584 = vunpack.c.l.b16 %v7085
        %v9585 = vunpack.c.l.b16 %v7086
        %v9586 = vpack.c.b16 %v9585, %v9584
        %v9589 = vsel %vm3028, %v9581, 0
        %9591 = vmatpush.bf16.msra.mxu0 0
        %9592 = vmatpush.bf16.msra.mxu0 0
        %9593 = vmatpush.bf16.msra.mxu0 0
        %9594 = vmatpush.bf16.msra.mxu0 0
        %9595 = vmatpush.bf16.msra.mxu0 0
        %9596 = vmatpush.bf16.msra.mxu0 0
        %9597 = vmatpush.bf16.msra.mxu0 0
        %9598 = vmatpush.bf16.msra.mxu0 %v9586
        %9599 = vmatmul.bf16.gmra.mxu0 %v9589
        %v9600 = vpop.f32.mrf.mxu0
        %v9601 = vadd.f32 0.0, %v9600
        %v9602 = vpop.f32.mrf.mxu0
        %v9603 = vadd.f32 0.0, %v9602
        %9604 = vdwg.mxu0
        %v9607 = vunpack.c.l.b16 %v8943
        %v9608 = vunpack.c.l.b16 %v8944
        %v9609 = vpack.c.b16 %v9608, %v9607
        %v9612 = vunpack.c.l.b16 %v7087
        %v9613 = vunpack.c.l.b16 %v7088
        %v9614 = vpack.c.b16 %v9613, %v9612
        %v9617 = vsel %vm3028, %v9609, 0
        %9619 = vmatpush.bf16.msra.mxu0 0
        %9620 = vmatpush.bf16.msra.mxu0 0
        %9621 = vmatpush.bf16.msra.mxu0 0
        %9622 = vmatpush.bf16.msra.mxu0 0
        %9623 = vmatpush.bf16.msra.mxu0 0
        %9624 = vmatpush.bf16.msra.mxu0 0
        %9625 = vmatpush.bf16.msra.mxu0 0
        %9626 = vmatpush.bf16.msra.mxu0 %v9614
        %9627 = vmatmul.bf16.gmra.mxu0 %v9617
        %v9628 = vpop.f32.mrf.mxu0
        %v9629 = vadd.f32 0.0, %v9628
        %v9630 = vpop.f32.mrf.mxu0
        %v9631 = vadd.f32 0.0, %v9630
        %9632 = vdwg.mxu0
        %v9635 = vunpack.c.l.b16 %v8945
        %v9636 = vunpack.c.l.b16 %v8946
        %v9637 = vpack.c.b16 %v9636, %v9635
        %v9640 = vunpack.c.l.b16 %v7089
        %v9641 = vunpack.c.l.b16 %v7090
        %v9642 = vpack.c.b16 %v9641, %v9640
        %v9645 = vsel %vm3028, %v9637, 0
        %9647 = vmatpush.bf16.msra.mxu0 0
        %9648 = vmatpush.bf16.msra.mxu0 0
        %9649 = vmatpush.bf16.msra.mxu0 0
        %9650 = vmatpush.bf16.msra.mxu0 0
        %9651 = vmatpush.bf16.msra.mxu0 0
        %9652 = vmatpush.bf16.msra.mxu0 0
        %9653 = vmatpush.bf16.msra.mxu0 0
        %9654 = vmatpush.bf16.msra.mxu0 %v9642
        %9655 = vmatmul.bf16.gmra.mxu0 %v9645
        %v9656 = vpop.f32.mrf.mxu0
        %v9657 = vadd.f32 0.0, %v9656
        %v9658 = vpop.f32.mrf.mxu0
        %v9659 = vadd.f32 0.0, %v9658
        %9660 = vdwg.mxu0
        %v9663 = vunpack.c.l.b16 %v8947
        %v9664 = vunpack.c.l.b16 %v8948
        %v9665 = vpack.c.b16 %v9664, %v9663
        %v9668 = vunpack.c.l.b16 %v7091
        %v9669 = vunpack.c.l.b16 %v7092
        %v9670 = vpack.c.b16 %v9669, %v9668
        %v9673 = vsel %vm3028, %v9665, 0
        %9675 = vmatpush.bf16.msra.mxu0 0
        %9676 = vmatpush.bf16.msra.mxu0 0
        %9677 = vmatpush.bf16.msra.mxu0 0
        %9678 = vmatpush.bf16.msra.mxu0 0
        %9679 = vmatpush.bf16.msra.mxu0 0
        %9680 = vmatpush.bf16.msra.mxu0 0
        %9681 = vmatpush.bf16.msra.mxu0 0
        %9682 = vmatpush.bf16.msra.mxu0 %v9670
        %9683 = vmatmul.bf16.gmra.mxu0 %v9673
        %v9684 = vpop.f32.mrf.mxu0
        %v9685 = vadd.f32 0.0, %v9684
        %v9686 = vpop.f32.mrf.mxu0
        %v9687 = vadd.f32 0.0, %v9686
        %9688 = vdwg.mxu0
        %v9691 = vunpack.c.l.b16 %v8949
        %v9692 = vunpack.c.l.b16 %v8950
        %v9693 = vpack.c.b16 %v9692, %v9691
        %v9696 = vunpack.c.l.b16 %v7093
        %v9697 = vunpack.c.l.b16 %v7094
        %v9698 = vpack.c.b16 %v9697, %v9696
        %v9701 = vsel %vm3028, %v9693, 0
        %9703 = vmatpush.bf16.msra.mxu0 0
        %9704 = vmatpush.bf16.msra.mxu0 0
        %9705 = vmatpush.bf16.msra.mxu0 0
        %9706 = vmatpush.bf16.msra.mxu0 0
        %9707 = vmatpush.bf16.msra.mxu0 0
        %9708 = vmatpush.bf16.msra.mxu0 0
        %9709 = vmatpush.bf16.msra.mxu0 0
        %9710 = vmatpush.bf16.msra.mxu0 %v9698
        %9711 = vmatmul.bf16.gmra.mxu0 %v9701
        %v9712 = vpop.f32.mrf.mxu0
        %v9713 = vadd.f32 0.0, %v9712
        %v9714 = vpop.f32.mrf.mxu0
        %v9715 = vadd.f32 0.0, %v9714
        %9716 = vdwg.mxu0
        %v9719 = vunpack.c.l.b16 %v8951
        %v9720 = vunpack.c.l.b16 %v8952
        %v9721 = vpack.c.b16 %v9720, %v9719
        %v9724 = vunpack.c.l.b16 %v7095
        %v9725 = vunpack.c.l.b16 %v7096
        %v9726 = vpack.c.b16 %v9725, %v9724
        %v9729 = vsel %vm3028, %v9721, 0
        %9731 = vmatpush.bf16.msra.mxu0 0
        %9732 = vmatpush.bf16.msra.mxu0 0
        %9733 = vmatpush.bf16.msra.mxu0 0
        %9734 = vmatpush.bf16.msra.mxu0 0
        %9735 = vmatpush.bf16.msra.mxu0 0
        %9736 = vmatpush.bf16.msra.mxu0 0
        %9737 = vmatpush.bf16.msra.mxu0 0
        %9738 = vmatpush.bf16.msra.mxu0 %v9726
        %9739 = vmatmul.bf16.gmra.mxu0 %v9729
        %v9740 = vpop.f32.mrf.mxu0
        %v9741 = vadd.f32 0.0, %v9740
        %v9742 = vpop.f32.mrf.mxu0
        %v9743 = vadd.f32 0.0, %v9742
        %9744 = vdwg.mxu0
        %v9747 = vunpack.c.l.b16 %v8953
        %v9748 = vunpack.c.l.b16 %v8954
        %v9749 = vpack.c.b16 %v9748, %v9747
        %v9752 = vunpack.c.l.b16 %v7097
        %v9753 = vunpack.c.l.b16 %v7098
        %v9754 = vpack.c.b16 %v9753, %v9752
        %v9757 = vsel %vm3028, %v9749, 0
        %9759 = vmatpush.bf16.msra.mxu0 0
        %9760 = vmatpush.bf16.msra.mxu0 0
        %9761 = vmatpush.bf16.msra.mxu0 0
        %9762 = vmatpush.bf16.msra.mxu0 0
        %9763 = vmatpush.bf16.msra.mxu0 0
        %9764 = vmatpush.bf16.msra.mxu0 0
        %9765 = vmatpush.bf16.msra.mxu0 0
        %9766 = vmatpush.bf16.msra.mxu0 %v9754
        %9767 = vmatmul.bf16.gmra.mxu0 %v9757
        %v9768 = vpop.f32.mrf.mxu0
        %v9769 = vadd.f32 0.0, %v9768
        %v9770 = vpop.f32.mrf.mxu0
        %v9771 = vadd.f32 0.0, %v9770
        %9772 = vdwg.mxu0
        %v9775 = vunpack.c.l.b16 %v8955
        %v9776 = vunpack.c.l.b16 %v8956
        %v9777 = vpack.c.b16 %v9776, %v9775
        %v9780 = vunpack.c.l.b16 %v7099
        %v9781 = vunpack.c.l.b16 %v7100
        %v9782 = vpack.c.b16 %v9781, %v9780
        %v9785 = vsel %vm3028, %v9777, 0
        %9787 = vmatpush.bf16.msra.mxu0 0
        %9788 = vmatpush.bf16.msra.mxu0 0
        %9789 = vmatpush.bf16.msra.mxu0 0
        %9790 = vmatpush.bf16.msra.mxu0 0
        %9791 = vmatpush.bf16.msra.mxu0 0
        %9792 = vmatpush.bf16.msra.mxu0 0
        %9793 = vmatpush.bf16.msra.mxu0 0
        %9794 = vmatpush.bf16.msra.mxu0 %v9782
        %9795 = vmatmul.bf16.gmra.mxu0 %v9785
        %v9796 = vpop.f32.mrf.mxu0
        %v9797 = vadd.f32 0.0, %v9796
        %v9798 = vpop.f32.mrf.mxu0
        %v9799 = vadd.f32 0.0, %v9798
        %9800 = vdwg.mxu0
        %v9803 = vunpack.c.l.b16 %v8957
        %v9804 = vunpack.c.l.b16 %v8958
        %v9805 = vpack.c.b16 %v9804, %v9803
        %v9808 = vunpack.c.l.b16 %v7101
        %v9809 = vunpack.c.l.b16 %v7102
        %v9810 = vpack.c.b16 %v9809, %v9808
        %v9813 = vsel %vm3028, %v9805, 0
        %9815 = vmatpush.bf16.msra.mxu0 0
        %9816 = vmatpush.bf16.msra.mxu0 0
        %9817 = vmatpush.bf16.msra.mxu0 0
        %9818 = vmatpush.bf16.msra.mxu0 0
        %9819 = vmatpush.bf16.msra.mxu0 0
        %9820 = vmatpush.bf16.msra.mxu0 0
        %9821 = vmatpush.bf16.msra.mxu0 0
        %9822 = vmatpush.bf16.msra.mxu0 %v9810
        %9823 = vmatmul.bf16.gmra.mxu0 %v9813
        %v9824 = vpop.f32.mrf.mxu0
        %v9825 = vadd.f32 0.0, %v9824
        %v9826 = vpop.f32.mrf.mxu0
        %v9827 = vadd.f32 0.0, %v9826
        %9828 = vdwg.mxu0
        %v9831 = vunpack.c.l.b16 %v8959
        %v9832 = vunpack.c.l.b16 %v8960
        %v9833 = vpack.c.b16 %v9832, %v9831
        %v9836 = vunpack.c.l.b16 %v7103
        %v9837 = vunpack.c.l.b16 %v7104
        %v9838 = vpack.c.b16 %v9837, %v9836
        %v9841 = vsel %vm3028, %v9833, 0
        %9843 = vmatpush.bf16.msra.mxu0 0
        %9844 = vmatpush.bf16.msra.mxu0 0
        %9845 = vmatpush.bf16.msra.mxu0 0
        %9846 = vmatpush.bf16.msra.mxu0 0
        %9847 = vmatpush.bf16.msra.mxu0 0
        %9848 = vmatpush.bf16.msra.mxu0 0
        %9849 = vmatpush.bf16.msra.mxu0 0
        %9850 = vmatpush.bf16.msra.mxu0 %v9838
        %9851 = vmatmul.bf16.gmra.mxu0 %v9841
        %v9852 = vpop.f32.mrf.mxu0
        %v9853 = vadd.f32 0.0, %v9852
        %v9854 = vpop.f32.mrf.mxu0
        %v9855 = vadd.f32 0.0, %v9854
        %9856 = vdwg.mxu0
        %9873 = vrot.lane.b32.xlu0 %v9013, 8
        %v9874 = vpop.permute.xlu0 %9873
        %9875 = vrot.lane.b32.xlu0 %v9015, 8
        %v9876 = vpop.permute.xlu0 %9875
        %9877 = vrot.lane.b32.xlu0 %v9125, 8
        %v9878 = vpop.permute.xlu0 %9877
        %9879 = vrot.lane.b32.xlu0 %v9127, 8
        %v9880 = vpop.permute.xlu0 %9879
        %9881 = vrot.lane.b32.xlu0 %v9237, 8
        %v9882 = vpop.permute.xlu0 %9881
        %9883 = vrot.lane.b32.xlu0 %v9239, 8
        %v9884 = vpop.permute.xlu0 %9883
        %9885 = vrot.lane.b32.xlu0 %v9349, 8
        %v9886 = vpop.permute.xlu0 %9885
        %9887 = vrot.lane.b32.xlu0 %v9351, 8
        %v9888 = vpop.permute.xlu0 %9887
        %9889 = vrot.lane.b32.xlu0 %v9461, 8
        %v9890 = vpop.permute.xlu0 %9889
        %9891 = vrot.lane.b32.xlu0 %v9463, 8
        %v9892 = vpop.permute.xlu0 %9891
        %9893 = vrot.lane.b32.xlu0 %v9573, 8
        %v9894 = vpop.permute.xlu0 %9893
        %9895 = vrot.lane.b32.xlu0 %v9575, 8
        %v9896 = vpop.permute.xlu0 %9895
        %9897 = vrot.lane.b32.xlu0 %v9685, 8
        %v9898 = vpop.permute.xlu0 %9897
        %9899 = vrot.lane.b32.xlu0 %v9687, 8
        %v9900 = vpop.permute.xlu0 %9899
        %9901 = vrot.lane.b32.xlu0 %v9797, 8
        %v9902 = vpop.permute.xlu0 %9901
        %9903 = vrot.lane.b32.xlu0 %v9799, 8
        %v9904 = vpop.permute.xlu0 %9903
        %9937 = vrot.lane.b32.xlu0 %v9041, 16
        %v9938 = vpop.permute.xlu0 %9937
        %9939 = vrot.lane.b32.xlu0 %v9043, 16
        %v9940 = vpop.permute.xlu0 %9939
        %9941 = vrot.lane.b32.xlu0 %v9153, 16
        %v9942 = vpop.permute.xlu0 %9941
        %9943 = vrot.lane.b32.xlu0 %v9155, 16
        %v9944 = vpop.permute.xlu0 %9943
        %9945 = vrot.lane.b32.xlu0 %v9265, 16
        %v9946 = vpop.permute.xlu0 %9945
        %9947 = vrot.lane.b32.xlu0 %v9267, 16
        %v9948 = vpop.permute.xlu0 %9947
        %9949 = vrot.lane.b32.xlu0 %v9377, 16
        %v9950 = vpop.permute.xlu0 %9949
        %9951 = vrot.lane.b32.xlu0 %v9379, 16
        %v9952 = vpop.permute.xlu0 %9951
        %9953 = vrot.lane.b32.xlu0 %v9489, 16
        %v9954 = vpop.permute.xlu0 %9953
        %9955 = vrot.lane.b32.xlu0 %v9491, 16
        %v9956 = vpop.permute.xlu0 %9955
        %9957 = vrot.lane.b32.xlu0 %v9601, 16
        %v9958 = vpop.permute.xlu0 %9957
        %9959 = vrot.lane.b32.xlu0 %v9603, 16
        %v9960 = vpop.permute.xlu0 %9959
        %9961 = vrot.lane.b32.xlu0 %v9713, 16
        %v9962 = vpop.permute.xlu0 %9961
        %9963 = vrot.lane.b32.xlu0 %v9715, 16
        %v9964 = vpop.permute.xlu0 %9963
        %9965 = vrot.lane.b32.xlu0 %v9825, 16
        %v9966 = vpop.permute.xlu0 %9965
        %9967 = vrot.lane.b32.xlu0 %v9827, 16
        %v9968 = vpop.permute.xlu0 %9967
        %10001 = vrot.lane.b32.xlu0 %v9069, 24
        %v10002 = vpop.permute.xlu0 %10001
        %10003 = vrot.lane.b32.xlu0 %v9071, 24
        %v10004 = vpop.permute.xlu0 %10003
        %10005 = vrot.lane.b32.xlu0 %v9181, 24
        %v10006 = vpop.permute.xlu0 %10005
        %10007 = vrot.lane.b32.xlu0 %v9183, 24
        %v10008 = vpop.permute.xlu0 %10007
        %10009 = vrot.lane.b32.xlu0 %v9293, 24
        %v10010 = vpop.permute.xlu0 %10009
        %10011 = vrot.lane.b32.xlu0 %v9295, 24
        %v10012 = vpop.permute.xlu0 %10011
        %10013 = vrot.lane.b32.xlu0 %v9405, 24
        %v10014 = vpop.permute.xlu0 %10013
        %10015 = vrot.lane.b32.xlu0 %v9407, 24
        %v10016 = vpop.permute.xlu0 %10015
        %10017 = vrot.lane.b32.xlu0 %v9517, 24
        %v10018 = vpop.permute.xlu0 %10017
        %10019 = vrot.lane.b32.xlu0 %v9519, 24
        %v10020 = vpop.permute.xlu0 %10019
        %10021 = vrot.lane.b32.xlu0 %v9629, 24
        %v10022 = vpop.permute.xlu0 %10021
        %10023 = vrot.lane.b32.xlu0 %v9631, 24
        %v10024 = vpop.permute.xlu0 %10023
        %10025 = vrot.lane.b32.xlu0 %v9741, 24
        %v10026 = vpop.permute.xlu0 %10025
        %10027 = vrot.lane.b32.xlu0 %v9743, 24
        %v10028 = vpop.permute.xlu0 %10027
        %10029 = vrot.lane.b32.xlu0 %v9853, 24
        %v10030 = vpop.permute.xlu0 %10029
        %10031 = vrot.lane.b32.xlu0 %v9855, 24
        %v10032 = vpop.permute.xlu0 %10031
        %v10049 = vsel %vm1925, %v8985, %v9874
        %v10050 = vsel %vm1925, %v8987, %v9876
        %v10051 = vsel %vm1925, %v9097, %v9878
        %v10052 = vsel %vm1925, %v9099, %v9880
        %v10053 = vsel %vm1925, %v9209, %v9882
        %v10054 = vsel %vm1925, %v9211, %v9884
        %v10055 = vsel %vm1925, %v9321, %v9886
        %v10056 = vsel %vm1925, %v9323, %v9888
        %v10057 = vsel %vm1925, %v9433, %v9890
        %v10058 = vsel %vm1925, %v9435, %v9892
        %v10059 = vsel %vm1925, %v9545, %v9894
        %v10060 = vsel %vm1925, %v9547, %v9896
        %v10061 = vsel %vm1925, %v9657, %v9898
        %v10062 = vsel %vm1925, %v9659, %v9900
        %v10063 = vsel %vm1925, %v9769, %v9902
        %v10064 = vsel %vm1925, %v9771, %v9904
        %v10065 = vsel %vm3028, %v10049, %v9938
        %v10066 = vsel %vm3028, %v10050, %v9940
        %v10067 = vsel %vm3028, %v10051, %v9942
        %v10068 = vsel %vm3028, %v10052, %v9944
        %v10069 = vsel %vm3028, %v10053, %v9946
        %v10070 = vsel %vm3028, %v10054, %v9948
        %v10071 = vsel %vm3028, %v10055, %v9950
        %v10072 = vsel %vm3028, %v10056, %v9952
        %v10073 = vsel %vm3028, %v10057, %v9954
        %v10074 = vsel %vm3028, %v10058, %v9956
        %v10075 = vsel %vm3028, %v10059, %v9958
        %v10076 = vsel %vm3028, %v10060, %v9960
        %v10077 = vsel %vm3028, %v10061, %v9962
        %v10078 = vsel %vm3028, %v10062, %v9964
        %v10079 = vsel %vm3028, %v10063, %v9966
        %v10080 = vsel %vm3028, %v10064, %v9968
        %v10081 = vsel %vm4917, %v10065, %v10002
        %v10082 = vsel %vm4917, %v10066, %v10004
        %v10083 = vsel %vm4917, %v10067, %v10006
        %v10084 = vsel %vm4917, %v10068, %v10008
        %v10085 = vsel %vm4917, %v10069, %v10010
        %v10086 = vsel %vm4917, %v10070, %v10012
        %v10087 = vsel %vm4917, %v10071, %v10014
        %v10088 = vsel %vm4917, %v10072, %v10016
        %v10089 = vsel %vm4917, %v10073, %v10018
        %v10090 = vsel %vm4917, %v10074, %v10020
        %v10091 = vsel %vm4917, %v10075, %v10022
        %v10092 = vsel %vm4917, %v10076, %v10024
        %v10093 = vsel %vm4917, %v10077, %v10026
        %v10094 = vsel %vm4917, %v10078, %v10028
        %v10095 = vsel %vm4917, %v10079, %v10030
        %v10096 = vsel %vm4917, %v10080, %v10032
        %v10097 = vpack.c.bf16 %v10082, %v10081
        %v10098 = vpack.c.bf16 %v10084, %v10083
        %v10099 = vpack.c.bf16 %v10086, %v10085
        %v10100 = vpack.c.bf16 %v10088, %v10087
        %v10101 = vpack.c.bf16 %v10090, %v10089
        %v10102 = vpack.c.bf16 %v10092, %v10091
        %v10103 = vpack.c.bf16 %v10094, %v10093
        %v10104 = vpack.c.bf16 %v10096, %v10095
        %s10105 = scalar_lea.vmem %s4, 112
        %v10106 = vld [vmem:[%s10105] sm:$0xf]
        %v10107 = vld [vmem:[%s10105 + $0x4] sm:$0xf]
        %v10108 = vld [vmem:[%s10105 + $0x8] sm:$0xf]
        %v10109 = vld [vmem:[%s10105 + $0xc] sm:$0xf]
        %v10110 = vperm.slane %v6198, 3
        %v10115 = vunpack.c.l.b16 %v10106
        %v10116 = vunpack.c.l.b16 %v10107
        %v10117 = vunpack.c.l.b16 %v10108
        %v10118 = vunpack.c.l.b16 %v10109
        %v10119 = vpack.c.b16 %v10116, %v10115
        %v10120 = vpack.c.b16 %v10118, %v10117
        %v10124 = vsel %vm615, %v10097, 0
        %v10127 = vsel %vm615, %v10098, 0
        %v10130 = vsel %vm615, %v10099, 0
        %v10133 = vsel %vm615, %v10100, 0
        %v10136 = vsel %vm615, %v10101, 0
        %v10139 = vsel %vm615, %v10102, 0
        %v10142 = vsel %vm615, %v10103, 0
        %v10145 = vsel %vm615, %v10104, 0
        %10147 = vmatpush.bf16.msra.mxu0 0
        %10148 = vmatpush.bf16.msra.mxu0 0
        %10149 = vmatpush.bf16.msra.mxu0 0
        %10150 = vmatpush.bf16.msra.mxu0 0
        %10151 = vmatpush.bf16.msra.mxu0 0
        %10152 = vmatpush.bf16.msra.mxu0 0
        %10153 = vmatpush.bf16.msra.mxu0 %v10120
        %10154 = vmatpush.bf16.msra.mxu0 %v10119
        %10155 = vmatmul.bf16.gmra.mxu0 %v10124
        %v10156 = vpop.f32.mrf.mxu0
        %v10157 = vadd.f32 %v10110, %v10156
        %v10158 = vpop.f32.mrf.mxu0
        %v10159 = vadd.f32 %v10110, %v10158
        %10160 = vmatmul.bf16.gmra.mxu0 %v10127
        %v10161 = vpop.f32.mrf.mxu0
        %v10162 = vadd.f32 %v10110, %v10161
        %v10163 = vpop.f32.mrf.mxu0
        %v10164 = vadd.f32 %v10110, %v10163
        %10165 = vmatmul.bf16.gmra.mxu0 %v10130
        %v10166 = vpop.f32.mrf.mxu0
        %v10167 = vadd.f32 %v10110, %v10166
        %v10168 = vpop.f32.mrf.mxu0
        %v10169 = vadd.f32 %v10110, %v10168
        %10170 = vmatmul.bf16.gmra.mxu0 %v10133
        %v10171 = vpop.f32.mrf.mxu0
        %v10172 = vadd.f32 %v10110, %v10171
        %v10173 = vpop.f32.mrf.mxu0
        %v10174 = vadd.f32 %v10110, %v10173
        %10175 = vmatmul.bf16.gmra.mxu0 %v10136
        %v10176 = vpop.f32.mrf.mxu0
        %v10177 = vadd.f32 %v10110, %v10176
        %v10178 = vpop.f32.mrf.mxu0
        %v10179 = vadd.f32 %v10110, %v10178
        %10180 = vmatmul.bf16.gmra.mxu0 %v10139
        %v10181 = vpop.f32.mrf.mxu0
        %v10182 = vadd.f32 %v10110, %v10181
        %v10183 = vpop.f32.mrf.mxu0
        %v10184 = vadd.f32 %v10110, %v10183
        %10185 = vmatmul.bf16.gmra.mxu0 %v10142
        %v10186 = vpop.f32.mrf.mxu0
        %v10187 = vadd.f32 %v10110, %v10186
        %v10188 = vpop.f32.mrf.mxu0
        %v10189 = vadd.f32 %v10110, %v10188
        %10190 = vmatmul.bf16.gmra.mxu0 %v10145
        %v10191 = vpop.f32.mrf.mxu0
        %v10192 = vadd.f32 %v10110, %v10191
        %v10193 = vpop.f32.mrf.mxu0
        %v10194 = vadd.f32 %v10110, %v10193
        %10195 = vdwg.mxu0
        %v10196 = vadd.f32 %v6181, %v10157
        %v10197 = vadd.f32 %v6182, %v10159
        %v10198 = vadd.f32 %v6183, %v10162
        %v10199 = vadd.f32 %v6184, %v10164
        %v10200 = vadd.f32 %v6185, %v10167
        %v10201 = vadd.f32 %v6186, %v10169
        %v10202 = vadd.f32 %v6187, %v10172
        %v10203 = vadd.f32 %v6188, %v10174
        %v10204 = vadd.f32 %v6189, %v10177
        %v10205 = vadd.f32 %v6190, %v10179
        %v10206 = vadd.f32 %v6191, %v10182
        %v10207 = vadd.f32 %v6192, %v10184
        %v10208 = vadd.f32 %v6193, %v10187
        %v10209 = vadd.f32 %v6194, %v10189
        %v10210 = vadd.f32 %v6195, %v10192
        %v10211 = vadd.f32 %v6196, %v10194
        %v10212 = vsel %vm615, %v10196, 0.0
        %10213 = vadd.xlane.f32.xlu0 %v10212
        %v10214 = vpop.xlane.xlu0 %10213
        %v10215 = vsel %vm615, %v10197, 0.0
        %10216 = vadd.xlane.f32.xlu0 %v10215
        %v10217 = vpop.xlane.xlu0 %10216
        %v10218 = vsel %vm615, %v10198, 0.0
        %10219 = vadd.xlane.f32.xlu0 %v10218
        %v10220 = vpop.xlane.xlu0 %10219
        %v10221 = vsel %vm615, %v10199, 0.0
        %10222 = vadd.xlane.f32.xlu0 %v10221
        %v10223 = vpop.xlane.xlu0 %10222
        %v10224 = vsel %vm615, %v10200, 0.0
        %10225 = vadd.xlane.f32.xlu0 %v10224
        %v10226 = vpop.xlane.xlu0 %10225
        %v10227 = vsel %vm615, %v10201, 0.0
        %10228 = vadd.xlane.f32.xlu0 %v10227
        %v10229 = vpop.xlane.xlu0 %10228
        %v10230 = vsel %vm615, %v10202, 0.0
        %10231 = vadd.xlane.f32.xlu0 %v10230
        %v10232 = vpop.xlane.xlu0 %10231
        %v10233 = vsel %vm615, %v10203, 0.0
        %10234 = vadd.xlane.f32.xlu0 %v10233
        %v10235 = vpop.xlane.xlu0 %10234
        %v10236 = vsel %vm615, %v10204, 0.0
        %10237 = vadd.xlane.f32.xlu0 %v10236
        %v10238 = vpop.xlane.xlu0 %10237
        %v10239 = vsel %vm615, %v10205, 0.0
        %10240 = vadd.xlane.f32.xlu0 %v10239
        %v10241 = vpop.xlane.xlu0 %10240
        %v10242 = vsel %vm615, %v10206, 0.0
        %10243 = vadd.xlane.f32.xlu0 %v10242
        %v10244 = vpop.xlane.xlu0 %10243
        %v10245 = vsel %vm615, %v10207, 0.0
        %10246 = vadd.xlane.f32.xlu0 %v10245
        %v10247 = vpop.xlane.xlu0 %10246
        %v10248 = vsel %vm615, %v10208, 0.0
        %10249 = vadd.xlane.f32.xlu0 %v10248
        %v10250 = vpop.xlane.xlu0 %10249
        %v10251 = vsel %vm615, %v10209, 0.0
        %10252 = vadd.xlane.f32.xlu0 %v10251
        %v10253 = vpop.xlane.xlu0 %10252
        %v10254 = vsel %vm615, %v10210, 0.0
        %10255 = vadd.xlane.f32.xlu0 %v10254
        %v10256 = vpop.xlane.xlu0 %10255
        %v10257 = vsel %vm615, %v10211, 0.0
        %10258 = vadd.xlane.f32.xlu0 %v10257
        %v10259 = vpop.xlane.xlu0 %10258
        %v10260 = vmul.f32 %v10214, %v670
        %v10261 = vmul.f32 %v10217, %v670
        %v10262 = vmul.f32 %v10220, %v670
        %v10263 = vmul.f32 %v10223, %v670
        %v10264 = vmul.f32 %v10226, %v670
        %v10265 = vmul.f32 %v10229, %v670
        %v10266 = vmul.f32 %v10232, %v670
        %v10267 = vmul.f32 %v10235, %v670
        %v10268 = vmul.f32 %v10238, %v670
        %v10269 = vmul.f32 %v10241, %v670
        %v10270 = vmul.f32 %v10244, %v670
        %v10271 = vmul.f32 %v10247, %v670
        %v10272 = vmul.f32 %v10250, %v670
        %v10273 = vmul.f32 %v10253, %v670
        %v10274 = vmul.f32 %v10256, %v670
        %v10275 = vmul.f32 %v10259, %v670
        %v10276 = vsub.f32 %v10196, %v10260
        %v10277 = vsub.f32 %v10197, %v10261
        %v10278 = vsub.f32 %v10198, %v10262
        %v10279 = vsub.f32 %v10199, %v10263
        %v10280 = vsub.f32 %v10200, %v10264
        %v10281 = vsub.f32 %v10201, %v10265
        %v10282 = vsub.f32 %v10202, %v10266
        %v10283 = vsub.f32 %v10203, %v10267
        %v10284 = vsub.f32 %v10204, %v10268
        %v10285 = vsub.f32 %v10205, %v10269
        %v10286 = vsub.f32 %v10206, %v10270
        %v10287 = vsub.f32 %v10207, %v10271
        %v10288 = vsub.f32 %v10208, %v10272
        %v10289 = vsub.f32 %v10209, %v10273
        %v10290 = vsub.f32 %v10210, %v10274
        %v10291 = vsub.f32 %v10211, %v10275
        %v10292 = vmul.f32 %v10276, %v10276
        %v10293 = vmul.f32 %v10277, %v10277
        %v10294 = vmul.f32 %v10278, %v10278
        %v10295 = vmul.f32 %v10279, %v10279
        %v10296 = vmul.f32 %v10280, %v10280
        %v10297 = vmul.f32 %v10281, %v10281
        %v10298 = vmul.f32 %v10282, %v10282
        %v10299 = vmul.f32 %v10283, %v10283
        %v10300 = vmul.f32 %v10284, %v10284
        %v10301 = vmul.f32 %v10285, %v10285
        %v10302 = vmul.f32 %v10286, %v10286
        %v10303 = vmul.f32 %v10287, %v10287
        %v10304 = vmul.f32 %v10288, %v10288
        %v10305 = vmul.f32 %v10289, %v10289
        %v10306 = vmul.f32 %v10290, %v10290
        %v10307 = vmul.f32 %v10291, %v10291
        %v10308 = vsel %vm615, %v10292, 0.0
        %10309 = vadd.xlane.f32.xlu0 %v10308
        %v10310 = vpop.xlane.xlu0 %10309
        %v10311 = vsel %vm615, %v10293, 0.0
        %10312 = vadd.xlane.f32.xlu0 %v10311
        %v10313 = vpop.xlane.xlu0 %10312
        %v10314 = vsel %vm615, %v10294, 0.0
        %10315 = vadd.xlane.f32.xlu0 %v10314
        %v10316 = vpop.xlane.xlu0 %10315
        %v10317 = vsel %vm615, %v10295, 0.0
        %10318 = vadd.xlane.f32.xlu0 %v10317
        %v10319 = vpop.xlane.xlu0 %10318
        %v10320 = vsel %vm615, %v10296, 0.0
        %10321 = vadd.xlane.f32.xlu0 %v10320
        %v10322 = vpop.xlane.xlu0 %10321
        %v10323 = vsel %vm615, %v10297, 0.0
        %10324 = vadd.xlane.f32.xlu0 %v10323
        %v10325 = vpop.xlane.xlu0 %10324
        %v10326 = vsel %vm615, %v10298, 0.0
        %10327 = vadd.xlane.f32.xlu0 %v10326
        %v10328 = vpop.xlane.xlu0 %10327
        %v10329 = vsel %vm615, %v10299, 0.0
        %10330 = vadd.xlane.f32.xlu0 %v10329
        %v10331 = vpop.xlane.xlu0 %10330
        %v10332 = vsel %vm615, %v10300, 0.0
        %10333 = vadd.xlane.f32.xlu0 %v10332
        %v10334 = vpop.xlane.xlu0 %10333
        %v10335 = vsel %vm615, %v10301, 0.0
        %10336 = vadd.xlane.f32.xlu0 %v10335
        %v10337 = vpop.xlane.xlu0 %10336
        %v10338 = vsel %vm615, %v10302, 0.0
        %10339 = vadd.xlane.f32.xlu0 %v10338
        %v10340 = vpop.xlane.xlu0 %10339
        %v10341 = vsel %vm615, %v10303, 0.0
        %10342 = vadd.xlane.f32.xlu0 %v10341
        %v10343 = vpop.xlane.xlu0 %10342
        %v10344 = vsel %vm615, %v10304, 0.0
        %10345 = vadd.xlane.f32.xlu0 %v10344
        %v10346 = vpop.xlane.xlu0 %10345
        %v10347 = vsel %vm615, %v10305, 0.0
        %10348 = vadd.xlane.f32.xlu0 %v10347
        %v10349 = vpop.xlane.xlu0 %10348
        %v10350 = vsel %vm615, %v10306, 0.0
        %10351 = vadd.xlane.f32.xlu0 %v10350
        %v10352 = vpop.xlane.xlu0 %10351
        %v10353 = vsel %vm615, %v10307, 0.0
        %10354 = vadd.xlane.f32.xlu0 %v10353
        %v10355 = vpop.xlane.xlu0 %10354
        %v10356 = vmul.f32 %v10310, %v670
        %v10357 = vmul.f32 %v10313, %v670
        %v10358 = vmul.f32 %v10316, %v670
        %v10359 = vmul.f32 %v10319, %v670
        %v10360 = vmul.f32 %v10322, %v670
        %v10361 = vmul.f32 %v10325, %v670
        %v10362 = vmul.f32 %v10328, %v670
        %v10363 = vmul.f32 %v10331, %v670
        %v10364 = vmul.f32 %v10334, %v670
        %v10365 = vmul.f32 %v10337, %v670
        %v10366 = vmul.f32 %v10340, %v670
        %v10367 = vmul.f32 %v10343, %v670
        %v10368 = vmul.f32 %v10346, %v670
        %v10369 = vmul.f32 %v10349, %v670
        %v10370 = vmul.f32 %v10352, %v670
        %v10371 = vmul.f32 %v10355, %v670
        %v10372 = vadd.f32 %v10356, 1e-05
        %v10373 = vadd.f32 %v10357, 1e-05
        %v10374 = vadd.f32 %v10358, 1e-05
        %v10375 = vadd.f32 %v10359, 1e-05
        %v10376 = vadd.f32 %v10360, 1e-05
        %v10377 = vadd.f32 %v10361, 1e-05
        %v10378 = vadd.f32 %v10362, 1e-05
        %v10379 = vadd.f32 %v10363, 1e-05
        %v10380 = vadd.f32 %v10364, 1e-05
        %v10381 = vadd.f32 %v10365, 1e-05
        %v10382 = vadd.f32 %v10366, 1e-05
        %v10383 = vadd.f32 %v10367, 1e-05
        %v10384 = vadd.f32 %v10368, 1e-05
        %v10385 = vadd.f32 %v10369, 1e-05
        %v10386 = vadd.f32 %v10370, 1e-05
        %v10387 = vadd.f32 %v10371, 1e-05
        %v10388 = vrsqrt.pop %v10372
        %v10389 = vmul.f32 %v10388, %v10372
        %v10390 = vmul.f32 %v10389, %v10388
        %v10391 = vmul.f32 0.5, %v10390
        %v10392 = vsub.f32 1.5, %v10391
        %v10393 = vmul.f32 %v10388, %v10392
        %vm10394 = vweird.f32 %v10372
        %vm10395 = vweird.f32 %v10388
        %vm10396 = vmor %vm10394, %vm10395
        %v10397 = vsel %vm10396, %v10388, %v10393
        %v10398 = vrsqrt.pop %v10373
        %v10399 = vmul.f32 %v10398, %v10373
        %v10400 = vmul.f32 %v10399, %v10398
        %v10401 = vmul.f32 0.5, %v10400
        %v10402 = vsub.f32 1.5, %v10401
        %v10403 = vmul.f32 %v10398, %v10402
        %vm10404 = vweird.f32 %v10373
        %vm10405 = vweird.f32 %v10398
        %vm10406 = vmor %vm10404, %vm10405
        %v10407 = vsel %vm10406, %v10398, %v10403
        %v10408 = vrsqrt.pop %v10374
        %v10409 = vmul.f32 %v10408, %v10374
        %v10410 = vmul.f32 %v10409, %v10408
        %v10411 = vmul.f32 0.5, %v10410
        %v10412 = vsub.f32 1.5, %v10411
        %v10413 = vmul.f32 %v10408, %v10412
        %vm10414 = vweird.f32 %v10374
        %vm10415 = vweird.f32 %v10408
        %vm10416 = vmor %vm10414, %vm10415
        %v10417 = vsel %vm10416, %v10408, %v10413
        %v10418 = vrsqrt.pop %v10375
        %v10419 = vmul.f32 %v10418, %v10375
        %v10420 = vmul.f32 %v10419, %v10418
        %v10421 = vmul.f32 0.5, %v10420
        %v10422 = vsub.f32 1.5, %v10421
        %v10423 = vmul.f32 %v10418, %v10422
        %vm10424 = vweird.f32 %v10375
        %vm10425 = vweird.f32 %v10418
        %vm10426 = vmor %vm10424, %vm10425
        %v10427 = vsel %vm10426, %v10418, %v10423
        %v10428 = vrsqrt.pop %v10376
        %v10429 = vmul.f32 %v10428, %v10376
        %v10430 = vmul.f32 %v10429, %v10428
        %v10431 = vmul.f32 0.5, %v10430
        %v10432 = vsub.f32 1.5, %v10431
        %v10433 = vmul.f32 %v10428, %v10432
        %vm10434 = vweird.f32 %v10376
        %vm10435 = vweird.f32 %v10428
        %vm10436 = vmor %vm10434, %vm10435
        %v10437 = vsel %vm10436, %v10428, %v10433
        %v10438 = vrsqrt.pop %v10377
        %v10439 = vmul.f32 %v10438, %v10377
        %v10440 = vmul.f32 %v10439, %v10438
        %v10441 = vmul.f32 0.5, %v10440
        %v10442 = vsub.f32 1.5, %v10441
        %v10443 = vmul.f32 %v10438, %v10442
        %vm10444 = vweird.f32 %v10377
        %vm10445 = vweird.f32 %v10438
        %vm10446 = vmor %vm10444, %vm10445
        %v10447 = vsel %vm10446, %v10438, %v10443
        %v10448 = vrsqrt.pop %v10378
        %v10449 = vmul.f32 %v10448, %v10378
        %v10450 = vmul.f32 %v10449, %v10448
        %v10451 = vmul.f32 0.5, %v10450
        %v10452 = vsub.f32 1.5, %v10451
        %v10453 = vmul.f32 %v10448, %v10452
        %vm10454 = vweird.f32 %v10378
        %vm10455 = vweird.f32 %v10448
        %vm10456 = vmor %vm10454, %vm10455
        %v10457 = vsel %vm10456, %v10448, %v10453
        %v10458 = vrsqrt.pop %v10379
        %v10459 = vmul.f32 %v10458, %v10379
        %v10460 = vmul.f32 %v10459, %v10458
        %v10461 = vmul.f32 0.5, %v10460
        %v10462 = vsub.f32 1.5, %v10461
        %v10463 = vmul.f32 %v10458, %v10462
        %vm10464 = vweird.f32 %v10379
        %vm10465 = vweird.f32 %v10458
        %vm10466 = vmor %vm10464, %vm10465
        %v10467 = vsel %vm10466, %v10458, %v10463
        %v10468 = vrsqrt.pop %v10380
        %v10469 = vmul.f32 %v10468, %v10380
        %v10470 = vmul.f32 %v10469, %v10468
        %v10471 = vmul.f32 0.5, %v10470
        %v10472 = vsub.f32 1.5, %v10471
        %v10473 = vmul.f32 %v10468, %v10472
        %vm10474 = vweird.f32 %v10380
        %vm10475 = vweird.f32 %v10468
        %vm10476 = vmor %vm10474, %vm10475
        %v10477 = vsel %vm10476, %v10468, %v10473
        %v10478 = vrsqrt.pop %v10381
        %v10479 = vmul.f32 %v10478, %v10381
        %v10480 = vmul.f32 %v10479, %v10478
        %v10481 = vmul.f32 0.5, %v10480
        %v10482 = vsub.f32 1.5, %v10481
        %v10483 = vmul.f32 %v10478, %v10482
        %vm10484 = vweird.f32 %v10381
        %vm10485 = vweird.f32 %v10478
        %vm10486 = vmor %vm10484, %vm10485
        %v10487 = vsel %vm10486, %v10478, %v10483
        %v10488 = vrsqrt.pop %v10382
        %v10489 = vmul.f32 %v10488, %v10382
        %v10490 = vmul.f32 %v10489, %v10488
        %v10491 = vmul.f32 0.5, %v10490
        %v10492 = vsub.f32 1.5, %v10491
        %v10493 = vmul.f32 %v10488, %v10492
        %vm10494 = vweird.f32 %v10382
        %vm10495 = vweird.f32 %v10488
        %vm10496 = vmor %vm10494, %vm10495
        %v10497 = vsel %vm10496, %v10488, %v10493
        %v10498 = vrsqrt.pop %v10383
        %v10499 = vmul.f32 %v10498, %v10383
        %v10500 = vmul.f32 %v10499, %v10498
        %v10501 = vmul.f32 0.5, %v10500
        %v10502 = vsub.f32 1.5, %v10501
        %v10503 = vmul.f32 %v10498, %v10502
        %vm10504 = vweird.f32 %v10383
        %vm10505 = vweird.f32 %v10498
        %vm10506 = vmor %vm10504, %vm10505
        %v10507 = vsel %vm10506, %v10498, %v10503
        %v10508 = vrsqrt.pop %v10384
        %v10509 = vmul.f32 %v10508, %v10384
        %v10510 = vmul.f32 %v10509, %v10508
        %v10511 = vmul.f32 0.5, %v10510
        %v10512 = vsub.f32 1.5, %v10511
        %v10513 = vmul.f32 %v10508, %v10512
        %vm10514 = vweird.f32 %v10384
        %vm10515 = vweird.f32 %v10508
        %vm10516 = vmor %vm10514, %vm10515
        %v10517 = vsel %vm10516, %v10508, %v10513
        %v10518 = vrsqrt.pop %v10385
        %v10519 = vmul.f32 %v10518, %v10385
        %v10520 = vmul.f32 %v10519, %v10518
        %v10521 = vmul.f32 0.5, %v10520
        %v10522 = vsub.f32 1.5, %v10521
        %v10523 = vmul.f32 %v10518, %v10522
        %vm10524 = vweird.f32 %v10385
        %vm10525 = vweird.f32 %v10518
        %vm10526 = vmor %vm10524, %vm10525
        %v10527 = vsel %vm10526, %v10518, %v10523
        %v10528 = vrsqrt.pop %v10386
        %v10529 = vmul.f32 %v10528, %v10386
        %v10530 = vmul.f32 %v10529, %v10528
        %v10531 = vmul.f32 0.5, %v10530
        %v10532 = vsub.f32 1.5, %v10531
        %v10533 = vmul.f32 %v10528, %v10532
        %vm10534 = vweird.f32 %v10386
        %vm10535 = vweird.f32 %v10528
        %vm10536 = vmor %vm10534, %vm10535
        %v10537 = vsel %vm10536, %v10528, %v10533
        %v10538 = vrsqrt.pop %v10387
        %v10539 = vmul.f32 %v10538, %v10387
        %v10540 = vmul.f32 %v10539, %v10538
        %v10541 = vmul.f32 0.5, %v10540
        %v10542 = vsub.f32 1.5, %v10541
        %v10543 = vmul.f32 %v10538, %v10542
        %vm10544 = vweird.f32 %v10387
        %vm10545 = vweird.f32 %v10538
        %vm10546 = vmor %vm10544, %vm10545
        %v10547 = vsel %vm10546, %v10538, %v10543
        %v10548 = vmul.f32 %v10276, %v10397
        %v10549 = vmul.f32 %v10277, %v10407
        %v10550 = vmul.f32 %v10278, %v10417
        %v10551 = vmul.f32 %v10279, %v10427
        %v10552 = vmul.f32 %v10280, %v10437
        %v10553 = vmul.f32 %v10281, %v10447
        %v10554 = vmul.f32 %v10282, %v10457
        %v10555 = vmul.f32 %v10283, %v10467
        %v10556 = vmul.f32 %v10284, %v10477
        %v10557 = vmul.f32 %v10285, %v10487
        %v10558 = vmul.f32 %v10286, %v10497
        %v10559 = vmul.f32 %v10287, %v10507
        %v10560 = vmul.f32 %v10288, %v10517
        %v10561 = vmul.f32 %v10289, %v10527
        %v10562 = vmul.f32 %v10290, %v10537
        %v10563 = vmul.f32 %v10291, %v10547
        %v10564 = vperm.slane %v6198, 4
        %v10565 = vmul.f32 %v10548, %v10564
        %v10566 = vmul.f32 %v10549, %v10564
        %v10567 = vmul.f32 %v10550, %v10564
        %v10568 = vmul.f32 %v10551, %v10564
        %v10569 = vmul.f32 %v10552, %v10564
        %v10570 = vmul.f32 %v10553, %v10564
        %v10571 = vmul.f32 %v10554, %v10564
        %v10572 = vmul.f32 %v10555, %v10564
        %v10573 = vmul.f32 %v10556, %v10564
        %v10574 = vmul.f32 %v10557, %v10564
        %v10575 = vmul.f32 %v10558, %v10564
        %v10576 = vmul.f32 %v10559, %v10564
        %v10577 = vmul.f32 %v10560, %v10564
        %v10578 = vmul.f32 %v10561, %v10564
        %v10579 = vmul.f32 %v10562, %v10564
        %v10580 = vmul.f32 %v10563, %v10564
        %v10581 = vperm.slane %v6198, 5
        %v10582 = vadd.f32 %v10565, %v10581
        %v10583 = vadd.f32 %v10566, %v10581
        %v10584 = vadd.f32 %v10567, %v10581
        %v10585 = vadd.f32 %v10568, %v10581
        %v10586 = vadd.f32 %v10569, %v10581
        %v10587 = vadd.f32 %v10570, %v10581
        %v10588 = vadd.f32 %v10571, %v10581
        %v10589 = vadd.f32 %v10572, %v10581
        %v10590 = vadd.f32 %v10573, %v10581
        %v10591 = vadd.f32 %v10574, %v10581
        %v10592 = vadd.f32 %v10575, %v10581
        %v10593 = vadd.f32 %v10576, %v10581
        %v10594 = vadd.f32 %v10577, %v10581
        %v10595 = vadd.f32 %v10578, %v10581
        %v10596 = vadd.f32 %v10579, %v10581
        %v10597 = vadd.f32 %v10580, %v10581
        %v10598 = vpack.c.bf16 %v10583, %v10582
        %v10599 = vpack.c.bf16 %v10585, %v10584
        %v10600 = vpack.c.bf16 %v10587, %v10586
        %v10601 = vpack.c.bf16 %v10589, %v10588
        %v10602 = vpack.c.bf16 %v10591, %v10590
        %v10603 = vpack.c.bf16 %v10593, %v10592
        %v10604 = vpack.c.bf16 %v10595, %v10594
        %v10605 = vpack.c.bf16 %v10597, %v10596
        %s10606 = scalar_lea.vmem %s6, 16
        %v10607 = vld [vmem:[%s10606] sm:$0xf]
        %v10608 = vld [vmem:[%s10606 + $0x4] sm:$0xf]
        %v10609 = vld [vmem:[%s10606 + $0x8] sm:$0xf]
        %v10610 = vld [vmem:[%s10606 + $0xc] sm:$0xf]
        %s10611 = scalar_lea.vmem %s7, 1
        %v10612 = vld [vmem:[%s10611] sm:$0x1]
        %v10614 = vperm.slane %v10612, 0
        %v10620 = vunpack.c.l.b16 %v10607
        %v10621 = vunpack.c.l.b16 %v10608
        %v10622 = vunpack.c.l.b16 %v10609
        %v10623 = vunpack.c.l.b16 %v10610
        %v10624 = vpack.c.b16 %v10621, %v10620
        %v10625 = vpack.c.b16 %v10623, %v10622
        %v10629 = vsel %vm615, %v10598, 0
        %v10632 = vsel %vm615, %v10599, 0
        %v10635 = vsel %vm615, %v10600, 0
        %v10638 = vsel %vm615, %v10601, 0
        %v10641 = vsel %vm615, %v10602, 0
        %v10644 = vsel %vm615, %v10603, 0
        %v10647 = vsel %vm615, %v10604, 0
        %v10650 = vsel %vm615, %v10605, 0
        %10652 = vmatpush.bf16.msra.mxu0 0
        %10653 = vmatpush.bf16.msra.mxu0 0
        %10654 = vmatpush.bf16.msra.mxu0 0
        %10655 = vmatpush.bf16.msra.mxu0 0
        %10656 = vmatpush.bf16.msra.mxu0 0
        %10657 = vmatpush.bf16.msra.mxu0 0
        %10658 = vmatpush.bf16.msra.mxu0 %v10625
        %10659 = vmatpush.bf16.msra.mxu0 %v10624
        %10660 = vmatmul.bf16.gmra.mxu0 %v10629
        %v10661 = vpop.f32.mrf.mxu0
        %v10662 = vadd.f32 %v10614, %v10661
        %v10663 = vpop.f32.mrf.mxu0
        %v10664 = vadd.f32 %v10614, %v10663
        %10665 = vmatmul.bf16.gmra.mxu0 %v10632
        %v10666 = vpop.f32.mrf.mxu0
        %v10667 = vadd.f32 %v10614, %v10666
        %v10668 = vpop.f32.mrf.mxu0
        %v10669 = vadd.f32 %v10614, %v10668
        %10670 = vmatmul.bf16.gmra.mxu0 %v10635
        %v10671 = vpop.f32.mrf.mxu0
        %v10672 = vadd.f32 %v10614, %v10671
        %v10673 = vpop.f32.mrf.mxu0
        %v10674 = vadd.f32 %v10614, %v10673
        %10675 = vmatmul.bf16.gmra.mxu0 %v10638
        %v10676 = vpop.f32.mrf.mxu0
        %v10677 = vadd.f32 %v10614, %v10676
        %v10678 = vpop.f32.mrf.mxu0
        %v10679 = vadd.f32 %v10614, %v10678
        %10680 = vmatmul.bf16.gmra.mxu0 %v10641
        %v10681 = vpop.f32.mrf.mxu0
        %v10682 = vadd.f32 %v10614, %v10681
        %v10683 = vpop.f32.mrf.mxu0
        %v10684 = vadd.f32 %v10614, %v10683
        %10685 = vmatmul.bf16.gmra.mxu0 %v10644
        %v10686 = vpop.f32.mrf.mxu0
        %v10687 = vadd.f32 %v10614, %v10686
        %v10688 = vpop.f32.mrf.mxu0
        %v10689 = vadd.f32 %v10614, %v10688
        %10690 = vmatmul.bf16.gmra.mxu0 %v10647
        %v10691 = vpop.f32.mrf.mxu0
        %v10692 = vadd.f32 %v10614, %v10691
        %v10693 = vpop.f32.mrf.mxu0
        %v10694 = vadd.f32 %v10614, %v10693
        %10695 = vmatmul.bf16.gmra.mxu0 %v10650
        %v10696 = vpop.f32.mrf.mxu0
        %v10697 = vadd.f32 %v10614, %v10696
        %v10698 = vpop.f32.mrf.mxu0
        %v10699 = vadd.f32 %v10614, %v10698
        %10700 = vdwg.mxu0
        %v10701 = vmul.f32 %v10662, %v10662
        %v10702 = vmul.f32 %v10664, %v10664
        %v10703 = vmul.f32 %v10667, %v10667
        %v10704 = vmul.f32 %v10669, %v10669
        %v10705 = vmul.f32 %v10672, %v10672
        %v10706 = vmul.f32 %v10674, %v10674
        %v10707 = vmul.f32 %v10677, %v10677
        %v10708 = vmul.f32 %v10679, %v10679
        %v10709 = vmul.f32 %v10682, %v10682
        %v10710 = vmul.f32 %v10684, %v10684
        %v10711 = vmul.f32 %v10687, %v10687
        %v10712 = vmul.f32 %v10689, %v10689
        %v10713 = vmul.f32 %v10692, %v10692
        %v10714 = vmul.f32 %v10694, %v10694
        %v10715 = vmul.f32 %v10697, %v10697
        %v10716 = vmul.f32 %v10699, %v10699
        %v10717 = vmul.f32 %v10662, %v10701
        %v10718 = vmul.f32 %v10664, %v10702
        %v10719 = vmul.f32 %v10667, %v10703
        %v10720 = vmul.f32 %v10669, %v10704
        %v10721 = vmul.f32 %v10672, %v10705
        %v10722 = vmul.f32 %v10674, %v10706
        %v10723 = vmul.f32 %v10677, %v10707
        %v10724 = vmul.f32 %v10679, %v10708
        %v10725 = vmul.f32 %v10682, %v10709
        %v10726 = vmul.f32 %v10684, %v10710
        %v10727 = vmul.f32 %v10687, %v10711
        %v10728 = vmul.f32 %v10689, %v10712
        %v10729 = vmul.f32 %v10692, %v10713
        %v10730 = vmul.f32 %v10694, %v10714
        %v10731 = vmul.f32 %v10697, %v10715
        %v10732 = vmul.f32 %v10699, %v10716
        %v10733 = vmul.f32 %v10717, 0.044715
        %v10734 = vmul.f32 %v10718, 0.044715
        %v10735 = vmul.f32 %v10719, 0.044715
        %v10736 = vmul.f32 %v10720, 0.044715
        %v10737 = vmul.f32 %v10721, 0.044715
        %v10738 = vmul.f32 %v10722, 0.044715
        %v10739 = vmul.f32 %v10723, 0.044715
        %v10740 = vmul.f32 %v10724, 0.044715
        %v10741 = vmul.f32 %v10725, 0.044715
        %v10742 = vmul.f32 %v10726, 0.044715
        %v10743 = vmul.f32 %v10727, 0.044715
        %v10744 = vmul.f32 %v10728, 0.044715
        %v10745 = vmul.f32 %v10729, 0.044715
        %v10746 = vmul.f32 %v10730, 0.044715
        %v10747 = vmul.f32 %v10731, 0.044715
        %v10748 = vmul.f32 %v10732, 0.044715
        %v10749 = vadd.f32 %v10662, %v10733
        %v10750 = vadd.f32 %v10664, %v10734
        %v10751 = vadd.f32 %v10667, %v10735
        %v10752 = vadd.f32 %v10669, %v10736
        %v10753 = vadd.f32 %v10672, %v10737
        %v10754 = vadd.f32 %v10674, %v10738
        %v10755 = vadd.f32 %v10677, %v10739
        %v10756 = vadd.f32 %v10679, %v10740
        %v10757 = vadd.f32 %v10682, %v10741
        %v10758 = vadd.f32 %v10684, %v10742
        %v10759 = vadd.f32 %v10687, %v10743
        %v10760 = vadd.f32 %v10689, %v10744
        %v10761 = vadd.f32 %v10692, %v10745
        %v10762 = vadd.f32 %v10694, %v10746
        %v10763 = vadd.f32 %v10697, %v10747
        %v10764 = vadd.f32 %v10699, %v10748
        %v10765 = vmul.f32 %v10749, 0.7978846
        %v10766 = vmul.f32 %v10750, 0.7978846
        %v10767 = vmul.f32 %v10751, 0.7978846
        %v10768 = vmul.f32 %v10752, 0.7978846
        %v10769 = vmul.f32 %v10753, 0.7978846
        %v10770 = vmul.f32 %v10754, 0.7978846
        %v10771 = vmul.f32 %v10755, 0.7978846
        %v10772 = vmul.f32 %v10756, 0.7978846
        %v10773 = vmul.f32 %v10757, 0.7978846
        %v10774 = vmul.f32 %v10758, 0.7978846
        %v10775 = vmul.f32 %v10759, 0.7978846
        %v10776 = vmul.f32 %v10760, 0.7978846
        %v10777 = vmul.f32 %v10761, 0.7978846
        %v10778 = vmul.f32 %v10762, 0.7978846
        %v10779 = vmul.f32 %v10763, 0.7978846
        %v10780 = vmul.f32 %v10764, 0.7978846
        %v10781 = vtanh.pop %v10765
        %v10782 = vtanh.pop %v10766
        %v10783 = vtanh.pop %v10767
        %v10784 = vtanh.pop %v10768
        %v10785 = vtanh.pop %v10769
        %v10786 = vtanh.pop %v10770
        %v10787 = vtanh.pop %v10771
        %v10788 = vtanh.pop %v10772
        %v10789 = vtanh.pop %v10773
        %v10790 = vtanh.pop %v10774
        %v10791 = vtanh.pop %v10775
        %v10792 = vtanh.pop %v10776
        %v10793 = vtanh.pop %v10777
        %v10794 = vtanh.pop %v10778
        %v10795 = vtanh.pop %v10779
        %v10796 = vtanh.pop %v10780
        %v10797 = vadd.f32 %v10781, 1.0
        %v10798 = vadd.f32 %v10782, 1.0
        %v10799 = vadd.f32 %v10783, 1.0
        %v10800 = vadd.f32 %v10784, 1.0
        %v10801 = vadd.f32 %v10785, 1.0
        %v10802 = vadd.f32 %v10786, 1.0
        %v10803 = vadd.f32 %v10787, 1.0
        %v10804 = vadd.f32 %v10788, 1.0
        %v10805 = vadd.f32 %v10789, 1.0
        %v10806 = vadd.f32 %v10790, 1.0
        %v10807 = vadd.f32 %v10791, 1.0
        %v10808 = vadd.f32 %v10792, 1.0
        %v10809 = vadd.f32 %v10793, 1.0
        %v10810 = vadd.f32 %v10794, 1.0
        %v10811 = vadd.f32 %v10795, 1.0
        %v10812 = vadd.f32 %v10796, 1.0
        %v10813 = vmul.f32 %v10797, 0.5
        %v10814 = vmul.f32 %v10798, 0.5
        %v10815 = vmul.f32 %v10799, 0.5
        %v10816 = vmul.f32 %v10800, 0.5
        %v10817 = vmul.f32 %v10801, 0.5
        %v10818 = vmul.f32 %v10802, 0.5
        %v10819 = vmul.f32 %v10803, 0.5
        %v10820 = vmul.f32 %v10804, 0.5
        %v10821 = vmul.f32 %v10805, 0.5
        %v10822 = vmul.f32 %v10806, 0.5
        %v10823 = vmul.f32 %v10807, 0.5
        %v10824 = vmul.f32 %v10808, 0.5
        %v10825 = vmul.f32 %v10809, 0.5
        %v10826 = vmul.f32 %v10810, 0.5
        %v10827 = vmul.f32 %v10811, 0.5
        %v10828 = vmul.f32 %v10812, 0.5
        %v10829 = vmul.f32 %v10662, %v10813
        %v10830 = vmul.f32 %v10664, %v10814
        %v10831 = vmul.f32 %v10667, %v10815
        %v10832 = vmul.f32 %v10669, %v10816
        %v10833 = vmul.f32 %v10672, %v10817
        %v10834 = vmul.f32 %v10674, %v10818
        %v10835 = vmul.f32 %v10677, %v10819
        %v10836 = vmul.f32 %v10679, %v10820
        %v10837 = vmul.f32 %v10682, %v10821
        %v10838 = vmul.f32 %v10684, %v10822
        %v10839 = vmul.f32 %v10687, %v10823
        %v10840 = vmul.f32 %v10689, %v10824
        %v10841 = vmul.f32 %v10692, %v10825
        %v10842 = vmul.f32 %v10694, %v10826
        %v10843 = vmul.f32 %v10697, %v10827
        %v10844 = vmul.f32 %v10699, %v10828
        %v10845 = vpack.c.bf16 %v10830, %v10829
        %v10846 = vpack.c.bf16 %v10832, %v10831
        %v10847 = vpack.c.bf16 %v10834, %v10833
        %v10848 = vpack.c.bf16 %v10836, %v10835
        %v10849 = vpack.c.bf16 %v10838, %v10837
        %v10850 = vpack.c.bf16 %v10840, %v10839
        %v10851 = vpack.c.bf16 %v10842, %v10841
        %v10852 = vpack.c.bf16 %v10844, %v10843
        %s10853 = scalar_lea.vmem %s8, 32
        %v10854 = vld [vmem:[%s10853] sm:$0xf]
        %v10855 = vld [vmem:[%s10853 + $0x4] sm:$0xf]
        %v10856 = vld [vmem:[%s10853 + $0x8] sm:$0xf]
        %v10857 = vld [vmem:[%s10853 + $0xc] sm:$0xf]
        %v10858 = vld [vmem:[%s10853 + $0x10] sm:$0xf]
        %v10859 = vld [vmem:[%s10853 + $0x14] sm:$0xf]
        %v10860 = vld [vmem:[%s10853 + $0x18] sm:$0xf]
        %v10861 = vld [vmem:[%s10853 + $0x1c] sm:$0xf]
        %v10862 = vperm.slane %v6198, 6
        %v10871 = vunpack.c.l.b16 %v10854
        %v10872 = vunpack.c.l.b16 %v10855
        %v10873 = vunpack.c.l.b16 %v10856
        %v10874 = vunpack.c.l.b16 %v10857
        %v10875 = vunpack.c.l.b16 %v10858
        %v10876 = vunpack.c.l.b16 %v10859
        %v10877 = vunpack.c.l.b16 %v10860
        %v10878 = vunpack.c.l.b16 %v10861
        %v10879 = vpack.c.b16 %v10872, %v10871
        %v10880 = vpack.c.b16 %v10874, %v10873
        %v10881 = vpack.c.b16 %v10876, %v10875
        %v10882 = vpack.c.b16 %v10878, %v10877
        %v10888 = vsel %vm5721, %v10845, 0
        %v10891 = vsel %vm5721, %v10846, 0
        %v10894 = vsel %vm5721, %v10847, 0
        %v10897 = vsel %vm5721, %v10848, 0
        %v10900 = vsel %vm5721, %v10849, 0
        %v10903 = vsel %vm5721, %v10850, 0
        %v10906 = vsel %vm5721, %v10851, 0
        %v10909 = vsel %vm5721, %v10852, 0
        %10911 = vmatpush.bf16.msra.mxu0 0
        %10912 = vmatpush.bf16.msra.mxu0 0
        %10913 = vmatpush.bf16.msra.mxu0 0
        %10914 = vmatpush.bf16.msra.mxu0 0
        %10915 = vmatpush.bf16.msra.mxu0 %v10882
        %10916 = vmatpush.bf16.msra.mxu0 %v10881
        %10917 = vmatpush.bf16.msra.mxu0 %v10880
        %10918 = vmatpush.bf16.msra.mxu0 %v10879
        %10919 = vmatmul.bf16.gmra.mxu0 %v10888
        %v10920 = vpop.f32.mrf.mxu0
        %v10921 = vadd.f32 %v10862, %v10920
        %v10922 = vpop.f32.mrf.mxu0
        %10923 = vmatmul.bf16.gmra.mxu0 %v10891
        %v10924 = vpop.f32.mrf.mxu0
        %v10925 = vadd.f32 %v10862, %v10924
        %v10926 = vpop.f32.mrf.mxu0
        %10927 = vmatmul.bf16.gmra.mxu0 %v10894
        %v10928 = vpop.f32.mrf.mxu0
        %v10929 = vadd.f32 %v10862, %v10928
        %v10930 = vpop.f32.mrf.mxu0
        %10931 = vmatmul.bf16.gmra.mxu0 %v10897
        %v10932 = vpop.f32.mrf.mxu0
        %v10933 = vadd.f32 %v10862, %v10932
        %v10934 = vpop.f32.mrf.mxu0
        %10935 = vmatmul.bf16.gmra.mxu0 %v10900
        %v10936 = vpop.f32.mrf.mxu0
        %v10937 = vadd.f32 %v10862, %v10936
        %v10938 = vpop.f32.mrf.mxu0
        %10939 = vmatmul.bf16.gmra.mxu0 %v10903
        %v10940 = vpop.f32.mrf.mxu0
        %v10941 = vadd.f32 %v10862, %v10940
        %v10942 = vpop.f32.mrf.mxu0
        %10943 = vmatmul.bf16.gmra.mxu0 %v10906
        %v10944 = vpop.f32.mrf.mxu0
        %v10945 = vadd.f32 %v10862, %v10944
        %v10946 = vpop.f32.mrf.mxu0
        %10947 = vmatmul.bf16.gmra.mxu0 %v10909
        %v10948 = vpop.f32.mrf.mxu0
        %v10949 = vadd.f32 %v10862, %v10948
        %v10950 = vpop.f32.mrf.mxu0
        %10951 = vdwg.mxu0
        %v10952 = vadd.f32 %v10582, %v10921
        %v10953 = vadd.f32 %v10584, %v10925
        %v10954 = vadd.f32 %v10586, %v10929
        %v10955 = vadd.f32 %v10588, %v10933
        %v10956 = vadd.f32 %v10590, %v10937
        %v10957 = vadd.f32 %v10592, %v10941
        %v10958 = vadd.f32 %v10594, %v10945
        %v10959 = vadd.f32 %v10596, %v10949
        %v10960 = vsel %vm615, %v10952, 0.0
        %10961 = vadd.xlane.f32.xlu0 %v10960
        %v10962 = vpop.xlane.xlu0 %10961
        %v10963 = vsel %vm615, %v10953, 0.0
        %10964 = vadd.xlane.f32.xlu0 %v10963
        %v10965 = vpop.xlane.xlu0 %10964
        %v10966 = vsel %vm615, %v10954, 0.0
        %10967 = vadd.xlane.f32.xlu0 %v10966
        %v10968 = vpop.xlane.xlu0 %10967
        %v10969 = vsel %vm615, %v10955, 0.0
        %10970 = vadd.xlane.f32.xlu0 %v10969
        %v10971 = vpop.xlane.xlu0 %10970
        %v10972 = vsel %vm615, %v10956, 0.0
        %10973 = vadd.xlane.f32.xlu0 %v10972
        %v10974 = vpop.xlane.xlu0 %10973
        %v10975 = vsel %vm615, %v10957, 0.0
        %10976 = vadd.xlane.f32.xlu0 %v10975
        %v10977 = vpop.xlane.xlu0 %10976
        %v10978 = vsel %vm615, %v10958, 0.0
        %10979 = vadd.xlane.f32.xlu0 %v10978
        %v10980 = vpop.xlane.xlu0 %10979
        %v10981 = vsel %vm615, %v10959, 0.0
        %10982 = vadd.xlane.f32.xlu0 %v10981
        %v10983 = vpop.xlane.xlu0 %10982
        %v10984 = vmul.f32 %v10962, %v670
        %v10985 = vmul.f32 %v10965, %v670
        %v10986 = vmul.f32 %v10968, %v670
        %v10987 = vmul.f32 %v10971, %v670
        %v10988 = vmul.f32 %v10974, %v670
        %v10989 = vmul.f32 %v10977, %v670
        %v10990 = vmul.f32 %v10980, %v670
        %v10991 = vmul.f32 %v10983, %v670
        %v10992 = vsub.f32 %v10952, %v10984
        %v10993 = vsub.f32 %v10953, %v10985
        %v10994 = vsub.f32 %v10954, %v10986
        %v10995 = vsub.f32 %v10955, %v10987
        %v10996 = vsub.f32 %v10956, %v10988
        %v10997 = vsub.f32 %v10957, %v10989
        %v10998 = vsub.f32 %v10958, %v10990
        %v10999 = vsub.f32 %v10959, %v10991
        %v11000 = vmul.f32 %v10992, %v10992
        %v11001 = vmul.f32 %v10993, %v10993
        %v11002 = vmul.f32 %v10994, %v10994
        %v11003 = vmul.f32 %v10995, %v10995
        %v11004 = vmul.f32 %v10996, %v10996
        %v11005 = vmul.f32 %v10997, %v10997
        %v11006 = vmul.f32 %v10998, %v10998
        %v11007 = vmul.f32 %v10999, %v10999
        %v11008 = vsel %vm615, %v11000, 0.0
        %11009 = vadd.xlane.f32.xlu0 %v11008
        %v11010 = vpop.xlane.xlu0 %11009
        %v11011 = vsel %vm615, %v11001, 0.0
        %11012 = vadd.xlane.f32.xlu0 %v11011
        %v11013 = vpop.xlane.xlu0 %11012
        %v11014 = vsel %vm615, %v11002, 0.0
        %11015 = vadd.xlane.f32.xlu0 %v11014
        %v11016 = vpop.xlane.xlu0 %11015
        %v11017 = vsel %vm615, %v11003, 0.0
        %11018 = vadd.xlane.f32.xlu0 %v11017
        %v11019 = vpop.xlane.xlu0 %11018
        %v11020 = vsel %vm615, %v11004, 0.0
        %11021 = vadd.xlane.f32.xlu0 %v11020
        %v11022 = vpop.xlane.xlu0 %11021
        %v11023 = vsel %vm615, %v11005, 0.0
        %11024 = vadd.xlane.f32.xlu0 %v11023
        %v11025 = vpop.xlane.xlu0 %11024
        %v11026 = vsel %vm615, %v11006, 0.0
        %11027 = vadd.xlane.f32.xlu0 %v11026
        %v11028 = vpop.xlane.xlu0 %11027
        %v11029 = vsel %vm615, %v11007, 0.0
        %11030 = vadd.xlane.f32.xlu0 %v11029
        %v11031 = vpop.xlane.xlu0 %11030
        %v11032 = vmul.f32 %v11010, %v670
        %v11033 = vmul.f32 %v11013, %v670
        %v11034 = vmul.f32 %v11016, %v670
        %v11035 = vmul.f32 %v11019, %v670
        %v11036 = vmul.f32 %v11022, %v670
        %v11037 = vmul.f32 %v11025, %v670
        %v11038 = vmul.f32 %v11028, %v670
        %v11039 = vmul.f32 %v11031, %v670
        %v11040 = vadd.f32 %v11032, 1e-05
        %v11041 = vadd.f32 %v11033, 1e-05
        %v11042 = vadd.f32 %v11034, 1e-05
        %v11043 = vadd.f32 %v11035, 1e-05
        %v11044 = vadd.f32 %v11036, 1e-05
        %v11045 = vadd.f32 %v11037, 1e-05
        %v11046 = vadd.f32 %v11038, 1e-05
        %v11047 = vadd.f32 %v11039, 1e-05
        %v11048 = vrsqrt.pop %v11040
        %v11049 = vmul.f32 %v11048, %v11040
        %v11050 = vmul.f32 %v11049, %v11048
        %v11051 = vmul.f32 0.5, %v11050
        %v11052 = vsub.f32 1.5, %v11051
        %v11053 = vmul.f32 %v11048, %v11052
        %vm11054 = vweird.f32 %v11040
        %vm11055 = vweird.f32 %v11048
        %vm11056 = vmor %vm11054, %vm11055
        %v11057 = vsel %vm11056, %v11048, %v11053
        %v11058 = vrsqrt.pop %v11041
        %v11059 = vmul.f32 %v11058, %v11041
        %v11060 = vmul.f32 %v11059, %v11058
        %v11061 = vmul.f32 0.5, %v11060
        %v11062 = vsub.f32 1.5, %v11061
        %v11063 = vmul.f32 %v11058, %v11062
        %vm11064 = vweird.f32 %v11041
        %vm11065 = vweird.f32 %v11058
        %vm11066 = vmor %vm11064, %vm11065
        %v11067 = vsel %vm11066, %v11058, %v11063
        %v11068 = vrsqrt.pop %v11042
        %v11069 = vmul.f32 %v11068, %v11042
        %v11070 = vmul.f32 %v11069, %v11068
        %v11071 = vmul.f32 0.5, %v11070
        %v11072 = vsub.f32 1.5, %v11071
        %v11073 = vmul.f32 %v11068, %v11072
        %vm11074 = vweird.f32 %v11042
        %vm11075 = vweird.f32 %v11068
        %vm11076 = vmor %vm11074, %vm11075
        %v11077 = vsel %vm11076, %v11068, %v11073
        %v11078 = vrsqrt.pop %v11043
        %v11079 = vmul.f32 %v11078, %v11043
        %v11080 = vmul.f32 %v11079, %v11078
        %v11081 = vmul.f32 0.5, %v11080
        %v11082 = vsub.f32 1.5, %v11081
        %v11083 = vmul.f32 %v11078, %v11082
        %vm11084 = vweird.f32 %v11043
        %vm11085 = vweird.f32 %v11078
        %vm11086 = vmor %vm11084, %vm11085
        %v11087 = vsel %vm11086, %v11078, %v11083
        %v11088 = vrsqrt.pop %v11044
        %v11089 = vmul.f32 %v11088, %v11044
        %v11090 = vmul.f32 %v11089, %v11088
        %v11091 = vmul.f32 0.5, %v11090
        %v11092 = vsub.f32 1.5, %v11091
        %v11093 = vmul.f32 %v11088, %v11092
        %vm11094 = vweird.f32 %v11044
        %vm11095 = vweird.f32 %v11088
        %vm11096 = vmor %vm11094, %vm11095
        %v11097 = vsel %vm11096, %v11088, %v11093
        %v11098 = vrsqrt.pop %v11045
        %v11099 = vmul.f32 %v11098, %v11045
        %v11100 = vmul.f32 %v11099, %v11098
        %v11101 = vmul.f32 0.5, %v11100
        %v11102 = vsub.f32 1.5, %v11101
        %v11103 = vmul.f32 %v11098, %v11102
        %vm11104 = vweird.f32 %v11045
        %vm11105 = vweird.f32 %v11098
        %vm11106 = vmor %vm11104, %vm11105
        %v11107 = vsel %vm11106, %v11098, %v11103
        %v11108 = vrsqrt.pop %v11046
        %v11109 = vmul.f32 %v11108, %v11046
        %v11110 = vmul.f32 %v11109, %v11108
        %v11111 = vmul.f32 0.5, %v11110
        %v11112 = vsub.f32 1.5, %v11111
        %v11113 = vmul.f32 %v11108, %v11112
        %vm11114 = vweird.f32 %v11046
        %vm11115 = vweird.f32 %v11108
        %vm11116 = vmor %vm11114, %vm11115
        %v11117 = vsel %vm11116, %v11108, %v11113
        %v11118 = vrsqrt.pop %v11047
        %v11119 = vmul.f32 %v11118, %v11047
        %v11120 = vmul.f32 %v11119, %v11118
        %v11121 = vmul.f32 0.5, %v11120
        %v11122 = vsub.f32 1.5, %v11121
        %v11123 = vmul.f32 %v11118, %v11122
        %vm11124 = vweird.f32 %v11047
        %vm11125 = vweird.f32 %v11118
        %vm11126 = vmor %vm11124, %vm11125
        %v11127 = vsel %vm11126, %v11118, %v11123
        %v11128 = vmul.f32 %v10992, %v11057
        %v11129 = vmul.f32 %v10993, %v11067
        %v11130 = vmul.f32 %v10994, %v11077
        %v11131 = vmul.f32 %v10995, %v11087
        %v11132 = vmul.f32 %v10996, %v11097
        %v11133 = vmul.f32 %v10997, %v11107
        %v11134 = vmul.f32 %v10998, %v11117
        %v11135 = vmul.f32 %v10999, %v11127
        %v11136 = vperm.slane %v6198, 7
        %v11137 = vmul.f32 %v11128, %v11136
        %v11138 = vmul.f32 %v11129, %v11136
        %v11139 = vmul.f32 %v11130, %v11136
        %v11140 = vmul.f32 %v11131, %v11136
        %v11141 = vmul.f32 %v11132, %v11136
        %v11142 = vmul.f32 %v11133, %v11136
        %v11143 = vmul.f32 %v11134, %v11136
        %v11144 = vmul.f32 %v11135, %v11136
        %v11145 = vperm.slane %v6199, 0
        %v11146 = vadd.f32 %v11137, %v11145
        %v11147 = vadd.f32 %v11138, %v11145
        %v11148 = vadd.f32 %v11139, %v11145
        %v11149 = vadd.f32 %v11140, %v11145
        %v11150 = vadd.f32 %v11141, %v11145
        %v11151 = vadd.f32 %v11142, %v11145
        %v11152 = vadd.f32 %v11143, %v11145
        %v11153 = vadd.f32 %v11144, %v11145
        %v11162 = vrot.slane %v11147, 7
        %vm11163 = vcmask 1041409
        %v11164 = vsel %vm11163, %v11162, %v11146
        %v11165 = vrot.slane %v11148, 6
        %vm11166 = vcmask 1042434
        %v11167 = vsel %vm11166, %v11165, %v11164
        %v11168 = vrot.slane %v11149, 5
        %vm11169 = vcmask 1043459
        %v11170 = vsel %vm11169, %v11168, %v11167
        %v11171 = vrot.slane %v11150, 4
        %vm11172 = vcmask 1044484
        %v11173 = vsel %vm11172, %v11171, %v11170
        %v11174 = vrot.slane %v11151, 3
        %vm11175 = vcmask 1045509
        %v11176 = vsel %vm11175, %v11174, %v11173
        %v11177 = vrot.slane %v11152, 2
        %vm11178 = vcmask 1046534
        %v11179 = vsel %vm11178, %v11177, %v11176
        %v11180 = vrot.slane %v11153, 1
        %vm11181 = vcmask 1047559
        %v11182 = vsel %vm11181, %v11180, %v11179
        %11184 = vst.msk [vmem:[%s323] sm:$0xff] %vm615, %v11182
        %s11185 = sand.u32 %s225, 1
        %s11186 = scalar_lea.sflag [#allocation3], %s11185
        %s11187 = sand.u32 %s225, 1
        %s11188 = smul.addr %s11187, 8
        %s11189 = scalar_lea.vmem [#allocation2], %s11188
        // Predicated region
        $region57: #{_encoder_cls_forward.1} parent=55 // pred_check
          %p11190 = pneg %p235
        $region58: #{_encoder_cls_forward.1} parent=55 // pred_check_branch
          %11192 = sbr.rel (%p11190) target = $region60
        $region59: #{_encoder_cls_forward.1} parent=55 // pred_region
          %11194 = vsyncadd %s11186, 0
          %s11195 = smul.addr %s23, 8
          %s11196 = scalar_lea.hbm %s9, %s11195
          %s11198 = sshll.u32 %s11189, 4
          %s11199 = int_to_ptr.vmem [resolvable:$true] %s11198
          %s11200 = sshll.u32 %s11196, 4
          %s11201 = int_to_ptr.hbm [resolvable:$true] %s11200
          %11203 = dma.vmem_to_hbm [thread:$0]  %s11199, 128, %s11201, %s11186
        $region60: #{_encoder_cls_forward.1} parent=55 // pred_fallthru
          _
      $region56: #{_encoder_cls_forward.1} parent=5 // pred_fallthru
        _
      %p11204 = scmp.le.s32.totalorder 2, %s18
      // Predicated region
      $region61: #{_encoder_cls_forward.1} parent=5 // pred_check
        %p11205 = pneg %p11204
      $region62: #{_encoder_cls_forward.1} parent=5 // pred_check_branch
        %11207 = sbr.rel (%p11205) target = $region64
      $region63: #{_encoder_cls_forward.1} parent=5 // pred_region
        %s11208 = ssub.s32 %s18, 2
        // Predicated region
        $region65: #{_encoder_cls_forward.1} parent=63 // pred_check
          %p11209 = pneg %p241
        $region66: #{_encoder_cls_forward.1} parent=63 // pred_check_branch
          %11211 = sbr.rel (%p11209) target = $region68
        $region67: #{_encoder_cls_forward.1} parent=63 // pred_region
          %s11212 = sand.u32 %s226, 1
          %s11213 = scalar_lea.sflag [#allocation3], %s11212
          %s11214 = sand.u32 %s226, 1
          %s11215 = smul.addr %s11214, 8
          %s11216 = scalar_lea.vmem [#allocation2], %s11215
          %11218 = dma.done %s11213, 128
        $region68: #{_encoder_cls_forward.1} parent=63 // pred_fallthru
          _
      $region64: #{_encoder_cls_forward.1} parent=5 // pred_fallthru
        _
    $region6: #{_encoder_cls_forward.1} parent=1 // loop_footer
      %s22 = sadd.s32 1, %s18
    $region7: #{_encoder_cls_forward.1} parent=1 // loop_footer_branch
      %17 = sbr.rel target = $region3
    $region8: #{_encoder_cls_forward.1} parent=1 // loop_exit
      _
    %11219 = vsyncpa [#allocation3], 1
    %s11220 = scalar_lea.sflag [#allocation3], 1
    %11221 = vsyncpa %s11220, 1

</llo_original>
